<compile_context>
chip_gen: v5e
topology: v5e:2x2
jax: 0.10.0
libtpu: 0.0.40
codegen_flags: <defaults>
</compile_context>

<pallas_src>
import functools

import jax
import jax.numpy as jnp
from jax import lax
from jax.experimental import pallas as pl
from jax.experimental.pallas import tpu as pltpu


def _round_up(x, m):
    return ((x + m - 1) // m) * m


# --------------------------------------------------------------------------
# Pallas kernel: tiled matmul with fused bias / BatchNorm / activation
# --------------------------------------------------------------------------

def _conv_kernel(a_ref, w_ref, b_ref, o_ref, acc_ref, *, act, bn, inv_m):
    """grid = (num_m, num_k).  Accumulate a@w over the K axis into a VMEM
    f32 scratch; on the last K step apply the epilogue and store."""
    k = pl.program_id(1)

    @pl.when(k == 0)
    def _():
        acc_ref[...] = jnp.zeros_like(acc_ref)

    acc_ref[...] += jnp.dot(a_ref[...], w_ref[...],
                            preferred_element_type=jnp.float32)

    @pl.when(k == pl.num_programs(1) - 1)
    def _():
        acc = acc_ref[...]
        if bn:
            # BatchNorm2d, training-mode batch stats (biased var, eps=1e-5,
            # gamma=1, beta=0).  Padded rows of `acc` are exactly zero, so
            # dividing the column sums by the TRUE row count gives exact
            # statistics.  The conv bias cancels under BN and is skipped.
            mean = jnp.sum(acc, axis=0, keepdims=True) * inv_m
            ex2 = jnp.sum(acc * acc, axis=0, keepdims=True) * inv_m
            var = ex2 - mean * mean
            y = (acc - mean) * lax.rsqrt(var + 1e-5)
            y = jnp.where(y > 0, y, 0.2 * y)           # LeakyReLU(0.2)
        else:
            y = acc + b_ref[...]
            if act == "lrelu":
                y = jnp.where(y > 0, y, 0.2 * y)
            elif act == "sigmoid":
                y = 1.0 / (1.0 + jnp.exp(-y))
        o_ref[...] = y.astype(o_ref.dtype)


# --------------------------------------------------------------------------
# Layer wrapper
# --------------------------------------------------------------------------

def conv_layer(patches, w_packed, b_packed, *, act, bn, true_m, out_dtype):
    """patches:(M,K) @ prepacked w:(Kp,N) bf16 + bias, fused epilogue."""
    M, K = patches.shape
    Kp, N = w_packed.shape
    Mp = max(_round_up(M, 8), 8)

    a = patches
    if (Mp, Kp) != (M, K):
        a = jnp.pad(a, ((0, Mp - M), (0, Kp - K)))
    a = a.astype(jnp.bfloat16)

    tk = Kp if Kp <= 1024 else 1024          # K-tile (keeps VMEM small)
    num_k = Kp // tk
    # BN needs the whole M extent in one block (batch statistics); otherwise
    # tile M so v7x can shard across its two TensorCores.
    tm = Mp if (bn or Mp % 256 != 0) else 256
    num_m = Mp // tm

    kernel = functools.partial(_conv_kernel, act=act, bn=bn, inv_m=1.0 / true_m)
    cost = pl.CostEstimate(
        flops=2 * Mp * Kp * N,
        transcendentals=Mp * N if act == "sigmoid" else 0,
        bytes_accessed=(a.size * 2 + w_packed.size * 2 + b_packed.size * 4
                        + Mp * N * jnp.dtype(out_dtype).itemsize),
    )

    out = pl.pallas_call(
        kernel,
        out_shape=jax.ShapeDtypeStruct((Mp, N), out_dtype),
        grid=(num_m, num_k),
        in_specs=[
            pl.BlockSpec((tm, tk), lambda m, k: (m, k)),
            pl.BlockSpec((tk, N), lambda m, k: (k, 0)),
            pl.BlockSpec((1, N), lambda m, k: (0, 0)),
        ],
        out_specs=pl.BlockSpec((tm, N), lambda m, k: (m, 0)),
        scratch_shapes=[pltpu.VMEM((tm, N), jnp.float32)],
        compiler_params=pltpu.CompilerParams(
            dimension_semantics=("parallel", "arbitrary")),
        cost_estimate=cost,
    )(a, w_packed, b_packed)
    return out[:M]


def im2col_nhwc(x, kh, kw, stride, pad):
    """x:(N,H,W,C) NHWC -> patches (N*Ho*Wo, kh*kw*C); C stays on the lane
    axis, column order (kh, kw, C) matches the prepacked weights."""
    if pad > 0:
        x = jnp.pad(x, ((0, 0), (pad, pad), (pad, pad), (0, 0)))
    n, H, W, C = x.shape
    Ho = (H - kh) // stride + 1
    Wo = (W - kw) // stride + 1
    cols = [x[:, i:i + stride * Ho:stride, j:j + stride * Wo:stride, :]
            for i in range(kh) for j in range(kw)]
    patches = jnp.concatenate(cols, axis=-1)            # (n, Ho, Wo, kh*kw*C)
    return patches.reshape(n * Ho * Wo, kh * kw * C), Ho, Wo


# --------------------------------------------------------------------------
# Model
# --------------------------------------------------------------------------

# (Cin, Cout, k, stride, pad, bn, activation)
_LAYER_CFG = [
    (4,   64,  4, 2, 1, False, "lrelu"),
    (64,  128, 4, 2, 1, True,  "lrelu"),
    (128, 256, 4, 2, 1, True,  "lrelu"),
    (256, 512, 4, 2, 1, True,  "lrelu"),
    (512, 1,   2, 1, 0, False, "sigmoid"),
]


def init_params(key):
    """Deterministic DCGAN-style init: weights ~ N(0, 0.02), bias = 0."""
    params = []
    for cin, cout, k, *_ in _LAYER_CFG:
        key, wk = jax.random.split(key)
        w = 0.02 * jax.random.normal(wk, (cout, cin, k, k), jnp.float32)
        b = jnp.zeros((cout,), jnp.float32)
        params.append((w, b))
    return params


def prepack_params(params):
    """One-time prepack: (Cout,Cin,kh,kw) -> (Kp,Cout) bf16 with row order
    (kh,kw,Cin) matching the NHWC im2col, K padded to the K-tile; bias (1,Cout)."""
    packed = []
    for (w, b), (cin, cout, k, *_rest) in zip(params, _LAYER_CFG):
        wm = jnp.transpose(w, (2, 3, 1, 0)).reshape(k * k * cin, cout)
        K = wm.shape[0]
        tk = K if K <= 1024 else 1024
        Kp = _round_up(K, tk)
        if Kp != K:
            wm = jnp.pad(wm, ((0, Kp - K), (0, 0)))
        packed.append((wm.astype(jnp.bfloat16),
                       b.reshape(1, cout).astype(jnp.float32)))
    return packed


def dcgan_discriminator(packed_params, x_nchw):
    # Single layout conversion at the model boundary; activations stay NHWC
    # (the matmul output already is NHWC-flattened) and bf16 between layers.
    out = jnp.transpose(x_nchw, (0, 2, 3, 1)).astype(jnp.bfloat16)
    n = out.shape[0]
    for (w_p, b_p), (cin, cout, k, s, p, bn, act) in zip(packed_params,
                                                         _LAYER_CFG):
        patches, ho, wo = im2col_nhwc(out, k, k, s, p)
        out_dtype = jnp.float32 if act == "sigmoid" else jnp.bfloat16
        y = conv_layer(patches, w_p, b_p, act=act, bn=bn,
                       true_m=patches.shape[0], out_dtype=out_dtype)
        out = y.reshape(n, ho, wo, cout)
    return jnp.transpose(out, (0, 3, 1, 2))              # (N, 1, 1, 1)


if __name__ == "__main__":
    key = jax.random.PRNGKey(0)
    pkey, xkey = jax.random.split(key)
    params = init_params(pkey)
    packed = prepack_params(params)                      # one-time prepack

    # input_shape=[32, 32, 4] -> NCHW input (batch=2, C=4, H=32, W=32)
    x = jax.random.normal(xkey, (2, 4, 32, 32), jnp.float32)

    fwd = jax.jit(dcgan_discriminator)
    out = jax.block_until_ready(fwd(packed, x))

    assert out.shape == (2, 1, 1, 1), out.shape
    assert bool(jnp.all(jnp.isfinite(out)))
    assert bool(jnp.all((out >= 0.0) & (out <= 1.0)))    # sigmoid output
    print("KERNEL_OK")
</pallas_src>

<mosaic_0001>
module attributes {stable_mosaic.version = 11 : i64} {
  func.func @_conv_kernel(%arg0: i32, %arg1: i32, %arg2: memref<256x64xbf16, #tpu.memory_space<vmem>>, %arg3: memref<64x64xbf16, #tpu.memory_space<vmem>>, %arg4: memref<1x64xf32, #tpu.memory_space<vmem>>, %arg5: memref<256x64xbf16, #tpu.memory_space<vmem>>, %arg6: memref<256x64xf32, #tpu.memory_space<vmem>>) attributes {dimension_semantics = [#tpu.dimension_semantics<parallel>, #tpu.dimension_semantics<arbitrary>], iteration_bounds = array<i64: 2, 1>, scalar_prefetch = 0 : i64, scratch_operands = 1 : i64, tpu.core_type = #tpu.core_type<tc>, window_params = [{transform_indices = @transform_0, window_bounds = array<i64: 256, 64>}, {transform_indices = @transform_1, window_bounds = array<i64: 64, 64>}, {pipeline_mode = #tpu.pipeline_mode<synchronous>, transform_indices = @transform_2, window_bounds = array<i64: 1, 64>}, {transform_indices = @transform_3, window_bounds = array<i64: 256, 64>}]} {
    %c0_i32 = arith.constant 0 : i32
    %0 = arith.cmpi eq, %arg1, %c0_i32 : i32
    %1 = arith.extui %0 : i1 to i32
    %c0_i32_0 = arith.constant 0 : i32
    %2 = arith.cmpi ne, %1, %c0_i32_0 : i32
    scf.if %2 {
      %cst_10 = arith.constant 0.000000e+00 : f32
      %12 = vector.broadcast %cst_10 : f32 to vector<256x64xf32>
      %c0_11 = arith.constant 0 : index
      %c0_12 = arith.constant 0 : index
      %13 = vector.load %arg6[%c0_11, %c0_12] : memref<256x64xf32, #tpu.memory_space<vmem>>, vector<256x64xf32>
      tpu.vector_store %arg6[%c0_11, %c0_12], %12 {strides = array<i32>} : memref<256x64xf32, #tpu.memory_space<vmem>>, vector<256x64xf32>,
    } else {
    }
    %c0 = arith.constant 0 : index
    %c0_1 = arith.constant 0 : index
    %3 = vector.load %arg6[%c0, %c0_1] : memref<256x64xf32, #tpu.memory_space<vmem>>, vector<256x64xf32>
    %c0_2 = arith.constant 0 : index
    %c0_3 = arith.constant 0 : index
    %4 = vector.load %arg2[%c0_2, %c0_3] : memref<256x64xbf16, #tpu.memory_space<vmem>>, vector<256x64xbf16>
    %c0_4 = arith.constant 0 : index
    %c0_5 = arith.constant 0 : index
    %5 = vector.load %arg3[%c0_4, %c0_5] : memref<64x64xbf16, #tpu.memory_space<vmem>>, vector<64x64xbf16>
    %cst = arith.constant dense<0.000000e+00> : vector<256x64xf32>
    %6 = tpu.matmul %4, %5, %cst {dimension_numbers = #tpu.dot_dimension_numbers<[1], [0], [0], [1], [0, 0, 1, 1], [], []>} : vector<256x64xbf16>, vector<64x64xbf16>, vector<256x64xf32> -> vector<256x64xf32>
    %7 = arith.addf %3, %6 : vector<256x64xf32>
    %c0_6 = arith.constant 0 : index
    %c0_7 = arith.constant 0 : index
    %8 = vector.load %arg6[%c0_6, %c0_7] : memref<256x64xf32, #tpu.memory_space<vmem>>, vector<256x64xf32>
    tpu.vector_store %arg6[%c0_6, %c0_7], %7 {strides = array<i32>} : memref<256x64xf32, #tpu.memory_space<vmem>>, vector<256x64xf32>,
    %c0_i32_8 = arith.constant 0 : i32
    %9 = arith.cmpi eq, %arg1, %c0_i32_8 : i32
    %10 = arith.extui %9 : i1 to i32
    %c0_i32_9 = arith.constant 0 : i32
    %11 = arith.cmpi ne, %10, %c0_i32_9 : i32
    scf.if %11 {
      %c0_10 = arith.constant 0 : index
      %c0_11 = arith.constant 0 : index
      %12 = vector.load %arg6[%c0_10, %c0_11] : memref<256x64xf32, #tpu.memory_space<vmem>>, vector<256x64xf32>
      %c0_12 = arith.constant 0 : index
      %c0_13 = arith.constant 0 : index
      %13 = vector.load %arg4[%c0_12, %c0_13] : memref<1x64xf32, #tpu.memory_space<vmem>>, vector<1x64xf32>
      %14 = vector.broadcast %13 : vector<1x64xf32> to vector<256x64xf32>
      %15 = arith.addf %12, %14 : vector<256x64xf32>
      %cst_14 = arith.constant 0.000000e+00 : f32
      %16 = vector.broadcast %cst_14 : f32 to vector<256x64xf32>
      %17 = arith.cmpf ogt, %15, %16 : vector<256x64xf32>
      %cst_15 = arith.constant 2.000000e-01 : f32
      %18 = vector.broadcast %cst_15 : f32 to vector<256x64xf32>
      %19 = arith.mulf %18, %15 : vector<256x64xf32>
      %20 = arith.select %17, %15, %19 : vector<256x64xi1>, vector<256x64xf32>
      %21 = arith.truncf %20 : vector<256x64xf32> to vector<256x64xbf16>
      %c0_16 = arith.constant 0 : index
      %c0_17 = arith.constant 0 : index
      %22 = vector.load %arg5[%c0_16, %c0_17] : memref<256x64xbf16, #tpu.memory_space<vmem>>, vector<256x64xbf16>
      tpu.vector_store %arg5[%c0_16, %c0_17], %21 {strides = array<i32>} : memref<256x64xbf16, #tpu.memory_space<vmem>>, vector<256x64xbf16>,
    } else {
    }
    return
  }
  func.func @transform_0(%arg0: i32, %arg1: i32) -> (i32, i32) {
    %c0_i32 = arith.constant 0 : i32
    return %arg0, %arg1 : i32, i32
  }
  func.func @transform_1(%arg0: i32, %arg1: i32) -> (i32, i32) {
    %c0_i32 = arith.constant 0 : i32
    %c0_i32_0 = arith.constant 0 : i32
    return %arg1, %c0_i32 : i32, i32
  }
  func.func @transform_2(%arg0: i32, %arg1: i32) -> (i32, i32) {
    %c0_i32 = arith.constant 0 : i32
    %c0_i32_0 = arith.constant 0 : i32
    %c0_i32_1 = arith.constant 0 : i32
    return %c0_i32, %c0_i32_0 : i32, i32
  }
  func.func @transform_3(%arg0: i32, %arg1: i32) -> (i32, i32) {
    %c0_i32 = arith.constant 0 : i32
    %c0_i32_0 = arith.constant 0 : i32
    return %arg0, %c0_i32 : i32, i32
  }
}

module attributes {stable_mosaic.version = 11 : i64} {
  func.func @_conv_kernel(%arg0: i32, %arg1: i32, %arg2: memref<128x1024xbf16, #tpu.memory_space<vmem>>, %arg3: memref<1024x128xbf16, #tpu.memory_space<vmem>>, %arg4: memref<1x128xf32, #tpu.memory_space<vmem>>, %arg5: memref<128x128xbf16, #tpu.memory_space<vmem>>, %arg6: memref<128x128xf32, #tpu.memory_space<vmem>>) attributes {dimension_semantics = [#tpu.dimension_semantics<parallel>, #tpu.dimension_semantics<arbitrary>], iteration_bounds = array<i64: 1, 1>, scalar_prefetch = 0 : i64, scratch_operands = 1 : i64, tpu.core_type = #tpu.core_type<tc>, window_params = [{transform_indices = @transform_0, window_bounds = array<i64: 128, 1024>}, {transform_indices = @transform_1, window_bounds = array<i64: 1024, 128>}, {pipeline_mode = #tpu.pipeline_mode<synchronous>, transform_indices = @transform_2, window_bounds = array<i64: 1, 128>}, {transform_indices = @transform_3, window_bounds = array<i64: 128, 128>}]} {
    %c0_i32 = arith.constant 0 : i32
    %0 = arith.cmpi eq, %arg1, %c0_i32 : i32
    %1 = arith.extui %0 : i1 to i32
    %c0_i32_0 = arith.constant 0 : i32
    %2 = arith.cmpi ne, %1, %c0_i32_0 : i32
    scf.if %2 {
      %cst_10 = arith.constant 0.000000e+00 : f32
      %12 = vector.broadcast %cst_10 : f32 to vector<128x128xf32>
      %c0_11 = arith.constant 0 : index
      %c0_12 = arith.constant 0 : index
      %13 = vector.load %arg6[%c0_11, %c0_12] : memref<128x128xf32, #tpu.memory_space<vmem>>, vector<128x128xf32>
      tpu.vector_store %arg6[%c0_11, %c0_12], %12 {strides = array<i32>} : memref<128x128xf32, #tpu.memory_space<vmem>>, vector<128x128xf32>,
    } else {
    }
    %c0 = arith.constant 0 : index
    %c0_1 = arith.constant 0 : index
    %3 = vector.load %arg6[%c0, %c0_1] : memref<128x128xf32, #tpu.memory_space<vmem>>, vector<128x128xf32>
    %c0_2 = arith.constant 0 : index
    %c0_3 = arith.constant 0 : index
    %4 = vector.load %arg2[%c0_2, %c0_3] : memref<128x1024xbf16, #tpu.memory_space<vmem>>, vector<128x1024xbf16>
    %c0_4 = arith.constant 0 : index
    %c0_5 = arith.constant 0 : index
    %5 = vector.load %arg3[%c0_4, %c0_5] : memref<1024x128xbf16, #tpu.memory_space<vmem>>, vector<1024x128xbf16>
    %cst = arith.constant dense<0.000000e+00> : vector<128x128xf32>
    %6 = tpu.matmul %4, %5, %cst {dimension_numbers = #tpu.dot_dimension_numbers<[1], [0], [0], [1], [0, 0, 1, 1], [], []>} : vector<128x1024xbf16>, vector<1024x128xbf16>, vector<128x128xf32> -> vector<128x128xf32>
    %7 = arith.addf %3, %6 : vector<128x128xf32>
    %c0_6 = arith.constant 0 : index
    %c0_7 = arith.constant 0 : index
    %8 = vector.load %arg6[%c0_6, %c0_7] : memref<128x128xf32, #tpu.memory_space<vmem>>, vector<128x128xf32>
    tpu.vector_store %arg6[%c0_6, %c0_7], %7 {strides = array<i32>} : memref<128x128xf32, #tpu.memory_space<vmem>>, vector<128x128xf32>,
    %c0_i32_8 = arith.constant 0 : i32
    %9 = arith.cmpi eq, %arg1, %c0_i32_8 : i32
    %10 = arith.extui %9 : i1 to i32
    %c0_i32_9 = arith.constant 0 : i32
    %11 = arith.cmpi ne, %10, %c0_i32_9 : i32
    scf.if %11 {
      %c0_10 = arith.constant 0 : index
      %c0_11 = arith.constant 0 : index
      %12 = vector.load %arg6[%c0_10, %c0_11] : memref<128x128xf32, #tpu.memory_space<vmem>>, vector<128x128xf32>
      %cst_12 = arith.constant dense<0.000000e+00> : vector<128xf32>
      %13 = vector.multi_reduction <add>, %12, %cst_12 [0] : vector<128x128xf32> to vector<128xf32>
      %14 = vector.shape_cast %13 : vector<128xf32> to vector<1x128xf32>
      %cst_13 = arith.constant 7.812500e-03 : f32
      %15 = vector.broadcast %cst_13 : f32 to vector<1x128xf32>
      %16 = arith.mulf %14, %15 : vector<1x128xf32>
      %17 = arith.mulf %12, %12 : vector<128x128xf32>
      %cst_14 = arith.constant dense<0.000000e+00> : vector<128xf32>
      %18 = vector.multi_reduction <add>, %17, %cst_14 [0] : vector<128x128xf32> to vector<128xf32>
      %19 = vector.shape_cast %18 : vector<128xf32> to vector<1x128xf32>
      %cst_15 = arith.constant 7.812500e-03 : f32
      %20 = vector.broadcast %cst_15 : f32 to vector<1x128xf32>
      %21 = arith.mulf %19, %20 : vector<1x128xf32>
      %22 = arith.mulf %16, %16 : vector<1x128xf32>
      %23 = arith.subf %21, %22 : vector<1x128xf32>
      %24 = vector.broadcast %16 : vector<1x128xf32> to vector<128x128xf32>
      %25 = arith.subf %12, %24 : vector<128x128xf32>
      %cst_16 = arith.constant 9.99999974E-6 : f32
      %26 = vector.broadcast %cst_16 : f32 to vector<1x128xf32>
      %27 = arith.addf %23, %26 : vector<1x128xf32>
      %28 = math.rsqrt %27 : vector<1x128xf32>
      %29 = vector.broadcast %28 : vector<1x128xf32> to vector<128x128xf32>
      %30 = arith.mulf %25, %29 : vector<128x128xf32>
      %cst_17 = arith.constant 0.000000e+00 : f32
      %31 = vector.broadcast %cst_17 : f32 to vector<128x128xf32>
      %32 = arith.cmpf ogt, %30, %31 : vector<128x128xf32>
      %cst_18 = arith.constant 2.000000e-01 : f32
      %33 = vector.broadcast %cst_18 : f32 to vector<128x128xf32>
      %34 = arith.mulf %33, %30 : vector<128x128xf32>
      %35 = arith.select %32, %30, %34 : vector<128x128xi1>, vector<128x128xf32>
      %36 = arith.truncf %35 : vector<128x128xf32> to vector<128x128xbf16>
      %c0_19 = arith.constant 0 : index
      %c0_20 = arith.constant 0 : index
      %37 = vector.load %arg5[%c0_19, %c0_20] : memref<128x128xbf16, #tpu.memory_space<vmem>>, vector<128x128xbf16>
      tpu.vector_store %arg5[%c0_19, %c0_20], %36 {strides = array<i32>} : memref<128x128xbf16, #tpu.memory_space<vmem>>, vector<128x128xbf16>,
    } else {
    }
    return
  }
  func.func @transform_0(%arg0: i32, %arg1: i32) -> (i32, i32) {
    %c0_i32 = arith.constant 0 : i32
    return %arg0, %arg1 : i32, i32
  }
  func.func @transform_1(%arg0: i32, %arg1: i32) -> (i32, i32) {
    %c0_i32 = arith.constant 0 : i32
    %c0_i32_0 = arith.constant 0 : i32
    return %arg1, %c0_i32 : i32, i32
  }
  func.func @transform_2(%arg0: i32, %arg1: i32) -> (i32, i32) {
    %c0_i32 = arith.constant 0 : i32
    %c0_i32_0 = arith.constant 0 : i32
    %c0_i32_1 = arith.constant 0 : i32
    return %c0_i32, %c0_i32_0 : i32, i32
  }
  func.func @transform_3(%arg0: i32, %arg1: i32) -> (i32, i32) {
    %c0_i32 = arith.constant 0 : i32
    %c0_i32_0 = arith.constant 0 : i32
    return %arg0, %c0_i32 : i32, i32
  }
}

module attributes {stable_mosaic.version = 11 : i64} {
  func.func @_conv_kernel(%arg0: i32, %arg1: i32, %arg2: memref<32x1024xbf16, #tpu.memory_space<vmem>>, %arg3: memref<1024x256xbf16, #tpu.memory_space<vmem>>, %arg4: memref<1x256xf32, #tpu.memory_space<vmem>>, %arg5: memref<32x256xbf16, #tpu.memory_space<vmem>>, %arg6: memref<32x256xf32, #tpu.memory_space<vmem>>) attributes {dimension_semantics = [#tpu.dimension_semantics<parallel>, #tpu.dimension_semantics<arbitrary>], iteration_bounds = array<i64: 1, 2>, scalar_prefetch = 0 : i64, scratch_operands = 1 : i64, tpu.core_type = #tpu.core_type<tc>, window_params = [{transform_indices = @transform_0, window_bounds = array<i64: 32, 1024>}, {transform_indices = @transform_1, window_bounds = array<i64: 1024, 256>}, {pipeline_mode = #tpu.pipeline_mode<synchronous>, transform_indices = @transform_2, window_bounds = array<i64: 1, 256>}, {transform_indices = @transform_3, window_bounds = array<i64: 32, 256>}]} {
    %c0_i32 = arith.constant 0 : i32
    %0 = arith.cmpi eq, %arg1, %c0_i32 : i32
    %1 = arith.extui %0 : i1 to i32
    %c0_i32_0 = arith.constant 0 : i32
    %2 = arith.cmpi ne, %1, %c0_i32_0 : i32
    scf.if %2 {
      %cst_9 = arith.constant 0.000000e+00 : f32
      %12 = vector.broadcast %cst_9 : f32 to vector<32x256xf32>
      %c0_10 = arith.constant 0 : index
      %c0_11 = arith.constant 0 : index
      %13 = vector.load %arg6[%c0_10, %c0_11] : memref<32x256xf32, #tpu.memory_space<vmem>>, vector<32x256xf32>
      tpu.vector_store %arg6[%c0_10, %c0_11], %12 {strides = array<i32>} : memref<32x256xf32, #tpu.memory_space<vmem>>, vector<32x256xf32>,
    } else {
    }
    %c0 = arith.constant 0 : index
    %c0_1 = arith.constant 0 : index
    %3 = vector.load %arg6[%c0, %c0_1] : memref<32x256xf32, #tpu.memory_space<vmem>>, vector<32x256xf32>
    %c0_2 = arith.constant 0 : index
    %c0_3 = arith.constant 0 : index
    %4 = vector.load %arg2[%c0_2, %c0_3] : memref<32x1024xbf16, #tpu.memory_space<vmem>>, vector<32x1024xbf16>
    %c0_4 = arith.constant 0 : index
    %c0_5 = arith.constant 0 : index
    %5 = vector.load %arg3[%c0_4, %c0_5] : memref<1024x256xbf16, #tpu.memory_space<vmem>>, vector<1024x256xbf16>
    %cst = arith.constant dense<0.000000e+00> : vector<32x256xf32>
    %6 = tpu.matmul %4, %5, %cst {dimension_numbers = #tpu.dot_dimension_numbers<[1], [0], [0], [1], [0, 0, 1, 1], [], []>} : vector<32x1024xbf16>, vector<1024x256xbf16>, vector<32x256xf32> -> vector<32x256xf32>
    %7 = arith.addf %3, %6 : vector<32x256xf32>
    %c0_6 = arith.constant 0 : index
    %c0_7 = arith.constant 0 : index
    %8 = vector.load %arg6[%c0_6, %c0_7] : memref<32x256xf32, #tpu.memory_space<vmem>>, vector<32x256xf32>
    tpu.vector_store %arg6[%c0_6, %c0_7], %7 {strides = array<i32>} : memref<32x256xf32, #tpu.memory_space<vmem>>, vector<32x256xf32>,
    %c1_i32 = arith.constant 1 : i32
    %9 = arith.cmpi eq, %arg1, %c1_i32 : i32
    %10 = arith.extui %9 : i1 to i32
    %c0_i32_8 = arith.constant 0 : i32
    %11 = arith.cmpi ne, %10, %c0_i32_8 : i32
    scf.if %11 {
      %c0_9 = arith.constant 0 : index
      %c0_10 = arith.constant 0 : index
      %12 = vector.load %arg6[%c0_9, %c0_10] : memref<32x256xf32, #tpu.memory_space<vmem>>, vector<32x256xf32>
      %cst_11 = arith.constant dense<0.000000e+00> : vector<256xf32>
      %13 = vector.multi_reduction <add>, %12, %cst_11 [0] : vector<32x256xf32> to vector<256xf32>
      %14 = vector.shape_cast %13 : vector<256xf32> to vector<1x256xf32>
      %cst_12 = arith.constant 3.125000e-02 : f32
      %15 = vector.broadcast %cst_12 : f32 to vector<1x256xf32>
      %16 = arith.mulf %14, %15 : vector<1x256xf32>
      %17 = arith.mulf %12, %12 : vector<32x256xf32>
      %cst_13 = arith.constant dense<0.000000e+00> : vector<256xf32>
      %18 = vector.multi_reduction <add>, %17, %cst_13 [0] : vector<32x256xf32> to vector<256xf32>
      %19 = vector.shape_cast %18 : vector<256xf32> to vector<1x256xf32>
      %cst_14 = arith.constant 3.125000e-02 : f32
      %20 = vector.broadcast %cst_14 : f32 to vector<1x256xf32>
      %21 = arith.mulf %19, %20 : vector<1x256xf32>
      %22 = arith.mulf %16, %16 : vector<1x256xf32>
      %23 = arith.subf %21, %22 : vector<1x256xf32>
      %24 = vector.broadcast %16 : vector<1x256xf32> to vector<32x256xf32>
      %25 = arith.subf %12, %24 : vector<32x256xf32>
      %cst_15 = arith.constant 9.99999974E-6 : f32
      %26 = vector.broadcast %cst_15 : f32 to vector<1x256xf32>
      %27 = arith.addf %23, %26 : vector<1x256xf32>
      %28 = math.rsqrt %27 : vector<1x256xf32>
      %29 = vector.broadcast %28 : vector<1x256xf32> to vector<32x256xf32>
      %30 = arith.mulf %25, %29 : vector<32x256xf32>
      %cst_16 = arith.constant 0.000000e+00 : f32
      %31 = vector.broadcast %cst_16 : f32 to vector<32x256xf32>
      %32 = arith.cmpf ogt, %30, %31 : vector<32x256xf32>
      %cst_17 = arith.constant 2.000000e-01 : f32
      %33 = vector.broadcast %cst_17 : f32 to vector<32x256xf32>
      %34 = arith.mulf %33, %30 : vector<32x256xf32>
      %35 = arith.select %32, %30, %34 : vector<32x256xi1>, vector<32x256xf32>
      %36 = arith.truncf %35 : vector<32x256xf32> to vector<32x256xbf16>
      %c0_18 = arith.constant 0 : index
      %c0_19 = arith.constant 0 : index
      %37 = vector.load %arg5[%c0_18, %c0_19] : memref<32x256xbf16, #tpu.memory_space<vmem>>, vector<32x256xbf16>
      tpu.vector_store %arg5[%c0_18, %c0_19], %36 {strides = array<i32>} : memref<32x256xbf16, #tpu.memory_space<vmem>>, vector<32x256xbf16>,
    } else {
    }
    return
  }
  func.func @transform_0(%arg0: i32, %arg1: i32) -> (i32, i32) {
    %c0_i32 = arith.constant 0 : i32
    return %arg0, %arg1 : i32, i32
  }
  func.func @transform_1(%arg0: i32, %arg1: i32) -> (i32, i32) {
    %c0_i32 = arith.constant 0 : i32
    %c0_i32_0 = arith.constant 0 : i32
    return %arg1, %c0_i32 : i32, i32
  }
  func.func @transform_2(%arg0: i32, %arg1: i32) -> (i32, i32) {
    %c0_i32 = arith.constant 0 : i32
    %c0_i32_0 = arith.constant 0 : i32
    %c0_i32_1 = arith.constant 0 : i32
    return %c0_i32, %c0_i32_0 : i32, i32
  }
  func.func @transform_3(%arg0: i32, %arg1: i32) -> (i32, i32) {
    %c0_i32 = arith.constant 0 : i32
    %c0_i32_0 = arith.constant 0 : i32
    return %arg0, %c0_i32 : i32, i32
  }
}

module attributes {stable_mosaic.version = 11 : i64} {
  func.func @_conv_kernel(%arg0: i32, %arg1: i32, %arg2: memref<8x1024xbf16, #tpu.memory_space<vmem>>, %arg3: memref<1024x512xbf16, #tpu.memory_space<vmem>>, %arg4: memref<1x512xf32, #tpu.memory_space<vmem>>, %arg5: memref<8x512xbf16, #tpu.memory_space<vmem>>, %arg6: memref<8x512xf32, #tpu.memory_space<vmem>>) attributes {dimension_semantics = [#tpu.dimension_semantics<parallel>, #tpu.dimension_semantics<arbitrary>], iteration_bounds = array<i64: 1, 4>, scalar_prefetch = 0 : i64, scratch_operands = 1 : i64, tpu.core_type = #tpu.core_type<tc>, window_params = [{transform_indices = @transform_0, window_bounds = array<i64: 8, 1024>}, {transform_indices = @transform_1, window_bounds = array<i64: 1024, 512>}, {pipeline_mode = #tpu.pipeline_mode<synchronous>, transform_indices = @transform_2, window_bounds = array<i64: 1, 512>}, {transform_indices = @transform_3, window_bounds = array<i64: 8, 512>}]} {
    %c0_i32 = arith.constant 0 : i32
    %0 = arith.cmpi eq, %arg1, %c0_i32 : i32
    %1 = arith.extui %0 : i1 to i32
    %c0_i32_0 = arith.constant 0 : i32
    %2 = arith.cmpi ne, %1, %c0_i32_0 : i32
    scf.if %2 {
      %cst_9 = arith.constant 0.000000e+00 : f32
      %12 = vector.broadcast %cst_9 : f32 to vector<8x512xf32>
      %c0_10 = arith.constant 0 : index
      %c0_11 = arith.constant 0 : index
      %13 = vector.load %arg6[%c0_10, %c0_11] : memref<8x512xf32, #tpu.memory_space<vmem>>, vector<8x512xf32>
      tpu.vector_store %arg6[%c0_10, %c0_11], %12 {strides = array<i32>} : memref<8x512xf32, #tpu.memory_space<vmem>>, vector<8x512xf32>,
    } else {
    }
    %c0 = arith.constant 0 : index
    %c0_1 = arith.constant 0 : index
    %3 = vector.load %arg6[%c0, %c0_1] : memref<8x512xf32, #tpu.memory_space<vmem>>, vector<8x512xf32>
    %c0_2 = arith.constant 0 : index
    %c0_3 = arith.constant 0 : index
    %4 = vector.load %arg2[%c0_2, %c0_3] : memref<8x1024xbf16, #tpu.memory_space<vmem>>, vector<8x1024xbf16>
    %c0_4 = arith.constant 0 : index
    %c0_5 = arith.constant 0 : index
    %5 = vector.load %arg3[%c0_4, %c0_5] : memref<1024x512xbf16, #tpu.memory_space<vmem>>, vector<1024x512xbf16>
    %cst = arith.constant dense<0.000000e+00> : vector<8x512xf32>
    %6 = tpu.matmul %4, %5, %cst {dimension_numbers = #tpu.dot_dimension_numbers<[1], [0], [0], [1], [0, 0, 1, 1], [], []>} : vector<8x1024xbf16>, vector<1024x512xbf16>, vector<8x512xf32> -> vector<8x512xf32>
    %7 = arith.addf %3, %6 : vector<8x512xf32>
    %c0_6 = arith.constant 0 : index
    %c0_7 = arith.constant 0 : index
    %8 = vector.load %arg6[%c0_6, %c0_7] : memref<8x512xf32, #tpu.memory_space<vmem>>, vector<8x512xf32>
    tpu.vector_store %arg6[%c0_6, %c0_7], %7 {strides = array<i32>} : memref<8x512xf32, #tpu.memory_space<vmem>>, vector<8x512xf32>,
    %c3_i32 = arith.constant 3 : i32
    %9 = arith.cmpi eq, %arg1, %c3_i32 : i32
    %10 = arith.extui %9 : i1 to i32
    %c0_i32_8 = arith.constant 0 : i32
    %11 = arith.cmpi ne, %10, %c0_i32_8 : i32
    scf.if %11 {
      %c0_9 = arith.constant 0 : index
      %c0_10 = arith.constant 0 : index
      %12 = vector.load %arg6[%c0_9, %c0_10] : memref<8x512xf32, #tpu.memory_space<vmem>>, vector<8x512xf32>
      %cst_11 = arith.constant dense<0.000000e+00> : vector<512xf32>
      %13 = vector.multi_reduction <add>, %12, %cst_11 [0] : vector<8x512xf32> to vector<512xf32>
      %14 = vector.shape_cast %13 : vector<512xf32> to vector<1x512xf32>
      %cst_12 = arith.constant 1.250000e-01 : f32
      %15 = vector.broadcast %cst_12 : f32 to vector<1x512xf32>
      %16 = arith.mulf %14, %15 : vector<1x512xf32>
      %17 = arith.mulf %12, %12 : vector<8x512xf32>
      %cst_13 = arith.constant dense<0.000000e+00> : vector<512xf32>
      %18 = vector.multi_reduction <add>, %17, %cst_13 [0] : vector<8x512xf32> to vector<512xf32>
      %19 = vector.shape_cast %18 : vector<512xf32> to vector<1x512xf32>
      %cst_14 = arith.constant 1.250000e-01 : f32
      %20 = vector.broadcast %cst_14 : f32 to vector<1x512xf32>
      %21 = arith.mulf %19, %20 : vector<1x512xf32>
      %22 = arith.mulf %16, %16 : vector<1x512xf32>
      %23 = arith.subf %21, %22 : vector<1x512xf32>
      %24 = vector.broadcast %16 : vector<1x512xf32> to vector<8x512xf32>
      %25 = arith.subf %12, %24 : vector<8x512xf32>
      %cst_15 = arith.constant 9.99999974E-6 : f32
      %26 = vector.broadcast %cst_15 : f32 to vector<1x512xf32>
      %27 = arith.addf %23, %26 : vector<1x512xf32>
      %28 = math.rsqrt %27 : vector<1x512xf32>
      %29 = vector.broadcast %28 : vector<1x512xf32> to vector<8x512xf32>
      %30 = arith.mulf %25, %29 : vector<8x512xf32>
      %cst_16 = arith.constant 0.000000e+00 : f32
      %31 = vector.broadcast %cst_16 : f32 to vector<8x512xf32>
      %32 = arith.cmpf ogt, %30, %31 : vector<8x512xf32>
      %cst_17 = arith.constant 2.000000e-01 : f32
      %33 = vector.broadcast %cst_17 : f32 to vector<8x512xf32>
      %34 = arith.mulf %33, %30 : vector<8x512xf32>
      %35 = arith.select %32, %30, %34 : vector<8x512xi1>, vector<8x512xf32>
      %36 = arith.truncf %35 : vector<8x512xf32> to vector<8x512xbf16>
      %c0_18 = arith.constant 0 : index
      %c0_19 = arith.constant 0 : index
      %37 = vector.load %arg5[%c0_18, %c0_19] : memref<8x512xbf16, #tpu.memory_space<vmem>>, vector<8x512xbf16>
      tpu.vector_store %arg5[%c0_18, %c0_19], %36 {strides = array<i32>} : memref<8x512xbf16, #tpu.memory_space<vmem>>, vector<8x512xbf16>,
    } else {
    }
    return
  }
  func.func @transform_0(%arg0: i32, %arg1: i32) -> (i32, i32) {
    %c0_i32 = arith.constant 0 : i32
    return %arg0, %arg1 : i32, i32
  }
  func.func @transform_1(%arg0: i32, %arg1: i32) -> (i32, i32) {
    %c0_i32 = arith.constant 0 : i32
    %c0_i32_0 = arith.constant 0 : i32
    return %arg1, %c0_i32 : i32, i32
  }
  func.func @transform_2(%arg0: i32, %arg1: i32) -> (i32, i32) {
    %c0_i32 = arith.constant 0 : i32
    %c0_i32_0 = arith.constant 0 : i32
    %c0_i32_1 = arith.constant 0 : i32
    return %c0_i32, %c0_i32_0 : i32, i32
  }
  func.func @transform_3(%arg0: i32, %arg1: i32) -> (i32, i32) {
    %c0_i32 = arith.constant 0 : i32
    %c0_i32_0 = arith.constant 0 : i32
    return %arg0, %c0_i32 : i32, i32
  }
}

module attributes {stable_mosaic.version = 11 : i64} {
  func.func @_conv_kernel(%arg0: i32, %arg1: i32, %arg2: memref<8x1024xbf16, #tpu.memory_space<vmem>>, %arg3: memref<1024x1xbf16, #tpu.memory_space<vmem>>, %arg4: memref<1x1xf32, #tpu.memory_space<vmem>>, %arg5: memref<8x1xf32, #tpu.memory_space<vmem>>, %arg6: memref<8x1xf32, #tpu.memory_space<vmem>>) attributes {dimension_semantics = [#tpu.dimension_semantics<parallel>, #tpu.dimension_semantics<arbitrary>], iteration_bounds = array<i64: 1, 2>, scalar_prefetch = 0 : i64, scratch_operands = 1 : i64, tpu.core_type = #tpu.core_type<tc>, window_params = [{transform_indices = @transform_0, window_bounds = array<i64: 8, 1024>}, {transform_indices = @transform_1, window_bounds = array<i64: 1024, 1>}, {pipeline_mode = #tpu.pipeline_mode<synchronous>, transform_indices = @transform_2, window_bounds = array<i64: 1, 1>}, {transform_indices = @transform_3, window_bounds = array<i64: 8, 1>}]} {
    %c0_i32 = arith.constant 0 : i32
    %0 = arith.cmpi eq, %arg1, %c0_i32 : i32
    %1 = arith.extui %0 : i1 to i32
    %c0_i32_0 = arith.constant 0 : i32
    %2 = arith.cmpi ne, %1, %c0_i32_0 : i32
    scf.if %2 {
      %cst_9 = arith.constant 0.000000e+00 : f32
      %12 = vector.broadcast %cst_9 : f32 to vector<8x1xf32>
      %c0_10 = arith.constant 0 : index
      %c0_11 = arith.constant 0 : index
      %13 = vector.load %arg6[%c0_10, %c0_11] : memref<8x1xf32, #tpu.memory_space<vmem>>, vector<8x1xf32>
      tpu.vector_store %arg6[%c0_10, %c0_11], %12 {strides = array<i32>} : memref<8x1xf32, #tpu.memory_space<vmem>>, vector<8x1xf32>,
    } else {
    }
    %c0 = arith.constant 0 : index
    %c0_1 = arith.constant 0 : index
    %3 = vector.load %arg6[%c0, %c0_1] : memref<8x1xf32, #tpu.memory_space<vmem>>, vector<8x1xf32>
    %c0_2 = arith.constant 0 : index
    %c0_3 = arith.constant 0 : index
    %4 = vector.load %arg2[%c0_2, %c0_3] : memref<8x1024xbf16, #tpu.memory_space<vmem>>, vector<8x1024xbf16>
    %c0_4 = arith.constant 0 : index
    %c0_5 = arith.constant 0 : index
    %5 = vector.load %arg3[%c0_4, %c0_5] : memref<1024x1xbf16, #tpu.memory_space<vmem>>, vector<1024x1xbf16>
    %cst = arith.constant dense<0.000000e+00> : vector<8x1xf32>
    %6 = tpu.matmul %4, %5, %cst {dimension_numbers = #tpu.dot_dimension_numbers<[1], [0], [0], [1], [0, 0, 1, 1], [], []>} : vector<8x1024xbf16>, vector<1024x1xbf16>, vector<8x1xf32> -> vector<8x1xf32>
    %7 = arith.addf %3, %6 : vector<8x1xf32>
    %c0_6 = arith.constant 0 : index
    %c0_7 = arith.constant 0 : index
    %8 = vector.load %arg6[%c0_6, %c0_7] : memref<8x1xf32, #tpu.memory_space<vmem>>, vector<8x1xf32>
    tpu.vector_store %arg6[%c0_6, %c0_7], %7 {strides = array<i32>} : memref<8x1xf32, #tpu.memory_space<vmem>>, vector<8x1xf32>,
    %c1_i32 = arith.constant 1 : i32
    %9 = arith.cmpi eq, %arg1, %c1_i32 : i32
    %10 = arith.extui %9 : i1 to i32
    %c0_i32_8 = arith.constant 0 : i32
    %11 = arith.cmpi ne, %10, %c0_i32_8 : i32
    scf.if %11 {
      %c0_9 = arith.constant 0 : index
      %c0_10 = arith.constant 0 : index
      %12 = vector.load %arg6[%c0_9, %c0_10] : memref<8x1xf32, #tpu.memory_space<vmem>>, vector<8x1xf32>
      %c0_11 = arith.constant 0 : index
      %c0_12 = arith.constant 0 : index
      %13 = vector.load %arg4[%c0_11, %c0_12] : memref<1x1xf32, #tpu.memory_space<vmem>>, vector<1x1xf32>
      %14 = vector.broadcast %13 : vector<1x1xf32> to vector<8x1xf32>
      %15 = arith.addf %12, %14 : vector<8x1xf32>
      %cst_13 = arith.constant 0.000000e+00 : f32
      %16 = vector.broadcast %cst_13 : f32 to vector<8x1xf32>
      %17 = arith.subf %16, %15 : vector<8x1xf32>
      %18 = math.exp %17 : vector<8x1xf32>
      %cst_14 = arith.constant 1.000000e+00 : f32
      %19 = vector.broadcast %cst_14 : f32 to vector<8x1xf32>
      %20 = arith.addf %19, %18 : vector<8x1xf32>
      %cst_15 = arith.constant 1.000000e+00 : f32
      %21 = vector.broadcast %cst_15 : f32 to vector<8x1xf32>
      %22 = arith.divf %21, %20 : vector<8x1xf32>
      %c0_16 = arith.constant 0 : index
      %c0_17 = arith.constant 0 : index
      %23 = vector.load %arg5[%c0_16, %c0_17] : memref<8x1xf32, #tpu.memory_space<vmem>>, vector<8x1xf32>
      tpu.vector_store %arg5[%c0_16, %c0_17], %22 {strides = array<i32>} : memref<8x1xf32, #tpu.memory_space<vmem>>, vector<8x1xf32>,
    } else {
    }
    return
  }
  func.func @transform_0(%arg0: i32, %arg1: i32) -> (i32, i32) {
    %c0_i32 = arith.constant 0 : i32
    return %arg0, %arg1 : i32, i32
  }
  func.func @transform_1(%arg0: i32, %arg1: i32) -> (i32, i32) {
    %c0_i32 = arith.constant 0 : i32
    %c0_i32_0 = arith.constant 0 : i32
    return %arg1, %c0_i32 : i32, i32
  }
  func.func @transform_2(%arg0: i32, %arg1: i32) -> (i32, i32) {
    %c0_i32 = arith.constant 0 : i32
    %c0_i32_0 = arith.constant 0 : i32
    %c0_i32_1 = arith.constant 0 : i32
    return %c0_i32, %c0_i32_0 : i32, i32
  }
  func.func @transform_3(%arg0: i32, %arg1: i32) -> (i32, i32) {
    %c0_i32 = arith.constant 0 : i32
    %c0_i32_0 = arith.constant 0 : i32
    return %arg0, %c0_i32 : i32, i32
  }
}

</mosaic_0001>

<llo_original>
// kernel: dcgan_discriminator.5
$region0: #{dcgan_discriminator.5}
  #allocation0 [shape = 'u32[]', space=smem, size = 0x4, offset = 0x4, fixed_abs, tag = 'smem constant byte address 0x4 - core index']
  #allocation1 [shape = 'u32[72,128]{1,0:T(1,128)}', space=vmem, size = 0x9000, scoped, tag = 'internal scratch']
  #allocation2 [shape = 'f32[256,64]{1,0:T(8,128)}', space=vmem, size = 0x20000, scoped, tag = 'scratch operand']
  %s0 = inlined_call_operand.vmem [shape: bf16[512,64], index: 0, kind: input, shape index: {}]
  %s1 = inlined_call_operand.vmem [shape: bf16[64,64], index: 1, kind: input, shape index: {}]
  %s2 = inlined_call_operand.vmem [shape: f32[1,64], index: 2, kind: input, shape index: {}]
  %s3 = inlined_call_operand.vmem [shape: bf16[512,64], index: 3, kind: output, shape index: {}]
  %s4 = sld [smem:[#allocation0]]
  $region53: #{dcgan_discriminator.5} parent=0
    _
  %s6 = ssub.s32 1, %s4
  %s7 = scalar_select 0, %s6, %s4
  loop: start=0, step=1, limit=4
  $region2: #{dcgan_discriminator.5} parent=0 // loop_pre_header
    _
  $region3: #{dcgan_discriminator.5} parent=0 // loop_header
    %s9 = sphi 0, %s13
    %p10 = scmp.ge.s32.totalorder %s9, 4
    %s16 = sphi 0, %s28
    %s17 = sphi 0, %s24
    %s18 = sphi 0, %s16
    %s19 = sphi 0, %s17
    %s20 = sphi 0, %s18
    %s21 = sphi 0, %s19
    %s33 = sphi 0, %s35
    %s36 = sphi 0, %s33
    %s37 = sphi 0, %s36
    %s53 = sphi 0, %s37
    %s59 = sphi 0, %s61
    %s62 = sphi 0, %s59
    %s63 = sphi 0, %s62
    %s79 = sphi 0, %s63
    %s83 = sphi 0, %s83
    %s85 = sphi 0, %s83
    %s86 = sphi 0, %s85
    %s100 = sphi 0, %s86
    %s106 = sphi 0, %s108
    %s109 = sphi 0, %s106
    %s110 = sphi 0, %s109
    %s126 = sphi 0, %s110
  $region4: #{dcgan_discriminator.5} parent=0 // loop_header_branch
    %12 = sbr.rel (%p10) target = $region8
  $region5: #{dcgan_discriminator.5} parent=0 // loop_body
    %s14 = ssub.s32 %s9, 1
    %s15 = ssub.s32 %s9, 2
    %s22 = sadd.s32 1, %s17
    %p23 = scmp.ge.s32.totalorder %s22, 1
    %s24 = scalar_select %p23, 0, %s22
    %s25 = sadd.s32 1, %s16
    %s26 = scalar_select %p23, %s25, %s16
    %p27 = scmp.ge.s32.totalorder %s26, 2
    %s28 = scalar_select %p27, 0, %s26
    %s29 = ssub.s32 %s16, %s28
    %s30 = ssub.s32 %s17, %s24
    %s31 = sor.u32 %s29, %s30
    %p32 = scmp.eq.s32.totalorder %s31, 0
    %s34 = sadd.s32 %s33, 1
    %s35 = scalar_select %p32, %s33, %s34
    %p38 = pneg %p32
    %p39 = scmp.eq.s32.totalorder %s9, 1
    %p40 = por %p38, %p39
    %p41 = scmp.ne.s32.totalorder %s33, %s36
    %p42 = scmp.eq.s32.totalorder %s9, 0
    %p43 = por %p41, %p42
    %p44 = scmp.ne.s32.totalorder %s33, %s36
    %p45 = scmp.eq.s32.totalorder %s14, 1
    %p46 = por %p44, %p45
    %p47 = scmp.ne.s32.totalorder %s36, %s37
    %p48 = scmp.eq.s32.totalorder %s14, 0
    %p49 = por %p47, %p48
    %p50 = scmp.ne.s32.totalorder %s36, %s37
    %p51 = scmp.eq.s32.totalorder %s15, 1
    %p52 = por %p50, %p51
    %p54 = scmp.ne.s32.totalorder %s37, %s53
    %p55 = scmp.eq.s32.totalorder %s15, 0
    %p56 = por %p54, %p55
    %s57 = ssub.s32 %s17, %s24
    %p58 = scmp.eq.s32.totalorder %s57, 0
    %s60 = sadd.s32 %s59, 1
    %s61 = scalar_select %p58, %s59, %s60
    %p64 = pneg %p58
    %p65 = scmp.eq.s32.totalorder %s9, 1
    %p66 = por %p64, %p65
    %p67 = scmp.ne.s32.totalorder %s59, %s62
    %p68 = scmp.eq.s32.totalorder %s9, 0
    %p69 = por %p67, %p68
    %p70 = scmp.ne.s32.totalorder %s59, %s62
    %p71 = scmp.eq.s32.totalorder %s14, 1
    %p72 = por %p70, %p71
    %p73 = scmp.ne.s32.totalorder %s62, %s63
    %p74 = scmp.eq.s32.totalorder %s14, 0
    %p75 = por %p73, %p74
    %p76 = scmp.ne.s32.totalorder %s62, %s63
    %p77 = scmp.eq.s32.totalorder %s15, 1
    %p78 = por %p76, %p77
    %p80 = scmp.ne.s32.totalorder %s63, %s79
    %p81 = scmp.eq.s32.totalorder %s15, 0
    %p82 = por %p80, %p81
    %s84 = sadd.s32 %s83, 1
    %p87 = scmp.eq.s32.totalorder %s9, 1
    %p88 = scmp.ne.s32.totalorder %s83, %s85
    %p89 = scmp.eq.s32.totalorder %s9, 0
    %p90 = por %p88, %p89
    %p91 = scmp.ne.s32.totalorder %s83, %s85
    %p92 = scmp.eq.s32.totalorder %s14, 1
    %p93 = por %p91, %p92
    %p94 = scmp.ne.s32.totalorder %s85, %s86
    %p95 = scmp.eq.s32.totalorder %s14, 0
    %p96 = por %p94, %p95
    %p97 = scmp.ne.s32.totalorder %s85, %s86
    %p98 = scmp.eq.s32.totalorder %s15, 1
    %p99 = por %p97, %p98
    %p101 = scmp.ne.s32.totalorder %s86, %s100
    %p102 = scmp.eq.s32.totalorder %s15, 0
    %p103 = por %p101, %p102
    %s104 = ssub.s32 %s16, %s28
    %p105 = scmp.eq.s32.totalorder %s104, 0
    %s107 = sadd.s32 %s106, 1
    %s108 = scalar_select %p105, %s106, %s107
    %p111 = pneg %p105
    %p112 = scmp.eq.s32.totalorder %s9, 1
    %p113 = por %p111, %p112
    %p114 = scmp.ne.s32.totalorder %s106, %s109
    %p115 = scmp.eq.s32.totalorder %s9, 0
    %p116 = por %p114, %p115
    %p117 = scmp.ne.s32.totalorder %s106, %s109
    %p118 = scmp.eq.s32.totalorder %s14, 1
    %p119 = por %p117, %p118
    %p120 = scmp.ne.s32.totalorder %s109, %s110
    %p121 = scmp.eq.s32.totalorder %s14, 0
    %p122 = por %p120, %p121
    %p123 = scmp.ne.s32.totalorder %s109, %s110
    %p124 = scmp.eq.s32.totalorder %s15, 1
    %p125 = por %p123, %p124
    %p127 = scmp.ne.s32.totalorder %s110, %s126
    %p128 = scmp.eq.s32.totalorder %s15, 0
    %p129 = por %p127, %p128
    %p130 = scmp.le.s32.totalorder 1, %s9
    %p131 = scmp.lt.s32.totalorder %s9, 3
    %p132 = pnand %p130, %p131
    %p133 = pneg %p132
    // Predicated region
    $region9: #{dcgan_discriminator.5} parent=5 // pred_check
      _
    $region10: #{dcgan_discriminator.5} parent=5 // pred_check_branch
      %135 = sbr.rel (%p132) target = $region12
    $region11: #{dcgan_discriminator.5} parent=5 // pred_region
      %s136 = ssub.s32 %s9, 1
      // Predicated region
      $region13: #{dcgan_discriminator.5} parent=11 // pred_check
        %p137 = pneg %p75
      $region14: #{dcgan_discriminator.5} parent=11 // pred_check_branch
        %139 = sbr.rel (%p137) target = $region16
      $region15: #{dcgan_discriminator.5} parent=11 // pred_region
        %s140 = smul.u32 8, %s19
        %p141 = scmp.lt.s32.totalorder %s140, 7
        %s142 = scalar_select %p141, %s140, 7
        %s143 = smul.addr %s142, 4
        %s144 = scalar_lea.vmem %s1, %s143
        %s145 = smul.u32 8, %s19
      $region16: #{dcgan_discriminator.5} parent=11 // pred_fallthru
        _
      // Predicated region
      $region17: #{dcgan_discriminator.5} parent=11 // pred_check
        %p146 = pneg %p96
      $region18: #{dcgan_discriminator.5} parent=11 // pred_check_branch
        %148 = sbr.rel (%p146) target = $region20
      $region19: #{dcgan_discriminator.5} parent=11 // pred_region
        _
      $region20: #{dcgan_discriminator.5} parent=11 // pred_fallthru
        _
    $region12: #{dcgan_discriminator.5} parent=5 // pred_fallthru
      _
    %p149 = scmp.lt.s32.totalorder %s9, 2
    // Predicated region
    $region21: #{dcgan_discriminator.5} parent=5 // pred_check
      %p150 = pneg %p149
    $region22: #{dcgan_discriminator.5} parent=5 // pred_check_branch
      %152 = sbr.rel (%p150) target = $region24
    $region23: #{dcgan_discriminator.5} parent=5 // pred_region
      // Predicated region
      $region25: #{dcgan_discriminator.5} parent=23 // pred_check
        %p153 = pneg %p43
      $region26: #{dcgan_discriminator.5} parent=23 // pred_check_branch
        %155 = sbr.rel (%p153) target = $region28
      $region27: #{dcgan_discriminator.5} parent=23 // pred_region
        %s156 = smul.u32 32, %s16
        %p157 = scmp.lt.s32.totalorder %s156, 63
        %s158 = scalar_select %p157, %s156, 63
        %p159 = scmp.lt.s32.totalorder %s17, 0
        %s160 = scalar_select %p159, %s17, 0
        %s161 = sadd.s32 %s160, %s158
        %s162 = smul.addr %s161, 4
        %s163 = scalar_lea.vmem %s0, %s162
        %s164 = smul.u32 32, %s16
      $region28: #{dcgan_discriminator.5} parent=23 // pred_fallthru
        _
    $region24: #{dcgan_discriminator.5} parent=5 // pred_fallthru
      _
    %p165 = scmp.le.s32.totalorder 1, %s9
    %p166 = scmp.lt.s32.totalorder %s9, 3
    %p167 = pnand %p165, %p166
    %p168 = pneg %p167
    // Predicated region
    $region29: #{dcgan_discriminator.5} parent=5 // pred_check
      _
    $region30: #{dcgan_discriminator.5} parent=5 // pred_check_branch
      %170 = sbr.rel (%p167) target = $region32
    $region31: #{dcgan_discriminator.5} parent=5 // pred_region
      %s171 = ssub.s32 %s9, 1
      %s172 = smul.u32 32, %s18
      %p173 = scmp.lt.s32.totalorder %s172, 63
      %s174 = scalar_select %p173, %s172, 63
      %p175 = scmp.lt.s32.totalorder %s19, 0
      %s176 = scalar_select %p175, %s19, 0
      %s177 = sadd.s32 %s176, %s174
      %s178 = smul.addr %s177, 4
      %s179 = scalar_lea.vmem %s0, %s178
      %p180 = pneg %p49
      %p181 = pneg %p46
      %s182 = smul.u32 8, %s19
      %p183 = scmp.lt.s32.totalorder %s182, 7
      %s184 = scalar_select %p183, %s182, 7
      %s185 = smul.addr %s184, 4
      %s186 = scalar_lea.vmem %s1, %s185
      %p187 = pneg %p75
      %p188 = pneg %p72
      %p189 = pneg %p96
      %p190 = pneg %p93
      %p191 = pneg %p122
      %p192 = pneg %p119
      %s193 = smul.u32 32, %s18
      %p194 = scmp.lt.s32.totalorder %s193, 63
      %s195 = scalar_select %p194, %s193, 63
      %s196 = smul.addr %s195, 4
      %s197 = scalar_lea.vmem %s3, %s196
      %s198 = smul.u32 32, %s18
      %p199 = scmp.lt.s32.totalorder %s198, 63
      %s200 = scalar_select %p199, %s198, 63
      %p201 = scmp.lt.s32.totalorder %s19, 0
      %s202 = scalar_select %p201, %s19, 0
      %s203 = sadd.s32 %s202, %s200
      %s204 = smul.addr %s203, 4
      %s205 = scalar_lea.vmem %s0, %s204
      %s206 = smul.u32 32, %s18
      %s207 = smul.u32 8, %s19
      %p208 = scmp.lt.s32.totalorder %s207, 7
      %s209 = scalar_select %p208, %s207, 7
      %s210 = smul.addr %s209, 4
      %s211 = scalar_lea.vmem %s1, %s210
      %s212 = smul.u32 8, %s19
      %s213 = smul.u32 32, %s18
      %p214 = scmp.lt.s32.totalorder %s213, 63
      %s215 = scalar_select %p214, %s213, 63
      %s216 = smul.addr %s215, 4
      %s217 = scalar_lea.vmem %s3, %s216
      %s218 = smul.u32 32, %s18
      %p220 = scmp.eq.s32.totalorder %s19, 0
      // Predicated region
      $region33: #{dcgan_discriminator.5} parent=31 // pred_check
        %p221 = pneg %p220
      $region34: #{dcgan_discriminator.5} parent=31 // pred_check_branch
        %223 = sbr.rel (%p221) target = $region36
      $region35: #{dcgan_discriminator.5} parent=31 // pred_region
        %vm224 = vcmask 523264
        %225 = vst.msk [vmem:[#allocation2] sm:$0xff] %vm224, 0.0
        %226 = vst.msk [vmem:[#allocation2 + $0x8] sm:$0xff] %vm224, 0.0
        %227 = vst.msk [vmem:[#allocation2 + $0x10] sm:$0xff] %vm224, 0.0
        %228 = vst.msk [vmem:[#allocation2 + $0x18] sm:$0xff] %vm224, 0.0
        %229 = vst.msk [vmem:[#allocation2 + $0x20] sm:$0xff] %vm224, 0.0
        %230 = vst.msk [vmem:[#allocation2 + $0x28] sm:$0xff] %vm224, 0.0
        %231 = vst.msk [vmem:[#allocation2 + $0x30] sm:$0xff] %vm224, 0.0
        %232 = vst.msk [vmem:[#allocation2 + $0x38] sm:$0xff] %vm224, 0.0
        %233 = vst.msk [vmem:[#allocation2 + $0x40] sm:$0xff] %vm224, 0.0
        %234 = vst.msk [vmem:[#allocation2 + $0x48] sm:$0xff] %vm224, 0.0
        %235 = vst.msk [vmem:[#allocation2 + $0x50] sm:$0xff] %vm224, 0.0
        %236 = vst.msk [vmem:[#allocation2 + $0x58] sm:$0xff] %vm224, 0.0
        %237 = vst.msk [vmem:[#allocation2 + $0x60] sm:$0xff] %vm224, 0.0
        %238 = vst.msk [vmem:[#allocation2 + $0x68] sm:$0xff] %vm224, 0.0
        %239 = vst.msk [vmem:[#allocation2 + $0x70] sm:$0xff] %vm224, 0.0
        %240 = vst.msk [vmem:[#allocation2 + $0x78] sm:$0xff] %vm224, 0.0
        %241 = vst.msk [vmem:[#allocation2 + $0x80] sm:$0xff] %vm224, 0.0
        %242 = vst.msk [vmem:[#allocation2 + $0x88] sm:$0xff] %vm224, 0.0
        %243 = vst.msk [vmem:[#allocation2 + $0x90] sm:$0xff] %vm224, 0.0
        %244 = vst.msk [vmem:[#allocation2 + $0x98] sm:$0xff] %vm224, 0.0
        %245 = vst.msk [vmem:[#allocation2 + $0xa0] sm:$0xff] %vm224, 0.0
        %246 = vst.msk [vmem:[#allocation2 + $0xa8] sm:$0xff] %vm224, 0.0
        %247 = vst.msk [vmem:[#allocation2 + $0xb0] sm:$0xff] %vm224, 0.0
        %248 = vst.msk [vmem:[#allocation2 + $0xb8] sm:$0xff] %vm224, 0.0
        %249 = vst.msk [vmem:[#allocation2 + $0xc0] sm:$0xff] %vm224, 0.0
        %250 = vst.msk [vmem:[#allocation2 + $0xc8] sm:$0xff] %vm224, 0.0
        %251 = vst.msk [vmem:[#allocation2 + $0xd0] sm:$0xff] %vm224, 0.0
        %252 = vst.msk [vmem:[#allocation2 + $0xd8] sm:$0xff] %vm224, 0.0
        %253 = vst.msk [vmem:[#allocation2 + $0xe0] sm:$0xff] %vm224, 0.0
        %254 = vst.msk [vmem:[#allocation2 + $0xe8] sm:$0xff] %vm224, 0.0
        %255 = vst.msk [vmem:[#allocation2 + $0xf0] sm:$0xff] %vm224, 0.0
        %256 = vst.msk [vmem:[#allocation2 + $0xf8] sm:$0xff] %vm224, 0.0
      $region36: #{dcgan_discriminator.5} parent=31 // pred_fallthru
        _
      %v257 = vld [vmem:[#allocation2] sm:$0xff]
      %v258 = vld [vmem:[#allocation2 + $0x8] sm:$0xff]
      %v259 = vld [vmem:[#allocation2 + $0x10] sm:$0xff]
      %v260 = vld [vmem:[#allocation2 + $0x18] sm:$0xff]
      %v261 = vld [vmem:[#allocation2 + $0x20] sm:$0xff]
      %v262 = vld [vmem:[#allocation2 + $0x28] sm:$0xff]
      %v263 = vld [vmem:[#allocation2 + $0x30] sm:$0xff]
      %v264 = vld [vmem:[#allocation2 + $0x38] sm:$0xff]
      %v265 = vld [vmem:[#allocation2 + $0x40] sm:$0xff]
      %v266 = vld [vmem:[#allocation2 + $0x48] sm:$0xff]
      %v267 = vld [vmem:[#allocation2 + $0x50] sm:$0xff]
      %v268 = vld [vmem:[#allocation2 + $0x58] sm:$0xff]
      %v269 = vld [vmem:[#allocation2 + $0x60] sm:$0xff]
      %v270 = vld [vmem:[#allocation2 + $0x68] sm:$0xff]
      %v271 = vld [vmem:[#allocation2 + $0x70] sm:$0xff]
      %v272 = vld [vmem:[#allocation2 + $0x78] sm:$0xff]
      %v273 = vld [vmem:[#allocation2 + $0x80] sm:$0xff]
      %v274 = vld [vmem:[#allocation2 + $0x88] sm:$0xff]
      %v275 = vld [vmem:[#allocation2 + $0x90] sm:$0xff]
      %v276 = vld [vmem:[#allocation2 + $0x98] sm:$0xff]
      %v277 = vld [vmem:[#allocation2 + $0xa0] sm:$0xff]
      %v278 = vld [vmem:[#allocation2 + $0xa8] sm:$0xff]
      %v279 = vld [vmem:[#allocation2 + $0xb0] sm:$0xff]
      %v280 = vld [vmem:[#allocation2 + $0xb8] sm:$0xff]
      %v281 = vld [vmem:[#allocation2 + $0xc0] sm:$0xff]
      %v282 = vld [vmem:[#allocation2 + $0xc8] sm:$0xff]
      %v283 = vld [vmem:[#allocation2 + $0xd0] sm:$0xff]
      %v284 = vld [vmem:[#allocation2 + $0xd8] sm:$0xff]
      %v285 = vld [vmem:[#allocation2 + $0xe0] sm:$0xff]
      %v286 = vld [vmem:[#allocation2 + $0xe8] sm:$0xff]
      %v287 = vld [vmem:[#allocation2 + $0xf0] sm:$0xff]
      %v288 = vld [vmem:[#allocation2 + $0xf8] sm:$0xff]
      %v289 = vld [vmem:[%s205] sm:$0xf]
      %v290 = vld [vmem:[%s205 + $0x4] sm:$0xf]
      %v291 = vld [vmem:[%s205 + $0x8] sm:$0xf]
      %v292 = vld [vmem:[%s205 + $0xc] sm:$0xf]
      %v293 = vld [vmem:[%s205 + $0x10] sm:$0xf]
      %v294 = vld [vmem:[%s205 + $0x14] sm:$0xf]
      %v295 = vld [vmem:[%s205 + $0x18] sm:$0xf]
      %v296 = vld [vmem:[%s205 + $0x1c] sm:$0xf]
      %v297 = vld [vmem:[%s205 + $0x20] sm:$0xf]
      %v298 = vld [vmem:[%s205 + $0x24] sm:$0xf]
      %v299 = vld [vmem:[%s205 + $0x28] sm:$0xf]
      %v300 = vld [vmem:[%s205 + $0x2c] sm:$0xf]
      %v301 = vld [vmem:[%s205 + $0x30] sm:$0xf]
      %v302 = vld [vmem:[%s205 + $0x34] sm:$0xf]
      %v303 = vld [vmem:[%s205 + $0x38] sm:$0xf]
      %v304 = vld [vmem:[%s205 + $0x3c] sm:$0xf]
      %v305 = vld [vmem:[%s205 + $0x40] sm:$0xf]
      %v306 = vld [vmem:[%s205 + $0x44] sm:$0xf]
      %v307 = vld [vmem:[%s205 + $0x48] sm:$0xf]
      %v308 = vld [vmem:[%s205 + $0x4c] sm:$0xf]
      %v309 = vld [vmem:[%s205 + $0x50] sm:$0xf]
      %v310 = vld [vmem:[%s205 + $0x54] sm:$0xf]
      %v311 = vld [vmem:[%s205 + $0x58] sm:$0xf]
      %v312 = vld [vmem:[%s205 + $0x5c] sm:$0xf]
      %v313 = vld [vmem:[%s205 + $0x60] sm:$0xf]
      %v314 = vld [vmem:[%s205 + $0x64] sm:$0xf]
      %v315 = vld [vmem:[%s205 + $0x68] sm:$0xf]
      %v316 = vld [vmem:[%s205 + $0x6c] sm:$0xf]
      %v317 = vld [vmem:[%s205 + $0x70] sm:$0xf]
      %v318 = vld [vmem:[%s205 + $0x74] sm:$0xf]
      %v319 = vld [vmem:[%s205 + $0x78] sm:$0xf]
      %v320 = vld [vmem:[%s205 + $0x7c] sm:$0xf]
      %v321 = vld [vmem:[%s211] sm:$0xf]
      %v322 = vld [vmem:[%s211 + $0x4] sm:$0xf]
      %v323 = vld [vmem:[%s211 + $0x8] sm:$0xf]
      %v324 = vld [vmem:[%s211 + $0xc] sm:$0xf]
      %v325 = vld [vmem:[%s211 + $0x10] sm:$0xf]
      %v326 = vld [vmem:[%s211 + $0x14] sm:$0xf]
      %v327 = vld [vmem:[%s211 + $0x18] sm:$0xf]
      %v328 = vld [vmem:[%s211 + $0x1c] sm:$0xf]
      %v361 = vunpack.c.l.b16 %v289
      %v362 = vunpack.c.l.b16 %v290
      %v363 = vunpack.c.l.b16 %v291
      %v364 = vunpack.c.l.b16 %v292
      %v365 = vunpack.c.l.b16 %v293
      %v366 = vunpack.c.l.b16 %v294
      %v367 = vunpack.c.l.b16 %v295
      %v368 = vunpack.c.l.b16 %v296
      %v369 = vunpack.c.l.b16 %v297
      %v370 = vunpack.c.l.b16 %v298
      %v371 = vunpack.c.l.b16 %v299
      %v372 = vunpack.c.l.b16 %v300
      %v373 = vunpack.c.l.b16 %v301
      %v374 = vunpack.c.l.b16 %v302
      %v375 = vunpack.c.l.b16 %v303
      %v376 = vunpack.c.l.b16 %v304
      %v377 = vunpack.c.l.b16 %v305
      %v378 = vunpack.c.l.b16 %v306
      %v379 = vunpack.c.l.b16 %v307
      %v380 = vunpack.c.l.b16 %v308
      %v381 = vunpack.c.l.b16 %v309
      %v382 = vunpack.c.l.b16 %v310
      %v383 = vunpack.c.l.b16 %v311
      %v384 = vunpack.c.l.b16 %v312
      %v385 = vunpack.c.l.b16 %v313
      %v386 = vunpack.c.l.b16 %v314
      %v387 = vunpack.c.l.b16 %v315
      %v388 = vunpack.c.l.b16 %v316
      %v389 = vunpack.c.l.b16 %v317
      %v390 = vunpack.c.l.b16 %v318
      %v391 = vunpack.c.l.b16 %v319
      %v392 = vunpack.c.l.b16 %v320
      %v393 = vpack.c.b16 %v362, %v361
      %v394 = vpack.c.b16 %v364, %v363
      %v395 = vpack.c.b16 %v366, %v365
      %v396 = vpack.c.b16 %v368, %v367
      %v397 = vpack.c.b16 %v370, %v369
      %v398 = vpack.c.b16 %v372, %v371
      %v399 = vpack.c.b16 %v374, %v373
      %v400 = vpack.c.b16 %v376, %v375
      %v401 = vpack.c.b16 %v378, %v377
      %v402 = vpack.c.b16 %v380, %v379
      %v403 = vpack.c.b16 %v382, %v381
      %v404 = vpack.c.b16 %v384, %v383
      %v405 = vpack.c.b16 %v386, %v385
      %v406 = vpack.c.b16 %v388, %v387
      %v407 = vpack.c.b16 %v390, %v389
      %v408 = vpack.c.b16 %v392, %v391
      %v417 = vunpack.c.l.b16 %v321
      %v418 = vunpack.c.l.b16 %v322
      %v419 = vunpack.c.l.b16 %v323
      %v420 = vunpack.c.l.b16 %v324
      %v421 = vunpack.c.l.b16 %v325
      %v422 = vunpack.c.l.b16 %v326
      %v423 = vunpack.c.l.b16 %v327
      %v424 = vunpack.c.l.b16 %v328
      %v425 = vpack.c.b16 %v418, %v417
      %v426 = vpack.c.b16 %v420, %v419
      %v427 = vpack.c.b16 %v422, %v421
      %v428 = vpack.c.b16 %v424, %v423
      %vm433 = vcmask 523264
      %v435 = vsel %vm433, %v393, 0
      %v438 = vsel %vm433, %v394, 0
      %v441 = vsel %vm433, %v395, 0
      %v444 = vsel %vm433, %v396, 0
      %v447 = vsel %vm433, %v397, 0
      %v450 = vsel %vm433, %v398, 0
      %v453 = vsel %vm433, %v399, 0
      %v456 = vsel %vm433, %v400, 0
      %v459 = vsel %vm433, %v401, 0
      %v462 = vsel %vm433, %v402, 0
      %v465 = vsel %vm433, %v403, 0
      %v468 = vsel %vm433, %v404, 0
      %v471 = vsel %vm433, %v405, 0
      %v474 = vsel %vm433, %v406, 0
      %v477 = vsel %vm433, %v407, 0
      %v480 = vsel %vm433, %v408, 0
      %482 = vmatpush.bf16.msra.mxu0 0
      %483 = vmatpush.bf16.msra.mxu0 0
      %484 = vmatpush.bf16.msra.mxu0 0
      %485 = vmatpush.bf16.msra.mxu0 0
      %486 = vmatpush.bf16.msra.mxu0 %v428
      %487 = vmatpush.bf16.msra.mxu0 %v427
      %488 = vmatpush.bf16.msra.mxu0 %v426
      %489 = vmatpush.bf16.msra.mxu0 %v425
      %490 = vmatmul.bf16.gmra.mxu0 %v435
      %v491 = vpop.f32.mrf.mxu0
      %v492 = vadd.f32 0.0, %v491
      %v493 = vpop.f32.mrf.mxu0
      %v494 = vadd.f32 0.0, %v493
      %495 = vmatmul.bf16.gmra.mxu0 %v438
      %v496 = vpop.f32.mrf.mxu0
      %v497 = vadd.f32 0.0, %v496
      %v498 = vpop.f32.mrf.mxu0
      %v499 = vadd.f32 0.0, %v498
      %500 = vmatmul.bf16.gmra.mxu0 %v441
      %v501 = vpop.f32.mrf.mxu0
      %v502 = vadd.f32 0.0, %v501
      %v503 = vpop.f32.mrf.mxu0
      %v504 = vadd.f32 0.0, %v503
      %505 = vmatmul.bf16.gmra.mxu0 %v444
      %v506 = vpop.f32.mrf.mxu0
      %v507 = vadd.f32 0.0, %v506
      %v508 = vpop.f32.mrf.mxu0
      %v509 = vadd.f32 0.0, %v508
      %510 = vmatmul.bf16.gmra.mxu0 %v447
      %v511 = vpop.f32.mrf.mxu0
      %v512 = vadd.f32 0.0, %v511
      %v513 = vpop.f32.mrf.mxu0
      %v514 = vadd.f32 0.0, %v513
      %515 = vmatmul.bf16.gmra.mxu0 %v450
      %v516 = vpop.f32.mrf.mxu0
      %v517 = vadd.f32 0.0, %v516
      %v518 = vpop.f32.mrf.mxu0
      %v519 = vadd.f32 0.0, %v518
      %520 = vmatmul.bf16.gmra.mxu0 %v453
      %v521 = vpop.f32.mrf.mxu0
      %v522 = vadd.f32 0.0, %v521
      %v523 = vpop.f32.mrf.mxu0
      %v524 = vadd.f32 0.0, %v523
      %525 = vmatmul.bf16.gmra.mxu0 %v456
      %v526 = vpop.f32.mrf.mxu0
      %v527 = vadd.f32 0.0, %v526
      %v528 = vpop.f32.mrf.mxu0
      %v529 = vadd.f32 0.0, %v528
      %530 = vmatmul.bf16.gmra.mxu0 %v459
      %v531 = vpop.f32.mrf.mxu0
      %v532 = vadd.f32 0.0, %v531
      %v533 = vpop.f32.mrf.mxu0
      %v534 = vadd.f32 0.0, %v533
      %535 = vmatmul.bf16.gmra.mxu0 %v462
      %v536 = vpop.f32.mrf.mxu0
      %v537 = vadd.f32 0.0, %v536
      %v538 = vpop.f32.mrf.mxu0
      %v539 = vadd.f32 0.0, %v538
      %540 = vmatmul.bf16.gmra.mxu0 %v465
      %v541 = vpop.f32.mrf.mxu0
      %v542 = vadd.f32 0.0, %v541
      %v543 = vpop.f32.mrf.mxu0
      %v544 = vadd.f32 0.0, %v543
      %545 = vmatmul.bf16.gmra.mxu0 %v468
      %v546 = vpop.f32.mrf.mxu0
      %v547 = vadd.f32 0.0, %v546
      %v548 = vpop.f32.mrf.mxu0
      %v549 = vadd.f32 0.0, %v548
      %550 = vmatmul.bf16.gmra.mxu0 %v471
      %v551 = vpop.f32.mrf.mxu0
      %v552 = vadd.f32 0.0, %v551
      %v553 = vpop.f32.mrf.mxu0
      %v554 = vadd.f32 0.0, %v553
      %555 = vmatmul.bf16.gmra.mxu0 %v474
      %v556 = vpop.f32.mrf.mxu0
      %v557 = vadd.f32 0.0, %v556
      %v558 = vpop.f32.mrf.mxu0
      %v559 = vadd.f32 0.0, %v558
      %560 = vmatmul.bf16.gmra.mxu0 %v477
      %v561 = vpop.f32.mrf.mxu0
      %v562 = vadd.f32 0.0, %v561
      %v563 = vpop.f32.mrf.mxu0
      %v564 = vadd.f32 0.0, %v563
      %565 = vmatmul.bf16.gmra.mxu0 %v480
      %v566 = vpop.f32.mrf.mxu0
      %v567 = vadd.f32 0.0, %v566
      %v568 = vpop.f32.mrf.mxu0
      %v569 = vadd.f32 0.0, %v568
      %570 = vdwg.mxu0
      %v571 = vadd.f32 %v257, %v492
      %v572 = vadd.f32 %v258, %v494
      %v573 = vadd.f32 %v259, %v497
      %v574 = vadd.f32 %v260, %v499
      %v575 = vadd.f32 %v261, %v502
      %v576 = vadd.f32 %v262, %v504
      %v577 = vadd.f32 %v263, %v507
      %v578 = vadd.f32 %v264, %v509
      %v579 = vadd.f32 %v265, %v512
      %v580 = vadd.f32 %v266, %v514
      %v581 = vadd.f32 %v267, %v517
      %v582 = vadd.f32 %v268, %v519
      %v583 = vadd.f32 %v269, %v522
      %v584 = vadd.f32 %v270, %v524
      %v585 = vadd.f32 %v271, %v527
      %v586 = vadd.f32 %v272, %v529
      %v587 = vadd.f32 %v273, %v532
      %v588 = vadd.f32 %v274, %v534
      %v589 = vadd.f32 %v275, %v537
      %v590 = vadd.f32 %v276, %v539
      %v591 = vadd.f32 %v277, %v542
      %v592 = vadd.f32 %v278, %v544
      %v593 = vadd.f32 %v279, %v547
      %v594 = vadd.f32 %v280, %v549
      %v595 = vadd.f32 %v281, %v552
      %v596 = vadd.f32 %v282, %v554
      %v597 = vadd.f32 %v283, %v557
      %v598 = vadd.f32 %v284, %v559
      %v599 = vadd.f32 %v285, %v562
      %v600 = vadd.f32 %v286, %v564
      %v601 = vadd.f32 %v287, %v567
      %v602 = vadd.f32 %v288, %v569
      %603 = vst.msk [vmem:[#allocation2] sm:$0xff] %vm433, %v571
      %604 = vst.msk [vmem:[#allocation2 + $0x8] sm:$0xff] %vm433, %v572
      %605 = vst.msk [vmem:[#allocation2 + $0x10] sm:$0xff] %vm433, %v573
      %606 = vst.msk [vmem:[#allocation2 + $0x18] sm:$0xff] %vm433, %v574
      %607 = vst.msk [vmem:[#allocation2 + $0x20] sm:$0xff] %vm433, %v575
      %608 = vst.msk [vmem:[#allocation2 + $0x28] sm:$0xff] %vm433, %v576
      %609 = vst.msk [vmem:[#allocation2 + $0x30] sm:$0xff] %vm433, %v577
      %610 = vst.msk [vmem:[#allocation2 + $0x38] sm:$0xff] %vm433, %v578
      %611 = vst.msk [vmem:[#allocation2 + $0x40] sm:$0xff] %vm433, %v579
      %612 = vst.msk [vmem:[#allocation2 + $0x48] sm:$0xff] %vm433, %v580
      %613 = vst.msk [vmem:[#allocation2 + $0x50] sm:$0xff] %vm433, %v581
      %614 = vst.msk [vmem:[#allocation2 + $0x58] sm:$0xff] %vm433, %v582
      %615 = vst.msk [vmem:[#allocation2 + $0x60] sm:$0xff] %vm433, %v583
      %616 = vst.msk [vmem:[#allocation2 + $0x68] sm:$0xff] %vm433, %v584
      %617 = vst.msk [vmem:[#allocation2 + $0x70] sm:$0xff] %vm433, %v585
      %618 = vst.msk [vmem:[#allocation2 + $0x78] sm:$0xff] %vm433, %v586
      %619 = vst.msk [vmem:[#allocation2 + $0x80] sm:$0xff] %vm433, %v587
      %620 = vst.msk [vmem:[#allocation2 + $0x88] sm:$0xff] %vm433, %v588
      %621 = vst.msk [vmem:[#allocation2 + $0x90] sm:$0xff] %vm433, %v589
      %622 = vst.msk [vmem:[#allocation2 + $0x98] sm:$0xff] %vm433, %v590
      %623 = vst.msk [vmem:[#allocation2 + $0xa0] sm:$0xff] %vm433, %v591
      %624 = vst.msk [vmem:[#allocation2 + $0xa8] sm:$0xff] %vm433, %v592
      %625 = vst.msk [vmem:[#allocation2 + $0xb0] sm:$0xff] %vm433, %v593
      %626 = vst.msk [vmem:[#allocation2 + $0xb8] sm:$0xff] %vm433, %v594
      %627 = vst.msk [vmem:[#allocation2 + $0xc0] sm:$0xff] %vm433, %v595
      %628 = vst.msk [vmem:[#allocation2 + $0xc8] sm:$0xff] %vm433, %v596
      %629 = vst.msk [vmem:[#allocation2 + $0xd0] sm:$0xff] %vm433, %v597
      %630 = vst.msk [vmem:[#allocation2 + $0xd8] sm:$0xff] %vm433, %v598
      %631 = vst.msk [vmem:[#allocation2 + $0xe0] sm:$0xff] %vm433, %v599
      %632 = vst.msk [vmem:[#allocation2 + $0xe8] sm:$0xff] %vm433, %v600
      %633 = vst.msk [vmem:[#allocation2 + $0xf0] sm:$0xff] %vm433, %v601
      %634 = vst.msk [vmem:[#allocation2 + $0xf8] sm:$0xff] %vm433, %v602
      // Predicated region
      $region37: #{dcgan_discriminator.5} parent=31 // pred_check
        %p635 = pneg %p220
      $region38: #{dcgan_discriminator.5} parent=31 // pred_check_branch
        %637 = sbr.rel (%p635) target = $region40
      $region39: #{dcgan_discriminator.5} parent=31 // pred_region
        %v638 = vld [vmem:[#allocation2] sm:$0xff]
        %v639 = vld [vmem:[#allocation2 + $0x8] sm:$0xff]
        %v640 = vld [vmem:[#allocation2 + $0x10] sm:$0xff]
        %v641 = vld [vmem:[#allocation2 + $0x18] sm:$0xff]
        %v642 = vld [vmem:[#allocation2 + $0x20] sm:$0xff]
        %v643 = vld [vmem:[#allocation2 + $0x28] sm:$0xff]
        %v644 = vld [vmem:[#allocation2 + $0x30] sm:$0xff]
        %v645 = vld [vmem:[#allocation2 + $0x38] sm:$0xff]
        %v646 = vld [vmem:[#allocation2 + $0x40] sm:$0xff]
        %v647 = vld [vmem:[#allocation2 + $0x48] sm:$0xff]
        %v648 = vld [vmem:[#allocation2 + $0x50] sm:$0xff]
        %v649 = vld [vmem:[#allocation2 + $0x58] sm:$0xff]
        %v650 = vld [vmem:[#allocation2 + $0x60] sm:$0xff]
        %v651 = vld [vmem:[#allocation2 + $0x68] sm:$0xff]
        %v652 = vld [vmem:[#allocation2 + $0x70] sm:$0xff]
        %v653 = vld [vmem:[#allocation2 + $0x78] sm:$0xff]
        %v654 = vld [vmem:[#allocation2 + $0x80] sm:$0xff]
        %v655 = vld [vmem:[#allocation2 + $0x88] sm:$0xff]
        %v656 = vld [vmem:[#allocation2 + $0x90] sm:$0xff]
        %v657 = vld [vmem:[#allocation2 + $0x98] sm:$0xff]
        %v658 = vld [vmem:[#allocation2 + $0xa0] sm:$0xff]
        %v659 = vld [vmem:[#allocation2 + $0xa8] sm:$0xff]
        %v660 = vld [vmem:[#allocation2 + $0xb0] sm:$0xff]
        %v661 = vld [vmem:[#allocation2 + $0xb8] sm:$0xff]
        %v662 = vld [vmem:[#allocation2 + $0xc0] sm:$0xff]
        %v663 = vld [vmem:[#allocation2 + $0xc8] sm:$0xff]
        %v664 = vld [vmem:[#allocation2 + $0xd0] sm:$0xff]
        %v665 = vld [vmem:[#allocation2 + $0xd8] sm:$0xff]
        %v666 = vld [vmem:[#allocation2 + $0xe0] sm:$0xff]
        %v667 = vld [vmem:[#allocation2 + $0xe8] sm:$0xff]
        %v668 = vld [vmem:[#allocation2 + $0xf0] sm:$0xff]
        %v669 = vld [vmem:[#allocation2 + $0xf8] sm:$0xff]
        %v670 = vld [vmem:[%s2] sm:$0x1]
        %v672 = vperm.slane %v670, 0
        %v674 = vadd.f32 %v638, %v672
        %v675 = vadd.f32 %v639, %v672
        %v676 = vadd.f32 %v640, %v672
        %v677 = vadd.f32 %v641, %v672
        %v678 = vadd.f32 %v642, %v672
        %v679 = vadd.f32 %v643, %v672
        %v680 = vadd.f32 %v644, %v672
        %v681 = vadd.f32 %v645, %v672
        %v682 = vadd.f32 %v646, %v672
        %v683 = vadd.f32 %v647, %v672
        %v684 = vadd.f32 %v648, %v672
        %v685 = vadd.f32 %v649, %v672
        %v686 = vadd.f32 %v650, %v672
        %v687 = vadd.f32 %v651, %v672
        %v688 = vadd.f32 %v652, %v672
        %v689 = vadd.f32 %v653, %v672
        %v690 = vadd.f32 %v654, %v672
        %v691 = vadd.f32 %v655, %v672
        %v692 = vadd.f32 %v656, %v672
        %v693 = vadd.f32 %v657, %v672
        %v694 = vadd.f32 %v658, %v672
        %v695 = vadd.f32 %v659, %v672
        %v696 = vadd.f32 %v660, %v672
        %v697 = vadd.f32 %v661, %v672
        %v698 = vadd.f32 %v662, %v672
        %v699 = vadd.f32 %v663, %v672
        %v700 = vadd.f32 %v664, %v672
        %v701 = vadd.f32 %v665, %v672
        %v702 = vadd.f32 %v666, %v672
        %v703 = vadd.f32 %v667, %v672
        %v704 = vadd.f32 %v668, %v672
        %v705 = vadd.f32 %v669, %v672
        %vm706 = vcmp.gt.f32.partialorder %v674, 0.0
        %vm707 = vcmp.gt.f32.partialorder %v675, 0.0
        %vm708 = vcmp.gt.f32.partialorder %v676, 0.0
        %vm709 = vcmp.gt.f32.partialorder %v677, 0.0
        %vm710 = vcmp.gt.f32.partialorder %v678, 0.0
        %vm711 = vcmp.gt.f32.partialorder %v679, 0.0
        %vm712 = vcmp.gt.f32.partialorder %v680, 0.0
        %vm713 = vcmp.gt.f32.partialorder %v681, 0.0
        %vm714 = vcmp.gt.f32.partialorder %v682, 0.0
        %vm715 = vcmp.gt.f32.partialorder %v683, 0.0
        %vm716 = vcmp.gt.f32.partialorder %v684, 0.0
        %vm717 = vcmp.gt.f32.partialorder %v685, 0.0
        %vm718 = vcmp.gt.f32.partialorder %v686, 0.0
        %vm719 = vcmp.gt.f32.partialorder %v687, 0.0
        %vm720 = vcmp.gt.f32.partialorder %v688, 0.0
        %vm721 = vcmp.gt.f32.partialorder %v689, 0.0
        %vm722 = vcmp.gt.f32.partialorder %v690, 0.0
        %vm723 = vcmp.gt.f32.partialorder %v691, 0.0
        %vm724 = vcmp.gt.f32.partialorder %v692, 0.0
        %vm725 = vcmp.gt.f32.partialorder %v693, 0.0
        %vm726 = vcmp.gt.f32.partialorder %v694, 0.0
        %vm727 = vcmp.gt.f32.partialorder %v695, 0.0
        %vm728 = vcmp.gt.f32.partialorder %v696, 0.0
        %vm729 = vcmp.gt.f32.partialorder %v697, 0.0
        %vm730 = vcmp.gt.f32.partialorder %v698, 0.0
        %vm731 = vcmp.gt.f32.partialorder %v699, 0.0
        %vm732 = vcmp.gt.f32.partialorder %v700, 0.0
        %vm733 = vcmp.gt.f32.partialorder %v701, 0.0
        %vm734 = vcmp.gt.f32.partialorder %v702, 0.0
        %vm735 = vcmp.gt.f32.partialorder %v703, 0.0
        %vm736 = vcmp.gt.f32.partialorder %v704, 0.0
        %vm737 = vcmp.gt.f32.partialorder %v705, 0.0
        %v738 = vmul.f32 %v674, 0.2
        %v739 = vmul.f32 %v675, 0.2
        %v740 = vmul.f32 %v676, 0.2
        %v741 = vmul.f32 %v677, 0.2
        %v742 = vmul.f32 %v678, 0.2
        %v743 = vmul.f32 %v679, 0.2
        %v744 = vmul.f32 %v680, 0.2
        %v745 = vmul.f32 %v681, 0.2
        %v746 = vmul.f32 %v682, 0.2
        %v747 = vmul.f32 %v683, 0.2
        %v748 = vmul.f32 %v684, 0.2
        %v749 = vmul.f32 %v685, 0.2
        %v750 = vmul.f32 %v686, 0.2
        %v751 = vmul.f32 %v687, 0.2
        %v752 = vmul.f32 %v688, 0.2
        %v753 = vmul.f32 %v689, 0.2
        %v754 = vmul.f32 %v690, 0.2
        %v755 = vmul.f32 %v691, 0.2
        %v756 = vmul.f32 %v692, 0.2
        %v757 = vmul.f32 %v693, 0.2
        %v758 = vmul.f32 %v694, 0.2
        %v759 = vmul.f32 %v695, 0.2
        %v760 = vmul.f32 %v696, 0.2
        %v761 = vmul.f32 %v697, 0.2
        %v762 = vmul.f32 %v698, 0.2
        %v763 = vmul.f32 %v699, 0.2
        %v764 = vmul.f32 %v700, 0.2
        %v765 = vmul.f32 %v701, 0.2
        %v766 = vmul.f32 %v702, 0.2
        %v767 = vmul.f32 %v703, 0.2
        %v768 = vmul.f32 %v704, 0.2
        %v769 = vmul.f32 %v705, 0.2
        %v770 = vsel %vm706, %v674, %v738
        %v771 = vsel %vm707, %v675, %v739
        %v772 = vsel %vm708, %v676, %v740
        %v773 = vsel %vm709, %v677, %v741
        %v774 = vsel %vm710, %v678, %v742
        %v775 = vsel %vm711, %v679, %v743
        %v776 = vsel %vm712, %v680, %v744
        %v777 = vsel %vm713, %v681, %v745
        %v778 = vsel %vm714, %v682, %v746
        %v779 = vsel %vm715, %v683, %v747
        %v780 = vsel %vm716, %v684, %v748
        %v781 = vsel %vm717, %v685, %v749
        %v782 = vsel %vm718, %v686, %v750
        %v783 = vsel %vm719, %v687, %v751
        %v784 = vsel %vm720, %v688, %v752
        %v785 = vsel %vm721, %v689, %v753
        %v786 = vsel %vm722, %v690, %v754
        %v787 = vsel %vm723, %v691, %v755
        %v788 = vsel %vm724, %v692, %v756
        %v789 = vsel %vm725, %v693, %v757
        %v790 = vsel %vm726, %v694, %v758
        %v791 = vsel %vm727, %v695, %v759
        %v792 = vsel %vm728, %v696, %v760
        %v793 = vsel %vm729, %v697, %v761
        %v794 = vsel %vm730, %v698, %v762
        %v795 = vsel %vm731, %v699, %v763
        %v796 = vsel %vm732, %v700, %v764
        %v797 = vsel %vm733, %v701, %v765
        %v798 = vsel %vm734, %v702, %v766
        %v799 = vsel %vm735, %v703, %v767
        %v800 = vsel %vm736, %v704, %v768
        %v801 = vsel %vm737, %v705, %v769
        %v802 = vpack.c.bf16 %v770, %v770
        %v803 = vpack.c.bf16 %v771, %v771
        %v804 = vpack.c.bf16 %v772, %v772
        %v805 = vpack.c.bf16 %v773, %v773
        %v806 = vpack.c.bf16 %v774, %v774
        %v807 = vpack.c.bf16 %v775, %v775
        %v808 = vpack.c.bf16 %v776, %v776
        %v809 = vpack.c.bf16 %v777, %v777
        %v810 = vpack.c.bf16 %v778, %v778
        %v811 = vpack.c.bf16 %v779, %v779
        %v812 = vpack.c.bf16 %v780, %v780
        %v813 = vpack.c.bf16 %v781, %v781
        %v814 = vpack.c.bf16 %v782, %v782
        %v815 = vpack.c.bf16 %v783, %v783
        %v816 = vpack.c.bf16 %v784, %v784
        %v817 = vpack.c.bf16 %v785, %v785
        %v818 = vpack.c.bf16 %v786, %v786
        %v819 = vpack.c.bf16 %v787, %v787
        %v820 = vpack.c.bf16 %v788, %v788
        %v821 = vpack.c.bf16 %v789, %v789
        %v822 = vpack.c.bf16 %v790, %v790
        %v823 = vpack.c.bf16 %v791, %v791
        %v824 = vpack.c.bf16 %v792, %v792
        %v825 = vpack.c.bf16 %v793, %v793
        %v826 = vpack.c.bf16 %v794, %v794
        %v827 = vpack.c.bf16 %v795, %v795
        %v828 = vpack.c.bf16 %v796, %v796
        %v829 = vpack.c.bf16 %v797, %v797
        %v830 = vpack.c.bf16 %v798, %v798
        %v831 = vpack.c.bf16 %v799, %v799
        %v832 = vpack.c.bf16 %v800, %v800
        %v833 = vpack.c.bf16 %v801, %v801
        %vm834 = vcmask 519168
        %835 = vst.msk [vmem:[%s217] sm:$0xf] %vm834, %v802
        %836 = vst.msk [vmem:[%s217 + $0x4] sm:$0xf] %vm834, %v803
        %837 = vst.msk [vmem:[%s217 + $0x8] sm:$0xf] %vm834, %v804
        %838 = vst.msk [vmem:[%s217 + $0xc] sm:$0xf] %vm834, %v805
        %839 = vst.msk [vmem:[%s217 + $0x10] sm:$0xf] %vm834, %v806
        %840 = vst.msk [vmem:[%s217 + $0x14] sm:$0xf] %vm834, %v807
        %841 = vst.msk [vmem:[%s217 + $0x18] sm:$0xf] %vm834, %v808
        %842 = vst.msk [vmem:[%s217 + $0x1c] sm:$0xf] %vm834, %v809
        %843 = vst.msk [vmem:[%s217 + $0x20] sm:$0xf] %vm834, %v810
        %844 = vst.msk [vmem:[%s217 + $0x24] sm:$0xf] %vm834, %v811
        %845 = vst.msk [vmem:[%s217 + $0x28] sm:$0xf] %vm834, %v812
        %846 = vst.msk [vmem:[%s217 + $0x2c] sm:$0xf] %vm834, %v813
        %847 = vst.msk [vmem:[%s217 + $0x30] sm:$0xf] %vm834, %v814
        %848 = vst.msk [vmem:[%s217 + $0x34] sm:$0xf] %vm834, %v815
        %849 = vst.msk [vmem:[%s217 + $0x38] sm:$0xf] %vm834, %v816
        %850 = vst.msk [vmem:[%s217 + $0x3c] sm:$0xf] %vm834, %v817
        %851 = vst.msk [vmem:[%s217 + $0x40] sm:$0xf] %vm834, %v818
        %852 = vst.msk [vmem:[%s217 + $0x44] sm:$0xf] %vm834, %v819
        %853 = vst.msk [vmem:[%s217 + $0x48] sm:$0xf] %vm834, %v820
        %854 = vst.msk [vmem:[%s217 + $0x4c] sm:$0xf] %vm834, %v821
        %855 = vst.msk [vmem:[%s217 + $0x50] sm:$0xf] %vm834, %v822
        %856 = vst.msk [vmem:[%s217 + $0x54] sm:$0xf] %vm834, %v823
        %857 = vst.msk [vmem:[%s217 + $0x58] sm:$0xf] %vm834, %v824
        %858 = vst.msk [vmem:[%s217 + $0x5c] sm:$0xf] %vm834, %v825
        %859 = vst.msk [vmem:[%s217 + $0x60] sm:$0xf] %vm834, %v826
        %860 = vst.msk [vmem:[%s217 + $0x64] sm:$0xf] %vm834, %v827
        %861 = vst.msk [vmem:[%s217 + $0x68] sm:$0xf] %vm834, %v828
        %862 = vst.msk [vmem:[%s217 + $0x6c] sm:$0xf] %vm834, %v829
        %863 = vst.msk [vmem:[%s217 + $0x70] sm:$0xf] %vm834, %v830
        %864 = vst.msk [vmem:[%s217 + $0x74] sm:$0xf] %vm834, %v831
        %865 = vst.msk [vmem:[%s217 + $0x78] sm:$0xf] %vm834, %v832
        %866 = vst.msk [vmem:[%s217 + $0x7c] sm:$0xf] %vm834, %v833
      $region40: #{dcgan_discriminator.5} parent=31 // pred_fallthru
        _
      %s867 = smul.u32 32, %s18
      %p868 = scmp.lt.s32.totalorder %s867, 63
      %s869 = scalar_select %p868, %s867, 63
      %s870 = smul.addr %s869, 4
      %s871 = scalar_lea.vmem %s3, %s870
      // Predicated region
      $region41: #{dcgan_discriminator.5} parent=31 // pred_check
        %p872 = pneg %p119
      $region42: #{dcgan_discriminator.5} parent=31 // pred_check_branch
        %874 = sbr.rel (%p872) target = $region44
      $region43: #{dcgan_discriminator.5} parent=31 // pred_region
        %s875 = smul.u32 32, %s18
      $region44: #{dcgan_discriminator.5} parent=31 // pred_fallthru
        _
    $region32: #{dcgan_discriminator.5} parent=5 // pred_fallthru
      _
    %p876 = scmp.le.s32.totalorder 2, %s9
    // Predicated region
    $region45: #{dcgan_discriminator.5} parent=5 // pred_check
      %p877 = pneg %p876
    $region46: #{dcgan_discriminator.5} parent=5 // pred_check_branch
      %879 = sbr.rel (%p877) target = $region48
    $region47: #{dcgan_discriminator.5} parent=5 // pred_region
      %s880 = ssub.s32 %s9, 2
      // Predicated region
      $region49: #{dcgan_discriminator.5} parent=47 // pred_check
        %p881 = pneg %p125
      $region50: #{dcgan_discriminator.5} parent=47 // pred_check_branch
        %883 = sbr.rel (%p881) target = $region52
      $region51: #{dcgan_discriminator.5} parent=47 // pred_region
        %s884 = smul.u32 32, %s20
        %p885 = scmp.lt.s32.totalorder %s884, 63
        %s886 = scalar_select %p885, %s884, 63
        %s887 = smul.addr %s886, 4
        %s888 = scalar_lea.vmem %s3, %s887
      $region52: #{dcgan_discriminator.5} parent=47 // pred_fallthru
        _
    $region48: #{dcgan_discriminator.5} parent=5 // pred_fallthru
      _
  $region6: #{dcgan_discriminator.5} parent=0 // loop_footer
    %s13 = sadd.s32 1, %s9
  $region7: #{dcgan_discriminator.5} parent=0 // loop_footer_branch
    %8 = sbr.rel target = $region3
  $region8: #{dcgan_discriminator.5} parent=0 // loop_exit
    _

// kernel: dcgan_discriminator.6
$region0: #{dcgan_discriminator.6}
  #allocation0 [shape = 'u32[]', space=smem, size = 0x4, offset = 0x4, fixed_abs, tag = 'smem constant byte address 0x4 - core index']
  #allocation1 [shape = 'u32[72,128]{1,0:T(1,128)}', space=vmem, size = 0x9000, scoped, tag = 'internal scratch']
  #allocation2 [shape = 'f32[128,128]{1,0:T(8,128)}', space=vmem, size = 0x10000, scoped, tag = 'scratch operand']
  %s0 = inlined_call_operand.vmem [shape: bf16[128,1024], index: 0, kind: input, shape index: {}]
  %s1 = inlined_call_operand.vmem [shape: bf16[1024,128], index: 1, kind: input, shape index: {}]
  %s2 = inlined_call_operand.vmem [shape: f32[1,128], index: 2, kind: input, shape index: {}]
  %s3 = inlined_call_operand.vmem [shape: bf16[128,128], index: 3, kind: output, shape index: {}]
  %s4 = sld [smem:[#allocation0]]
  $region30: #{dcgan_discriminator.6} parent=0
    _
  %s6 = ssub.s32 1, %s4
  %s7 = scalar_select 0, %s6, %s4
  // Predicated region
  $region2: #{dcgan_discriminator.6} parent=0 // pred_check
    _
  $region3: #{dcgan_discriminator.6} parent=0 // pred_check_branch
    %9 = sbr.rel (0) target = $region5
  $region4: #{dcgan_discriminator.6} parent=0 // pred_region
    _
  $region5: #{dcgan_discriminator.6} parent=0 // pred_fallthru
    _
  // Predicated region
  $region6: #{dcgan_discriminator.6} parent=0 // pred_check
    _
  $region7: #{dcgan_discriminator.6} parent=0 // pred_check_branch
    %11 = sbr.rel (0) target = $region9
  $region8: #{dcgan_discriminator.6} parent=0 // pred_region
    _
  $region9: #{dcgan_discriminator.6} parent=0 // pred_fallthru
    _
  // Predicated region
  $region10: #{dcgan_discriminator.6} parent=0 // pred_check
    _
  $region11: #{dcgan_discriminator.6} parent=0 // pred_check_branch
    %13 = sbr.rel (0) target = $region13
  $region12: #{dcgan_discriminator.6} parent=0 // pred_region
    _
  $region13: #{dcgan_discriminator.6} parent=0 // pred_fallthru
    _
  %p14 = scmp.eq.s32.totalorder 0, 0
  // Predicated region
  $region14: #{dcgan_discriminator.6} parent=0 // pred_check
    %p15 = pneg %p14
  $region15: #{dcgan_discriminator.6} parent=0 // pred_check_branch
    %17 = sbr.rel (%p15) target = $region17
  $region16: #{dcgan_discriminator.6} parent=0 // pred_region
    %18 = vst [vmem:[#allocation2] sm:$0xff] 0.0
    %19 = vst [vmem:[#allocation2 + $0x8] sm:$0xff] 0.0
    %20 = vst [vmem:[#allocation2 + $0x10] sm:$0xff] 0.0
    %21 = vst [vmem:[#allocation2 + $0x18] sm:$0xff] 0.0
    %22 = vst [vmem:[#allocation2 + $0x20] sm:$0xff] 0.0
    %23 = vst [vmem:[#allocation2 + $0x28] sm:$0xff] 0.0
    %24 = vst [vmem:[#allocation2 + $0x30] sm:$0xff] 0.0
    %25 = vst [vmem:[#allocation2 + $0x38] sm:$0xff] 0.0
    %26 = vst [vmem:[#allocation2 + $0x40] sm:$0xff] 0.0
    %27 = vst [vmem:[#allocation2 + $0x48] sm:$0xff] 0.0
    %28 = vst [vmem:[#allocation2 + $0x50] sm:$0xff] 0.0
    %29 = vst [vmem:[#allocation2 + $0x58] sm:$0xff] 0.0
    %30 = vst [vmem:[#allocation2 + $0x60] sm:$0xff] 0.0
    %31 = vst [vmem:[#allocation2 + $0x68] sm:$0xff] 0.0
    %32 = vst [vmem:[#allocation2 + $0x70] sm:$0xff] 0.0
    %33 = vst [vmem:[#allocation2 + $0x78] sm:$0xff] 0.0
  $region17: #{dcgan_discriminator.6} parent=0 // pred_fallthru
    _
  %v34 = vld [vmem:[#allocation2] sm:$0xff]
  %v35 = vld [vmem:[#allocation2 + $0x8] sm:$0xff]
  %v36 = vld [vmem:[#allocation2 + $0x10] sm:$0xff]
  %v37 = vld [vmem:[#allocation2 + $0x18] sm:$0xff]
  %v38 = vld [vmem:[#allocation2 + $0x20] sm:$0xff]
  %v39 = vld [vmem:[#allocation2 + $0x28] sm:$0xff]
  %v40 = vld [vmem:[#allocation2 + $0x30] sm:$0xff]
  %v41 = vld [vmem:[#allocation2 + $0x38] sm:$0xff]
  %v42 = vld [vmem:[#allocation2 + $0x40] sm:$0xff]
  %v43 = vld [vmem:[#allocation2 + $0x48] sm:$0xff]
  %v44 = vld [vmem:[#allocation2 + $0x50] sm:$0xff]
  %v45 = vld [vmem:[#allocation2 + $0x58] sm:$0xff]
  %v46 = vld [vmem:[#allocation2 + $0x60] sm:$0xff]
  %v47 = vld [vmem:[#allocation2 + $0x68] sm:$0xff]
  %v48 = vld [vmem:[#allocation2 + $0x70] sm:$0xff]
  %v49 = vld [vmem:[#allocation2 + $0x78] sm:$0xff]
  %v50 = vld [vmem:[%s0] sm:$0xff]
  %v51 = vld [vmem:[%s0 + $0x8] sm:$0xff]
  %v52 = vld [vmem:[%s0 + $0x10] sm:$0xff]
  %v53 = vld [vmem:[%s0 + $0x18] sm:$0xff]
  %v54 = vld [vmem:[%s0 + $0x20] sm:$0xff]
  %v55 = vld [vmem:[%s0 + $0x28] sm:$0xff]
  %v56 = vld [vmem:[%s0 + $0x30] sm:$0xff]
  %v57 = vld [vmem:[%s0 + $0x38] sm:$0xff]
  %v58 = vld [vmem:[%s0 + $0x40] sm:$0xff]
  %v59 = vld [vmem:[%s0 + $0x48] sm:$0xff]
  %v60 = vld [vmem:[%s0 + $0x50] sm:$0xff]
  %v61 = vld [vmem:[%s0 + $0x58] sm:$0xff]
  %v62 = vld [vmem:[%s0 + $0x60] sm:$0xff]
  %v63 = vld [vmem:[%s0 + $0x68] sm:$0xff]
  %v64 = vld [vmem:[%s0 + $0x70] sm:$0xff]
  %v65 = vld [vmem:[%s0 + $0x78] sm:$0xff]
  %v66 = vld [vmem:[%s0 + $0x80] sm:$0xff]
  %v67 = vld [vmem:[%s0 + $0x88] sm:$0xff]
  %v68 = vld [vmem:[%s0 + $0x90] sm:$0xff]
  %v69 = vld [vmem:[%s0 + $0x98] sm:$0xff]
  %v70 = vld [vmem:[%s0 + $0xa0] sm:$0xff]
  %v71 = vld [vmem:[%s0 + $0xa8] sm:$0xff]
  %v72 = vld [vmem:[%s0 + $0xb0] sm:$0xff]
  %v73 = vld [vmem:[%s0 + $0xb8] sm:$0xff]
  %v74 = vld [vmem:[%s0 + $0xc0] sm:$0xff]
  %v75 = vld [vmem:[%s0 + $0xc8] sm:$0xff]
  %v76 = vld [vmem:[%s0 + $0xd0] sm:$0xff]
  %v77 = vld [vmem:[%s0 + $0xd8] sm:$0xff]
  %v78 = vld [vmem:[%s0 + $0xe0] sm:$0xff]
  %v79 = vld [vmem:[%s0 + $0xe8] sm:$0xff]
  %v80 = vld [vmem:[%s0 + $0xf0] sm:$0xff]
  %v81 = vld [vmem:[%s0 + $0xf8] sm:$0xff]
  %v82 = vld [vmem:[%s0 + $0x100] sm:$0xff]
  %v83 = vld [vmem:[%s0 + $0x108] sm:$0xff]
  %v84 = vld [vmem:[%s0 + $0x110] sm:$0xff]
  %v85 = vld [vmem:[%s0 + $0x118] sm:$0xff]
  %v86 = vld [vmem:[%s0 + $0x120] sm:$0xff]
  %v87 = vld [vmem:[%s0 + $0x128] sm:$0xff]
  %v88 = vld [vmem:[%s0 + $0x130] sm:$0xff]
  %v89 = vld [vmem:[%s0 + $0x138] sm:$0xff]
  %v90 = vld [vmem:[%s0 + $0x140] sm:$0xff]
  %v91 = vld [vmem:[%s0 + $0x148] sm:$0xff]
  %v92 = vld [vmem:[%s0 + $0x150] sm:$0xff]
  %v93 = vld [vmem:[%s0 + $0x158] sm:$0xff]
  %v94 = vld [vmem:[%s0 + $0x160] sm:$0xff]
  %v95 = vld [vmem:[%s0 + $0x168] sm:$0xff]
  %v96 = vld [vmem:[%s0 + $0x170] sm:$0xff]
  %v97 = vld [vmem:[%s0 + $0x178] sm:$0xff]
  %v98 = vld [vmem:[%s0 + $0x180] sm:$0xff]
  %v99 = vld [vmem:[%s0 + $0x188] sm:$0xff]
  %v100 = vld [vmem:[%s0 + $0x190] sm:$0xff]
  %v101 = vld [vmem:[%s0 + $0x198] sm:$0xff]
  %v102 = vld [vmem:[%s0 + $0x1a0] sm:$0xff]
  %v103 = vld [vmem:[%s0 + $0x1a8] sm:$0xff]
  %v104 = vld [vmem:[%s0 + $0x1b0] sm:$0xff]
  %v105 = vld [vmem:[%s0 + $0x1b8] sm:$0xff]
  %v106 = vld [vmem:[%s0 + $0x1c0] sm:$0xff]
  %v107 = vld [vmem:[%s0 + $0x1c8] sm:$0xff]
  %v108 = vld [vmem:[%s0 + $0x1d0] sm:$0xff]
  %v109 = vld [vmem:[%s0 + $0x1d8] sm:$0xff]
  %v110 = vld [vmem:[%s0 + $0x1e0] sm:$0xff]
  %v111 = vld [vmem:[%s0 + $0x1e8] sm:$0xff]
  %v112 = vld [vmem:[%s0 + $0x1f0] sm:$0xff]
  %v113 = vld [vmem:[%s0 + $0x1f8] sm:$0xff]
  %v114 = vld [vmem:[%s1] sm:$0xf]
  %v115 = vld [vmem:[%s1 + $0x4] sm:$0xf]
  %v116 = vld [vmem:[%s1 + $0x8] sm:$0xf]
  %v117 = vld [vmem:[%s1 + $0xc] sm:$0xf]
  %v118 = vld [vmem:[%s1 + $0x10] sm:$0xf]
  %v119 = vld [vmem:[%s1 + $0x14] sm:$0xf]
  %v120 = vld [vmem:[%s1 + $0x18] sm:$0xf]
  %v121 = vld [vmem:[%s1 + $0x1c] sm:$0xf]
  %v122 = vld [vmem:[%s1 + $0x20] sm:$0xf]
  %v123 = vld [vmem:[%s1 + $0x24] sm:$0xf]
  %v124 = vld [vmem:[%s1 + $0x28] sm:$0xf]
  %v125 = vld [vmem:[%s1 + $0x2c] sm:$0xf]
  %v126 = vld [vmem:[%s1 + $0x30] sm:$0xf]
  %v127 = vld [vmem:[%s1 + $0x34] sm:$0xf]
  %v128 = vld [vmem:[%s1 + $0x38] sm:$0xf]
  %v129 = vld [vmem:[%s1 + $0x3c] sm:$0xf]
  %v130 = vld [vmem:[%s1 + $0x40] sm:$0xf]
  %v131 = vld [vmem:[%s1 + $0x44] sm:$0xf]
  %v132 = vld [vmem:[%s1 + $0x48] sm:$0xf]
  %v133 = vld [vmem:[%s1 + $0x4c] sm:$0xf]
  %v134 = vld [vmem:[%s1 + $0x50] sm:$0xf]
  %v135 = vld [vmem:[%s1 + $0x54] sm:$0xf]
  %v136 = vld [vmem:[%s1 + $0x58] sm:$0xf]
  %v137 = vld [vmem:[%s1 + $0x5c] sm:$0xf]
  %v138 = vld [vmem:[%s1 + $0x60] sm:$0xf]
  %v139 = vld [vmem:[%s1 + $0x64] sm:$0xf]
  %v140 = vld [vmem:[%s1 + $0x68] sm:$0xf]
  %v141 = vld [vmem:[%s1 + $0x6c] sm:$0xf]
  %v142 = vld [vmem:[%s1 + $0x70] sm:$0xf]
  %v143 = vld [vmem:[%s1 + $0x74] sm:$0xf]
  %v144 = vld [vmem:[%s1 + $0x78] sm:$0xf]
  %v145 = vld [vmem:[%s1 + $0x7c] sm:$0xf]
  %v146 = vld [vmem:[%s1 + $0x80] sm:$0xf]
  %v147 = vld [vmem:[%s1 + $0x84] sm:$0xf]
  %v148 = vld [vmem:[%s1 + $0x88] sm:$0xf]
  %v149 = vld [vmem:[%s1 + $0x8c] sm:$0xf]
  %v150 = vld [vmem:[%s1 + $0x90] sm:$0xf]
  %v151 = vld [vmem:[%s1 + $0x94] sm:$0xf]
  %v152 = vld [vmem:[%s1 + $0x98] sm:$0xf]
  %v153 = vld [vmem:[%s1 + $0x9c] sm:$0xf]
  %v154 = vld [vmem:[%s1 + $0xa0] sm:$0xf]
  %v155 = vld [vmem:[%s1 + $0xa4] sm:$0xf]
  %v156 = vld [vmem:[%s1 + $0xa8] sm:$0xf]
  %v157 = vld [vmem:[%s1 + $0xac] sm:$0xf]
  %v158 = vld [vmem:[%s1 + $0xb0] sm:$0xf]
  %v159 = vld [vmem:[%s1 + $0xb4] sm:$0xf]
  %v160 = vld [vmem:[%s1 + $0xb8] sm:$0xf]
  %v161 = vld [vmem:[%s1 + $0xbc] sm:$0xf]
  %v162 = vld [vmem:[%s1 + $0xc0] sm:$0xf]
  %v163 = vld [vmem:[%s1 + $0xc4] sm:$0xf]
  %v164 = vld [vmem:[%s1 + $0xc8] sm:$0xf]
  %v165 = vld [vmem:[%s1 + $0xcc] sm:$0xf]
  %v166 = vld [vmem:[%s1 + $0xd0] sm:$0xf]
  %v167 = vld [vmem:[%s1 + $0xd4] sm:$0xf]
  %v168 = vld [vmem:[%s1 + $0xd8] sm:$0xf]
  %v169 = vld [vmem:[%s1 + $0xdc] sm:$0xf]
  %v170 = vld [vmem:[%s1 + $0xe0] sm:$0xf]
  %v171 = vld [vmem:[%s1 + $0xe4] sm:$0xf]
  %v172 = vld [vmem:[%s1 + $0xe8] sm:$0xf]
  %v173 = vld [vmem:[%s1 + $0xec] sm:$0xf]
  %v174 = vld [vmem:[%s1 + $0xf0] sm:$0xf]
  %v175 = vld [vmem:[%s1 + $0xf4] sm:$0xf]
  %v176 = vld [vmem:[%s1 + $0xf8] sm:$0xf]
  %v177 = vld [vmem:[%s1 + $0xfc] sm:$0xf]
  %v178 = vld [vmem:[%s1 + $0x100] sm:$0xf]
  %v179 = vld [vmem:[%s1 + $0x104] sm:$0xf]
  %v180 = vld [vmem:[%s1 + $0x108] sm:$0xf]
  %v181 = vld [vmem:[%s1 + $0x10c] sm:$0xf]
  %v182 = vld [vmem:[%s1 + $0x110] sm:$0xf]
  %v183 = vld [vmem:[%s1 + $0x114] sm:$0xf]
  %v184 = vld [vmem:[%s1 + $0x118] sm:$0xf]
  %v185 = vld [vmem:[%s1 + $0x11c] sm:$0xf]
  %v186 = vld [vmem:[%s1 + $0x120] sm:$0xf]
  %v187 = vld [vmem:[%s1 + $0x124] sm:$0xf]
  %v188 = vld [vmem:[%s1 + $0x128] sm:$0xf]
  %v189 = vld [vmem:[%s1 + $0x12c] sm:$0xf]
  %v190 = vld [vmem:[%s1 + $0x130] sm:$0xf]
  %v191 = vld [vmem:[%s1 + $0x134] sm:$0xf]
  %v192 = vld [vmem:[%s1 + $0x138] sm:$0xf]
  %v193 = vld [vmem:[%s1 + $0x13c] sm:$0xf]
  %v194 = vld [vmem:[%s1 + $0x140] sm:$0xf]
  %v195 = vld [vmem:[%s1 + $0x144] sm:$0xf]
  %v196 = vld [vmem:[%s1 + $0x148] sm:$0xf]
  %v197 = vld [vmem:[%s1 + $0x14c] sm:$0xf]
  %v198 = vld [vmem:[%s1 + $0x150] sm:$0xf]
  %v199 = vld [vmem:[%s1 + $0x154] sm:$0xf]
  %v200 = vld [vmem:[%s1 + $0x158] sm:$0xf]
  %v201 = vld [vmem:[%s1 + $0x15c] sm:$0xf]
  %v202 = vld [vmem:[%s1 + $0x160] sm:$0xf]
  %v203 = vld [vmem:[%s1 + $0x164] sm:$0xf]
  %v204 = vld [vmem:[%s1 + $0x168] sm:$0xf]
  %v205 = vld [vmem:[%s1 + $0x16c] sm:$0xf]
  %v206 = vld [vmem:[%s1 + $0x170] sm:$0xf]
  %v207 = vld [vmem:[%s1 + $0x174] sm:$0xf]
  %v208 = vld [vmem:[%s1 + $0x178] sm:$0xf]
  %v209 = vld [vmem:[%s1 + $0x17c] sm:$0xf]
  %v210 = vld [vmem:[%s1 + $0x180] sm:$0xf]
  %v211 = vld [vmem:[%s1 + $0x184] sm:$0xf]
  %v212 = vld [vmem:[%s1 + $0x188] sm:$0xf]
  %v213 = vld [vmem:[%s1 + $0x18c] sm:$0xf]
  %v214 = vld [vmem:[%s1 + $0x190] sm:$0xf]
  %v215 = vld [vmem:[%s1 + $0x194] sm:$0xf]
  %v216 = vld [vmem:[%s1 + $0x198] sm:$0xf]
  %v217 = vld [vmem:[%s1 + $0x19c] sm:$0xf]
  %v218 = vld [vmem:[%s1 + $0x1a0] sm:$0xf]
  %v219 = vld [vmem:[%s1 + $0x1a4] sm:$0xf]
  %v220 = vld [vmem:[%s1 + $0x1a8] sm:$0xf]
  %v221 = vld [vmem:[%s1 + $0x1ac] sm:$0xf]
  %v222 = vld [vmem:[%s1 + $0x1b0] sm:$0xf]
  %v223 = vld [vmem:[%s1 + $0x1b4] sm:$0xf]
  %v224 = vld [vmem:[%s1 + $0x1b8] sm:$0xf]
  %v225 = vld [vmem:[%s1 + $0x1bc] sm:$0xf]
  %v226 = vld [vmem:[%s1 + $0x1c0] sm:$0xf]
  %v227 = vld [vmem:[%s1 + $0x1c4] sm:$0xf]
  %v228 = vld [vmem:[%s1 + $0x1c8] sm:$0xf]
  %v229 = vld [vmem:[%s1 + $0x1cc] sm:$0xf]
  %v230 = vld [vmem:[%s1 + $0x1d0] sm:$0xf]
  %v231 = vld [vmem:[%s1 + $0x1d4] sm:$0xf]
  %v232 = vld [vmem:[%s1 + $0x1d8] sm:$0xf]
  %v233 = vld [vmem:[%s1 + $0x1dc] sm:$0xf]
  %v234 = vld [vmem:[%s1 + $0x1e0] sm:$0xf]
  %v235 = vld [vmem:[%s1 + $0x1e4] sm:$0xf]
  %v236 = vld [vmem:[%s1 + $0x1e8] sm:$0xf]
  %v237 = vld [vmem:[%s1 + $0x1ec] sm:$0xf]
  %v238 = vld [vmem:[%s1 + $0x1f0] sm:$0xf]
  %v239 = vld [vmem:[%s1 + $0x1f4] sm:$0xf]
  %v240 = vld [vmem:[%s1 + $0x1f8] sm:$0xf]
  %v241 = vld [vmem:[%s1 + $0x1fc] sm:$0xf]
  %v306 = vunpack.c.l.b16 %v50
  %v307 = vunpack.c.h.b16 %v50
  %v308 = vunpack.c.l.b16 %v51
  %v309 = vunpack.c.h.b16 %v51
  %v310 = vunpack.c.l.b16 %v52
  %v311 = vunpack.c.h.b16 %v52
  %v312 = vunpack.c.l.b16 %v53
  %v313 = vunpack.c.h.b16 %v53
  %v314 = vunpack.c.l.b16 %v54
  %v315 = vunpack.c.h.b16 %v54
  %v316 = vunpack.c.l.b16 %v55
  %v317 = vunpack.c.h.b16 %v55
  %v318 = vunpack.c.l.b16 %v56
  %v319 = vunpack.c.h.b16 %v56
  %v320 = vunpack.c.l.b16 %v57
  %v321 = vunpack.c.h.b16 %v57
  %v322 = vunpack.c.l.b16 %v58
  %v323 = vunpack.c.h.b16 %v58
  %v324 = vunpack.c.l.b16 %v59
  %v325 = vunpack.c.h.b16 %v59
  %v326 = vunpack.c.l.b16 %v60
  %v327 = vunpack.c.h.b16 %v60
  %v328 = vunpack.c.l.b16 %v61
  %v329 = vunpack.c.h.b16 %v61
  %v330 = vunpack.c.l.b16 %v62
  %v331 = vunpack.c.h.b16 %v62
  %v332 = vunpack.c.l.b16 %v63
  %v333 = vunpack.c.h.b16 %v63
  %v334 = vunpack.c.l.b16 %v64
  %v335 = vunpack.c.h.b16 %v64
  %v336 = vunpack.c.l.b16 %v65
  %v337 = vunpack.c.h.b16 %v65
  %v338 = vunpack.c.l.b16 %v66
  %v339 = vunpack.c.h.b16 %v66
  %v340 = vunpack.c.l.b16 %v67
  %v341 = vunpack.c.h.b16 %v67
  %v342 = vunpack.c.l.b16 %v68
  %v343 = vunpack.c.h.b16 %v68
  %v344 = vunpack.c.l.b16 %v69
  %v345 = vunpack.c.h.b16 %v69
  %v346 = vunpack.c.l.b16 %v70
  %v347 = vunpack.c.h.b16 %v70
  %v348 = vunpack.c.l.b16 %v71
  %v349 = vunpack.c.h.b16 %v71
  %v350 = vunpack.c.l.b16 %v72
  %v351 = vunpack.c.h.b16 %v72
  %v352 = vunpack.c.l.b16 %v73
  %v353 = vunpack.c.h.b16 %v73
  %v354 = vunpack.c.l.b16 %v74
  %v355 = vunpack.c.h.b16 %v74
  %v356 = vunpack.c.l.b16 %v75
  %v357 = vunpack.c.h.b16 %v75
  %v358 = vunpack.c.l.b16 %v76
  %v359 = vunpack.c.h.b16 %v76
  %v360 = vunpack.c.l.b16 %v77
  %v361 = vunpack.c.h.b16 %v77
  %v362 = vunpack.c.l.b16 %v78
  %v363 = vunpack.c.h.b16 %v78
  %v364 = vunpack.c.l.b16 %v79
  %v365 = vunpack.c.h.b16 %v79
  %v366 = vunpack.c.l.b16 %v80
  %v367 = vunpack.c.h.b16 %v80
  %v368 = vunpack.c.l.b16 %v81
  %v369 = vunpack.c.h.b16 %v81
  %v370 = vunpack.c.l.b16 %v82
  %v371 = vunpack.c.h.b16 %v82
  %v372 = vunpack.c.l.b16 %v83
  %v373 = vunpack.c.h.b16 %v83
  %v374 = vunpack.c.l.b16 %v84
  %v375 = vunpack.c.h.b16 %v84
  %v376 = vunpack.c.l.b16 %v85
  %v377 = vunpack.c.h.b16 %v85
  %v378 = vunpack.c.l.b16 %v86
  %v379 = vunpack.c.h.b16 %v86
  %v380 = vunpack.c.l.b16 %v87
  %v381 = vunpack.c.h.b16 %v87
  %v382 = vunpack.c.l.b16 %v88
  %v383 = vunpack.c.h.b16 %v88
  %v384 = vunpack.c.l.b16 %v89
  %v385 = vunpack.c.h.b16 %v89
  %v386 = vunpack.c.l.b16 %v90
  %v387 = vunpack.c.h.b16 %v90
  %v388 = vunpack.c.l.b16 %v91
  %v389 = vunpack.c.h.b16 %v91
  %v390 = vunpack.c.l.b16 %v92
  %v391 = vunpack.c.h.b16 %v92
  %v392 = vunpack.c.l.b16 %v93
  %v393 = vunpack.c.h.b16 %v93
  %v394 = vunpack.c.l.b16 %v94
  %v395 = vunpack.c.h.b16 %v94
  %v396 = vunpack.c.l.b16 %v95
  %v397 = vunpack.c.h.b16 %v95
  %v398 = vunpack.c.l.b16 %v96
  %v399 = vunpack.c.h.b16 %v96
  %v400 = vunpack.c.l.b16 %v97
  %v401 = vunpack.c.h.b16 %v97
  %v402 = vunpack.c.l.b16 %v98
  %v403 = vunpack.c.h.b16 %v98
  %v404 = vunpack.c.l.b16 %v99
  %v405 = vunpack.c.h.b16 %v99
  %v406 = vunpack.c.l.b16 %v100
  %v407 = vunpack.c.h.b16 %v100
  %v408 = vunpack.c.l.b16 %v101
  %v409 = vunpack.c.h.b16 %v101
  %v410 = vunpack.c.l.b16 %v102
  %v411 = vunpack.c.h.b16 %v102
  %v412 = vunpack.c.l.b16 %v103
  %v413 = vunpack.c.h.b16 %v103
  %v414 = vunpack.c.l.b16 %v104
  %v415 = vunpack.c.h.b16 %v104
  %v416 = vunpack.c.l.b16 %v105
  %v417 = vunpack.c.h.b16 %v105
  %v418 = vunpack.c.l.b16 %v106
  %v419 = vunpack.c.h.b16 %v106
  %v420 = vunpack.c.l.b16 %v107
  %v421 = vunpack.c.h.b16 %v107
  %v422 = vunpack.c.l.b16 %v108
  %v423 = vunpack.c.h.b16 %v108
  %v424 = vunpack.c.l.b16 %v109
  %v425 = vunpack.c.h.b16 %v109
  %v426 = vunpack.c.l.b16 %v110
  %v427 = vunpack.c.h.b16 %v110
  %v428 = vunpack.c.l.b16 %v111
  %v429 = vunpack.c.h.b16 %v111
  %v430 = vunpack.c.l.b16 %v112
  %v431 = vunpack.c.h.b16 %v112
  %v432 = vunpack.c.l.b16 %v113
  %v433 = vunpack.c.h.b16 %v113
  %v434 = vpack.c.b16 %v314, %v306
  %v435 = vpack.c.b16 %v315, %v307
  %v436 = vpack.c.b16 %v316, %v308
  %v437 = vpack.c.b16 %v317, %v309
  %v438 = vpack.c.b16 %v318, %v310
  %v439 = vpack.c.b16 %v319, %v311
  %v440 = vpack.c.b16 %v320, %v312
  %v441 = vpack.c.b16 %v321, %v313
  %v442 = vpack.c.b16 %v330, %v322
  %v443 = vpack.c.b16 %v331, %v323
  %v444 = vpack.c.b16 %v332, %v324
  %v445 = vpack.c.b16 %v333, %v325
  %v446 = vpack.c.b16 %v334, %v326
  %v447 = vpack.c.b16 %v335, %v327
  %v448 = vpack.c.b16 %v336, %v328
  %v449 = vpack.c.b16 %v337, %v329
  %v450 = vpack.c.b16 %v346, %v338
  %v451 = vpack.c.b16 %v347, %v339
  %v452 = vpack.c.b16 %v348, %v340
  %v453 = vpack.c.b16 %v349, %v341
  %v454 = vpack.c.b16 %v350, %v342
  %v455 = vpack.c.b16 %v351, %v343
  %v456 = vpack.c.b16 %v352, %v344
  %v457 = vpack.c.b16 %v353, %v345
  %v458 = vpack.c.b16 %v362, %v354
  %v459 = vpack.c.b16 %v363, %v355
  %v460 = vpack.c.b16 %v364, %v356
  %v461 = vpack.c.b16 %v365, %v357
  %v462 = vpack.c.b16 %v366, %v358
  %v463 = vpack.c.b16 %v367, %v359
  %v464 = vpack.c.b16 %v368, %v360
  %v465 = vpack.c.b16 %v369, %v361
  %v466 = vpack.c.b16 %v378, %v370
  %v467 = vpack.c.b16 %v379, %v371
  %v468 = vpack.c.b16 %v380, %v372
  %v469 = vpack.c.b16 %v381, %v373
  %v470 = vpack.c.b16 %v382, %v374
  %v471 = vpack.c.b16 %v383, %v375
  %v472 = vpack.c.b16 %v384, %v376
  %v473 = vpack.c.b16 %v385, %v377
  %v474 = vpack.c.b16 %v394, %v386
  %v475 = vpack.c.b16 %v395, %v387
  %v476 = vpack.c.b16 %v396, %v388
  %v477 = vpack.c.b16 %v397, %v389
  %v478 = vpack.c.b16 %v398, %v390
  %v479 = vpack.c.b16 %v399, %v391
  %v480 = vpack.c.b16 %v400, %v392
  %v481 = vpack.c.b16 %v401, %v393
  %v482 = vpack.c.b16 %v410, %v402
  %v483 = vpack.c.b16 %v411, %v403
  %v484 = vpack.c.b16 %v412, %v404
  %v485 = vpack.c.b16 %v413, %v405
  %v486 = vpack.c.b16 %v414, %v406
  %v487 = vpack.c.b16 %v415, %v407
  %v488 = vpack.c.b16 %v416, %v408
  %v489 = vpack.c.b16 %v417, %v409
  %v490 = vpack.c.b16 %v426, %v418
  %v491 = vpack.c.b16 %v427, %v419
  %v492 = vpack.c.b16 %v428, %v420
  %v493 = vpack.c.b16 %v429, %v421
  %v494 = vpack.c.b16 %v430, %v422
  %v495 = vpack.c.b16 %v431, %v423
  %v496 = vpack.c.b16 %v432, %v424
  %v497 = vpack.c.b16 %v433, %v425
  %v690 = vunpack.c.l.b16 %v114
  %v691 = vunpack.c.l.b16 %v115
  %v692 = vunpack.c.l.b16 %v116
  %v693 = vunpack.c.l.b16 %v117
  %v694 = vunpack.c.l.b16 %v118
  %v695 = vunpack.c.l.b16 %v119
  %v696 = vunpack.c.l.b16 %v120
  %v697 = vunpack.c.l.b16 %v121
  %v698 = vunpack.c.l.b16 %v122
  %v699 = vunpack.c.l.b16 %v123
  %v700 = vunpack.c.l.b16 %v124
  %v701 = vunpack.c.l.b16 %v125
  %v702 = vunpack.c.l.b16 %v126
  %v703 = vunpack.c.l.b16 %v127
  %v704 = vunpack.c.l.b16 %v128
  %v705 = vunpack.c.l.b16 %v129
  %v706 = vunpack.c.l.b16 %v130
  %v707 = vunpack.c.l.b16 %v131
  %v708 = vunpack.c.l.b16 %v132
  %v709 = vunpack.c.l.b16 %v133
  %v710 = vunpack.c.l.b16 %v134
  %v711 = vunpack.c.l.b16 %v135
  %v712 = vunpack.c.l.b16 %v136
  %v713 = vunpack.c.l.b16 %v137
  %v714 = vunpack.c.l.b16 %v138
  %v715 = vunpack.c.l.b16 %v139
  %v716 = vunpack.c.l.b16 %v140
  %v717 = vunpack.c.l.b16 %v141
  %v718 = vunpack.c.l.b16 %v142
  %v719 = vunpack.c.l.b16 %v143
  %v720 = vunpack.c.l.b16 %v144
  %v721 = vunpack.c.l.b16 %v145
  %v722 = vunpack.c.l.b16 %v146
  %v723 = vunpack.c.l.b16 %v147
  %v724 = vunpack.c.l.b16 %v148
  %v725 = vunpack.c.l.b16 %v149
  %v726 = vunpack.c.l.b16 %v150
  %v727 = vunpack.c.l.b16 %v151
  %v728 = vunpack.c.l.b16 %v152
  %v729 = vunpack.c.l.b16 %v153
  %v730 = vunpack.c.l.b16 %v154
  %v731 = vunpack.c.l.b16 %v155
  %v732 = vunpack.c.l.b16 %v156
  %v733 = vunpack.c.l.b16 %v157
  %v734 = vunpack.c.l.b16 %v158
  %v735 = vunpack.c.l.b16 %v159
  %v736 = vunpack.c.l.b16 %v160
  %v737 = vunpack.c.l.b16 %v161
  %v738 = vunpack.c.l.b16 %v162
  %v739 = vunpack.c.l.b16 %v163
  %v740 = vunpack.c.l.b16 %v164
  %v741 = vunpack.c.l.b16 %v165
  %v742 = vunpack.c.l.b16 %v166
  %v743 = vunpack.c.l.b16 %v167
  %v744 = vunpack.c.l.b16 %v168
  %v745 = vunpack.c.l.b16 %v169
  %v746 = vunpack.c.l.b16 %v170
  %v747 = vunpack.c.l.b16 %v171
  %v748 = vunpack.c.l.b16 %v172
  %v749 = vunpack.c.l.b16 %v173
  %v750 = vunpack.c.l.b16 %v174
  %v751 = vunpack.c.l.b16 %v175
  %v752 = vunpack.c.l.b16 %v176
  %v753 = vunpack.c.l.b16 %v177
  %v754 = vunpack.c.l.b16 %v178
  %v755 = vunpack.c.l.b16 %v179
  %v756 = vunpack.c.l.b16 %v180
  %v757 = vunpack.c.l.b16 %v181
  %v758 = vunpack.c.l.b16 %v182
  %v759 = vunpack.c.l.b16 %v183
  %v760 = vunpack.c.l.b16 %v184
  %v761 = vunpack.c.l.b16 %v185
  %v762 = vunpack.c.l.b16 %v186
  %v763 = vunpack.c.l.b16 %v187
  %v764 = vunpack.c.l.b16 %v188
  %v765 = vunpack.c.l.b16 %v189
  %v766 = vunpack.c.l.b16 %v190
  %v767 = vunpack.c.l.b16 %v191
  %v768 = vunpack.c.l.b16 %v192
  %v769 = vunpack.c.l.b16 %v193
  %v770 = vunpack.c.l.b16 %v194
  %v771 = vunpack.c.l.b16 %v195
  %v772 = vunpack.c.l.b16 %v196
  %v773 = vunpack.c.l.b16 %v197
  %v774 = vunpack.c.l.b16 %v198
  %v775 = vunpack.c.l.b16 %v199
  %v776 = vunpack.c.l.b16 %v200
  %v777 = vunpack.c.l.b16 %v201
  %v778 = vunpack.c.l.b16 %v202
  %v779 = vunpack.c.l.b16 %v203
  %v780 = vunpack.c.l.b16 %v204
  %v781 = vunpack.c.l.b16 %v205
  %v782 = vunpack.c.l.b16 %v206
  %v783 = vunpack.c.l.b16 %v207
  %v784 = vunpack.c.l.b16 %v208
  %v785 = vunpack.c.l.b16 %v209
  %v786 = vunpack.c.l.b16 %v210
  %v787 = vunpack.c.l.b16 %v211
  %v788 = vunpack.c.l.b16 %v212
  %v789 = vunpack.c.l.b16 %v213
  %v790 = vunpack.c.l.b16 %v214
  %v791 = vunpack.c.l.b16 %v215
  %v792 = vunpack.c.l.b16 %v216
  %v793 = vunpack.c.l.b16 %v217
  %v794 = vunpack.c.l.b16 %v218
  %v795 = vunpack.c.l.b16 %v219
  %v796 = vunpack.c.l.b16 %v220
  %v797 = vunpack.c.l.b16 %v221
  %v798 = vunpack.c.l.b16 %v222
  %v799 = vunpack.c.l.b16 %v223
  %v800 = vunpack.c.l.b16 %v224
  %v801 = vunpack.c.l.b16 %v225
  %v802 = vunpack.c.l.b16 %v226
  %v803 = vunpack.c.l.b16 %v227
  %v804 = vunpack.c.l.b16 %v228
  %v805 = vunpack.c.l.b16 %v229
  %v806 = vunpack.c.l.b16 %v230
  %v807 = vunpack.c.l.b16 %v231
  %v808 = vunpack.c.l.b16 %v232
  %v809 = vunpack.c.l.b16 %v233
  %v810 = vunpack.c.l.b16 %v234
  %v811 = vunpack.c.l.b16 %v235
  %v812 = vunpack.c.l.b16 %v236
  %v813 = vunpack.c.l.b16 %v237
  %v814 = vunpack.c.l.b16 %v238
  %v815 = vunpack.c.l.b16 %v239
  %v816 = vunpack.c.l.b16 %v240
  %v817 = vunpack.c.l.b16 %v241
  %v818 = vpack.c.b16 %v691, %v690
  %v819 = vpack.c.b16 %v693, %v692
  %v820 = vpack.c.b16 %v695, %v694
  %v821 = vpack.c.b16 %v697, %v696
  %v822 = vpack.c.b16 %v699, %v698
  %v823 = vpack.c.b16 %v701, %v700
  %v824 = vpack.c.b16 %v703, %v702
  %v825 = vpack.c.b16 %v705, %v704
  %v826 = vpack.c.b16 %v707, %v706
  %v827 = vpack.c.b16 %v709, %v708
  %v828 = vpack.c.b16 %v711, %v710
  %v829 = vpack.c.b16 %v713, %v712
  %v830 = vpack.c.b16 %v715, %v714
  %v831 = vpack.c.b16 %v717, %v716
  %v832 = vpack.c.b16 %v719, %v718
  %v833 = vpack.c.b16 %v721, %v720
  %v834 = vpack.c.b16 %v723, %v722
  %v835 = vpack.c.b16 %v725, %v724
  %v836 = vpack.c.b16 %v727, %v726
  %v837 = vpack.c.b16 %v729, %v728
  %v838 = vpack.c.b16 %v731, %v730
  %v839 = vpack.c.b16 %v733, %v732
  %v840 = vpack.c.b16 %v735, %v734
  %v841 = vpack.c.b16 %v737, %v736
  %v842 = vpack.c.b16 %v739, %v738
  %v843 = vpack.c.b16 %v741, %v740
  %v844 = vpack.c.b16 %v743, %v742
  %v845 = vpack.c.b16 %v745, %v744
  %v846 = vpack.c.b16 %v747, %v746
  %v847 = vpack.c.b16 %v749, %v748
  %v848 = vpack.c.b16 %v751, %v750
  %v849 = vpack.c.b16 %v753, %v752
  %v850 = vpack.c.b16 %v755, %v754
  %v851 = vpack.c.b16 %v757, %v756
  %v852 = vpack.c.b16 %v759, %v758
  %v853 = vpack.c.b16 %v761, %v760
  %v854 = vpack.c.b16 %v763, %v762
  %v855 = vpack.c.b16 %v765, %v764
  %v856 = vpack.c.b16 %v767, %v766
  %v857 = vpack.c.b16 %v769, %v768
  %v858 = vpack.c.b16 %v771, %v770
  %v859 = vpack.c.b16 %v773, %v772
  %v860 = vpack.c.b16 %v775, %v774
  %v861 = vpack.c.b16 %v777, %v776
  %v862 = vpack.c.b16 %v779, %v778
  %v863 = vpack.c.b16 %v781, %v780
  %v864 = vpack.c.b16 %v783, %v782
  %v865 = vpack.c.b16 %v785, %v784
  %v866 = vpack.c.b16 %v787, %v786
  %v867 = vpack.c.b16 %v789, %v788
  %v868 = vpack.c.b16 %v791, %v790
  %v869 = vpack.c.b16 %v793, %v792
  %v870 = vpack.c.b16 %v795, %v794
  %v871 = vpack.c.b16 %v797, %v796
  %v872 = vpack.c.b16 %v799, %v798
  %v873 = vpack.c.b16 %v801, %v800
  %v874 = vpack.c.b16 %v803, %v802
  %v875 = vpack.c.b16 %v805, %v804
  %v876 = vpack.c.b16 %v807, %v806
  %v877 = vpack.c.b16 %v809, %v808
  %v878 = vpack.c.b16 %v811, %v810
  %v879 = vpack.c.b16 %v813, %v812
  %v880 = vpack.c.b16 %v815, %v814
  %v881 = vpack.c.b16 %v817, %v816
  %946 = vmatpush.bf16.msra.mxu0 %v825
  %947 = vmatpush.bf16.msra.mxu0 %v824
  %948 = vmatpush.bf16.msra.mxu0 %v823
  %949 = vmatpush.bf16.msra.mxu0 %v822
  %950 = vmatpush.bf16.msra.mxu0 %v821
  %951 = vmatpush.bf16.msra.mxu0 %v820
  %952 = vmatpush.bf16.msra.mxu0 %v819
  %953 = vmatpush.bf16.msra.mxu0 %v818
  %954 = vmatmul.bf16.gmra.mxu0 %v434
  %v955 = vpop.f32.mrf.mxu0
  %v956 = vadd.f32 0.0, %v955
  %v957 = vpop.f32.mrf.mxu0
  %v958 = vadd.f32 0.0, %v957
  %959 = vmatmul.bf16.gmra.mxu0 %v442
  %v960 = vpop.f32.mrf.mxu0
  %v961 = vadd.f32 0.0, %v960
  %v962 = vpop.f32.mrf.mxu0
  %v963 = vadd.f32 0.0, %v962
  %964 = vmatmul.bf16.gmra.mxu0 %v450
  %v965 = vpop.f32.mrf.mxu0
  %v966 = vadd.f32 0.0, %v965
  %v967 = vpop.f32.mrf.mxu0
  %v968 = vadd.f32 0.0, %v967
  %969 = vmatmul.bf16.gmra.mxu0 %v458
  %v970 = vpop.f32.mrf.mxu0
  %v971 = vadd.f32 0.0, %v970
  %v972 = vpop.f32.mrf.mxu0
  %v973 = vadd.f32 0.0, %v972
  %974 = vmatmul.bf16.gmra.mxu0 %v466
  %v975 = vpop.f32.mrf.mxu0
  %v976 = vadd.f32 0.0, %v975
  %v977 = vpop.f32.mrf.mxu0
  %v978 = vadd.f32 0.0, %v977
  %979 = vmatmul.bf16.gmra.mxu0 %v474
  %v980 = vpop.f32.mrf.mxu0
  %v981 = vadd.f32 0.0, %v980
  %v982 = vpop.f32.mrf.mxu0
  %v983 = vadd.f32 0.0, %v982
  %984 = vmatmul.bf16.gmra.mxu0 %v482
  %v985 = vpop.f32.mrf.mxu0
  %v986 = vadd.f32 0.0, %v985
  %v987 = vpop.f32.mrf.mxu0
  %v988 = vadd.f32 0.0, %v987
  %989 = vmatmul.bf16.gmra.mxu0 %v490
  %v990 = vpop.f32.mrf.mxu0
  %v991 = vadd.f32 0.0, %v990
  %v992 = vpop.f32.mrf.mxu0
  %v993 = vadd.f32 0.0, %v992
  %994 = vdwg.mxu0
  %995 = vmatpush.bf16.msra.mxu0 %v833
  %996 = vmatpush.bf16.msra.mxu0 %v832
  %997 = vmatpush.bf16.msra.mxu0 %v831
  %998 = vmatpush.bf16.msra.mxu0 %v830
  %999 = vmatpush.bf16.msra.mxu0 %v829
  %1000 = vmatpush.bf16.msra.mxu0 %v828
  %1001 = vmatpush.bf16.msra.mxu0 %v827
  %1002 = vmatpush.bf16.msra.mxu0 %v826
  %1003 = vmatmul.bf16.gmra.mxu0 %v435
  %v1004 = vpop.f32.mrf.mxu0
  %v1005 = vadd.f32 %v956, %v1004
  %v1006 = vpop.f32.mrf.mxu0
  %v1007 = vadd.f32 %v958, %v1006
  %1008 = vmatmul.bf16.gmra.mxu0 %v443
  %v1009 = vpop.f32.mrf.mxu0
  %v1010 = vadd.f32 %v961, %v1009
  %v1011 = vpop.f32.mrf.mxu0
  %v1012 = vadd.f32 %v963, %v1011
  %1013 = vmatmul.bf16.gmra.mxu0 %v451
  %v1014 = vpop.f32.mrf.mxu0
  %v1015 = vadd.f32 %v966, %v1014
  %v1016 = vpop.f32.mrf.mxu0
  %v1017 = vadd.f32 %v968, %v1016
  %1018 = vmatmul.bf16.gmra.mxu0 %v459
  %v1019 = vpop.f32.mrf.mxu0
  %v1020 = vadd.f32 %v971, %v1019
  %v1021 = vpop.f32.mrf.mxu0
  %v1022 = vadd.f32 %v973, %v1021
  %1023 = vmatmul.bf16.gmra.mxu0 %v467
  %v1024 = vpop.f32.mrf.mxu0
  %v1025 = vadd.f32 %v976, %v1024
  %v1026 = vpop.f32.mrf.mxu0
  %v1027 = vadd.f32 %v978, %v1026
  %1028 = vmatmul.bf16.gmra.mxu0 %v475
  %v1029 = vpop.f32.mrf.mxu0
  %v1030 = vadd.f32 %v981, %v1029
  %v1031 = vpop.f32.mrf.mxu0
  %v1032 = vadd.f32 %v983, %v1031
  %1033 = vmatmul.bf16.gmra.mxu0 %v483
  %v1034 = vpop.f32.mrf.mxu0
  %v1035 = vadd.f32 %v986, %v1034
  %v1036 = vpop.f32.mrf.mxu0
  %v1037 = vadd.f32 %v988, %v1036
  %1038 = vmatmul.bf16.gmra.mxu0 %v491
  %v1039 = vpop.f32.mrf.mxu0
  %v1040 = vadd.f32 %v991, %v1039
  %v1041 = vpop.f32.mrf.mxu0
  %v1042 = vadd.f32 %v993, %v1041
  %1043 = vdwg.mxu0
  %1044 = vmatpush.bf16.msra.mxu0 %v841
  %1045 = vmatpush.bf16.msra.mxu0 %v840
  %1046 = vmatpush.bf16.msra.mxu0 %v839
  %1047 = vmatpush.bf16.msra.mxu0 %v838
  %1048 = vmatpush.bf16.msra.mxu0 %v837
  %1049 = vmatpush.bf16.msra.mxu0 %v836
  %1050 = vmatpush.bf16.msra.mxu0 %v835
  %1051 = vmatpush.bf16.msra.mxu0 %v834
  %1052 = vmatmul.bf16.gmra.mxu0 %v436
  %v1053 = vpop.f32.mrf.mxu0
  %v1054 = vadd.f32 %v1005, %v1053
  %v1055 = vpop.f32.mrf.mxu0
  %v1056 = vadd.f32 %v1007, %v1055
  %1057 = vmatmul.bf16.gmra.mxu0 %v444
  %v1058 = vpop.f32.mrf.mxu0
  %v1059 = vadd.f32 %v1010, %v1058
  %v1060 = vpop.f32.mrf.mxu0
  %v1061 = vadd.f32 %v1012, %v1060
  %1062 = vmatmul.bf16.gmra.mxu0 %v452
  %v1063 = vpop.f32.mrf.mxu0
  %v1064 = vadd.f32 %v1015, %v1063
  %v1065 = vpop.f32.mrf.mxu0
  %v1066 = vadd.f32 %v1017, %v1065
  %1067 = vmatmul.bf16.gmra.mxu0 %v460
  %v1068 = vpop.f32.mrf.mxu0
  %v1069 = vadd.f32 %v1020, %v1068
  %v1070 = vpop.f32.mrf.mxu0
  %v1071 = vadd.f32 %v1022, %v1070
  %1072 = vmatmul.bf16.gmra.mxu0 %v468
  %v1073 = vpop.f32.mrf.mxu0
  %v1074 = vadd.f32 %v1025, %v1073
  %v1075 = vpop.f32.mrf.mxu0
  %v1076 = vadd.f32 %v1027, %v1075
  %1077 = vmatmul.bf16.gmra.mxu0 %v476
  %v1078 = vpop.f32.mrf.mxu0
  %v1079 = vadd.f32 %v1030, %v1078
  %v1080 = vpop.f32.mrf.mxu0
  %v1081 = vadd.f32 %v1032, %v1080
  %1082 = vmatmul.bf16.gmra.mxu0 %v484
  %v1083 = vpop.f32.mrf.mxu0
  %v1084 = vadd.f32 %v1035, %v1083
  %v1085 = vpop.f32.mrf.mxu0
  %v1086 = vadd.f32 %v1037, %v1085
  %1087 = vmatmul.bf16.gmra.mxu0 %v492
  %v1088 = vpop.f32.mrf.mxu0
  %v1089 = vadd.f32 %v1040, %v1088
  %v1090 = vpop.f32.mrf.mxu0
  %v1091 = vadd.f32 %v1042, %v1090
  %1092 = vdwg.mxu0
  %1093 = vmatpush.bf16.msra.mxu0 %v849
  %1094 = vmatpush.bf16.msra.mxu0 %v848
  %1095 = vmatpush.bf16.msra.mxu0 %v847
  %1096 = vmatpush.bf16.msra.mxu0 %v846
  %1097 = vmatpush.bf16.msra.mxu0 %v845
  %1098 = vmatpush.bf16.msra.mxu0 %v844
  %1099 = vmatpush.bf16.msra.mxu0 %v843
  %1100 = vmatpush.bf16.msra.mxu0 %v842
  %1101 = vmatmul.bf16.gmra.mxu0 %v437
  %v1102 = vpop.f32.mrf.mxu0
  %v1103 = vadd.f32 %v1054, %v1102
  %v1104 = vpop.f32.mrf.mxu0
  %v1105 = vadd.f32 %v1056, %v1104
  %1106 = vmatmul.bf16.gmra.mxu0 %v445
  %v1107 = vpop.f32.mrf.mxu0
  %v1108 = vadd.f32 %v1059, %v1107
  %v1109 = vpop.f32.mrf.mxu0
  %v1110 = vadd.f32 %v1061, %v1109
  %1111 = vmatmul.bf16.gmra.mxu0 %v453
  %v1112 = vpop.f32.mrf.mxu0
  %v1113 = vadd.f32 %v1064, %v1112
  %v1114 = vpop.f32.mrf.mxu0
  %v1115 = vadd.f32 %v1066, %v1114
  %1116 = vmatmul.bf16.gmra.mxu0 %v461
  %v1117 = vpop.f32.mrf.mxu0
  %v1118 = vadd.f32 %v1069, %v1117
  %v1119 = vpop.f32.mrf.mxu0
  %v1120 = vadd.f32 %v1071, %v1119
  %1121 = vmatmul.bf16.gmra.mxu0 %v469
  %v1122 = vpop.f32.mrf.mxu0
  %v1123 = vadd.f32 %v1074, %v1122
  %v1124 = vpop.f32.mrf.mxu0
  %v1125 = vadd.f32 %v1076, %v1124
  %1126 = vmatmul.bf16.gmra.mxu0 %v477
  %v1127 = vpop.f32.mrf.mxu0
  %v1128 = vadd.f32 %v1079, %v1127
  %v1129 = vpop.f32.mrf.mxu0
  %v1130 = vadd.f32 %v1081, %v1129
  %1131 = vmatmul.bf16.gmra.mxu0 %v485
  %v1132 = vpop.f32.mrf.mxu0
  %v1133 = vadd.f32 %v1084, %v1132
  %v1134 = vpop.f32.mrf.mxu0
  %v1135 = vadd.f32 %v1086, %v1134
  %1136 = vmatmul.bf16.gmra.mxu0 %v493
  %v1137 = vpop.f32.mrf.mxu0
  %v1138 = vadd.f32 %v1089, %v1137
  %v1139 = vpop.f32.mrf.mxu0
  %v1140 = vadd.f32 %v1091, %v1139
  %1141 = vdwg.mxu0
  %1142 = vmatpush.bf16.msra.mxu0 %v857
  %1143 = vmatpush.bf16.msra.mxu0 %v856
  %1144 = vmatpush.bf16.msra.mxu0 %v855
  %1145 = vmatpush.bf16.msra.mxu0 %v854
  %1146 = vmatpush.bf16.msra.mxu0 %v853
  %1147 = vmatpush.bf16.msra.mxu0 %v852
  %1148 = vmatpush.bf16.msra.mxu0 %v851
  %1149 = vmatpush.bf16.msra.mxu0 %v850
  %1150 = vmatmul.bf16.gmra.mxu0 %v438
  %v1151 = vpop.f32.mrf.mxu0
  %v1152 = vadd.f32 %v1103, %v1151
  %v1153 = vpop.f32.mrf.mxu0
  %v1154 = vadd.f32 %v1105, %v1153
  %1155 = vmatmul.bf16.gmra.mxu0 %v446
  %v1156 = vpop.f32.mrf.mxu0
  %v1157 = vadd.f32 %v1108, %v1156
  %v1158 = vpop.f32.mrf.mxu0
  %v1159 = vadd.f32 %v1110, %v1158
  %1160 = vmatmul.bf16.gmra.mxu0 %v454
  %v1161 = vpop.f32.mrf.mxu0
  %v1162 = vadd.f32 %v1113, %v1161
  %v1163 = vpop.f32.mrf.mxu0
  %v1164 = vadd.f32 %v1115, %v1163
  %1165 = vmatmul.bf16.gmra.mxu0 %v462
  %v1166 = vpop.f32.mrf.mxu0
  %v1167 = vadd.f32 %v1118, %v1166
  %v1168 = vpop.f32.mrf.mxu0
  %v1169 = vadd.f32 %v1120, %v1168
  %1170 = vmatmul.bf16.gmra.mxu0 %v470
  %v1171 = vpop.f32.mrf.mxu0
  %v1172 = vadd.f32 %v1123, %v1171
  %v1173 = vpop.f32.mrf.mxu0
  %v1174 = vadd.f32 %v1125, %v1173
  %1175 = vmatmul.bf16.gmra.mxu0 %v478
  %v1176 = vpop.f32.mrf.mxu0
  %v1177 = vadd.f32 %v1128, %v1176
  %v1178 = vpop.f32.mrf.mxu0
  %v1179 = vadd.f32 %v1130, %v1178
  %1180 = vmatmul.bf16.gmra.mxu0 %v486
  %v1181 = vpop.f32.mrf.mxu0
  %v1182 = vadd.f32 %v1133, %v1181
  %v1183 = vpop.f32.mrf.mxu0
  %v1184 = vadd.f32 %v1135, %v1183
  %1185 = vmatmul.bf16.gmra.mxu0 %v494
  %v1186 = vpop.f32.mrf.mxu0
  %v1187 = vadd.f32 %v1138, %v1186
  %v1188 = vpop.f32.mrf.mxu0
  %v1189 = vadd.f32 %v1140, %v1188
  %1190 = vdwg.mxu0
  %1191 = vmatpush.bf16.msra.mxu0 %v865
  %1192 = vmatpush.bf16.msra.mxu0 %v864
  %1193 = vmatpush.bf16.msra.mxu0 %v863
  %1194 = vmatpush.bf16.msra.mxu0 %v862
  %1195 = vmatpush.bf16.msra.mxu0 %v861
  %1196 = vmatpush.bf16.msra.mxu0 %v860
  %1197 = vmatpush.bf16.msra.mxu0 %v859
  %1198 = vmatpush.bf16.msra.mxu0 %v858
  %1199 = vmatmul.bf16.gmra.mxu0 %v439
  %v1200 = vpop.f32.mrf.mxu0
  %v1201 = vadd.f32 %v1152, %v1200
  %v1202 = vpop.f32.mrf.mxu0
  %v1203 = vadd.f32 %v1154, %v1202
  %1204 = vmatmul.bf16.gmra.mxu0 %v447
  %v1205 = vpop.f32.mrf.mxu0
  %v1206 = vadd.f32 %v1157, %v1205
  %v1207 = vpop.f32.mrf.mxu0
  %v1208 = vadd.f32 %v1159, %v1207
  %1209 = vmatmul.bf16.gmra.mxu0 %v455
  %v1210 = vpop.f32.mrf.mxu0
  %v1211 = vadd.f32 %v1162, %v1210
  %v1212 = vpop.f32.mrf.mxu0
  %v1213 = vadd.f32 %v1164, %v1212
  %1214 = vmatmul.bf16.gmra.mxu0 %v463
  %v1215 = vpop.f32.mrf.mxu0
  %v1216 = vadd.f32 %v1167, %v1215
  %v1217 = vpop.f32.mrf.mxu0
  %v1218 = vadd.f32 %v1169, %v1217
  %1219 = vmatmul.bf16.gmra.mxu0 %v471
  %v1220 = vpop.f32.mrf.mxu0
  %v1221 = vadd.f32 %v1172, %v1220
  %v1222 = vpop.f32.mrf.mxu0
  %v1223 = vadd.f32 %v1174, %v1222
  %1224 = vmatmul.bf16.gmra.mxu0 %v479
  %v1225 = vpop.f32.mrf.mxu0
  %v1226 = vadd.f32 %v1177, %v1225
  %v1227 = vpop.f32.mrf.mxu0
  %v1228 = vadd.f32 %v1179, %v1227
  %1229 = vmatmul.bf16.gmra.mxu0 %v487
  %v1230 = vpop.f32.mrf.mxu0
  %v1231 = vadd.f32 %v1182, %v1230
  %v1232 = vpop.f32.mrf.mxu0
  %v1233 = vadd.f32 %v1184, %v1232
  %1234 = vmatmul.bf16.gmra.mxu0 %v495
  %v1235 = vpop.f32.mrf.mxu0
  %v1236 = vadd.f32 %v1187, %v1235
  %v1237 = vpop.f32.mrf.mxu0
  %v1238 = vadd.f32 %v1189, %v1237
  %1239 = vdwg.mxu0
  %1240 = vmatpush.bf16.msra.mxu0 %v873
  %1241 = vmatpush.bf16.msra.mxu0 %v872
  %1242 = vmatpush.bf16.msra.mxu0 %v871
  %1243 = vmatpush.bf16.msra.mxu0 %v870
  %1244 = vmatpush.bf16.msra.mxu0 %v869
  %1245 = vmatpush.bf16.msra.mxu0 %v868
  %1246 = vmatpush.bf16.msra.mxu0 %v867
  %1247 = vmatpush.bf16.msra.mxu0 %v866
  %1248 = vmatmul.bf16.gmra.mxu0 %v440
  %v1249 = vpop.f32.mrf.mxu0
  %v1250 = vadd.f32 %v1201, %v1249
  %v1251 = vpop.f32.mrf.mxu0
  %v1252 = vadd.f32 %v1203, %v1251
  %1253 = vmatmul.bf16.gmra.mxu0 %v448
  %v1254 = vpop.f32.mrf.mxu0
  %v1255 = vadd.f32 %v1206, %v1254
  %v1256 = vpop.f32.mrf.mxu0
  %v1257 = vadd.f32 %v1208, %v1256
  %1258 = vmatmul.bf16.gmra.mxu0 %v456
  %v1259 = vpop.f32.mrf.mxu0
  %v1260 = vadd.f32 %v1211, %v1259
  %v1261 = vpop.f32.mrf.mxu0
  %v1262 = vadd.f32 %v1213, %v1261
  %1263 = vmatmul.bf16.gmra.mxu0 %v464
  %v1264 = vpop.f32.mrf.mxu0
  %v1265 = vadd.f32 %v1216, %v1264
  %v1266 = vpop.f32.mrf.mxu0
  %v1267 = vadd.f32 %v1218, %v1266
  %1268 = vmatmul.bf16.gmra.mxu0 %v472
  %v1269 = vpop.f32.mrf.mxu0
  %v1270 = vadd.f32 %v1221, %v1269
  %v1271 = vpop.f32.mrf.mxu0
  %v1272 = vadd.f32 %v1223, %v1271
  %1273 = vmatmul.bf16.gmra.mxu0 %v480
  %v1274 = vpop.f32.mrf.mxu0
  %v1275 = vadd.f32 %v1226, %v1274
  %v1276 = vpop.f32.mrf.mxu0
  %v1277 = vadd.f32 %v1228, %v1276
  %1278 = vmatmul.bf16.gmra.mxu0 %v488
  %v1279 = vpop.f32.mrf.mxu0
  %v1280 = vadd.f32 %v1231, %v1279
  %v1281 = vpop.f32.mrf.mxu0
  %v1282 = vadd.f32 %v1233, %v1281
  %1283 = vmatmul.bf16.gmra.mxu0 %v496
  %v1284 = vpop.f32.mrf.mxu0
  %v1285 = vadd.f32 %v1236, %v1284
  %v1286 = vpop.f32.mrf.mxu0
  %v1287 = vadd.f32 %v1238, %v1286
  %1288 = vdwg.mxu0
  %1289 = vmatpush.bf16.msra.mxu0 %v881
  %1290 = vmatpush.bf16.msra.mxu0 %v880
  %1291 = vmatpush.bf16.msra.mxu0 %v879
  %1292 = vmatpush.bf16.msra.mxu0 %v878
  %1293 = vmatpush.bf16.msra.mxu0 %v877
  %1294 = vmatpush.bf16.msra.mxu0 %v876
  %1295 = vmatpush.bf16.msra.mxu0 %v875
  %1296 = vmatpush.bf16.msra.mxu0 %v874
  %1297 = vmatmul.bf16.gmra.mxu0 %v441
  %v1298 = vpop.f32.mrf.mxu0
  %v1299 = vadd.f32 %v1250, %v1298
  %v1300 = vpop.f32.mrf.mxu0
  %v1301 = vadd.f32 %v1252, %v1300
  %1302 = vmatmul.bf16.gmra.mxu0 %v449
  %v1303 = vpop.f32.mrf.mxu0
  %v1304 = vadd.f32 %v1255, %v1303
  %v1305 = vpop.f32.mrf.mxu0
  %v1306 = vadd.f32 %v1257, %v1305
  %1307 = vmatmul.bf16.gmra.mxu0 %v457
  %v1308 = vpop.f32.mrf.mxu0
  %v1309 = vadd.f32 %v1260, %v1308
  %v1310 = vpop.f32.mrf.mxu0
  %v1311 = vadd.f32 %v1262, %v1310
  %1312 = vmatmul.bf16.gmra.mxu0 %v465
  %v1313 = vpop.f32.mrf.mxu0
  %v1314 = vadd.f32 %v1265, %v1313
  %v1315 = vpop.f32.mrf.mxu0
  %v1316 = vadd.f32 %v1267, %v1315
  %1317 = vmatmul.bf16.gmra.mxu0 %v473
  %v1318 = vpop.f32.mrf.mxu0
  %v1319 = vadd.f32 %v1270, %v1318
  %v1320 = vpop.f32.mrf.mxu0
  %v1321 = vadd.f32 %v1272, %v1320
  %1322 = vmatmul.bf16.gmra.mxu0 %v481
  %v1323 = vpop.f32.mrf.mxu0
  %v1324 = vadd.f32 %v1275, %v1323
  %v1325 = vpop.f32.mrf.mxu0
  %v1326 = vadd.f32 %v1277, %v1325
  %1327 = vmatmul.bf16.gmra.mxu0 %v489
  %v1328 = vpop.f32.mrf.mxu0
  %v1329 = vadd.f32 %v1280, %v1328
  %v1330 = vpop.f32.mrf.mxu0
  %v1331 = vadd.f32 %v1282, %v1330
  %1332 = vmatmul.bf16.gmra.mxu0 %v497
  %v1333 = vpop.f32.mrf.mxu0
  %v1334 = vadd.f32 %v1285, %v1333
  %v1335 = vpop.f32.mrf.mxu0
  %v1336 = vadd.f32 %v1287, %v1335
  %1337 = vdwg.mxu0
  %v1338 = vadd.f32 %v34, %v1299
  %v1339 = vadd.f32 %v35, %v1301
  %v1340 = vadd.f32 %v36, %v1304
  %v1341 = vadd.f32 %v37, %v1306
  %v1342 = vadd.f32 %v38, %v1309
  %v1343 = vadd.f32 %v39, %v1311
  %v1344 = vadd.f32 %v40, %v1314
  %v1345 = vadd.f32 %v41, %v1316
  %v1346 = vadd.f32 %v42, %v1319
  %v1347 = vadd.f32 %v43, %v1321
  %v1348 = vadd.f32 %v44, %v1324
  %v1349 = vadd.f32 %v45, %v1326
  %v1350 = vadd.f32 %v46, %v1329
  %v1351 = vadd.f32 %v47, %v1331
  %v1352 = vadd.f32 %v48, %v1334
  %v1353 = vadd.f32 %v49, %v1336
  %1354 = vst [vmem:[#allocation2] sm:$0xff] %v1338
  %1355 = vst [vmem:[#allocation2 + $0x8] sm:$0xff] %v1339
  %1356 = vst [vmem:[#allocation2 + $0x10] sm:$0xff] %v1340
  %1357 = vst [vmem:[#allocation2 + $0x18] sm:$0xff] %v1341
  %1358 = vst [vmem:[#allocation2 + $0x20] sm:$0xff] %v1342
  %1359 = vst [vmem:[#allocation2 + $0x28] sm:$0xff] %v1343
  %1360 = vst [vmem:[#allocation2 + $0x30] sm:$0xff] %v1344
  %1361 = vst [vmem:[#allocation2 + $0x38] sm:$0xff] %v1345
  %1362 = vst [vmem:[#allocation2 + $0x40] sm:$0xff] %v1346
  %1363 = vst [vmem:[#allocation2 + $0x48] sm:$0xff] %v1347
  %1364 = vst [vmem:[#allocation2 + $0x50] sm:$0xff] %v1348
  %1365 = vst [vmem:[#allocation2 + $0x58] sm:$0xff] %v1349
  %1366 = vst [vmem:[#allocation2 + $0x60] sm:$0xff] %v1350
  %1367 = vst [vmem:[#allocation2 + $0x68] sm:$0xff] %v1351
  %1368 = vst [vmem:[#allocation2 + $0x70] sm:$0xff] %v1352
  %1369 = vst [vmem:[#allocation2 + $0x78] sm:$0xff] %v1353
  // Predicated region
  $region18: #{dcgan_discriminator.6} parent=0 // pred_check
    %p1370 = pneg %p14
  $region19: #{dcgan_discriminator.6} parent=0 // pred_check_branch
    %1372 = sbr.rel (%p1370) target = $region21
  $region20: #{dcgan_discriminator.6} parent=0 // pred_region
    %v1373 = vld [vmem:[#allocation2] sm:$0xff]
    %v1374 = vld [vmem:[#allocation2 + $0x8] sm:$0xff]
    %v1375 = vld [vmem:[#allocation2 + $0x10] sm:$0xff]
    %v1376 = vld [vmem:[#allocation2 + $0x18] sm:$0xff]
    %v1377 = vld [vmem:[#allocation2 + $0x20] sm:$0xff]
    %v1378 = vld [vmem:[#allocation2 + $0x28] sm:$0xff]
    %v1379 = vld [vmem:[#allocation2 + $0x30] sm:$0xff]
    %v1380 = vld [vmem:[#allocation2 + $0x38] sm:$0xff]
    %v1381 = vld [vmem:[#allocation2 + $0x40] sm:$0xff]
    %v1382 = vld [vmem:[#allocation2 + $0x48] sm:$0xff]
    %v1383 = vld [vmem:[#allocation2 + $0x50] sm:$0xff]
    %v1384 = vld [vmem:[#allocation2 + $0x58] sm:$0xff]
    %v1385 = vld [vmem:[#allocation2 + $0x60] sm:$0xff]
    %v1386 = vld [vmem:[#allocation2 + $0x68] sm:$0xff]
    %v1387 = vld [vmem:[#allocation2 + $0x70] sm:$0xff]
    %v1388 = vld [vmem:[#allocation2 + $0x78] sm:$0xff]
    %v1389 = vadd.f32 %v1373, %v1374
    %v1390 = vadd.f32 %v1389, %v1375
    %v1391 = vadd.f32 %v1390, %v1376
    %v1392 = vadd.f32 %v1391, %v1377
    %v1393 = vadd.f32 %v1392, %v1378
    %v1394 = vadd.f32 %v1393, %v1379
    %v1395 = vadd.f32 %v1394, %v1380
    %v1396 = vadd.f32 %v1395, %v1381
    %v1397 = vadd.f32 %v1396, %v1382
    %v1398 = vadd.f32 %v1397, %v1383
    %v1399 = vadd.f32 %v1398, %v1384
    %v1400 = vadd.f32 %v1399, %v1385
    %v1401 = vadd.f32 %v1400, %v1386
    %v1402 = vadd.f32 %v1401, %v1387
    %v1403 = vadd.f32 %v1402, %v1388
    %v1404 = vrot.slane %v1403, 4
    %v1405 = vadd.f32 %v1403, %v1404
    %v1406 = vrot.slane %v1405, 2
    %v1407 = vadd.f32 %v1405, %v1406
    %v1408 = vrot.slane %v1407, 1
    %v1409 = vadd.f32 %v1407, %v1408
    %v1410 = vmul.f32 %v1409, 0.0078125
    %v1411 = vmul.f32 %v1373, %v1373
    %v1412 = vmul.f32 %v1374, %v1374
    %v1413 = vmul.f32 %v1375, %v1375
    %v1414 = vmul.f32 %v1376, %v1376
    %v1415 = vmul.f32 %v1377, %v1377
    %v1416 = vmul.f32 %v1378, %v1378
    %v1417 = vmul.f32 %v1379, %v1379
    %v1418 = vmul.f32 %v1380, %v1380
    %v1419 = vmul.f32 %v1381, %v1381
    %v1420 = vmul.f32 %v1382, %v1382
    %v1421 = vmul.f32 %v1383, %v1383
    %v1422 = vmul.f32 %v1384, %v1384
    %v1423 = vmul.f32 %v1385, %v1385
    %v1424 = vmul.f32 %v1386, %v1386
    %v1425 = vmul.f32 %v1387, %v1387
    %v1426 = vmul.f32 %v1388, %v1388
    %v1427 = vadd.f32 %v1411, %v1412
    %v1428 = vadd.f32 %v1427, %v1413
    %v1429 = vadd.f32 %v1428, %v1414
    %v1430 = vadd.f32 %v1429, %v1415
    %v1431 = vadd.f32 %v1430, %v1416
    %v1432 = vadd.f32 %v1431, %v1417
    %v1433 = vadd.f32 %v1432, %v1418
    %v1434 = vadd.f32 %v1433, %v1419
    %v1435 = vadd.f32 %v1434, %v1420
    %v1436 = vadd.f32 %v1435, %v1421
    %v1437 = vadd.f32 %v1436, %v1422
    %v1438 = vadd.f32 %v1437, %v1423
    %v1439 = vadd.f32 %v1438, %v1424
    %v1440 = vadd.f32 %v1439, %v1425
    %v1441 = vadd.f32 %v1440, %v1426
    %v1442 = vrot.slane %v1441, 4
    %v1443 = vadd.f32 %v1441, %v1442
    %v1444 = vrot.slane %v1443, 2
    %v1445 = vadd.f32 %v1443, %v1444
    %v1446 = vrot.slane %v1445, 1
    %v1447 = vadd.f32 %v1445, %v1446
    %v1448 = vmul.f32 %v1447, 0.0078125
    %v1449 = vmul.f32 %v1410, %v1410
    %v1450 = vsub.f32 %v1448, %v1449
    %v1451 = vsub.f32 %v1373, %v1410
    %v1452 = vsub.f32 %v1374, %v1410
    %v1453 = vsub.f32 %v1375, %v1410
    %v1454 = vsub.f32 %v1376, %v1410
    %v1455 = vsub.f32 %v1377, %v1410
    %v1456 = vsub.f32 %v1378, %v1410
    %v1457 = vsub.f32 %v1379, %v1410
    %v1458 = vsub.f32 %v1380, %v1410
    %v1459 = vsub.f32 %v1381, %v1410
    %v1460 = vsub.f32 %v1382, %v1410
    %v1461 = vsub.f32 %v1383, %v1410
    %v1462 = vsub.f32 %v1384, %v1410
    %v1463 = vsub.f32 %v1385, %v1410
    %v1464 = vsub.f32 %v1386, %v1410
    %v1465 = vsub.f32 %v1387, %v1410
    %v1466 = vsub.f32 %v1388, %v1410
    %v1467 = vadd.f32 %v1450, 1e-05
    %v1468 = vrsqrt.pop %v1467
    %v1469 = vmul.f32 %v1468, %v1467
    %v1470 = vmul.f32 %v1469, %v1468
    %v1471 = vmul.f32 0.5, %v1470
    %v1472 = vsub.f32 1.5, %v1471
    %v1473 = vmul.f32 %v1468, %v1472
    %vm1474 = vweird.f32 %v1467
    %vm1475 = vweird.f32 %v1468
    %vm1476 = vmor %vm1474, %vm1475
    %v1477 = vsel %vm1476, %v1468, %v1473
    %v1478 = vmul.f32 %v1451, %v1477
    %v1479 = vmul.f32 %v1452, %v1477
    %v1480 = vmul.f32 %v1453, %v1477
    %v1481 = vmul.f32 %v1454, %v1477
    %v1482 = vmul.f32 %v1455, %v1477
    %v1483 = vmul.f32 %v1456, %v1477
    %v1484 = vmul.f32 %v1457, %v1477
    %v1485 = vmul.f32 %v1458, %v1477
    %v1486 = vmul.f32 %v1459, %v1477
    %v1487 = vmul.f32 %v1460, %v1477
    %v1488 = vmul.f32 %v1461, %v1477
    %v1489 = vmul.f32 %v1462, %v1477
    %v1490 = vmul.f32 %v1463, %v1477
    %v1491 = vmul.f32 %v1464, %v1477
    %v1492 = vmul.f32 %v1465, %v1477
    %v1493 = vmul.f32 %v1466, %v1477
    %vm1494 = vcmp.gt.f32.partialorder %v1478, 0.0
    %vm1495 = vcmp.gt.f32.partialorder %v1479, 0.0
    %vm1496 = vcmp.gt.f32.partialorder %v1480, 0.0
    %vm1497 = vcmp.gt.f32.partialorder %v1481, 0.0
    %vm1498 = vcmp.gt.f32.partialorder %v1482, 0.0
    %vm1499 = vcmp.gt.f32.partialorder %v1483, 0.0
    %vm1500 = vcmp.gt.f32.partialorder %v1484, 0.0
    %vm1501 = vcmp.gt.f32.partialorder %v1485, 0.0
    %vm1502 = vcmp.gt.f32.partialorder %v1486, 0.0
    %vm1503 = vcmp.gt.f32.partialorder %v1487, 0.0
    %vm1504 = vcmp.gt.f32.partialorder %v1488, 0.0
    %vm1505 = vcmp.gt.f32.partialorder %v1489, 0.0
    %vm1506 = vcmp.gt.f32.partialorder %v1490, 0.0
    %vm1507 = vcmp.gt.f32.partialorder %v1491, 0.0
    %vm1508 = vcmp.gt.f32.partialorder %v1492, 0.0
    %vm1509 = vcmp.gt.f32.partialorder %v1493, 0.0
    %v1510 = vmul.f32 %v1478, 0.2
    %v1511 = vmul.f32 %v1479, 0.2
    %v1512 = vmul.f32 %v1480, 0.2
    %v1513 = vmul.f32 %v1481, 0.2
    %v1514 = vmul.f32 %v1482, 0.2
    %v1515 = vmul.f32 %v1483, 0.2
    %v1516 = vmul.f32 %v1484, 0.2
    %v1517 = vmul.f32 %v1485, 0.2
    %v1518 = vmul.f32 %v1486, 0.2
    %v1519 = vmul.f32 %v1487, 0.2
    %v1520 = vmul.f32 %v1488, 0.2
    %v1521 = vmul.f32 %v1489, 0.2
    %v1522 = vmul.f32 %v1490, 0.2
    %v1523 = vmul.f32 %v1491, 0.2
    %v1524 = vmul.f32 %v1492, 0.2
    %v1525 = vmul.f32 %v1493, 0.2
    %v1526 = vsel %vm1494, %v1478, %v1510
    %v1527 = vsel %vm1495, %v1479, %v1511
    %v1528 = vsel %vm1496, %v1480, %v1512
    %v1529 = vsel %vm1497, %v1481, %v1513
    %v1530 = vsel %vm1498, %v1482, %v1514
    %v1531 = vsel %vm1499, %v1483, %v1515
    %v1532 = vsel %vm1500, %v1484, %v1516
    %v1533 = vsel %vm1501, %v1485, %v1517
    %v1534 = vsel %vm1502, %v1486, %v1518
    %v1535 = vsel %vm1503, %v1487, %v1519
    %v1536 = vsel %vm1504, %v1488, %v1520
    %v1537 = vsel %vm1505, %v1489, %v1521
    %v1538 = vsel %vm1506, %v1490, %v1522
    %v1539 = vsel %vm1507, %v1491, %v1523
    %v1540 = vsel %vm1508, %v1492, %v1524
    %v1541 = vsel %vm1509, %v1493, %v1525
    %v1542 = vpack.c.bf16 %v1526, %v1526
    %v1543 = vpack.c.bf16 %v1527, %v1527
    %v1544 = vpack.c.bf16 %v1528, %v1528
    %v1545 = vpack.c.bf16 %v1529, %v1529
    %v1546 = vpack.c.bf16 %v1530, %v1530
    %v1547 = vpack.c.bf16 %v1531, %v1531
    %v1548 = vpack.c.bf16 %v1532, %v1532
    %v1549 = vpack.c.bf16 %v1533, %v1533
    %v1550 = vpack.c.bf16 %v1534, %v1534
    %v1551 = vpack.c.bf16 %v1535, %v1535
    %v1552 = vpack.c.bf16 %v1536, %v1536
    %v1553 = vpack.c.bf16 %v1537, %v1537
    %v1554 = vpack.c.bf16 %v1538, %v1538
    %v1555 = vpack.c.bf16 %v1539, %v1539
    %v1556 = vpack.c.bf16 %v1540, %v1540
    %v1557 = vpack.c.bf16 %v1541, %v1541
    %1558 = vst [vmem:[%s3] sm:$0xf] %v1542
    %1559 = vst [vmem:[%s3 + $0x4] sm:$0xf] %v1543
    %1560 = vst [vmem:[%s3 + $0x8] sm:$0xf] %v1544
    %1561 = vst [vmem:[%s3 + $0xc] sm:$0xf] %v1545
    %1562 = vst [vmem:[%s3 + $0x10] sm:$0xf] %v1546
    %1563 = vst [vmem:[%s3 + $0x14] sm:$0xf] %v1547
    %1564 = vst [vmem:[%s3 + $0x18] sm:$0xf] %v1548
    %1565 = vst [vmem:[%s3 + $0x1c] sm:$0xf] %v1549
    %1566 = vst [vmem:[%s3 + $0x20] sm:$0xf] %v1550
    %1567 = vst [vmem:[%s3 + $0x24] sm:$0xf] %v1551
    %1568 = vst [vmem:[%s3 + $0x28] sm:$0xf] %v1552
    %1569 = vst [vmem:[%s3 + $0x2c] sm:$0xf] %v1553
    %1570 = vst [vmem:[%s3 + $0x30] sm:$0xf] %v1554
    %1571 = vst [vmem:[%s3 + $0x34] sm:$0xf] %v1555
    %1572 = vst [vmem:[%s3 + $0x38] sm:$0xf] %v1556
    %1573 = vst [vmem:[%s3 + $0x3c] sm:$0xf] %v1557
  $region21: #{dcgan_discriminator.6} parent=0 // pred_fallthru
    _
  // Predicated region
  $region22: #{dcgan_discriminator.6} parent=0 // pred_check
    _
  $region23: #{dcgan_discriminator.6} parent=0 // pred_check_branch
    %1575 = sbr.rel (0) target = $region25
  $region24: #{dcgan_discriminator.6} parent=0 // pred_region
    _
  $region25: #{dcgan_discriminator.6} parent=0 // pred_fallthru
    _
  // Predicated region
  $region26: #{dcgan_discriminator.6} parent=0 // pred_check
    _
  $region27: #{dcgan_discriminator.6} parent=0 // pred_check_branch
    %1577 = sbr.rel (0) target = $region29
  $region28: #{dcgan_discriminator.6} parent=0 // pred_region
    _
  $region29: #{dcgan_discriminator.6} parent=0 // pred_fallthru
    _

// kernel: dcgan_discriminator.7
$region0: #{dcgan_discriminator.7}
  #allocation0 [shape = 'u32[]', space=smem, size = 0x4, offset = 0x4, fixed_abs, tag = 'smem constant byte address 0x4 - core index']
  #allocation1 [shape = 'u32[72,128]{1,0:T(1,128)}', space=vmem, size = 0x9000, scoped, tag = 'internal scratch']
  #allocation2 [shape = 'f32[32,256]{1,0:T(8,128)}', space=vmem, size = 0x8000, scoped, tag = 'scratch operand']
  %s0 = inlined_call_operand.vmem [shape: bf16[32,2048], index: 0, kind: input, shape index: {}]
  %s1 = inlined_call_operand.vmem [shape: bf16[2048,256], index: 1, kind: input, shape index: {}]
  %s2 = inlined_call_operand.vmem [shape: f32[1,256], index: 2, kind: input, shape index: {}]
  %s3 = inlined_call_operand.vmem [shape: bf16[32,256], index: 3, kind: output, shape index: {}]
  %s4 = sld [smem:[#allocation0]]
  $region76: #{dcgan_discriminator.7} parent=0
    _
  %s6 = ssub.s32 1, %s4
  %s7 = scalar_select 0, %s6, %s4
  $region1: #{dcgan_discriminator.7} parent=0
    #allocation3 [shape = 'u8[131072]{0}', space=vmem, size = 0x20000, scoped, tag = 'input window, operand 0']
    loop: start=0, step=1, limit=4
    $region2: #{dcgan_discriminator.7} parent=1 // loop_pre_header
      _
    $region3: #{dcgan_discriminator.7} parent=1 // loop_header
      %s9 = sphi 0, %s13
      %p10 = scmp.ge.s32.totalorder %s9, 4
      %s16 = sphi 0, %s28
      %s17 = sphi 0, %s24
      %s18 = sphi 0, %s16
      %s19 = sphi 0, %s17
      %s20 = sphi 0, %s18
      %s21 = sphi 0, %s19
      %s33 = sphi 0, %s35
      %s36 = sphi 0, %s33
      %s37 = sphi 0, %s36
      %s53 = sphi 0, %s37
      %s59 = sphi 0, %s61
      %s62 = sphi 0, %s59
      %s63 = sphi 0, %s62
      %s79 = sphi 0, %s63
      %s83 = sphi 0, %s83
      %s85 = sphi 0, %s83
      %s86 = sphi 0, %s85
      %s100 = sphi 0, %s86
      %s106 = sphi 0, %s108
      %s109 = sphi 0, %s106
      %s110 = sphi 0, %s109
      %s126 = sphi 0, %s110
    $region4: #{dcgan_discriminator.7} parent=1 // loop_header_branch
      %12 = sbr.rel (%p10) target = $region8
    $region5: #{dcgan_discriminator.7} parent=1 // loop_body
      %s14 = ssub.s32 %s9, 1
      %s15 = ssub.s32 %s9, 2
      %s22 = sadd.s32 1, %s17
      %p23 = scmp.ge.s32.totalorder %s22, 2
      %s24 = scalar_select %p23, 0, %s22
      %s25 = sadd.s32 1, %s16
      %s26 = scalar_select %p23, %s25, %s16
      %p27 = scmp.ge.s32.totalorder %s26, 1
      %s28 = scalar_select %p27, 0, %s26
      %s29 = ssub.s32 %s16, %s28
      %s30 = ssub.s32 %s17, %s24
      %s31 = sor.u32 %s29, %s30
      %p32 = scmp.eq.s32.totalorder %s31, 0
      %s34 = sadd.s32 %s33, 1
      %s35 = scalar_select %p32, %s33, %s34
      %p38 = pneg %p32
      %p39 = scmp.eq.s32.totalorder %s9, 1
      %p40 = por %p38, %p39
      %p41 = scmp.ne.s32.totalorder %s33, %s36
      %p42 = scmp.eq.s32.totalorder %s9, 0
      %p43 = por %p41, %p42
      %p44 = scmp.ne.s32.totalorder %s33, %s36
      %p45 = scmp.eq.s32.totalorder %s14, 1
      %p46 = por %p44, %p45
      %p47 = scmp.ne.s32.totalorder %s36, %s37
      %p48 = scmp.eq.s32.totalorder %s14, 0
      %p49 = por %p47, %p48
      %p50 = scmp.ne.s32.totalorder %s36, %s37
      %p51 = scmp.eq.s32.totalorder %s15, 1
      %p52 = por %p50, %p51
      %p54 = scmp.ne.s32.totalorder %s37, %s53
      %p55 = scmp.eq.s32.totalorder %s15, 0
      %p56 = por %p54, %p55
      %s57 = ssub.s32 %s17, %s24
      %p58 = scmp.eq.s32.totalorder %s57, 0
      %s60 = sadd.s32 %s59, 1
      %s61 = scalar_select %p58, %s59, %s60
      %p64 = pneg %p58
      %p65 = scmp.eq.s32.totalorder %s9, 1
      %p66 = por %p64, %p65
      %p67 = scmp.ne.s32.totalorder %s59, %s62
      %p68 = scmp.eq.s32.totalorder %s9, 0
      %p69 = por %p67, %p68
      %p70 = scmp.ne.s32.totalorder %s59, %s62
      %p71 = scmp.eq.s32.totalorder %s14, 1
      %p72 = por %p70, %p71
      %p73 = scmp.ne.s32.totalorder %s62, %s63
      %p74 = scmp.eq.s32.totalorder %s14, 0
      %p75 = por %p73, %p74
      %p76 = scmp.ne.s32.totalorder %s62, %s63
      %p77 = scmp.eq.s32.totalorder %s15, 1
      %p78 = por %p76, %p77
      %p80 = scmp.ne.s32.totalorder %s63, %s79
      %p81 = scmp.eq.s32.totalorder %s15, 0
      %p82 = por %p80, %p81
      %s84 = sadd.s32 %s83, 1
      %p87 = scmp.eq.s32.totalorder %s9, 1
      %p88 = scmp.ne.s32.totalorder %s83, %s85
      %p89 = scmp.eq.s32.totalorder %s9, 0
      %p90 = por %p88, %p89
      %p91 = scmp.ne.s32.totalorder %s83, %s85
      %p92 = scmp.eq.s32.totalorder %s14, 1
      %p93 = por %p91, %p92
      %p94 = scmp.ne.s32.totalorder %s85, %s86
      %p95 = scmp.eq.s32.totalorder %s14, 0
      %p96 = por %p94, %p95
      %p97 = scmp.ne.s32.totalorder %s85, %s86
      %p98 = scmp.eq.s32.totalorder %s15, 1
      %p99 = por %p97, %p98
      %p101 = scmp.ne.s32.totalorder %s86, %s100
      %p102 = scmp.eq.s32.totalorder %s15, 0
      %p103 = por %p101, %p102
      %s104 = ssub.s32 %s16, %s28
      %p105 = scmp.eq.s32.totalorder %s104, 0
      %s107 = sadd.s32 %s106, 1
      %s108 = scalar_select %p105, %s106, %s107
      %p111 = pneg %p105
      %p112 = scmp.eq.s32.totalorder %s9, 1
      %p113 = por %p111, %p112
      %p114 = scmp.ne.s32.totalorder %s106, %s109
      %p115 = scmp.eq.s32.totalorder %s9, 0
      %p116 = por %p114, %p115
      %p117 = scmp.ne.s32.totalorder %s106, %s109
      %p118 = scmp.eq.s32.totalorder %s14, 1
      %p119 = por %p117, %p118
      %p120 = scmp.ne.s32.totalorder %s109, %s110
      %p121 = scmp.eq.s32.totalorder %s14, 0
      %p122 = por %p120, %p121
      %p123 = scmp.ne.s32.totalorder %s109, %s110
      %p124 = scmp.eq.s32.totalorder %s15, 1
      %p125 = por %p123, %p124
      %p127 = scmp.ne.s32.totalorder %s110, %s126
      %p128 = scmp.eq.s32.totalorder %s15, 0
      %p129 = por %p127, %p128
      %p130 = scmp.le.s32.totalorder 1, %s9
      %p131 = scmp.lt.s32.totalorder %s9, 3
      %p132 = pnand %p130, %p131
      %p133 = pneg %p132
      // Predicated region
      $region9: #{dcgan_discriminator.7} parent=5 // pred_check
        _
      $region10: #{dcgan_discriminator.7} parent=5 // pred_check_branch
        %135 = sbr.rel (%p132) target = $region12
      $region11: #{dcgan_discriminator.7} parent=5 // pred_region
        %s136 = ssub.s32 %s9, 1
        // Predicated region
        $region13: #{dcgan_discriminator.7} parent=11 // pred_check
          %p137 = pneg %p96
        $region14: #{dcgan_discriminator.7} parent=11 // pred_check_branch
          %139 = sbr.rel (%p137) target = $region16
        $region15: #{dcgan_discriminator.7} parent=11 // pred_region
          _
        $region16: #{dcgan_discriminator.7} parent=11 // pred_fallthru
          _
      $region12: #{dcgan_discriminator.7} parent=5 // pred_fallthru
        _
      %p140 = scmp.lt.s32.totalorder %s9, 2
      // Predicated region
      $region17: #{dcgan_discriminator.7} parent=5 // pred_check
        %p141 = pneg %p140
      $region18: #{dcgan_discriminator.7} parent=5 // pred_check_branch
        %143 = sbr.rel (%p141) target = $region20
      $region19: #{dcgan_discriminator.7} parent=5 // pred_region
        // Predicated region
        $region21: #{dcgan_discriminator.7} parent=19 // pred_check
          %p144 = pneg %p43
        $region22: #{dcgan_discriminator.7} parent=19 // pred_check_branch
          %146 = sbr.rel (%p144) target = $region24
        $region23: #{dcgan_discriminator.7} parent=19 // pred_region
          %s147 = sand.u32 %s33, 1
          %s148 = sand.u32 %s33, 1
          %s149 = smul.addr %s148, 128
          %s150 = scalar_lea.vmem [#allocation3], %s149
          %s151 = smul.u32 4, %s16
          %s152 = smul.u32 8, %s17
          %s153 = smul.addr %s151, 16
          %s154 = sadd.s32 %s152, %s153
          %s155 = smul.addr %s154, 4
          %s156 = scalar_lea.vmem %s0, %s155
          // Predicated region
          $region25: #{dcgan_discriminator.7} parent=23 // pred_check
            _
          $region26: #{dcgan_discriminator.7} parent=23 // pred_check_branch
            %158 = sbr.rel (0) target = $region28
          $region27: #{dcgan_discriminator.7} parent=23 // pred_region
            // Predicated region
            $region29: #{dcgan_discriminator.7} parent=27 // pred_check
              _
            $region30: #{dcgan_discriminator.7} parent=27 // pred_check_branch
              %160 = sbr.rel (0) target = $region32
            $region31: #{dcgan_discriminator.7} parent=27 // pred_region
              loop: start=0, step=1, limit=1
              $region33: #{dcgan_discriminator.7} parent=31 // loop_pre_header
                _
              $region34: #{dcgan_discriminator.7} parent=31 // loop_header
                %s162 = sphi 0, %s166
                %p163 = scmp.ge.s32.totalorder %s162, 1
                %s167 = sphi %s156, %s156
                %s168 = sphi %s150, %s150
              $region35: #{dcgan_discriminator.7} parent=31 // loop_header_branch
                %165 = sbr.rel (%p163) target = $region39
              $region36: #{dcgan_discriminator.7} parent=31 // loop_body
                %v169 = vld [vmem:[%s167] sm:$0xff]
                %170 = vst [vmem:[%s168] sm:$0xff] %v169
                %v171 = vld [vmem:[%s167 + $0x8] sm:$0xff]
                %172 = vst [vmem:[%s168 + $0x8] sm:$0xff] %v171
                %v173 = vld [vmem:[%s167 + $0x10] sm:$0xff]
                %174 = vst [vmem:[%s168 + $0x10] sm:$0xff] %v173
                %v175 = vld [vmem:[%s167 + $0x18] sm:$0xff]
                %176 = vst [vmem:[%s168 + $0x18] sm:$0xff] %v175
                %v177 = vld [vmem:[%s167 + $0x40] sm:$0xff]
                %178 = vst [vmem:[%s168 + $0x20] sm:$0xff] %v177
                %v179 = vld [vmem:[%s167 + $0x48] sm:$0xff]
                %180 = vst [vmem:[%s168 + $0x28] sm:$0xff] %v179
                %v181 = vld [vmem:[%s167 + $0x50] sm:$0xff]
                %182 = vst [vmem:[%s168 + $0x30] sm:$0xff] %v181
                %v183 = vld [vmem:[%s167 + $0x58] sm:$0xff]
                %184 = vst [vmem:[%s168 + $0x38] sm:$0xff] %v183
                %v185 = vld [vmem:[%s167 + $0x80] sm:$0xff]
                %186 = vst [vmem:[%s168 + $0x40] sm:$0xff] %v185
                %v187 = vld [vmem:[%s167 + $0x88] sm:$0xff]
                %188 = vst [vmem:[%s168 + $0x48] sm:$0xff] %v187
                %v189 = vld [vmem:[%s167 + $0x90] sm:$0xff]
                %190 = vst [vmem:[%s168 + $0x50] sm:$0xff] %v189
                %v191 = vld [vmem:[%s167 + $0x98] sm:$0xff]
                %192 = vst [vmem:[%s168 + $0x58] sm:$0xff] %v191
                %v193 = vld [vmem:[%s167 + $0xc0] sm:$0xff]
                %194 = vst [vmem:[%s168 + $0x60] sm:$0xff] %v193
                %v195 = vld [vmem:[%s167 + $0xc8] sm:$0xff]
                %196 = vst [vmem:[%s168 + $0x68] sm:$0xff] %v195
                %v197 = vld [vmem:[%s167 + $0xd0] sm:$0xff]
                %198 = vst [vmem:[%s168 + $0x70] sm:$0xff] %v197
                %v199 = vld [vmem:[%s167 + $0xd8] sm:$0xff]
                %200 = vst [vmem:[%s168 + $0x78] sm:$0xff] %v199
              $region37: #{dcgan_discriminator.7} parent=31 // loop_footer
                %s166 = sadd.s32 1, %s162
              $region38: #{dcgan_discriminator.7} parent=31 // loop_footer_branch
                %161 = sbr.rel target = $region34
              $region39: #{dcgan_discriminator.7} parent=31 // loop_exit
                _
            $region32: #{dcgan_discriminator.7} parent=27 // pred_fallthru
              _
            // Predicated region
            $region40: #{dcgan_discriminator.7} parent=27 // pred_check
              _
            $region41: #{dcgan_discriminator.7} parent=27 // pred_check_branch
              %202 = sbr.rel target = $region43
            $region42: #{dcgan_discriminator.7} parent=27 // pred_region
              _
            $region43: #{dcgan_discriminator.7} parent=27 // pred_fallthru
              _
          $region28: #{dcgan_discriminator.7} parent=23 // pred_fallthru
            _
          %203 = vnop
        $region24: #{dcgan_discriminator.7} parent=19 // pred_fallthru
          _
        // Predicated region
        $region44: #{dcgan_discriminator.7} parent=19 // pred_check
          %p204 = pneg %p69
        $region45: #{dcgan_discriminator.7} parent=19 // pred_check_branch
          %206 = sbr.rel (%p204) target = $region47
        $region46: #{dcgan_discriminator.7} parent=19 // pred_region
          %s207 = smul.u32 128, %s17
          %p208 = scmp.lt.s32.totalorder %s207, 255
          %s209 = scalar_select %p208, %s207, 255
          %s210 = smul.addr %s209, 2
          %s211 = smul.addr %s210, 4
          %s212 = scalar_lea.vmem %s1, %s211
          %s213 = smul.u32 128, %s17
        $region47: #{dcgan_discriminator.7} parent=19 // pred_fallthru
          _
      $region20: #{dcgan_discriminator.7} parent=5 // pred_fallthru
        _
      %p214 = scmp.le.s32.totalorder 1, %s9
      %p215 = scmp.lt.s32.totalorder %s9, 3
      %p216 = pnand %p214, %p215
      %p217 = pneg %p216
      // Predicated region
      $region48: #{dcgan_discriminator.7} parent=5 // pred_check
        _
      $region49: #{dcgan_discriminator.7} parent=5 // pred_check_branch
        %219 = sbr.rel (%p216) target = $region51
      $region50: #{dcgan_discriminator.7} parent=5 // pred_region
        %s220 = ssub.s32 %s9, 1
        %s221 = sand.u32 %s36, 1
        %s222 = sand.u32 %s36, 1
        %s223 = smul.addr %s222, 128
        %s224 = scalar_lea.vmem [#allocation3], %s223
        // Predicated region
        $region52: #{dcgan_discriminator.7} parent=50 // pred_check
          %p225 = pneg %p49
        $region53: #{dcgan_discriminator.7} parent=50 // pred_check_branch
          %227 = sbr.rel (%p225) target = $region55
        $region54: #{dcgan_discriminator.7} parent=50 // pred_region
          _
        $region55: #{dcgan_discriminator.7} parent=50 // pred_fallthru
          _
        %s228 = sand.u32 %s36, 1
        %s229 = sand.u32 %s36, 1
        %s230 = smul.addr %s229, 128
        %s231 = scalar_lea.vmem [#allocation3], %s230
        %p232 = pneg %p49
        %p233 = pneg %p46
        %s234 = smul.u32 128, %s19
        %p235 = scmp.lt.s32.totalorder %s234, 255
        %s236 = scalar_select %p235, %s234, 255
        %s237 = smul.addr %s236, 2
        %s238 = smul.addr %s237, 4
        %s239 = scalar_lea.vmem %s1, %s238
        %p240 = pneg %p75
        %p241 = pneg %p72
        %p242 = pneg %p96
        %p243 = pneg %p93
        %p244 = pneg %p122
        %p245 = pneg %p119
        %s246 = smul.u32 4, %s18
        %p247 = scmp.lt.s32.totalorder %s246, 3
        %s248 = scalar_select %p247, %s246, 3
        %s249 = smul.addr %s248, 2
        %s250 = smul.addr %s249, 4
        %s251 = scalar_lea.vmem %s3, %s250
        %s252 = smul.u32 4, %s18
        %s253 = smul.u32 8, %s19
        %s254 = smul.u32 128, %s19
        %p255 = scmp.lt.s32.totalorder %s254, 255
        %s256 = scalar_select %p255, %s254, 255
        %s257 = smul.addr %s256, 2
        %s258 = smul.addr %s257, 4
        %s259 = scalar_lea.vmem %s1, %s258
        %s260 = smul.u32 128, %s19
        %s261 = smul.u32 4, %s18
        %p262 = scmp.lt.s32.totalorder %s261, 3
        %s263 = scalar_select %p262, %s261, 3
        %s264 = smul.addr %s263, 2
        %s265 = smul.addr %s264, 4
        %s266 = scalar_lea.vmem %s3, %s265
        %s267 = smul.u32 4, %s18
        %p268 = scmp.eq.s32.totalorder %s19, 0
        // Predicated region
        $region56: #{dcgan_discriminator.7} parent=50 // pred_check
          %p269 = pneg %p268
        $region57: #{dcgan_discriminator.7} parent=50 // pred_check_branch
          %271 = sbr.rel (%p269) target = $region59
        $region58: #{dcgan_discriminator.7} parent=50 // pred_region
          %272 = vst [vmem:[#allocation2] sm:$0xff] 0.0
          %273 = vst [vmem:[#allocation2 + $0x8] sm:$0xff] 0.0
          %274 = vst [vmem:[#allocation2 + $0x10] sm:$0xff] 0.0
          %275 = vst [vmem:[#allocation2 + $0x18] sm:$0xff] 0.0
          %276 = vst [vmem:[#allocation2 + $0x20] sm:$0xff] 0.0
          %277 = vst [vmem:[#allocation2 + $0x28] sm:$0xff] 0.0
          %278 = vst [vmem:[#allocation2 + $0x30] sm:$0xff] 0.0
          %279 = vst [vmem:[#allocation2 + $0x38] sm:$0xff] 0.0
        $region59: #{dcgan_discriminator.7} parent=50 // pred_fallthru
          _
        %v280 = vld [vmem:[#allocation2] sm:$0xff]
        %v281 = vld [vmem:[#allocation2 + $0x8] sm:$0xff]
        %v282 = vld [vmem:[#allocation2 + $0x10] sm:$0xff]
        %v283 = vld [vmem:[#allocation2 + $0x18] sm:$0xff]
        %v284 = vld [vmem:[#allocation2 + $0x20] sm:$0xff]
        %v285 = vld [vmem:[#allocation2 + $0x28] sm:$0xff]
        %v286 = vld [vmem:[#allocation2 + $0x30] sm:$0xff]
        %v287 = vld [vmem:[#allocation2 + $0x38] sm:$0xff]
        %v288 = vld [vmem:[%s224] sm:$0xff]
        %v289 = vld [vmem:[%s224 + $0x8] sm:$0xff]
        %v290 = vld [vmem:[%s224 + $0x10] sm:$0xff]
        %v291 = vld [vmem:[%s224 + $0x18] sm:$0xff]
        %v292 = vld [vmem:[%s224 + $0x20] sm:$0xff]
        %v293 = vld [vmem:[%s224 + $0x28] sm:$0xff]
        %v294 = vld [vmem:[%s224 + $0x30] sm:$0xff]
        %v295 = vld [vmem:[%s224 + $0x38] sm:$0xff]
        %v296 = vld [vmem:[%s224 + $0x40] sm:$0xff]
        %v297 = vld [vmem:[%s224 + $0x48] sm:$0xff]
        %v298 = vld [vmem:[%s224 + $0x50] sm:$0xff]
        %v299 = vld [vmem:[%s224 + $0x58] sm:$0xff]
        %v300 = vld [vmem:[%s224 + $0x60] sm:$0xff]
        %v301 = vld [vmem:[%s224 + $0x68] sm:$0xff]
        %v302 = vld [vmem:[%s224 + $0x70] sm:$0xff]
        %v303 = vld [vmem:[%s224 + $0x78] sm:$0xff]
        %v304 = vld [vmem:[%s259] sm:$0xff]
        %v305 = vld [vmem:[%s259 + $0x8] sm:$0xff]
        %v306 = vld [vmem:[%s259 + $0x10] sm:$0xff]
        %v307 = vld [vmem:[%s259 + $0x18] sm:$0xff]
        %v308 = vld [vmem:[%s259 + $0x20] sm:$0xff]
        %v309 = vld [vmem:[%s259 + $0x28] sm:$0xff]
        %v310 = vld [vmem:[%s259 + $0x30] sm:$0xff]
        %v311 = vld [vmem:[%s259 + $0x38] sm:$0xff]
        %v312 = vld [vmem:[%s259 + $0x40] sm:$0xff]
        %v313 = vld [vmem:[%s259 + $0x48] sm:$0xff]
        %v314 = vld [vmem:[%s259 + $0x50] sm:$0xff]
        %v315 = vld [vmem:[%s259 + $0x58] sm:$0xff]
        %v316 = vld [vmem:[%s259 + $0x60] sm:$0xff]
        %v317 = vld [vmem:[%s259 + $0x68] sm:$0xff]
        %v318 = vld [vmem:[%s259 + $0x70] sm:$0xff]
        %v319 = vld [vmem:[%s259 + $0x78] sm:$0xff]
        %v320 = vld [vmem:[%s259 + $0x80] sm:$0xff]
        %v321 = vld [vmem:[%s259 + $0x88] sm:$0xff]
        %v322 = vld [vmem:[%s259 + $0x90] sm:$0xff]
        %v323 = vld [vmem:[%s259 + $0x98] sm:$0xff]
        %v324 = vld [vmem:[%s259 + $0xa0] sm:$0xff]
        %v325 = vld [vmem:[%s259 + $0xa8] sm:$0xff]
        %v326 = vld [vmem:[%s259 + $0xb0] sm:$0xff]
        %v327 = vld [vmem:[%s259 + $0xb8] sm:$0xff]
        %v328 = vld [vmem:[%s259 + $0xc0] sm:$0xff]
        %v329 = vld [vmem:[%s259 + $0xc8] sm:$0xff]
        %v330 = vld [vmem:[%s259 + $0xd0] sm:$0xff]
        %v331 = vld [vmem:[%s259 + $0xd8] sm:$0xff]
        %v332 = vld [vmem:[%s259 + $0xe0] sm:$0xff]
        %v333 = vld [vmem:[%s259 + $0xe8] sm:$0xff]
        %v334 = vld [vmem:[%s259 + $0xf0] sm:$0xff]
        %v335 = vld [vmem:[%s259 + $0xf8] sm:$0xff]
        %v336 = vld [vmem:[%s259 + $0x100] sm:$0xff]
        %v337 = vld [vmem:[%s259 + $0x108] sm:$0xff]
        %v338 = vld [vmem:[%s259 + $0x110] sm:$0xff]
        %v339 = vld [vmem:[%s259 + $0x118] sm:$0xff]
        %v340 = vld [vmem:[%s259 + $0x120] sm:$0xff]
        %v341 = vld [vmem:[%s259 + $0x128] sm:$0xff]
        %v342 = vld [vmem:[%s259 + $0x130] sm:$0xff]
        %v343 = vld [vmem:[%s259 + $0x138] sm:$0xff]
        %v344 = vld [vmem:[%s259 + $0x140] sm:$0xff]
        %v345 = vld [vmem:[%s259 + $0x148] sm:$0xff]
        %v346 = vld [vmem:[%s259 + $0x150] sm:$0xff]
        %v347 = vld [vmem:[%s259 + $0x158] sm:$0xff]
        %v348 = vld [vmem:[%s259 + $0x160] sm:$0xff]
        %v349 = vld [vmem:[%s259 + $0x168] sm:$0xff]
        %v350 = vld [vmem:[%s259 + $0x170] sm:$0xff]
        %v351 = vld [vmem:[%s259 + $0x178] sm:$0xff]
        %v352 = vld [vmem:[%s259 + $0x180] sm:$0xff]
        %v353 = vld [vmem:[%s259 + $0x188] sm:$0xff]
        %v354 = vld [vmem:[%s259 + $0x190] sm:$0xff]
        %v355 = vld [vmem:[%s259 + $0x198] sm:$0xff]
        %v356 = vld [vmem:[%s259 + $0x1a0] sm:$0xff]
        %v357 = vld [vmem:[%s259 + $0x1a8] sm:$0xff]
        %v358 = vld [vmem:[%s259 + $0x1b0] sm:$0xff]
        %v359 = vld [vmem:[%s259 + $0x1b8] sm:$0xff]
        %v360 = vld [vmem:[%s259 + $0x1c0] sm:$0xff]
        %v361 = vld [vmem:[%s259 + $0x1c8] sm:$0xff]
        %v362 = vld [vmem:[%s259 + $0x1d0] sm:$0xff]
        %v363 = vld [vmem:[%s259 + $0x1d8] sm:$0xff]
        %v364 = vld [vmem:[%s259 + $0x1e0] sm:$0xff]
        %v365 = vld [vmem:[%s259 + $0x1e8] sm:$0xff]
        %v366 = vld [vmem:[%s259 + $0x1f0] sm:$0xff]
        %v367 = vld [vmem:[%s259 + $0x1f8] sm:$0xff]
        %v368 = vld [vmem:[%s259 + $0x200] sm:$0xff]
        %v369 = vld [vmem:[%s259 + $0x208] sm:$0xff]
        %v370 = vld [vmem:[%s259 + $0x210] sm:$0xff]
        %v371 = vld [vmem:[%s259 + $0x218] sm:$0xff]
        %v372 = vld [vmem:[%s259 + $0x220] sm:$0xff]
        %v373 = vld [vmem:[%s259 + $0x228] sm:$0xff]
        %v374 = vld [vmem:[%s259 + $0x230] sm:$0xff]
        %v375 = vld [vmem:[%s259 + $0x238] sm:$0xff]
        %v376 = vld [vmem:[%s259 + $0x240] sm:$0xff]
        %v377 = vld [vmem:[%s259 + $0x248] sm:$0xff]
        %v378 = vld [vmem:[%s259 + $0x250] sm:$0xff]
        %v379 = vld [vmem:[%s259 + $0x258] sm:$0xff]
        %v380 = vld [vmem:[%s259 + $0x260] sm:$0xff]
        %v381 = vld [vmem:[%s259 + $0x268] sm:$0xff]
        %v382 = vld [vmem:[%s259 + $0x270] sm:$0xff]
        %v383 = vld [vmem:[%s259 + $0x278] sm:$0xff]
        %v384 = vld [vmem:[%s259 + $0x280] sm:$0xff]
        %v385 = vld [vmem:[%s259 + $0x288] sm:$0xff]
        %v386 = vld [vmem:[%s259 + $0x290] sm:$0xff]
        %v387 = vld [vmem:[%s259 + $0x298] sm:$0xff]
        %v388 = vld [vmem:[%s259 + $0x2a0] sm:$0xff]
        %v389 = vld [vmem:[%s259 + $0x2a8] sm:$0xff]
        %v390 = vld [vmem:[%s259 + $0x2b0] sm:$0xff]
        %v391 = vld [vmem:[%s259 + $0x2b8] sm:$0xff]
        %v392 = vld [vmem:[%s259 + $0x2c0] sm:$0xff]
        %v393 = vld [vmem:[%s259 + $0x2c8] sm:$0xff]
        %v394 = vld [vmem:[%s259 + $0x2d0] sm:$0xff]
        %v395 = vld [vmem:[%s259 + $0x2d8] sm:$0xff]
        %v396 = vld [vmem:[%s259 + $0x2e0] sm:$0xff]
        %v397 = vld [vmem:[%s259 + $0x2e8] sm:$0xff]
        %v398 = vld [vmem:[%s259 + $0x2f0] sm:$0xff]
        %v399 = vld [vmem:[%s259 + $0x2f8] sm:$0xff]
        %v400 = vld [vmem:[%s259 + $0x300] sm:$0xff]
        %v401 = vld [vmem:[%s259 + $0x308] sm:$0xff]
        %v402 = vld [vmem:[%s259 + $0x310] sm:$0xff]
        %v403 = vld [vmem:[%s259 + $0x318] sm:$0xff]
        %v404 = vld [vmem:[%s259 + $0x320] sm:$0xff]
        %v405 = vld [vmem:[%s259 + $0x328] sm:$0xff]
        %v406 = vld [vmem:[%s259 + $0x330] sm:$0xff]
        %v407 = vld [vmem:[%s259 + $0x338] sm:$0xff]
        %v408 = vld [vmem:[%s259 + $0x340] sm:$0xff]
        %v409 = vld [vmem:[%s259 + $0x348] sm:$0xff]
        %v410 = vld [vmem:[%s259 + $0x350] sm:$0xff]
        %v411 = vld [vmem:[%s259 + $0x358] sm:$0xff]
        %v412 = vld [vmem:[%s259 + $0x360] sm:$0xff]
        %v413 = vld [vmem:[%s259 + $0x368] sm:$0xff]
        %v414 = vld [vmem:[%s259 + $0x370] sm:$0xff]
        %v415 = vld [vmem:[%s259 + $0x378] sm:$0xff]
        %v416 = vld [vmem:[%s259 + $0x380] sm:$0xff]
        %v417 = vld [vmem:[%s259 + $0x388] sm:$0xff]
        %v418 = vld [vmem:[%s259 + $0x390] sm:$0xff]
        %v419 = vld [vmem:[%s259 + $0x398] sm:$0xff]
        %v420 = vld [vmem:[%s259 + $0x3a0] sm:$0xff]
        %v421 = vld [vmem:[%s259 + $0x3a8] sm:$0xff]
        %v422 = vld [vmem:[%s259 + $0x3b0] sm:$0xff]
        %v423 = vld [vmem:[%s259 + $0x3b8] sm:$0xff]
        %v424 = vld [vmem:[%s259 + $0x3c0] sm:$0xff]
        %v425 = vld [vmem:[%s259 + $0x3c8] sm:$0xff]
        %v426 = vld [vmem:[%s259 + $0x3d0] sm:$0xff]
        %v427 = vld [vmem:[%s259 + $0x3d8] sm:$0xff]
        %v428 = vld [vmem:[%s259 + $0x3e0] sm:$0xff]
        %v429 = vld [vmem:[%s259 + $0x3e8] sm:$0xff]
        %v430 = vld [vmem:[%s259 + $0x3f0] sm:$0xff]
        %v431 = vld [vmem:[%s259 + $0x3f8] sm:$0xff]
        %v448 = vunpack.c.l.b16 %v288
        %v449 = vunpack.c.h.b16 %v288
        %v450 = vunpack.c.l.b16 %v289
        %v451 = vunpack.c.h.b16 %v289
        %v452 = vunpack.c.l.b16 %v290
        %v453 = vunpack.c.h.b16 %v290
        %v454 = vunpack.c.l.b16 %v291
        %v455 = vunpack.c.h.b16 %v291
        %v456 = vunpack.c.l.b16 %v292
        %v457 = vunpack.c.h.b16 %v292
        %v458 = vunpack.c.l.b16 %v293
        %v459 = vunpack.c.h.b16 %v293
        %v460 = vunpack.c.l.b16 %v294
        %v461 = vunpack.c.h.b16 %v294
        %v462 = vunpack.c.l.b16 %v295
        %v463 = vunpack.c.h.b16 %v295
        %v464 = vunpack.c.l.b16 %v296
        %v465 = vunpack.c.h.b16 %v296
        %v466 = vunpack.c.l.b16 %v297
        %v467 = vunpack.c.h.b16 %v297
        %v468 = vunpack.c.l.b16 %v298
        %v469 = vunpack.c.h.b16 %v298
        %v470 = vunpack.c.l.b16 %v299
        %v471 = vunpack.c.h.b16 %v299
        %v472 = vunpack.c.l.b16 %v300
        %v473 = vunpack.c.h.b16 %v300
        %v474 = vunpack.c.l.b16 %v301
        %v475 = vunpack.c.h.b16 %v301
        %v476 = vunpack.c.l.b16 %v302
        %v477 = vunpack.c.h.b16 %v302
        %v478 = vunpack.c.l.b16 %v303
        %v479 = vunpack.c.h.b16 %v303
        %v480 = vpack.c.b16 %v456, %v448
        %v481 = vpack.c.b16 %v457, %v449
        %v482 = vpack.c.b16 %v458, %v450
        %v483 = vpack.c.b16 %v459, %v451
        %v484 = vpack.c.b16 %v460, %v452
        %v485 = vpack.c.b16 %v461, %v453
        %v486 = vpack.c.b16 %v462, %v454
        %v487 = vpack.c.b16 %v463, %v455
        %v488 = vpack.c.b16 %v472, %v464
        %v489 = vpack.c.b16 %v473, %v465
        %v490 = vpack.c.b16 %v474, %v466
        %v491 = vpack.c.b16 %v475, %v467
        %v492 = vpack.c.b16 %v476, %v468
        %v493 = vpack.c.b16 %v477, %v469
        %v494 = vpack.c.b16 %v478, %v470
        %v495 = vpack.c.b16 %v479, %v471
        %v640 = vunpack.c.l.b16 %v304
        %v641 = vunpack.c.h.b16 %v304
        %v642 = vunpack.c.l.b16 %v305
        %v643 = vunpack.c.h.b16 %v305
        %v644 = vunpack.c.l.b16 %v306
        %v645 = vunpack.c.h.b16 %v306
        %v646 = vunpack.c.l.b16 %v307
        %v647 = vunpack.c.h.b16 %v307
        %v648 = vunpack.c.l.b16 %v308
        %v649 = vunpack.c.h.b16 %v308
        %v650 = vunpack.c.l.b16 %v309
        %v651 = vunpack.c.h.b16 %v309
        %v652 = vunpack.c.l.b16 %v310
        %v653 = vunpack.c.h.b16 %v310
        %v654 = vunpack.c.l.b16 %v311
        %v655 = vunpack.c.h.b16 %v311
        %v656 = vunpack.c.l.b16 %v312
        %v657 = vunpack.c.h.b16 %v312
        %v658 = vunpack.c.l.b16 %v313
        %v659 = vunpack.c.h.b16 %v313
        %v660 = vunpack.c.l.b16 %v314
        %v661 = vunpack.c.h.b16 %v314
        %v662 = vunpack.c.l.b16 %v315
        %v663 = vunpack.c.h.b16 %v315
        %v664 = vunpack.c.l.b16 %v316
        %v665 = vunpack.c.h.b16 %v316
        %v666 = vunpack.c.l.b16 %v317
        %v667 = vunpack.c.h.b16 %v317
        %v668 = vunpack.c.l.b16 %v318
        %v669 = vunpack.c.h.b16 %v318
        %v670 = vunpack.c.l.b16 %v319
        %v671 = vunpack.c.h.b16 %v319
        %v672 = vunpack.c.l.b16 %v320
        %v673 = vunpack.c.h.b16 %v320
        %v674 = vunpack.c.l.b16 %v321
        %v675 = vunpack.c.h.b16 %v321
        %v676 = vunpack.c.l.b16 %v322
        %v677 = vunpack.c.h.b16 %v322
        %v678 = vunpack.c.l.b16 %v323
        %v679 = vunpack.c.h.b16 %v323
        %v680 = vunpack.c.l.b16 %v324
        %v681 = vunpack.c.h.b16 %v324
        %v682 = vunpack.c.l.b16 %v325
        %v683 = vunpack.c.h.b16 %v325
        %v684 = vunpack.c.l.b16 %v326
        %v685 = vunpack.c.h.b16 %v326
        %v686 = vunpack.c.l.b16 %v327
        %v687 = vunpack.c.h.b16 %v327
        %v688 = vunpack.c.l.b16 %v328
        %v689 = vunpack.c.h.b16 %v328
        %v690 = vunpack.c.l.b16 %v329
        %v691 = vunpack.c.h.b16 %v329
        %v692 = vunpack.c.l.b16 %v330
        %v693 = vunpack.c.h.b16 %v330
        %v694 = vunpack.c.l.b16 %v331
        %v695 = vunpack.c.h.b16 %v331
        %v696 = vunpack.c.l.b16 %v332
        %v697 = vunpack.c.h.b16 %v332
        %v698 = vunpack.c.l.b16 %v333
        %v699 = vunpack.c.h.b16 %v333
        %v700 = vunpack.c.l.b16 %v334
        %v701 = vunpack.c.h.b16 %v334
        %v702 = vunpack.c.l.b16 %v335
        %v703 = vunpack.c.h.b16 %v335
        %v704 = vunpack.c.l.b16 %v336
        %v705 = vunpack.c.h.b16 %v336
        %v706 = vunpack.c.l.b16 %v337
        %v707 = vunpack.c.h.b16 %v337
        %v708 = vunpack.c.l.b16 %v338
        %v709 = vunpack.c.h.b16 %v338
        %v710 = vunpack.c.l.b16 %v339
        %v711 = vunpack.c.h.b16 %v339
        %v712 = vunpack.c.l.b16 %v340
        %v713 = vunpack.c.h.b16 %v340
        %v714 = vunpack.c.l.b16 %v341
        %v715 = vunpack.c.h.b16 %v341
        %v716 = vunpack.c.l.b16 %v342
        %v717 = vunpack.c.h.b16 %v342
        %v718 = vunpack.c.l.b16 %v343
        %v719 = vunpack.c.h.b16 %v343
        %v720 = vunpack.c.l.b16 %v344
        %v721 = vunpack.c.h.b16 %v344
        %v722 = vunpack.c.l.b16 %v345
        %v723 = vunpack.c.h.b16 %v345
        %v724 = vunpack.c.l.b16 %v346
        %v725 = vunpack.c.h.b16 %v346
        %v726 = vunpack.c.l.b16 %v347
        %v727 = vunpack.c.h.b16 %v347
        %v728 = vunpack.c.l.b16 %v348
        %v729 = vunpack.c.h.b16 %v348
        %v730 = vunpack.c.l.b16 %v349
        %v731 = vunpack.c.h.b16 %v349
        %v732 = vunpack.c.l.b16 %v350
        %v733 = vunpack.c.h.b16 %v350
        %v734 = vunpack.c.l.b16 %v351
        %v735 = vunpack.c.h.b16 %v351
        %v736 = vunpack.c.l.b16 %v352
        %v737 = vunpack.c.h.b16 %v352
        %v738 = vunpack.c.l.b16 %v353
        %v739 = vunpack.c.h.b16 %v353
        %v740 = vunpack.c.l.b16 %v354
        %v741 = vunpack.c.h.b16 %v354
        %v742 = vunpack.c.l.b16 %v355
        %v743 = vunpack.c.h.b16 %v355
        %v744 = vunpack.c.l.b16 %v356
        %v745 = vunpack.c.h.b16 %v356
        %v746 = vunpack.c.l.b16 %v357
        %v747 = vunpack.c.h.b16 %v357
        %v748 = vunpack.c.l.b16 %v358
        %v749 = vunpack.c.h.b16 %v358
        %v750 = vunpack.c.l.b16 %v359
        %v751 = vunpack.c.h.b16 %v359
        %v752 = vunpack.c.l.b16 %v360
        %v753 = vunpack.c.h.b16 %v360
        %v754 = vunpack.c.l.b16 %v361
        %v755 = vunpack.c.h.b16 %v361
        %v756 = vunpack.c.l.b16 %v362
        %v757 = vunpack.c.h.b16 %v362
        %v758 = vunpack.c.l.b16 %v363
        %v759 = vunpack.c.h.b16 %v363
        %v760 = vunpack.c.l.b16 %v364
        %v761 = vunpack.c.h.b16 %v364
        %v762 = vunpack.c.l.b16 %v365
        %v763 = vunpack.c.h.b16 %v365
        %v764 = vunpack.c.l.b16 %v366
        %v765 = vunpack.c.h.b16 %v366
        %v766 = vunpack.c.l.b16 %v367
        %v767 = vunpack.c.h.b16 %v367
        %v768 = vunpack.c.l.b16 %v368
        %v769 = vunpack.c.h.b16 %v368
        %v770 = vunpack.c.l.b16 %v369
        %v771 = vunpack.c.h.b16 %v369
        %v772 = vunpack.c.l.b16 %v370
        %v773 = vunpack.c.h.b16 %v370
        %v774 = vunpack.c.l.b16 %v371
        %v775 = vunpack.c.h.b16 %v371
        %v776 = vunpack.c.l.b16 %v372
        %v777 = vunpack.c.h.b16 %v372
        %v778 = vunpack.c.l.b16 %v373
        %v779 = vunpack.c.h.b16 %v373
        %v780 = vunpack.c.l.b16 %v374
        %v781 = vunpack.c.h.b16 %v374
        %v782 = vunpack.c.l.b16 %v375
        %v783 = vunpack.c.h.b16 %v375
        %v784 = vunpack.c.l.b16 %v376
        %v785 = vunpack.c.h.b16 %v376
        %v786 = vunpack.c.l.b16 %v377
        %v787 = vunpack.c.h.b16 %v377
        %v788 = vunpack.c.l.b16 %v378
        %v789 = vunpack.c.h.b16 %v378
        %v790 = vunpack.c.l.b16 %v379
        %v791 = vunpack.c.h.b16 %v379
        %v792 = vunpack.c.l.b16 %v380
        %v793 = vunpack.c.h.b16 %v380
        %v794 = vunpack.c.l.b16 %v381
        %v795 = vunpack.c.h.b16 %v381
        %v796 = vunpack.c.l.b16 %v382
        %v797 = vunpack.c.h.b16 %v382
        %v798 = vunpack.c.l.b16 %v383
        %v799 = vunpack.c.h.b16 %v383
        %v800 = vunpack.c.l.b16 %v384
        %v801 = vunpack.c.h.b16 %v384
        %v802 = vunpack.c.l.b16 %v385
        %v803 = vunpack.c.h.b16 %v385
        %v804 = vunpack.c.l.b16 %v386
        %v805 = vunpack.c.h.b16 %v386
        %v806 = vunpack.c.l.b16 %v387
        %v807 = vunpack.c.h.b16 %v387
        %v808 = vunpack.c.l.b16 %v388
        %v809 = vunpack.c.h.b16 %v388
        %v810 = vunpack.c.l.b16 %v389
        %v811 = vunpack.c.h.b16 %v389
        %v812 = vunpack.c.l.b16 %v390
        %v813 = vunpack.c.h.b16 %v390
        %v814 = vunpack.c.l.b16 %v391
        %v815 = vunpack.c.h.b16 %v391
        %v816 = vunpack.c.l.b16 %v392
        %v817 = vunpack.c.h.b16 %v392
        %v818 = vunpack.c.l.b16 %v393
        %v819 = vunpack.c.h.b16 %v393
        %v820 = vunpack.c.l.b16 %v394
        %v821 = vunpack.c.h.b16 %v394
        %v822 = vunpack.c.l.b16 %v395
        %v823 = vunpack.c.h.b16 %v395
        %v824 = vunpack.c.l.b16 %v396
        %v825 = vunpack.c.h.b16 %v396
        %v826 = vunpack.c.l.b16 %v397
        %v827 = vunpack.c.h.b16 %v397
        %v828 = vunpack.c.l.b16 %v398
        %v829 = vunpack.c.h.b16 %v398
        %v830 = vunpack.c.l.b16 %v399
        %v831 = vunpack.c.h.b16 %v399
        %v832 = vunpack.c.l.b16 %v400
        %v833 = vunpack.c.h.b16 %v400
        %v834 = vunpack.c.l.b16 %v401
        %v835 = vunpack.c.h.b16 %v401
        %v836 = vunpack.c.l.b16 %v402
        %v837 = vunpack.c.h.b16 %v402
        %v838 = vunpack.c.l.b16 %v403
        %v839 = vunpack.c.h.b16 %v403
        %v840 = vunpack.c.l.b16 %v404
        %v841 = vunpack.c.h.b16 %v404
        %v842 = vunpack.c.l.b16 %v405
        %v843 = vunpack.c.h.b16 %v405
        %v844 = vunpack.c.l.b16 %v406
        %v845 = vunpack.c.h.b16 %v406
        %v846 = vunpack.c.l.b16 %v407
        %v847 = vunpack.c.h.b16 %v407
        %v848 = vunpack.c.l.b16 %v408
        %v849 = vunpack.c.h.b16 %v408
        %v850 = vunpack.c.l.b16 %v409
        %v851 = vunpack.c.h.b16 %v409
        %v852 = vunpack.c.l.b16 %v410
        %v853 = vunpack.c.h.b16 %v410
        %v854 = vunpack.c.l.b16 %v411
        %v855 = vunpack.c.h.b16 %v411
        %v856 = vunpack.c.l.b16 %v412
        %v857 = vunpack.c.h.b16 %v412
        %v858 = vunpack.c.l.b16 %v413
        %v859 = vunpack.c.h.b16 %v413
        %v860 = vunpack.c.l.b16 %v414
        %v861 = vunpack.c.h.b16 %v414
        %v862 = vunpack.c.l.b16 %v415
        %v863 = vunpack.c.h.b16 %v415
        %v864 = vunpack.c.l.b16 %v416
        %v865 = vunpack.c.h.b16 %v416
        %v866 = vunpack.c.l.b16 %v417
        %v867 = vunpack.c.h.b16 %v417
        %v868 = vunpack.c.l.b16 %v418
        %v869 = vunpack.c.h.b16 %v418
        %v870 = vunpack.c.l.b16 %v419
        %v871 = vunpack.c.h.b16 %v419
        %v872 = vunpack.c.l.b16 %v420
        %v873 = vunpack.c.h.b16 %v420
        %v874 = vunpack.c.l.b16 %v421
        %v875 = vunpack.c.h.b16 %v421
        %v876 = vunpack.c.l.b16 %v422
        %v877 = vunpack.c.h.b16 %v422
        %v878 = vunpack.c.l.b16 %v423
        %v879 = vunpack.c.h.b16 %v423
        %v880 = vunpack.c.l.b16 %v424
        %v881 = vunpack.c.h.b16 %v424
        %v882 = vunpack.c.l.b16 %v425
        %v883 = vunpack.c.h.b16 %v425
        %v884 = vunpack.c.l.b16 %v426
        %v885 = vunpack.c.h.b16 %v426
        %v886 = vunpack.c.l.b16 %v427
        %v887 = vunpack.c.h.b16 %v427
        %v888 = vunpack.c.l.b16 %v428
        %v889 = vunpack.c.h.b16 %v428
        %v890 = vunpack.c.l.b16 %v429
        %v891 = vunpack.c.h.b16 %v429
        %v892 = vunpack.c.l.b16 %v430
        %v893 = vunpack.c.h.b16 %v430
        %v894 = vunpack.c.l.b16 %v431
        %v895 = vunpack.c.h.b16 %v431
        %v896 = vpack.c.b16 %v642, %v640
        %v897 = vpack.c.b16 %v643, %v641
        %v898 = vpack.c.b16 %v646, %v644
        %v899 = vpack.c.b16 %v647, %v645
        %v900 = vpack.c.b16 %v650, %v648
        %v901 = vpack.c.b16 %v651, %v649
        %v902 = vpack.c.b16 %v654, %v652
        %v903 = vpack.c.b16 %v655, %v653
        %v904 = vpack.c.b16 %v658, %v656
        %v905 = vpack.c.b16 %v659, %v657
        %v906 = vpack.c.b16 %v662, %v660
        %v907 = vpack.c.b16 %v663, %v661
        %v908 = vpack.c.b16 %v666, %v664
        %v909 = vpack.c.b16 %v667, %v665
        %v910 = vpack.c.b16 %v670, %v668
        %v911 = vpack.c.b16 %v671, %v669
        %v912 = vpack.c.b16 %v674, %v672
        %v913 = vpack.c.b16 %v675, %v673
        %v914 = vpack.c.b16 %v678, %v676
        %v915 = vpack.c.b16 %v679, %v677
        %v916 = vpack.c.b16 %v682, %v680
        %v917 = vpack.c.b16 %v683, %v681
        %v918 = vpack.c.b16 %v686, %v684
        %v919 = vpack.c.b16 %v687, %v685
        %v920 = vpack.c.b16 %v690, %v688
        %v921 = vpack.c.b16 %v691, %v689
        %v922 = vpack.c.b16 %v694, %v692
        %v923 = vpack.c.b16 %v695, %v693
        %v924 = vpack.c.b16 %v698, %v696
        %v925 = vpack.c.b16 %v699, %v697
        %v926 = vpack.c.b16 %v702, %v700
        %v927 = vpack.c.b16 %v703, %v701
        %v928 = vpack.c.b16 %v706, %v704
        %v929 = vpack.c.b16 %v707, %v705
        %v930 = vpack.c.b16 %v710, %v708
        %v931 = vpack.c.b16 %v711, %v709
        %v932 = vpack.c.b16 %v714, %v712
        %v933 = vpack.c.b16 %v715, %v713
        %v934 = vpack.c.b16 %v718, %v716
        %v935 = vpack.c.b16 %v719, %v717
        %v936 = vpack.c.b16 %v722, %v720
        %v937 = vpack.c.b16 %v723, %v721
        %v938 = vpack.c.b16 %v726, %v724
        %v939 = vpack.c.b16 %v727, %v725
        %v940 = vpack.c.b16 %v730, %v728
        %v941 = vpack.c.b16 %v731, %v729
        %v942 = vpack.c.b16 %v734, %v732
        %v943 = vpack.c.b16 %v735, %v733
        %v944 = vpack.c.b16 %v738, %v736
        %v945 = vpack.c.b16 %v739, %v737
        %v946 = vpack.c.b16 %v742, %v740
        %v947 = vpack.c.b16 %v743, %v741
        %v948 = vpack.c.b16 %v746, %v744
        %v949 = vpack.c.b16 %v747, %v745
        %v950 = vpack.c.b16 %v750, %v748
        %v951 = vpack.c.b16 %v751, %v749
        %v952 = vpack.c.b16 %v754, %v752
        %v953 = vpack.c.b16 %v755, %v753
        %v954 = vpack.c.b16 %v758, %v756
        %v955 = vpack.c.b16 %v759, %v757
        %v956 = vpack.c.b16 %v762, %v760
        %v957 = vpack.c.b16 %v763, %v761
        %v958 = vpack.c.b16 %v766, %v764
        %v959 = vpack.c.b16 %v767, %v765
        %v960 = vpack.c.b16 %v770, %v768
        %v961 = vpack.c.b16 %v771, %v769
        %v962 = vpack.c.b16 %v774, %v772
        %v963 = vpack.c.b16 %v775, %v773
        %v964 = vpack.c.b16 %v778, %v776
        %v965 = vpack.c.b16 %v779, %v777
        %v966 = vpack.c.b16 %v782, %v780
        %v967 = vpack.c.b16 %v783, %v781
        %v968 = vpack.c.b16 %v786, %v784
        %v969 = vpack.c.b16 %v787, %v785
        %v970 = vpack.c.b16 %v790, %v788
        %v971 = vpack.c.b16 %v791, %v789
        %v972 = vpack.c.b16 %v794, %v792
        %v973 = vpack.c.b16 %v795, %v793
        %v974 = vpack.c.b16 %v798, %v796
        %v975 = vpack.c.b16 %v799, %v797
        %v976 = vpack.c.b16 %v802, %v800
        %v977 = vpack.c.b16 %v803, %v801
        %v978 = vpack.c.b16 %v806, %v804
        %v979 = vpack.c.b16 %v807, %v805
        %v980 = vpack.c.b16 %v810, %v808
        %v981 = vpack.c.b16 %v811, %v809
        %v982 = vpack.c.b16 %v814, %v812
        %v983 = vpack.c.b16 %v815, %v813
        %v984 = vpack.c.b16 %v818, %v816
        %v985 = vpack.c.b16 %v819, %v817
        %v986 = vpack.c.b16 %v822, %v820
        %v987 = vpack.c.b16 %v823, %v821
        %v988 = vpack.c.b16 %v826, %v824
        %v989 = vpack.c.b16 %v827, %v825
        %v990 = vpack.c.b16 %v830, %v828
        %v991 = vpack.c.b16 %v831, %v829
        %v992 = vpack.c.b16 %v834, %v832
        %v993 = vpack.c.b16 %v835, %v833
        %v994 = vpack.c.b16 %v838, %v836
        %v995 = vpack.c.b16 %v839, %v837
        %v996 = vpack.c.b16 %v842, %v840
        %v997 = vpack.c.b16 %v843, %v841
        %v998 = vpack.c.b16 %v846, %v844
        %v999 = vpack.c.b16 %v847, %v845
        %v1000 = vpack.c.b16 %v850, %v848
        %v1001 = vpack.c.b16 %v851, %v849
        %v1002 = vpack.c.b16 %v854, %v852
        %v1003 = vpack.c.b16 %v855, %v853
        %v1004 = vpack.c.b16 %v858, %v856
        %v1005 = vpack.c.b16 %v859, %v857
        %v1006 = vpack.c.b16 %v862, %v860
        %v1007 = vpack.c.b16 %v863, %v861
        %v1008 = vpack.c.b16 %v866, %v864
        %v1009 = vpack.c.b16 %v867, %v865
        %v1010 = vpack.c.b16 %v870, %v868
        %v1011 = vpack.c.b16 %v871, %v869
        %v1012 = vpack.c.b16 %v874, %v872
        %v1013 = vpack.c.b16 %v875, %v873
        %v1014 = vpack.c.b16 %v878, %v876
        %v1015 = vpack.c.b16 %v879, %v877
        %v1016 = vpack.c.b16 %v882, %v880
        %v1017 = vpack.c.b16 %v883, %v881
        %v1018 = vpack.c.b16 %v886, %v884
        %v1019 = vpack.c.b16 %v887, %v885
        %v1020 = vpack.c.b16 %v890, %v888
        %v1021 = vpack.c.b16 %v891, %v889
        %v1022 = vpack.c.b16 %v894, %v892
        %v1023 = vpack.c.b16 %v895, %v893
        %1152 = vmatpush.bf16.msra.mxu0 %v910
        %1153 = vmatpush.bf16.msra.mxu0 %v908
        %1154 = vmatpush.bf16.msra.mxu0 %v906
        %1155 = vmatpush.bf16.msra.mxu0 %v904
        %1156 = vmatpush.bf16.msra.mxu0 %v902
        %1157 = vmatpush.bf16.msra.mxu0 %v900
        %1158 = vmatpush.bf16.msra.mxu0 %v898
        %1159 = vmatpush.bf16.msra.mxu0 %v896
        %1160 = vmatmul.bf16.gmra.mxu0 %v480
        %v1161 = vpop.f32.mrf.mxu0
        %v1162 = vadd.f32 0.0, %v1161
        %v1163 = vpop.f32.mrf.mxu0
        %v1164 = vadd.f32 0.0, %v1163
        %1165 = vmatmul.bf16.gmra.mxu0 %v488
        %v1166 = vpop.f32.mrf.mxu0
        %v1167 = vadd.f32 0.0, %v1166
        %v1168 = vpop.f32.mrf.mxu0
        %v1169 = vadd.f32 0.0, %v1168
        %1170 = vdwg.mxu0
        %1171 = vmatpush.bf16.msra.mxu0 %v926
        %1172 = vmatpush.bf16.msra.mxu0 %v924
        %1173 = vmatpush.bf16.msra.mxu0 %v922
        %1174 = vmatpush.bf16.msra.mxu0 %v920
        %1175 = vmatpush.bf16.msra.mxu0 %v918
        %1176 = vmatpush.bf16.msra.mxu0 %v916
        %1177 = vmatpush.bf16.msra.mxu0 %v914
        %1178 = vmatpush.bf16.msra.mxu0 %v912
        %1179 = vmatmul.bf16.gmra.mxu0 %v481
        %v1180 = vpop.f32.mrf.mxu0
        %v1181 = vadd.f32 %v1162, %v1180
        %v1182 = vpop.f32.mrf.mxu0
        %v1183 = vadd.f32 %v1164, %v1182
        %1184 = vmatmul.bf16.gmra.mxu0 %v489
        %v1185 = vpop.f32.mrf.mxu0
        %v1186 = vadd.f32 %v1167, %v1185
        %v1187 = vpop.f32.mrf.mxu0
        %v1188 = vadd.f32 %v1169, %v1187
        %1189 = vdwg.mxu0
        %1190 = vmatpush.bf16.msra.mxu0 %v942
        %1191 = vmatpush.bf16.msra.mxu0 %v940
        %1192 = vmatpush.bf16.msra.mxu0 %v938
        %1193 = vmatpush.bf16.msra.mxu0 %v936
        %1194 = vmatpush.bf16.msra.mxu0 %v934
        %1195 = vmatpush.bf16.msra.mxu0 %v932
        %1196 = vmatpush.bf16.msra.mxu0 %v930
        %1197 = vmatpush.bf16.msra.mxu0 %v928
        %1198 = vmatmul.bf16.gmra.mxu0 %v482
        %v1199 = vpop.f32.mrf.mxu0
        %v1200 = vadd.f32 %v1181, %v1199
        %v1201 = vpop.f32.mrf.mxu0
        %v1202 = vadd.f32 %v1183, %v1201
        %1203 = vmatmul.bf16.gmra.mxu0 %v490
        %v1204 = vpop.f32.mrf.mxu0
        %v1205 = vadd.f32 %v1186, %v1204
        %v1206 = vpop.f32.mrf.mxu0
        %v1207 = vadd.f32 %v1188, %v1206
        %1208 = vdwg.mxu0
        %1209 = vmatpush.bf16.msra.mxu0 %v958
        %1210 = vmatpush.bf16.msra.mxu0 %v956
        %1211 = vmatpush.bf16.msra.mxu0 %v954
        %1212 = vmatpush.bf16.msra.mxu0 %v952
        %1213 = vmatpush.bf16.msra.mxu0 %v950
        %1214 = vmatpush.bf16.msra.mxu0 %v948
        %1215 = vmatpush.bf16.msra.mxu0 %v946
        %1216 = vmatpush.bf16.msra.mxu0 %v944
        %1217 = vmatmul.bf16.gmra.mxu0 %v483
        %v1218 = vpop.f32.mrf.mxu0
        %v1219 = vadd.f32 %v1200, %v1218
        %v1220 = vpop.f32.mrf.mxu0
        %v1221 = vadd.f32 %v1202, %v1220
        %1222 = vmatmul.bf16.gmra.mxu0 %v491
        %v1223 = vpop.f32.mrf.mxu0
        %v1224 = vadd.f32 %v1205, %v1223
        %v1225 = vpop.f32.mrf.mxu0
        %v1226 = vadd.f32 %v1207, %v1225
        %1227 = vdwg.mxu0
        %1228 = vmatpush.bf16.msra.mxu0 %v974
        %1229 = vmatpush.bf16.msra.mxu0 %v972
        %1230 = vmatpush.bf16.msra.mxu0 %v970
        %1231 = vmatpush.bf16.msra.mxu0 %v968
        %1232 = vmatpush.bf16.msra.mxu0 %v966
        %1233 = vmatpush.bf16.msra.mxu0 %v964
        %1234 = vmatpush.bf16.msra.mxu0 %v962
        %1235 = vmatpush.bf16.msra.mxu0 %v960
        %1236 = vmatmul.bf16.gmra.mxu0 %v484
        %v1237 = vpop.f32.mrf.mxu0
        %v1238 = vadd.f32 %v1219, %v1237
        %v1239 = vpop.f32.mrf.mxu0
        %v1240 = vadd.f32 %v1221, %v1239
        %1241 = vmatmul.bf16.gmra.mxu0 %v492
        %v1242 = vpop.f32.mrf.mxu0
        %v1243 = vadd.f32 %v1224, %v1242
        %v1244 = vpop.f32.mrf.mxu0
        %v1245 = vadd.f32 %v1226, %v1244
        %1246 = vdwg.mxu0
        %1247 = vmatpush.bf16.msra.mxu0 %v990
        %1248 = vmatpush.bf16.msra.mxu0 %v988
        %1249 = vmatpush.bf16.msra.mxu0 %v986
        %1250 = vmatpush.bf16.msra.mxu0 %v984
        %1251 = vmatpush.bf16.msra.mxu0 %v982
        %1252 = vmatpush.bf16.msra.mxu0 %v980
        %1253 = vmatpush.bf16.msra.mxu0 %v978
        %1254 = vmatpush.bf16.msra.mxu0 %v976
        %1255 = vmatmul.bf16.gmra.mxu0 %v485
        %v1256 = vpop.f32.mrf.mxu0
        %v1257 = vadd.f32 %v1238, %v1256
        %v1258 = vpop.f32.mrf.mxu0
        %v1259 = vadd.f32 %v1240, %v1258
        %1260 = vmatmul.bf16.gmra.mxu0 %v493
        %v1261 = vpop.f32.mrf.mxu0
        %v1262 = vadd.f32 %v1243, %v1261
        %v1263 = vpop.f32.mrf.mxu0
        %v1264 = vadd.f32 %v1245, %v1263
        %1265 = vdwg.mxu0
        %1266 = vmatpush.bf16.msra.mxu0 %v1006
        %1267 = vmatpush.bf16.msra.mxu0 %v1004
        %1268 = vmatpush.bf16.msra.mxu0 %v1002
        %1269 = vmatpush.bf16.msra.mxu0 %v1000
        %1270 = vmatpush.bf16.msra.mxu0 %v998
        %1271 = vmatpush.bf16.msra.mxu0 %v996
        %1272 = vmatpush.bf16.msra.mxu0 %v994
        %1273 = vmatpush.bf16.msra.mxu0 %v992
        %1274 = vmatmul.bf16.gmra.mxu0 %v486
        %v1275 = vpop.f32.mrf.mxu0
        %v1276 = vadd.f32 %v1257, %v1275
        %v1277 = vpop.f32.mrf.mxu0
        %v1278 = vadd.f32 %v1259, %v1277
        %1279 = vmatmul.bf16.gmra.mxu0 %v494
        %v1280 = vpop.f32.mrf.mxu0
        %v1281 = vadd.f32 %v1262, %v1280
        %v1282 = vpop.f32.mrf.mxu0
        %v1283 = vadd.f32 %v1264, %v1282
        %1284 = vdwg.mxu0
        %1285 = vmatpush.bf16.msra.mxu0 %v1022
        %1286 = vmatpush.bf16.msra.mxu0 %v1020
        %1287 = vmatpush.bf16.msra.mxu0 %v1018
        %1288 = vmatpush.bf16.msra.mxu0 %v1016
        %1289 = vmatpush.bf16.msra.mxu0 %v1014
        %1290 = vmatpush.bf16.msra.mxu0 %v1012
        %1291 = vmatpush.bf16.msra.mxu0 %v1010
        %1292 = vmatpush.bf16.msra.mxu0 %v1008
        %1293 = vmatmul.bf16.gmra.mxu0 %v487
        %v1294 = vpop.f32.mrf.mxu0
        %v1295 = vadd.f32 %v1276, %v1294
        %v1296 = vpop.f32.mrf.mxu0
        %v1297 = vadd.f32 %v1278, %v1296
        %1298 = vmatmul.bf16.gmra.mxu0 %v495
        %v1299 = vpop.f32.mrf.mxu0
        %v1300 = vadd.f32 %v1281, %v1299
        %v1301 = vpop.f32.mrf.mxu0
        %v1302 = vadd.f32 %v1283, %v1301
        %1303 = vdwg.mxu0
        %1304 = vmatpush.bf16.msra.mxu0 %v911
        %1305 = vmatpush.bf16.msra.mxu0 %v909
        %1306 = vmatpush.bf16.msra.mxu0 %v907
        %1307 = vmatpush.bf16.msra.mxu0 %v905
        %1308 = vmatpush.bf16.msra.mxu0 %v903
        %1309 = vmatpush.bf16.msra.mxu0 %v901
        %1310 = vmatpush.bf16.msra.mxu0 %v899
        %1311 = vmatpush.bf16.msra.mxu0 %v897
        %1312 = vmatmul.bf16.gmra.mxu0 %v480
        %v1313 = vpop.f32.mrf.mxu0
        %v1314 = vadd.f32 0.0, %v1313
        %v1315 = vpop.f32.mrf.mxu0
        %v1316 = vadd.f32 0.0, %v1315
        %1317 = vmatmul.bf16.gmra.mxu0 %v488
        %v1318 = vpop.f32.mrf.mxu0
        %v1319 = vadd.f32 0.0, %v1318
        %v1320 = vpop.f32.mrf.mxu0
        %v1321 = vadd.f32 0.0, %v1320
        %1322 = vdwg.mxu0
        %1323 = vmatpush.bf16.msra.mxu0 %v927
        %1324 = vmatpush.bf16.msra.mxu0 %v925
        %1325 = vmatpush.bf16.msra.mxu0 %v923
        %1326 = vmatpush.bf16.msra.mxu0 %v921
        %1327 = vmatpush.bf16.msra.mxu0 %v919
        %1328 = vmatpush.bf16.msra.mxu0 %v917
        %1329 = vmatpush.bf16.msra.mxu0 %v915
        %1330 = vmatpush.bf16.msra.mxu0 %v913
        %1331 = vmatmul.bf16.gmra.mxu0 %v481
        %v1332 = vpop.f32.mrf.mxu0
        %v1333 = vadd.f32 %v1314, %v1332
        %v1334 = vpop.f32.mrf.mxu0
        %v1335 = vadd.f32 %v1316, %v1334
        %1336 = vmatmul.bf16.gmra.mxu0 %v489
        %v1337 = vpop.f32.mrf.mxu0
        %v1338 = vadd.f32 %v1319, %v1337
        %v1339 = vpop.f32.mrf.mxu0
        %v1340 = vadd.f32 %v1321, %v1339
        %1341 = vdwg.mxu0
        %1342 = vmatpush.bf16.msra.mxu0 %v943
        %1343 = vmatpush.bf16.msra.mxu0 %v941
        %1344 = vmatpush.bf16.msra.mxu0 %v939
        %1345 = vmatpush.bf16.msra.mxu0 %v937
        %1346 = vmatpush.bf16.msra.mxu0 %v935
        %1347 = vmatpush.bf16.msra.mxu0 %v933
        %1348 = vmatpush.bf16.msra.mxu0 %v931
        %1349 = vmatpush.bf16.msra.mxu0 %v929
        %1350 = vmatmul.bf16.gmra.mxu0 %v482
        %v1351 = vpop.f32.mrf.mxu0
        %v1352 = vadd.f32 %v1333, %v1351
        %v1353 = vpop.f32.mrf.mxu0
        %v1354 = vadd.f32 %v1335, %v1353
        %1355 = vmatmul.bf16.gmra.mxu0 %v490
        %v1356 = vpop.f32.mrf.mxu0
        %v1357 = vadd.f32 %v1338, %v1356
        %v1358 = vpop.f32.mrf.mxu0
        %v1359 = vadd.f32 %v1340, %v1358
        %1360 = vdwg.mxu0
        %1361 = vmatpush.bf16.msra.mxu0 %v959
        %1362 = vmatpush.bf16.msra.mxu0 %v957
        %1363 = vmatpush.bf16.msra.mxu0 %v955
        %1364 = vmatpush.bf16.msra.mxu0 %v953
        %1365 = vmatpush.bf16.msra.mxu0 %v951
        %1366 = vmatpush.bf16.msra.mxu0 %v949
        %1367 = vmatpush.bf16.msra.mxu0 %v947
        %1368 = vmatpush.bf16.msra.mxu0 %v945
        %1369 = vmatmul.bf16.gmra.mxu0 %v483
        %v1370 = vpop.f32.mrf.mxu0
        %v1371 = vadd.f32 %v1352, %v1370
        %v1372 = vpop.f32.mrf.mxu0
        %v1373 = vadd.f32 %v1354, %v1372
        %1374 = vmatmul.bf16.gmra.mxu0 %v491
        %v1375 = vpop.f32.mrf.mxu0
        %v1376 = vadd.f32 %v1357, %v1375
        %v1377 = vpop.f32.mrf.mxu0
        %v1378 = vadd.f32 %v1359, %v1377
        %1379 = vdwg.mxu0
        %1380 = vmatpush.bf16.msra.mxu0 %v975
        %1381 = vmatpush.bf16.msra.mxu0 %v973
        %1382 = vmatpush.bf16.msra.mxu0 %v971
        %1383 = vmatpush.bf16.msra.mxu0 %v969
        %1384 = vmatpush.bf16.msra.mxu0 %v967
        %1385 = vmatpush.bf16.msra.mxu0 %v965
        %1386 = vmatpush.bf16.msra.mxu0 %v963
        %1387 = vmatpush.bf16.msra.mxu0 %v961
        %1388 = vmatmul.bf16.gmra.mxu0 %v484
        %v1389 = vpop.f32.mrf.mxu0
        %v1390 = vadd.f32 %v1371, %v1389
        %v1391 = vpop.f32.mrf.mxu0
        %v1392 = vadd.f32 %v1373, %v1391
        %1393 = vmatmul.bf16.gmra.mxu0 %v492
        %v1394 = vpop.f32.mrf.mxu0
        %v1395 = vadd.f32 %v1376, %v1394
        %v1396 = vpop.f32.mrf.mxu0
        %v1397 = vadd.f32 %v1378, %v1396
        %1398 = vdwg.mxu0
        %1399 = vmatpush.bf16.msra.mxu0 %v991
        %1400 = vmatpush.bf16.msra.mxu0 %v989
        %1401 = vmatpush.bf16.msra.mxu0 %v987
        %1402 = vmatpush.bf16.msra.mxu0 %v985
        %1403 = vmatpush.bf16.msra.mxu0 %v983
        %1404 = vmatpush.bf16.msra.mxu0 %v981
        %1405 = vmatpush.bf16.msra.mxu0 %v979
        %1406 = vmatpush.bf16.msra.mxu0 %v977
        %1407 = vmatmul.bf16.gmra.mxu0 %v485
        %v1408 = vpop.f32.mrf.mxu0
        %v1409 = vadd.f32 %v1390, %v1408
        %v1410 = vpop.f32.mrf.mxu0
        %v1411 = vadd.f32 %v1392, %v1410
        %1412 = vmatmul.bf16.gmra.mxu0 %v493
        %v1413 = vpop.f32.mrf.mxu0
        %v1414 = vadd.f32 %v1395, %v1413
        %v1415 = vpop.f32.mrf.mxu0
        %v1416 = vadd.f32 %v1397, %v1415
        %1417 = vdwg.mxu0
        %1418 = vmatpush.bf16.msra.mxu0 %v1007
        %1419 = vmatpush.bf16.msra.mxu0 %v1005
        %1420 = vmatpush.bf16.msra.mxu0 %v1003
        %1421 = vmatpush.bf16.msra.mxu0 %v1001
        %1422 = vmatpush.bf16.msra.mxu0 %v999
        %1423 = vmatpush.bf16.msra.mxu0 %v997
        %1424 = vmatpush.bf16.msra.mxu0 %v995
        %1425 = vmatpush.bf16.msra.mxu0 %v993
        %1426 = vmatmul.bf16.gmra.mxu0 %v486
        %v1427 = vpop.f32.mrf.mxu0
        %v1428 = vadd.f32 %v1409, %v1427
        %v1429 = vpop.f32.mrf.mxu0
        %v1430 = vadd.f32 %v1411, %v1429
        %1431 = vmatmul.bf16.gmra.mxu0 %v494
        %v1432 = vpop.f32.mrf.mxu0
        %v1433 = vadd.f32 %v1414, %v1432
        %v1434 = vpop.f32.mrf.mxu0
        %v1435 = vadd.f32 %v1416, %v1434
        %1436 = vdwg.mxu0
        %1437 = vmatpush.bf16.msra.mxu0 %v1023
        %1438 = vmatpush.bf16.msra.mxu0 %v1021
        %1439 = vmatpush.bf16.msra.mxu0 %v1019
        %1440 = vmatpush.bf16.msra.mxu0 %v1017
        %1441 = vmatpush.bf16.msra.mxu0 %v1015
        %1442 = vmatpush.bf16.msra.mxu0 %v1013
        %1443 = vmatpush.bf16.msra.mxu0 %v1011
        %1444 = vmatpush.bf16.msra.mxu0 %v1009
        %1445 = vmatmul.bf16.gmra.mxu0 %v487
        %v1446 = vpop.f32.mrf.mxu0
        %v1447 = vadd.f32 %v1428, %v1446
        %v1448 = vpop.f32.mrf.mxu0
        %v1449 = vadd.f32 %v1430, %v1448
        %1450 = vmatmul.bf16.gmra.mxu0 %v495
        %v1451 = vpop.f32.mrf.mxu0
        %v1452 = vadd.f32 %v1433, %v1451
        %v1453 = vpop.f32.mrf.mxu0
        %v1454 = vadd.f32 %v1435, %v1453
        %1455 = vdwg.mxu0
        %v1456 = vadd.f32 %v280, %v1295
        %v1457 = vadd.f32 %v281, %v1447
        %v1458 = vadd.f32 %v282, %v1297
        %v1459 = vadd.f32 %v283, %v1449
        %v1460 = vadd.f32 %v284, %v1300
        %v1461 = vadd.f32 %v285, %v1452
        %v1462 = vadd.f32 %v286, %v1302
        %v1463 = vadd.f32 %v287, %v1454
        %1464 = vst [vmem:[#allocation2] sm:$0xff] %v1456
        %1465 = vst [vmem:[#allocation2 + $0x8] sm:$0xff] %v1457
        %1466 = vst [vmem:[#allocation2 + $0x10] sm:$0xff] %v1458
        %1467 = vst [vmem:[#allocation2 + $0x18] sm:$0xff] %v1459
        %1468 = vst [vmem:[#allocation2 + $0x20] sm:$0xff] %v1460
        %1469 = vst [vmem:[#allocation2 + $0x28] sm:$0xff] %v1461
        %1470 = vst [vmem:[#allocation2 + $0x30] sm:$0xff] %v1462
        %1471 = vst [vmem:[#allocation2 + $0x38] sm:$0xff] %v1463
        %p1472 = scmp.eq.s32.totalorder %s19, 1
        // Predicated region
        $region60: #{dcgan_discriminator.7} parent=50 // pred_check
          %p1473 = pneg %p1472
        $region61: #{dcgan_discriminator.7} parent=50 // pred_check_branch
          %1475 = sbr.rel (%p1473) target = $region63
        $region62: #{dcgan_discriminator.7} parent=50 // pred_region
          %v1476 = vld [vmem:[#allocation2] sm:$0xff]
          %v1477 = vld [vmem:[#allocation2 + $0x8] sm:$0xff]
          %v1478 = vld [vmem:[#allocation2 + $0x10] sm:$0xff]
          %v1479 = vld [vmem:[#allocation2 + $0x18] sm:$0xff]
          %v1480 = vld [vmem:[#allocation2 + $0x20] sm:$0xff]
          %v1481 = vld [vmem:[#allocation2 + $0x28] sm:$0xff]
          %v1482 = vld [vmem:[#allocation2 + $0x30] sm:$0xff]
          %v1483 = vld [vmem:[#allocation2 + $0x38] sm:$0xff]
          %v1484 = vadd.f32 %v1476, %v1478
          %v1485 = vadd.f32 %v1484, %v1480
          %v1486 = vadd.f32 %v1485, %v1482
          %v1487 = vrot.slane %v1486, 4
          %v1488 = vadd.f32 %v1486, %v1487
          %v1489 = vrot.slane %v1488, 2
          %v1490 = vadd.f32 %v1488, %v1489
          %v1491 = vrot.slane %v1490, 1
          %v1492 = vadd.f32 %v1490, %v1491
          %v1493 = vadd.f32 %v1477, %v1479
          %v1494 = vadd.f32 %v1493, %v1481
          %v1495 = vadd.f32 %v1494, %v1483
          %v1496 = vrot.slane %v1495, 4
          %v1497 = vadd.f32 %v1495, %v1496
          %v1498 = vrot.slane %v1497, 2
          %v1499 = vadd.f32 %v1497, %v1498
          %v1500 = vrot.slane %v1499, 1
          %v1501 = vadd.f32 %v1499, %v1500
          %v1502 = vmul.f32 %v1492, 0.03125
          %v1503 = vmul.f32 %v1501, 0.03125
          %v1504 = vmul.f32 %v1476, %v1476
          %v1505 = vmul.f32 %v1477, %v1477
          %v1506 = vmul.f32 %v1478, %v1478
          %v1507 = vmul.f32 %v1479, %v1479
          %v1508 = vmul.f32 %v1480, %v1480
          %v1509 = vmul.f32 %v1481, %v1481
          %v1510 = vmul.f32 %v1482, %v1482
          %v1511 = vmul.f32 %v1483, %v1483
          %v1512 = vadd.f32 %v1504, %v1506
          %v1513 = vadd.f32 %v1512, %v1508
          %v1514 = vadd.f32 %v1513, %v1510
          %v1515 = vrot.slane %v1514, 4
          %v1516 = vadd.f32 %v1514, %v1515
          %v1517 = vrot.slane %v1516, 2
          %v1518 = vadd.f32 %v1516, %v1517
          %v1519 = vrot.slane %v1518, 1
          %v1520 = vadd.f32 %v1518, %v1519
          %v1521 = vadd.f32 %v1505, %v1507
          %v1522 = vadd.f32 %v1521, %v1509
          %v1523 = vadd.f32 %v1522, %v1511
          %v1524 = vrot.slane %v1523, 4
          %v1525 = vadd.f32 %v1523, %v1524
          %v1526 = vrot.slane %v1525, 2
          %v1527 = vadd.f32 %v1525, %v1526
          %v1528 = vrot.slane %v1527, 1
          %v1529 = vadd.f32 %v1527, %v1528
          %v1530 = vmul.f32 %v1520, 0.03125
          %v1531 = vmul.f32 %v1529, 0.03125
          %v1532 = vmul.f32 %v1502, %v1502
          %v1533 = vmul.f32 %v1503, %v1503
          %v1534 = vsub.f32 %v1530, %v1532
          %v1535 = vsub.f32 %v1531, %v1533
          %v1536 = vsub.f32 %v1476, %v1502
          %v1537 = vsub.f32 %v1477, %v1503
          %v1538 = vsub.f32 %v1478, %v1502
          %v1539 = vsub.f32 %v1479, %v1503
          %v1540 = vsub.f32 %v1480, %v1502
          %v1541 = vsub.f32 %v1481, %v1503
          %v1542 = vsub.f32 %v1482, %v1502
          %v1543 = vsub.f32 %v1483, %v1503
          %v1544 = vadd.f32 %v1534, 1e-05
          %v1545 = vadd.f32 %v1535, 1e-05
          %v1546 = vrsqrt.pop %v1544
          %v1547 = vmul.f32 %v1546, %v1544
          %v1548 = vmul.f32 %v1547, %v1546
          %v1549 = vmul.f32 0.5, %v1548
          %v1550 = vsub.f32 1.5, %v1549
          %v1551 = vmul.f32 %v1546, %v1550
          %vm1552 = vweird.f32 %v1544
          %vm1553 = vweird.f32 %v1546
          %vm1554 = vmor %vm1552, %vm1553
          %v1555 = vsel %vm1554, %v1546, %v1551
          %v1556 = vrsqrt.pop %v1545
          %v1557 = vmul.f32 %v1556, %v1545
          %v1558 = vmul.f32 %v1557, %v1556
          %v1559 = vmul.f32 0.5, %v1558
          %v1560 = vsub.f32 1.5, %v1559
          %v1561 = vmul.f32 %v1556, %v1560
          %vm1562 = vweird.f32 %v1545
          %vm1563 = vweird.f32 %v1556
          %vm1564 = vmor %vm1562, %vm1563
          %v1565 = vsel %vm1564, %v1556, %v1561
          %v1566 = vmul.f32 %v1536, %v1555
          %v1567 = vmul.f32 %v1537, %v1565
          %v1568 = vmul.f32 %v1538, %v1555
          %v1569 = vmul.f32 %v1539, %v1565
          %v1570 = vmul.f32 %v1540, %v1555
          %v1571 = vmul.f32 %v1541, %v1565
          %v1572 = vmul.f32 %v1542, %v1555
          %v1573 = vmul.f32 %v1543, %v1565
          %vm1574 = vcmp.gt.f32.partialorder %v1566, 0.0
          %vm1575 = vcmp.gt.f32.partialorder %v1567, 0.0
          %vm1576 = vcmp.gt.f32.partialorder %v1568, 0.0
          %vm1577 = vcmp.gt.f32.partialorder %v1569, 0.0
          %vm1578 = vcmp.gt.f32.partialorder %v1570, 0.0
          %vm1579 = vcmp.gt.f32.partialorder %v1571, 0.0
          %vm1580 = vcmp.gt.f32.partialorder %v1572, 0.0
          %vm1581 = vcmp.gt.f32.partialorder %v1573, 0.0
          %v1582 = vmul.f32 %v1566, 0.2
          %v1583 = vmul.f32 %v1567, 0.2
          %v1584 = vmul.f32 %v1568, 0.2
          %v1585 = vmul.f32 %v1569, 0.2
          %v1586 = vmul.f32 %v1570, 0.2
          %v1587 = vmul.f32 %v1571, 0.2
          %v1588 = vmul.f32 %v1572, 0.2
          %v1589 = vmul.f32 %v1573, 0.2
          %v1590 = vsel %vm1574, %v1566, %v1582
          %v1591 = vsel %vm1575, %v1567, %v1583
          %v1592 = vsel %vm1576, %v1568, %v1584
          %v1593 = vsel %vm1577, %v1569, %v1585
          %v1594 = vsel %vm1578, %v1570, %v1586
          %v1595 = vsel %vm1579, %v1571, %v1587
          %v1596 = vsel %vm1580, %v1572, %v1588
          %v1597 = vsel %vm1581, %v1573, %v1589
          %v1598 = vpack.c.bf16 %v1591, %v1590
          %v1599 = vpack.c.bf16 %v1593, %v1592
          %v1600 = vpack.c.bf16 %v1595, %v1594
          %v1601 = vpack.c.bf16 %v1597, %v1596
          %1602 = vst [vmem:[%s266] sm:$0xff] %v1598
          %1603 = vst [vmem:[%s266 + $0x8] sm:$0xff] %v1599
          %1604 = vst [vmem:[%s266 + $0x10] sm:$0xff] %v1600
          %1605 = vst [vmem:[%s266 + $0x18] sm:$0xff] %v1601
        $region63: #{dcgan_discriminator.7} parent=50 // pred_fallthru
          _
        %s1606 = smul.u32 4, %s18
        %p1607 = scmp.lt.s32.totalorder %s1606, 3
        %s1608 = scalar_select %p1607, %s1606, 3
        %s1609 = smul.addr %s1608, 2
        %s1610 = smul.addr %s1609, 4
        %s1611 = scalar_lea.vmem %s3, %s1610
        // Predicated region
        $region64: #{dcgan_discriminator.7} parent=50 // pred_check
          %p1612 = pneg %p119
        $region65: #{dcgan_discriminator.7} parent=50 // pred_check_branch
          %1614 = sbr.rel (%p1612) target = $region67
        $region66: #{dcgan_discriminator.7} parent=50 // pred_region
          %s1615 = smul.u32 4, %s18
        $region67: #{dcgan_discriminator.7} parent=50 // pred_fallthru
          _
        // Predicated region
        $region68: #{dcgan_discriminator.7} parent=50 // pred_check
          %p1616 = pneg %p119
        $region69: #{dcgan_discriminator.7} parent=50 // pred_check_branch
          %1618 = sbr.rel (%p1616) target = $region71
        $region70: #{dcgan_discriminator.7} parent=50 // pred_region
          %s1619 = smul.u32 4, %s18
          %p1620 = scmp.lt.s32.totalorder %s1619, 3
          %s1621 = scalar_select %p1620, %s1619, 3
          %s1622 = smul.addr %s1621, 2
          %s1623 = smul.addr %s1622, 4
          %s1624 = scalar_lea.vmem %s3, %s1623
        $region71: #{dcgan_discriminator.7} parent=50 // pred_fallthru
          _
      $region51: #{dcgan_discriminator.7} parent=5 // pred_fallthru
        _
      %p1625 = scmp.le.s32.totalorder 2, %s9
      // Predicated region
      $region72: #{dcgan_discriminator.7} parent=5 // pred_check
        %p1626 = pneg %p1625
      $region73: #{dcgan_discriminator.7} parent=5 // pred_check_branch
        %1628 = sbr.rel (%p1626) target = $region75
      $region74: #{dcgan_discriminator.7} parent=5 // pred_region
        %s1629 = ssub.s32 %s9, 2
      $region75: #{dcgan_discriminator.7} parent=5 // pred_fallthru
        _
    $region6: #{dcgan_discriminator.7} parent=1 // loop_footer
      %s13 = sadd.s32 1, %s9
    $region7: #{dcgan_discriminator.7} parent=1 // loop_footer_branch
      %8 = sbr.rel target = $region3
    $region8: #{dcgan_discriminator.7} parent=1 // loop_exit
      _

// kernel: dcgan_discriminator.9
$region0: #{dcgan_discriminator.9}
  #allocation0 [shape = 'u32[]', space=smem, size = 0x4, offset = 0x4, fixed_abs, tag = 'smem constant byte address 0x4 - core index']
  #allocation1 [shape = 'u32[72,128]{1,0:T(1,128)}', space=vmem, size = 0x9000, scoped, tag = 'internal scratch']
  #allocation2 [shape = 'f32[8,1]{1,0:T(8,128)}', space=vmem, size = 0x1000, scoped, tag = 'scratch operand']
  #allocation3 [shape = 'f32[1,1]{1,0:T(1,128)S(1)}', space=vmem, size = 0x200, scoped, tag = 'scoped memory for dcgan_discriminator.9']
  %s0 = inlined_call_operand.vmem [shape: bf16[8,2048], index: 0, kind: input, shape index: {}]
  %s1 = inlined_call_operand.vmem [shape: bf16[2048,1], index: 1, kind: input, shape index: {}]
  %s2 = inlined_call_operand.<no memory space> [shape: f32[1,1], index: 2, kind: input, shape index: {}]
  %s3 = inlined_call_operand.vmem [shape: f32[8,1], index: 3, kind: output, shape index: {}]
  %s4 = sld [smem:[#allocation0]]
  $region53: #{dcgan_discriminator.9} parent=0
    _
  %s6 = ssub.s32 1, %s4
  %s7 = scalar_select 0, %s6, %s4
  %v8 = vstv %s2
  %9 = vst [vmem:[#allocation3] sm:$0x1] %v8
  loop: start=0, step=1, limit=4
  $region2: #{dcgan_discriminator.9} parent=0 // loop_pre_header
    _
  $region3: #{dcgan_discriminator.9} parent=0 // loop_header
    %s11 = sphi 0, %s15
    %p12 = scmp.ge.s32.totalorder %s11, 4
    %s18 = sphi 0, %s30
    %s19 = sphi 0, %s26
    %s20 = sphi 0, %s18
    %s21 = sphi 0, %s19
    %s22 = sphi 0, %s20
    %s23 = sphi 0, %s21
    %s35 = sphi 0, %s37
    %s38 = sphi 0, %s35
    %s39 = sphi 0, %s38
    %s55 = sphi 0, %s39
    %s61 = sphi 0, %s63
    %s64 = sphi 0, %s61
    %s65 = sphi 0, %s64
    %s81 = sphi 0, %s65
    %s85 = sphi 0, %s85
    %s87 = sphi 0, %s85
    %s88 = sphi 0, %s87
    %s102 = sphi 0, %s88
    %s108 = sphi 0, %s110
    %s111 = sphi 0, %s108
    %s112 = sphi 0, %s111
    %s128 = sphi 0, %s112
  $region4: #{dcgan_discriminator.9} parent=0 // loop_header_branch
    %14 = sbr.rel (%p12) target = $region8
  $region5: #{dcgan_discriminator.9} parent=0 // loop_body
    %s16 = ssub.s32 %s11, 1
    %s17 = ssub.s32 %s11, 2
    %s24 = sadd.s32 1, %s19
    %p25 = scmp.ge.s32.totalorder %s24, 2
    %s26 = scalar_select %p25, 0, %s24
    %s27 = sadd.s32 1, %s18
    %s28 = scalar_select %p25, %s27, %s18
    %p29 = scmp.ge.s32.totalorder %s28, 1
    %s30 = scalar_select %p29, 0, %s28
    %s31 = ssub.s32 %s18, %s30
    %s32 = ssub.s32 %s19, %s26
    %s33 = sor.u32 %s31, %s32
    %p34 = scmp.eq.s32.totalorder %s33, 0
    %s36 = sadd.s32 %s35, 1
    %s37 = scalar_select %p34, %s35, %s36
    %p40 = pneg %p34
    %p41 = scmp.eq.s32.totalorder %s11, 1
    %p42 = por %p40, %p41
    %p43 = scmp.ne.s32.totalorder %s35, %s38
    %p44 = scmp.eq.s32.totalorder %s11, 0
    %p45 = por %p43, %p44
    %p46 = scmp.ne.s32.totalorder %s35, %s38
    %p47 = scmp.eq.s32.totalorder %s16, 1
    %p48 = por %p46, %p47
    %p49 = scmp.ne.s32.totalorder %s38, %s39
    %p50 = scmp.eq.s32.totalorder %s16, 0
    %p51 = por %p49, %p50
    %p52 = scmp.ne.s32.totalorder %s38, %s39
    %p53 = scmp.eq.s32.totalorder %s17, 1
    %p54 = por %p52, %p53
    %p56 = scmp.ne.s32.totalorder %s39, %s55
    %p57 = scmp.eq.s32.totalorder %s17, 0
    %p58 = por %p56, %p57
    %s59 = ssub.s32 %s19, %s26
    %p60 = scmp.eq.s32.totalorder %s59, 0
    %s62 = sadd.s32 %s61, 1
    %s63 = scalar_select %p60, %s61, %s62
    %p66 = pneg %p60
    %p67 = scmp.eq.s32.totalorder %s11, 1
    %p68 = por %p66, %p67
    %p69 = scmp.ne.s32.totalorder %s61, %s64
    %p70 = scmp.eq.s32.totalorder %s11, 0
    %p71 = por %p69, %p70
    %p72 = scmp.ne.s32.totalorder %s61, %s64
    %p73 = scmp.eq.s32.totalorder %s16, 1
    %p74 = por %p72, %p73
    %p75 = scmp.ne.s32.totalorder %s64, %s65
    %p76 = scmp.eq.s32.totalorder %s16, 0
    %p77 = por %p75, %p76
    %p78 = scmp.ne.s32.totalorder %s64, %s65
    %p79 = scmp.eq.s32.totalorder %s17, 1
    %p80 = por %p78, %p79
    %p82 = scmp.ne.s32.totalorder %s65, %s81
    %p83 = scmp.eq.s32.totalorder %s17, 0
    %p84 = por %p82, %p83
    %s86 = sadd.s32 %s85, 1
    %p89 = scmp.eq.s32.totalorder %s11, 1
    %p90 = scmp.ne.s32.totalorder %s85, %s87
    %p91 = scmp.eq.s32.totalorder %s11, 0
    %p92 = por %p90, %p91
    %p93 = scmp.ne.s32.totalorder %s85, %s87
    %p94 = scmp.eq.s32.totalorder %s16, 1
    %p95 = por %p93, %p94
    %p96 = scmp.ne.s32.totalorder %s87, %s88
    %p97 = scmp.eq.s32.totalorder %s16, 0
    %p98 = por %p96, %p97
    %p99 = scmp.ne.s32.totalorder %s87, %s88
    %p100 = scmp.eq.s32.totalorder %s17, 1
    %p101 = por %p99, %p100
    %p103 = scmp.ne.s32.totalorder %s88, %s102
    %p104 = scmp.eq.s32.totalorder %s17, 0
    %p105 = por %p103, %p104
    %s106 = ssub.s32 %s18, %s30
    %p107 = scmp.eq.s32.totalorder %s106, 0
    %s109 = sadd.s32 %s108, 1
    %s110 = scalar_select %p107, %s108, %s109
    %p113 = pneg %p107
    %p114 = scmp.eq.s32.totalorder %s11, 1
    %p115 = por %p113, %p114
    %p116 = scmp.ne.s32.totalorder %s108, %s111
    %p117 = scmp.eq.s32.totalorder %s11, 0
    %p118 = por %p116, %p117
    %p119 = scmp.ne.s32.totalorder %s108, %s111
    %p120 = scmp.eq.s32.totalorder %s16, 1
    %p121 = por %p119, %p120
    %p122 = scmp.ne.s32.totalorder %s111, %s112
    %p123 = scmp.eq.s32.totalorder %s16, 0
    %p124 = por %p122, %p123
    %p125 = scmp.ne.s32.totalorder %s111, %s112
    %p126 = scmp.eq.s32.totalorder %s17, 1
    %p127 = por %p125, %p126
    %p129 = scmp.ne.s32.totalorder %s112, %s128
    %p130 = scmp.eq.s32.totalorder %s17, 0
    %p131 = por %p129, %p130
    %p132 = scmp.le.s32.totalorder 1, %s11
    %p133 = scmp.lt.s32.totalorder %s11, 3
    %p134 = pnand %p132, %p133
    %p135 = pneg %p134
    // Predicated region
    $region9: #{dcgan_discriminator.9} parent=5 // pred_check
      _
    $region10: #{dcgan_discriminator.9} parent=5 // pred_check_branch
      %137 = sbr.rel (%p134) target = $region12
    $region11: #{dcgan_discriminator.9} parent=5 // pred_region
      %s138 = ssub.s32 %s11, 1
      // Predicated region
      $region13: #{dcgan_discriminator.9} parent=11 // pred_check
        %p139 = pneg %p98
      $region14: #{dcgan_discriminator.9} parent=11 // pred_check_branch
        %141 = sbr.rel (%p139) target = $region16
      $region15: #{dcgan_discriminator.9} parent=11 // pred_region
        _
      $region16: #{dcgan_discriminator.9} parent=11 // pred_fallthru
        _
    $region12: #{dcgan_discriminator.9} parent=5 // pred_fallthru
      _
    %p142 = scmp.lt.s32.totalorder %s11, 2
    // Predicated region
    $region17: #{dcgan_discriminator.9} parent=5 // pred_check
      %p143 = pneg %p142
    $region18: #{dcgan_discriminator.9} parent=5 // pred_check_branch
      %145 = sbr.rel (%p143) target = $region20
    $region19: #{dcgan_discriminator.9} parent=5 // pred_region
      // Predicated region
      $region21: #{dcgan_discriminator.9} parent=19 // pred_check
        %p146 = pneg %p45
      $region22: #{dcgan_discriminator.9} parent=19 // pred_check_branch
        %148 = sbr.rel (%p146) target = $region24
      $region23: #{dcgan_discriminator.9} parent=19 // pred_region
        %s149 = smul.u32 8, %s19
        %p150 = scmp.lt.s32.totalorder %s18, 0
        %s151 = scalar_select %p150, %s18, 0
        %p152 = scmp.lt.s32.totalorder %s149, 15
        %s153 = scalar_select %p152, %s149, 15
        %s154 = smul.addr %s151, 16
        %s155 = sadd.s32 %s153, %s154
        %s156 = smul.addr %s155, 4
        %s157 = scalar_lea.vmem %s0, %s156
        %s158 = smul.u32 8, %s19
      $region24: #{dcgan_discriminator.9} parent=19 // pred_fallthru
        _
      // Predicated region
      $region25: #{dcgan_discriminator.9} parent=19 // pred_check
        %p159 = pneg %p71
      $region26: #{dcgan_discriminator.9} parent=19 // pred_check_branch
        %161 = sbr.rel (%p159) target = $region28
      $region27: #{dcgan_discriminator.9} parent=19 // pred_region
        %s162 = smul.u32 128, %s19
        %p163 = scmp.lt.s32.totalorder %s162, 255
        %s164 = scalar_select %p163, %s162, 255
        %s165 = smul.addr %s164, 4
        %s166 = scalar_lea.vmem %s1, %s165
        %s167 = smul.u32 128, %s19
      $region28: #{dcgan_discriminator.9} parent=19 // pred_fallthru
        _
    $region20: #{dcgan_discriminator.9} parent=5 // pred_fallthru
      _
    %p168 = scmp.le.s32.totalorder 1, %s11
    %p169 = scmp.lt.s32.totalorder %s11, 3
    %p170 = pnand %p168, %p169
    %p171 = pneg %p170
    // Predicated region
    $region29: #{dcgan_discriminator.9} parent=5 // pred_check
      _
    $region30: #{dcgan_discriminator.9} parent=5 // pred_check_branch
      %173 = sbr.rel (%p170) target = $region32
    $region31: #{dcgan_discriminator.9} parent=5 // pred_region
      %s174 = ssub.s32 %s11, 1
      %s175 = smul.u32 8, %s21
      %p176 = scmp.lt.s32.totalorder %s20, 0
      %s177 = scalar_select %p176, %s20, 0
      %p178 = scmp.lt.s32.totalorder %s175, 15
      %s179 = scalar_select %p178, %s175, 15
      %s180 = smul.addr %s177, 16
      %s181 = sadd.s32 %s179, %s180
      %s182 = smul.addr %s181, 4
      %s183 = scalar_lea.vmem %s0, %s182
      %p184 = pneg %p51
      %p185 = pneg %p48
      %s186 = smul.u32 128, %s21
      %p187 = scmp.lt.s32.totalorder %s186, 255
      %s188 = scalar_select %p187, %s186, 255
      %s189 = smul.addr %s188, 4
      %s190 = scalar_lea.vmem %s1, %s189
      %p191 = pneg %p77
      %p192 = pneg %p74
      %p193 = pneg %p98
      %p194 = pneg %p95
      %p195 = pneg %p124
      %p196 = pneg %p121
      %p197 = scmp.lt.s32.totalorder %s20, 0
      %s198 = scalar_select %p197, %s20, 0
      %s199 = smul.addr %s198, 8
      %s200 = scalar_lea.vmem %s3, %s199
      %s201 = smul.u32 8, %s21
      %p202 = scmp.lt.s32.totalorder %s20, 0
      %s203 = scalar_select %p202, %s20, 0
      %p204 = scmp.lt.s32.totalorder %s201, 15
      %s205 = scalar_select %p204, %s201, 15
      %s206 = smul.addr %s203, 16
      %s207 = sadd.s32 %s205, %s206
      %s208 = smul.addr %s207, 4
      %s209 = scalar_lea.vmem %s0, %s208
      %s210 = smul.u32 8, %s21
      %s211 = smul.u32 128, %s21
      %p212 = scmp.lt.s32.totalorder %s211, 255
      %s213 = scalar_select %p212, %s211, 255
      %s214 = smul.addr %s213, 4
      %s215 = scalar_lea.vmem %s1, %s214
      %s216 = smul.u32 128, %s21
      %p217 = scmp.lt.s32.totalorder %s20, 0
      %s218 = scalar_select %p217, %s20, 0
      %s219 = smul.addr %s218, 8
      %s220 = scalar_lea.vmem %s3, %s219
      %p221 = scmp.eq.s32.totalorder %s21, 0
      // Predicated region
      $region33: #{dcgan_discriminator.9} parent=31 // pred_check
        %p222 = pneg %p221
      $region34: #{dcgan_discriminator.9} parent=31 // pred_check_branch
        %224 = sbr.rel (%p222) target = $region36
      $region35: #{dcgan_discriminator.9} parent=31 // pred_region
        %vm225 = vcmask 7168
        %226 = vst.msk [vmem:[#allocation2] sm:$0xff] %vm225, 0.0
      $region36: #{dcgan_discriminator.9} parent=31 // pred_fallthru
        _
      %v227 = vld [vmem:[#allocation2] sm:$0xff]
      %v228 = vld [vmem:[%s209] sm:$0xff]
      %v229 = vld [vmem:[%s209 + $0x8] sm:$0xff]
      %v230 = vld [vmem:[%s209 + $0x10] sm:$0xff]
      %v231 = vld [vmem:[%s209 + $0x18] sm:$0xff]
      %v232 = vld [vmem:[%s215] sm:$0xf]
      %v233 = vld [vmem:[%s215 + $0x4] sm:$0xf]
      %v234 = vld [vmem:[%s215 + $0x8] sm:$0xf]
      %v235 = vld [vmem:[%s215 + $0xc] sm:$0xf]
      %v236 = vld [vmem:[%s215 + $0x10] sm:$0xf]
      %v237 = vld [vmem:[%s215 + $0x14] sm:$0xf]
      %v238 = vld [vmem:[%s215 + $0x18] sm:$0xf]
      %v239 = vld [vmem:[%s215 + $0x1c] sm:$0xf]
      %v240 = vld [vmem:[%s215 + $0x20] sm:$0xf]
      %v241 = vld [vmem:[%s215 + $0x24] sm:$0xf]
      %v242 = vld [vmem:[%s215 + $0x28] sm:$0xf]
      %v243 = vld [vmem:[%s215 + $0x2c] sm:$0xf]
      %v244 = vld [vmem:[%s215 + $0x30] sm:$0xf]
      %v245 = vld [vmem:[%s215 + $0x34] sm:$0xf]
      %v246 = vld [vmem:[%s215 + $0x38] sm:$0xf]
      %v247 = vld [vmem:[%s215 + $0x3c] sm:$0xf]
      %v248 = vld [vmem:[%s215 + $0x40] sm:$0xf]
      %v249 = vld [vmem:[%s215 + $0x44] sm:$0xf]
      %v250 = vld [vmem:[%s215 + $0x48] sm:$0xf]
      %v251 = vld [vmem:[%s215 + $0x4c] sm:$0xf]
      %v252 = vld [vmem:[%s215 + $0x50] sm:$0xf]
      %v253 = vld [vmem:[%s215 + $0x54] sm:$0xf]
      %v254 = vld [vmem:[%s215 + $0x58] sm:$0xf]
      %v255 = vld [vmem:[%s215 + $0x5c] sm:$0xf]
      %v256 = vld [vmem:[%s215 + $0x60] sm:$0xf]
      %v257 = vld [vmem:[%s215 + $0x64] sm:$0xf]
      %v258 = vld [vmem:[%s215 + $0x68] sm:$0xf]
      %v259 = vld [vmem:[%s215 + $0x6c] sm:$0xf]
      %v260 = vld [vmem:[%s215 + $0x70] sm:$0xf]
      %v261 = vld [vmem:[%s215 + $0x74] sm:$0xf]
      %v262 = vld [vmem:[%s215 + $0x78] sm:$0xf]
      %v263 = vld [vmem:[%s215 + $0x7c] sm:$0xf]
      %v264 = vld [vmem:[%s215 + $0x80] sm:$0xf]
      %v265 = vld [vmem:[%s215 + $0x84] sm:$0xf]
      %v266 = vld [vmem:[%s215 + $0x88] sm:$0xf]
      %v267 = vld [vmem:[%s215 + $0x8c] sm:$0xf]
      %v268 = vld [vmem:[%s215 + $0x90] sm:$0xf]
      %v269 = vld [vmem:[%s215 + $0x94] sm:$0xf]
      %v270 = vld [vmem:[%s215 + $0x98] sm:$0xf]
      %v271 = vld [vmem:[%s215 + $0x9c] sm:$0xf]
      %v272 = vld [vmem:[%s215 + $0xa0] sm:$0xf]
      %v273 = vld [vmem:[%s215 + $0xa4] sm:$0xf]
      %v274 = vld [vmem:[%s215 + $0xa8] sm:$0xf]
      %v275 = vld [vmem:[%s215 + $0xac] sm:$0xf]
      %v276 = vld [vmem:[%s215 + $0xb0] sm:$0xf]
      %v277 = vld [vmem:[%s215 + $0xb4] sm:$0xf]
      %v278 = vld [vmem:[%s215 + $0xb8] sm:$0xf]
      %v279 = vld [vmem:[%s215 + $0xbc] sm:$0xf]
      %v280 = vld [vmem:[%s215 + $0xc0] sm:$0xf]
      %v281 = vld [vmem:[%s215 + $0xc4] sm:$0xf]
      %v282 = vld [vmem:[%s215 + $0xc8] sm:$0xf]
      %v283 = vld [vmem:[%s215 + $0xcc] sm:$0xf]
      %v284 = vld [vmem:[%s215 + $0xd0] sm:$0xf]
      %v285 = vld [vmem:[%s215 + $0xd4] sm:$0xf]
      %v286 = vld [vmem:[%s215 + $0xd8] sm:$0xf]
      %v287 = vld [vmem:[%s215 + $0xdc] sm:$0xf]
      %v288 = vld [vmem:[%s215 + $0xe0] sm:$0xf]
      %v289 = vld [vmem:[%s215 + $0xe4] sm:$0xf]
      %v290 = vld [vmem:[%s215 + $0xe8] sm:$0xf]
      %v291 = vld [vmem:[%s215 + $0xec] sm:$0xf]
      %v292 = vld [vmem:[%s215 + $0xf0] sm:$0xf]
      %v293 = vld [vmem:[%s215 + $0xf4] sm:$0xf]
      %v294 = vld [vmem:[%s215 + $0xf8] sm:$0xf]
      %v295 = vld [vmem:[%s215 + $0xfc] sm:$0xf]
      %v296 = vld [vmem:[%s215 + $0x100] sm:$0xf]
      %v297 = vld [vmem:[%s215 + $0x104] sm:$0xf]
      %v298 = vld [vmem:[%s215 + $0x108] sm:$0xf]
      %v299 = vld [vmem:[%s215 + $0x10c] sm:$0xf]
      %v300 = vld [vmem:[%s215 + $0x110] sm:$0xf]
      %v301 = vld [vmem:[%s215 + $0x114] sm:$0xf]
      %v302 = vld [vmem:[%s215 + $0x118] sm:$0xf]
      %v303 = vld [vmem:[%s215 + $0x11c] sm:$0xf]
      %v304 = vld [vmem:[%s215 + $0x120] sm:$0xf]
      %v305 = vld [vmem:[%s215 + $0x124] sm:$0xf]
      %v306 = vld [vmem:[%s215 + $0x128] sm:$0xf]
      %v307 = vld [vmem:[%s215 + $0x12c] sm:$0xf]
      %v308 = vld [vmem:[%s215 + $0x130] sm:$0xf]
      %v309 = vld [vmem:[%s215 + $0x134] sm:$0xf]
      %v310 = vld [vmem:[%s215 + $0x138] sm:$0xf]
      %v311 = vld [vmem:[%s215 + $0x13c] sm:$0xf]
      %v312 = vld [vmem:[%s215 + $0x140] sm:$0xf]
      %v313 = vld [vmem:[%s215 + $0x144] sm:$0xf]
      %v314 = vld [vmem:[%s215 + $0x148] sm:$0xf]
      %v315 = vld [vmem:[%s215 + $0x14c] sm:$0xf]
      %v316 = vld [vmem:[%s215 + $0x150] sm:$0xf]
      %v317 = vld [vmem:[%s215 + $0x154] sm:$0xf]
      %v318 = vld [vmem:[%s215 + $0x158] sm:$0xf]
      %v319 = vld [vmem:[%s215 + $0x15c] sm:$0xf]
      %v320 = vld [vmem:[%s215 + $0x160] sm:$0xf]
      %v321 = vld [vmem:[%s215 + $0x164] sm:$0xf]
      %v322 = vld [vmem:[%s215 + $0x168] sm:$0xf]
      %v323 = vld [vmem:[%s215 + $0x16c] sm:$0xf]
      %v324 = vld [vmem:[%s215 + $0x170] sm:$0xf]
      %v325 = vld [vmem:[%s215 + $0x174] sm:$0xf]
      %v326 = vld [vmem:[%s215 + $0x178] sm:$0xf]
      %v327 = vld [vmem:[%s215 + $0x17c] sm:$0xf]
      %v328 = vld [vmem:[%s215 + $0x180] sm:$0xf]
      %v329 = vld [vmem:[%s215 + $0x184] sm:$0xf]
      %v330 = vld [vmem:[%s215 + $0x188] sm:$0xf]
      %v331 = vld [vmem:[%s215 + $0x18c] sm:$0xf]
      %v332 = vld [vmem:[%s215 + $0x190] sm:$0xf]
      %v333 = vld [vmem:[%s215 + $0x194] sm:$0xf]
      %v334 = vld [vmem:[%s215 + $0x198] sm:$0xf]
      %v335 = vld [vmem:[%s215 + $0x19c] sm:$0xf]
      %v336 = vld [vmem:[%s215 + $0x1a0] sm:$0xf]
      %v337 = vld [vmem:[%s215 + $0x1a4] sm:$0xf]
      %v338 = vld [vmem:[%s215 + $0x1a8] sm:$0xf]
      %v339 = vld [vmem:[%s215 + $0x1ac] sm:$0xf]
      %v340 = vld [vmem:[%s215 + $0x1b0] sm:$0xf]
      %v341 = vld [vmem:[%s215 + $0x1b4] sm:$0xf]
      %v342 = vld [vmem:[%s215 + $0x1b8] sm:$0xf]
      %v343 = vld [vmem:[%s215 + $0x1bc] sm:$0xf]
      %v344 = vld [vmem:[%s215 + $0x1c0] sm:$0xf]
      %v345 = vld [vmem:[%s215 + $0x1c4] sm:$0xf]
      %v346 = vld [vmem:[%s215 + $0x1c8] sm:$0xf]
      %v347 = vld [vmem:[%s215 + $0x1cc] sm:$0xf]
      %v348 = vld [vmem:[%s215 + $0x1d0] sm:$0xf]
      %v349 = vld [vmem:[%s215 + $0x1d4] sm:$0xf]
      %v350 = vld [vmem:[%s215 + $0x1d8] sm:$0xf]
      %v351 = vld [vmem:[%s215 + $0x1dc] sm:$0xf]
      %v352 = vld [vmem:[%s215 + $0x1e0] sm:$0xf]
      %v353 = vld [vmem:[%s215 + $0x1e4] sm:$0xf]
      %v354 = vld [vmem:[%s215 + $0x1e8] sm:$0xf]
      %v355 = vld [vmem:[%s215 + $0x1ec] sm:$0xf]
      %v356 = vld [vmem:[%s215 + $0x1f0] sm:$0xf]
      %v357 = vld [vmem:[%s215 + $0x1f4] sm:$0xf]
      %v358 = vld [vmem:[%s215 + $0x1f8] sm:$0xf]
      %v359 = vld [vmem:[%s215 + $0x1fc] sm:$0xf]
      %v364 = vunpack.c.l.b16 %v228
      %v365 = vunpack.c.h.b16 %v228
      %v366 = vunpack.c.l.b16 %v229
      %v367 = vunpack.c.h.b16 %v229
      %v368 = vunpack.c.l.b16 %v230
      %v369 = vunpack.c.h.b16 %v230
      %v370 = vunpack.c.l.b16 %v231
      %v371 = vunpack.c.h.b16 %v231
      %v372 = vpack.c.b16 %v364, %v364
      %v373 = vpack.c.b16 %v365, %v365
      %v374 = vpack.c.b16 %v366, %v366
      %v375 = vpack.c.b16 %v367, %v367
      %v376 = vpack.c.b16 %v368, %v368
      %v377 = vpack.c.b16 %v369, %v369
      %v378 = vpack.c.b16 %v370, %v370
      %v379 = vpack.c.b16 %v371, %v371
      %v516 = vunpack.c.l.b16 %v232
      %v517 = vunpack.c.l.b16 %v233
      %v518 = vunpack.c.l.b16 %v234
      %v519 = vunpack.c.l.b16 %v235
      %v520 = vunpack.c.l.b16 %v236
      %v521 = vunpack.c.l.b16 %v237
      %v522 = vunpack.c.l.b16 %v238
      %v523 = vunpack.c.l.b16 %v239
      %v524 = vunpack.c.l.b16 %v240
      %v525 = vunpack.c.l.b16 %v241
      %v526 = vunpack.c.l.b16 %v242
      %v527 = vunpack.c.l.b16 %v243
      %v528 = vunpack.c.l.b16 %v244
      %v529 = vunpack.c.l.b16 %v245
      %v530 = vunpack.c.l.b16 %v246
      %v531 = vunpack.c.l.b16 %v247
      %v532 = vunpack.c.l.b16 %v248
      %v533 = vunpack.c.l.b16 %v249
      %v534 = vunpack.c.l.b16 %v250
      %v535 = vunpack.c.l.b16 %v251
      %v536 = vunpack.c.l.b16 %v252
      %v537 = vunpack.c.l.b16 %v253
      %v538 = vunpack.c.l.b16 %v254
      %v539 = vunpack.c.l.b16 %v255
      %v540 = vunpack.c.l.b16 %v256
      %v541 = vunpack.c.l.b16 %v257
      %v542 = vunpack.c.l.b16 %v258
      %v543 = vunpack.c.l.b16 %v259
      %v544 = vunpack.c.l.b16 %v260
      %v545 = vunpack.c.l.b16 %v261
      %v546 = vunpack.c.l.b16 %v262
      %v547 = vunpack.c.l.b16 %v263
      %v548 = vunpack.c.l.b16 %v264
      %v549 = vunpack.c.l.b16 %v265
      %v550 = vunpack.c.l.b16 %v266
      %v551 = vunpack.c.l.b16 %v267
      %v552 = vunpack.c.l.b16 %v268
      %v553 = vunpack.c.l.b16 %v269
      %v554 = vunpack.c.l.b16 %v270
      %v555 = vunpack.c.l.b16 %v271
      %v556 = vunpack.c.l.b16 %v272
      %v557 = vunpack.c.l.b16 %v273
      %v558 = vunpack.c.l.b16 %v274
      %v559 = vunpack.c.l.b16 %v275
      %v560 = vunpack.c.l.b16 %v276
      %v561 = vunpack.c.l.b16 %v277
      %v562 = vunpack.c.l.b16 %v278
      %v563 = vunpack.c.l.b16 %v279
      %v564 = vunpack.c.l.b16 %v280
      %v565 = vunpack.c.l.b16 %v281
      %v566 = vunpack.c.l.b16 %v282
      %v567 = vunpack.c.l.b16 %v283
      %v568 = vunpack.c.l.b16 %v284
      %v569 = vunpack.c.l.b16 %v285
      %v570 = vunpack.c.l.b16 %v286
      %v571 = vunpack.c.l.b16 %v287
      %v572 = vunpack.c.l.b16 %v288
      %v573 = vunpack.c.l.b16 %v289
      %v574 = vunpack.c.l.b16 %v290
      %v575 = vunpack.c.l.b16 %v291
      %v576 = vunpack.c.l.b16 %v292
      %v577 = vunpack.c.l.b16 %v293
      %v578 = vunpack.c.l.b16 %v294
      %v579 = vunpack.c.l.b16 %v295
      %v580 = vunpack.c.l.b16 %v296
      %v581 = vunpack.c.l.b16 %v297
      %v582 = vunpack.c.l.b16 %v298
      %v583 = vunpack.c.l.b16 %v299
      %v584 = vunpack.c.l.b16 %v300
      %v585 = vunpack.c.l.b16 %v301
      %v586 = vunpack.c.l.b16 %v302
      %v587 = vunpack.c.l.b16 %v303
      %v588 = vunpack.c.l.b16 %v304
      %v589 = vunpack.c.l.b16 %v305
      %v590 = vunpack.c.l.b16 %v306
      %v591 = vunpack.c.l.b16 %v307
      %v592 = vunpack.c.l.b16 %v308
      %v593 = vunpack.c.l.b16 %v309
      %v594 = vunpack.c.l.b16 %v310
      %v595 = vunpack.c.l.b16 %v311
      %v596 = vunpack.c.l.b16 %v312
      %v597 = vunpack.c.l.b16 %v313
      %v598 = vunpack.c.l.b16 %v314
      %v599 = vunpack.c.l.b16 %v315
      %v600 = vunpack.c.l.b16 %v316
      %v601 = vunpack.c.l.b16 %v317
      %v602 = vunpack.c.l.b16 %v318
      %v603 = vunpack.c.l.b16 %v319
      %v604 = vunpack.c.l.b16 %v320
      %v605 = vunpack.c.l.b16 %v321
      %v606 = vunpack.c.l.b16 %v322
      %v607 = vunpack.c.l.b16 %v323
      %v608 = vunpack.c.l.b16 %v324
      %v609 = vunpack.c.l.b16 %v325
      %v610 = vunpack.c.l.b16 %v326
      %v611 = vunpack.c.l.b16 %v327
      %v612 = vunpack.c.l.b16 %v328
      %v613 = vunpack.c.l.b16 %v329
      %v614 = vunpack.c.l.b16 %v330
      %v615 = vunpack.c.l.b16 %v331
      %v616 = vunpack.c.l.b16 %v332
      %v617 = vunpack.c.l.b16 %v333
      %v618 = vunpack.c.l.b16 %v334
      %v619 = vunpack.c.l.b16 %v335
      %v620 = vunpack.c.l.b16 %v336
      %v621 = vunpack.c.l.b16 %v337
      %v622 = vunpack.c.l.b16 %v338
      %v623 = vunpack.c.l.b16 %v339
      %v624 = vunpack.c.l.b16 %v340
      %v625 = vunpack.c.l.b16 %v341
      %v626 = vunpack.c.l.b16 %v342
      %v627 = vunpack.c.l.b16 %v343
      %v628 = vunpack.c.l.b16 %v344
      %v629 = vunpack.c.l.b16 %v345
      %v630 = vunpack.c.l.b16 %v346
      %v631 = vunpack.c.l.b16 %v347
      %v632 = vunpack.c.l.b16 %v348
      %v633 = vunpack.c.l.b16 %v349
      %v634 = vunpack.c.l.b16 %v350
      %v635 = vunpack.c.l.b16 %v351
      %v636 = vunpack.c.l.b16 %v352
      %v637 = vunpack.c.l.b16 %v353
      %v638 = vunpack.c.l.b16 %v354
      %v639 = vunpack.c.l.b16 %v355
      %v640 = vunpack.c.l.b16 %v356
      %v641 = vunpack.c.l.b16 %v357
      %v642 = vunpack.c.l.b16 %v358
      %v643 = vunpack.c.l.b16 %v359
      %v644 = vpack.c.b16 %v517, %v516
      %v645 = vpack.c.b16 %v519, %v518
      %v646 = vpack.c.b16 %v521, %v520
      %v647 = vpack.c.b16 %v523, %v522
      %v648 = vpack.c.b16 %v525, %v524
      %v649 = vpack.c.b16 %v527, %v526
      %v650 = vpack.c.b16 %v529, %v528
      %v651 = vpack.c.b16 %v531, %v530
      %v652 = vpack.c.b16 %v533, %v532
      %v653 = vpack.c.b16 %v535, %v534
      %v654 = vpack.c.b16 %v537, %v536
      %v655 = vpack.c.b16 %v539, %v538
      %v656 = vpack.c.b16 %v541, %v540
      %v657 = vpack.c.b16 %v543, %v542
      %v658 = vpack.c.b16 %v545, %v544
      %v659 = vpack.c.b16 %v547, %v546
      %v660 = vpack.c.b16 %v549, %v548
      %v661 = vpack.c.b16 %v551, %v550
      %v662 = vpack.c.b16 %v553, %v552
      %v663 = vpack.c.b16 %v555, %v554
      %v664 = vpack.c.b16 %v557, %v556
      %v665 = vpack.c.b16 %v559, %v558
      %v666 = vpack.c.b16 %v561, %v560
      %v667 = vpack.c.b16 %v563, %v562
      %v668 = vpack.c.b16 %v565, %v564
      %v669 = vpack.c.b16 %v567, %v566
      %v670 = vpack.c.b16 %v569, %v568
      %v671 = vpack.c.b16 %v571, %v570
      %v672 = vpack.c.b16 %v573, %v572
      %v673 = vpack.c.b16 %v575, %v574
      %v674 = vpack.c.b16 %v577, %v576
      %v675 = vpack.c.b16 %v579, %v578
      %v676 = vpack.c.b16 %v581, %v580
      %v677 = vpack.c.b16 %v583, %v582
      %v678 = vpack.c.b16 %v585, %v584
      %v679 = vpack.c.b16 %v587, %v586
      %v680 = vpack.c.b16 %v589, %v588
      %v681 = vpack.c.b16 %v591, %v590
      %v682 = vpack.c.b16 %v593, %v592
      %v683 = vpack.c.b16 %v595, %v594
      %v684 = vpack.c.b16 %v597, %v596
      %v685 = vpack.c.b16 %v599, %v598
      %v686 = vpack.c.b16 %v601, %v600
      %v687 = vpack.c.b16 %v603, %v602
      %v688 = vpack.c.b16 %v605, %v604
      %v689 = vpack.c.b16 %v607, %v606
      %v690 = vpack.c.b16 %v609, %v608
      %v691 = vpack.c.b16 %v611, %v610
      %v692 = vpack.c.b16 %v613, %v612
      %v693 = vpack.c.b16 %v615, %v614
      %v694 = vpack.c.b16 %v617, %v616
      %v695 = vpack.c.b16 %v619, %v618
      %v696 = vpack.c.b16 %v621, %v620
      %v697 = vpack.c.b16 %v623, %v622
      %v698 = vpack.c.b16 %v625, %v624
      %v699 = vpack.c.b16 %v627, %v626
      %v700 = vpack.c.b16 %v629, %v628
      %v701 = vpack.c.b16 %v631, %v630
      %v702 = vpack.c.b16 %v633, %v632
      %v703 = vpack.c.b16 %v635, %v634
      %v704 = vpack.c.b16 %v637, %v636
      %v705 = vpack.c.b16 %v639, %v638
      %v706 = vpack.c.b16 %v641, %v640
      %v707 = vpack.c.b16 %v643, %v642
      %772 = vmatpush.bf16.msra.mxu0 %v651
      %773 = vmatpush.bf16.msra.mxu0 %v650
      %774 = vmatpush.bf16.msra.mxu0 %v649
      %775 = vmatpush.bf16.msra.mxu0 %v648
      %776 = vmatpush.bf16.msra.mxu0 %v647
      %777 = vmatpush.bf16.msra.mxu0 %v646
      %778 = vmatpush.bf16.msra.mxu0 %v645
      %779 = vmatpush.bf16.msra.mxu0 %v644
      %780 = vmatmul.bf16.gmra.mxu0 %v372
      %v781 = vpop.f32.mrf.mxu0
      %v782 = vadd.f32 0.0, %v781
      %v783 = vpop.f32.mrf.mxu0
      %784 = vdwg.mxu0
      %785 = vmatpush.bf16.msra.mxu0 %v659
      %786 = vmatpush.bf16.msra.mxu0 %v658
      %787 = vmatpush.bf16.msra.mxu0 %v657
      %788 = vmatpush.bf16.msra.mxu0 %v656
      %789 = vmatpush.bf16.msra.mxu0 %v655
      %790 = vmatpush.bf16.msra.mxu0 %v654
      %791 = vmatpush.bf16.msra.mxu0 %v653
      %792 = vmatpush.bf16.msra.mxu0 %v652
      %793 = vmatmul.bf16.gmra.mxu0 %v373
      %v794 = vpop.f32.mrf.mxu0
      %v795 = vadd.f32 %v782, %v794
      %v796 = vpop.f32.mrf.mxu0
      %797 = vdwg.mxu0
      %798 = vmatpush.bf16.msra.mxu0 %v667
      %799 = vmatpush.bf16.msra.mxu0 %v666
      %800 = vmatpush.bf16.msra.mxu0 %v665
      %801 = vmatpush.bf16.msra.mxu0 %v664
      %802 = vmatpush.bf16.msra.mxu0 %v663
      %803 = vmatpush.bf16.msra.mxu0 %v662
      %804 = vmatpush.bf16.msra.mxu0 %v661
      %805 = vmatpush.bf16.msra.mxu0 %v660
      %806 = vmatmul.bf16.gmra.mxu0 %v374
      %v807 = vpop.f32.mrf.mxu0
      %v808 = vadd.f32 %v795, %v807
      %v809 = vpop.f32.mrf.mxu0
      %810 = vdwg.mxu0
      %811 = vmatpush.bf16.msra.mxu0 %v675
      %812 = vmatpush.bf16.msra.mxu0 %v674
      %813 = vmatpush.bf16.msra.mxu0 %v673
      %814 = vmatpush.bf16.msra.mxu0 %v672
      %815 = vmatpush.bf16.msra.mxu0 %v671
      %816 = vmatpush.bf16.msra.mxu0 %v670
      %817 = vmatpush.bf16.msra.mxu0 %v669
      %818 = vmatpush.bf16.msra.mxu0 %v668
      %819 = vmatmul.bf16.gmra.mxu0 %v375
      %v820 = vpop.f32.mrf.mxu0
      %v821 = vadd.f32 %v808, %v820
      %v822 = vpop.f32.mrf.mxu0
      %823 = vdwg.mxu0
      %824 = vmatpush.bf16.msra.mxu0 %v683
      %825 = vmatpush.bf16.msra.mxu0 %v682
      %826 = vmatpush.bf16.msra.mxu0 %v681
      %827 = vmatpush.bf16.msra.mxu0 %v680
      %828 = vmatpush.bf16.msra.mxu0 %v679
      %829 = vmatpush.bf16.msra.mxu0 %v678
      %830 = vmatpush.bf16.msra.mxu0 %v677
      %831 = vmatpush.bf16.msra.mxu0 %v676
      %832 = vmatmul.bf16.gmra.mxu0 %v376
      %v833 = vpop.f32.mrf.mxu0
      %v834 = vadd.f32 %v821, %v833
      %v835 = vpop.f32.mrf.mxu0
      %836 = vdwg.mxu0
      %837 = vmatpush.bf16.msra.mxu0 %v691
      %838 = vmatpush.bf16.msra.mxu0 %v690
      %839 = vmatpush.bf16.msra.mxu0 %v689
      %840 = vmatpush.bf16.msra.mxu0 %v688
      %841 = vmatpush.bf16.msra.mxu0 %v687
      %842 = vmatpush.bf16.msra.mxu0 %v686
      %843 = vmatpush.bf16.msra.mxu0 %v685
      %844 = vmatpush.bf16.msra.mxu0 %v684
      %845 = vmatmul.bf16.gmra.mxu0 %v377
      %v846 = vpop.f32.mrf.mxu0
      %v847 = vadd.f32 %v834, %v846
      %v848 = vpop.f32.mrf.mxu0
      %849 = vdwg.mxu0
      %850 = vmatpush.bf16.msra.mxu0 %v699
      %851 = vmatpush.bf16.msra.mxu0 %v698
      %852 = vmatpush.bf16.msra.mxu0 %v697
      %853 = vmatpush.bf16.msra.mxu0 %v696
      %854 = vmatpush.bf16.msra.mxu0 %v695
      %855 = vmatpush.bf16.msra.mxu0 %v694
      %856 = vmatpush.bf16.msra.mxu0 %v693
      %857 = vmatpush.bf16.msra.mxu0 %v692
      %858 = vmatmul.bf16.gmra.mxu0 %v378
      %v859 = vpop.f32.mrf.mxu0
      %v860 = vadd.f32 %v847, %v859
      %v861 = vpop.f32.mrf.mxu0
      %862 = vdwg.mxu0
      %863 = vmatpush.bf16.msra.mxu0 %v707
      %864 = vmatpush.bf16.msra.mxu0 %v706
      %865 = vmatpush.bf16.msra.mxu0 %v705
      %866 = vmatpush.bf16.msra.mxu0 %v704
      %867 = vmatpush.bf16.msra.mxu0 %v703
      %868 = vmatpush.bf16.msra.mxu0 %v702
      %869 = vmatpush.bf16.msra.mxu0 %v701
      %870 = vmatpush.bf16.msra.mxu0 %v700
      %871 = vmatmul.bf16.gmra.mxu0 %v379
      %v872 = vpop.f32.mrf.mxu0
      %v873 = vadd.f32 %v860, %v872
      %v874 = vpop.f32.mrf.mxu0
      %875 = vdwg.mxu0
      %v876 = vadd.f32 %v227, %v873
      %vm877 = vcmask 7168
      %878 = vst.msk [vmem:[#allocation2] sm:$0xff] %vm877, %v876
      %p879 = scmp.eq.s32.totalorder %s21, 1
      // Predicated region
      $region37: #{dcgan_discriminator.9} parent=31 // pred_check
        %p880 = pneg %p879
      $region38: #{dcgan_discriminator.9} parent=31 // pred_check_branch
        %882 = sbr.rel (%p880) target = $region40
      $region39: #{dcgan_discriminator.9} parent=31 // pred_region
        %v883 = vld [vmem:[#allocation2] sm:$0xff]
        %v884 = vld [vmem:[#allocation3] sm:$0x1]
        %v886 = vperm.slane %v884, 0
        %v888 = vadd.f32 %v883, %v886
        %v889 = vsub.f32 0.0, %v888
        %v890 = vmul.f32 %v889, 1.442695
        %v891 = vpow.pop %v890
        %v892 = vadd.f32 %v891, 1.0
        %v893 = vrcp.pop %v892
        %v894 = vmul.f32 %v892, %v893
        %v895 = vsub.f32 1.0, %v894
        %v896 = vmul.f32 %v893, %v895
        %v897 = vadd.f32 %v893, %v896
        %vm898 = vweird.f32 %v892
        %vm899 = vweird.f32 %v893
        %vm900 = vmor %vm898, %vm899
        %v901 = vsel %vm900, %v893, %v897
        %v902 = vand.u32 2147483647, %v892
        %vm903 = vcmp.eq.f32.partialorder %v902, 8.507059e+37
        %v904 = vand.u32 %v892, 2147483648
        %v905 = vor.u32 1.1754944e-38, %v904
        %v906 = vsel %vm903, %v905, %v901
        %v907 = vmul.f32 1.0, %v906
        %908 = vst.msk [vmem:[%s220] sm:$0xff] %vm877, %v907
      $region40: #{dcgan_discriminator.9} parent=31 // pred_fallthru
        _
      %p909 = scmp.lt.s32.totalorder %s20, 0
      %s910 = scalar_select %p909, %s20, 0
      %s911 = smul.addr %s910, 8
      %s912 = scalar_lea.vmem %s3, %s911
      // Predicated region
      $region41: #{dcgan_discriminator.9} parent=31 // pred_check
        %p913 = pneg %p121
      $region42: #{dcgan_discriminator.9} parent=31 // pred_check_branch
        %915 = sbr.rel (%p913) target = $region44
      $region43: #{dcgan_discriminator.9} parent=31 // pred_region
        _
      $region44: #{dcgan_discriminator.9} parent=31 // pred_fallthru
        _
      // Predicated region
      $region45: #{dcgan_discriminator.9} parent=31 // pred_check
        %p916 = pneg %p121
      $region46: #{dcgan_discriminator.9} parent=31 // pred_check_branch
        %918 = sbr.rel (%p916) target = $region48
      $region47: #{dcgan_discriminator.9} parent=31 // pred_region
        %p919 = scmp.lt.s32.totalorder %s20, 0
        %s920 = scalar_select %p919, %s20, 0
        %s921 = smul.addr %s920, 8
        %s922 = scalar_lea.vmem %s3, %s921
      $region48: #{dcgan_discriminator.9} parent=31 // pred_fallthru
        _
    $region32: #{dcgan_discriminator.9} parent=5 // pred_fallthru
      _
    %p923 = scmp.le.s32.totalorder 2, %s11
    // Predicated region
    $region49: #{dcgan_discriminator.9} parent=5 // pred_check
      %p924 = pneg %p923
    $region50: #{dcgan_discriminator.9} parent=5 // pred_check_branch
      %926 = sbr.rel (%p924) target = $region52
    $region51: #{dcgan_discriminator.9} parent=5 // pred_region
      %s927 = ssub.s32 %s11, 2
    $region52: #{dcgan_discriminator.9} parent=5 // pred_fallthru
      _
  $region6: #{dcgan_discriminator.9} parent=0 // loop_footer
    %s15 = sadd.s32 1, %s11
  $region7: #{dcgan_discriminator.9} parent=0 // loop_footer_branch
    %10 = sbr.rel target = $region3
  $region8: #{dcgan_discriminator.9} parent=0 // loop_exit
    _

// kernel: dcgan_discriminator.8
$region0: #{dcgan_discriminator.8}
  #allocation0 [shape = 'u32[]', space=smem, size = 0x4, offset = 0x4, fixed_abs, tag = 'smem constant byte address 0x4 - core index']
  #allocation1 [shape = 'u32[72,128]{1,0:T(1,128)}', space=vmem, size = 0x9000, scoped, tag = 'internal scratch']
  #allocation2 [shape = 'f32[8,512]{1,0:T(8,128)}', space=vmem, size = 0x4000, scoped, tag = 'scratch operand']
  %s0 = inlined_call_operand.vmem [shape: bf16[8,4096], index: 0, kind: input, shape index: {}]
  %s1 = inlined_call_operand.vmem [shape: bf16[4096,512], index: 1, kind: input, shape index: {}]
  %s2 = inlined_call_operand.vmem [shape: f32[1,512], index: 2, kind: input, shape index: {}]
  %s3 = inlined_call_operand.vmem [shape: bf16[8,512], index: 3, kind: output, shape index: {}]
  %s4 = sld [smem:[#allocation0]]
  $region53: #{dcgan_discriminator.8} parent=0
    _
  %s6 = ssub.s32 1, %s4
  %s7 = scalar_select 0, %s6, %s4
  loop: start=0, step=1, limit=6
  $region2: #{dcgan_discriminator.8} parent=0 // loop_pre_header
    _
  $region3: #{dcgan_discriminator.8} parent=0 // loop_header
    %s9 = sphi 0, %s13
    %p10 = scmp.ge.s32.totalorder %s9, 6
    %s16 = sphi 0, %s28
    %s17 = sphi 0, %s24
    %s18 = sphi 0, %s16
    %s19 = sphi 0, %s17
    %s20 = sphi 0, %s18
    %s21 = sphi 0, %s19
    %s33 = sphi 0, %s35
    %s36 = sphi 0, %s33
    %s37 = sphi 0, %s36
    %s53 = sphi 0, %s37
    %s59 = sphi 0, %s61
    %s62 = sphi 0, %s59
    %s63 = sphi 0, %s62
    %s79 = sphi 0, %s63
    %s83 = sphi 0, %s83
    %s85 = sphi 0, %s83
    %s86 = sphi 0, %s85
    %s100 = sphi 0, %s86
    %s106 = sphi 0, %s108
    %s109 = sphi 0, %s106
    %s110 = sphi 0, %s109
    %s126 = sphi 0, %s110
  $region4: #{dcgan_discriminator.8} parent=0 // loop_header_branch
    %12 = sbr.rel (%p10) target = $region8
  $region5: #{dcgan_discriminator.8} parent=0 // loop_body
    %s14 = ssub.s32 %s9, 1
    %s15 = ssub.s32 %s9, 2
    %s22 = sadd.s32 1, %s17
    %p23 = scmp.ge.s32.totalorder %s22, 4
    %s24 = scalar_select %p23, 0, %s22
    %s25 = sadd.s32 1, %s16
    %s26 = scalar_select %p23, %s25, %s16
    %p27 = scmp.ge.s32.totalorder %s26, 1
    %s28 = scalar_select %p27, 0, %s26
    %s29 = ssub.s32 %s16, %s28
    %s30 = ssub.s32 %s17, %s24
    %s31 = sor.u32 %s29, %s30
    %p32 = scmp.eq.s32.totalorder %s31, 0
    %s34 = sadd.s32 %s33, 1
    %s35 = scalar_select %p32, %s33, %s34
    %p38 = pneg %p32
    %p39 = scmp.eq.s32.totalorder %s9, 3
    %p40 = por %p38, %p39
    %p41 = scmp.ne.s32.totalorder %s33, %s36
    %p42 = scmp.eq.s32.totalorder %s9, 0
    %p43 = por %p41, %p42
    %p44 = scmp.ne.s32.totalorder %s33, %s36
    %p45 = scmp.eq.s32.totalorder %s14, 3
    %p46 = por %p44, %p45
    %p47 = scmp.ne.s32.totalorder %s36, %s37
    %p48 = scmp.eq.s32.totalorder %s14, 0
    %p49 = por %p47, %p48
    %p50 = scmp.ne.s32.totalorder %s36, %s37
    %p51 = scmp.eq.s32.totalorder %s15, 3
    %p52 = por %p50, %p51
    %p54 = scmp.ne.s32.totalorder %s37, %s53
    %p55 = scmp.eq.s32.totalorder %s15, 0
    %p56 = por %p54, %p55
    %s57 = ssub.s32 %s17, %s24
    %p58 = scmp.eq.s32.totalorder %s57, 0
    %s60 = sadd.s32 %s59, 1
    %s61 = scalar_select %p58, %s59, %s60
    %p64 = pneg %p58
    %p65 = scmp.eq.s32.totalorder %s9, 3
    %p66 = por %p64, %p65
    %p67 = scmp.ne.s32.totalorder %s59, %s62
    %p68 = scmp.eq.s32.totalorder %s9, 0
    %p69 = por %p67, %p68
    %p70 = scmp.ne.s32.totalorder %s59, %s62
    %p71 = scmp.eq.s32.totalorder %s14, 3
    %p72 = por %p70, %p71
    %p73 = scmp.ne.s32.totalorder %s62, %s63
    %p74 = scmp.eq.s32.totalorder %s14, 0
    %p75 = por %p73, %p74
    %p76 = scmp.ne.s32.totalorder %s62, %s63
    %p77 = scmp.eq.s32.totalorder %s15, 3
    %p78 = por %p76, %p77
    %p80 = scmp.ne.s32.totalorder %s63, %s79
    %p81 = scmp.eq.s32.totalorder %s15, 0
    %p82 = por %p80, %p81
    %s84 = sadd.s32 %s83, 1
    %p87 = scmp.eq.s32.totalorder %s9, 3
    %p88 = scmp.ne.s32.totalorder %s83, %s85
    %p89 = scmp.eq.s32.totalorder %s9, 0
    %p90 = por %p88, %p89
    %p91 = scmp.ne.s32.totalorder %s83, %s85
    %p92 = scmp.eq.s32.totalorder %s14, 3
    %p93 = por %p91, %p92
    %p94 = scmp.ne.s32.totalorder %s85, %s86
    %p95 = scmp.eq.s32.totalorder %s14, 0
    %p96 = por %p94, %p95
    %p97 = scmp.ne.s32.totalorder %s85, %s86
    %p98 = scmp.eq.s32.totalorder %s15, 3
    %p99 = por %p97, %p98
    %p101 = scmp.ne.s32.totalorder %s86, %s100
    %p102 = scmp.eq.s32.totalorder %s15, 0
    %p103 = por %p101, %p102
    %s104 = ssub.s32 %s16, %s28
    %p105 = scmp.eq.s32.totalorder %s104, 0
    %s107 = sadd.s32 %s106, 1
    %s108 = scalar_select %p105, %s106, %s107
    %p111 = pneg %p105
    %p112 = scmp.eq.s32.totalorder %s9, 3
    %p113 = por %p111, %p112
    %p114 = scmp.ne.s32.totalorder %s106, %s109
    %p115 = scmp.eq.s32.totalorder %s9, 0
    %p116 = por %p114, %p115
    %p117 = scmp.ne.s32.totalorder %s106, %s109
    %p118 = scmp.eq.s32.totalorder %s14, 3
    %p119 = por %p117, %p118
    %p120 = scmp.ne.s32.totalorder %s109, %s110
    %p121 = scmp.eq.s32.totalorder %s14, 0
    %p122 = por %p120, %p121
    %p123 = scmp.ne.s32.totalorder %s109, %s110
    %p124 = scmp.eq.s32.totalorder %s15, 3
    %p125 = por %p123, %p124
    %p127 = scmp.ne.s32.totalorder %s110, %s126
    %p128 = scmp.eq.s32.totalorder %s15, 0
    %p129 = por %p127, %p128
    %p130 = scmp.le.s32.totalorder 1, %s9
    %p131 = scmp.lt.s32.totalorder %s9, 5
    %p132 = pnand %p130, %p131
    %p133 = pneg %p132
    // Predicated region
    $region9: #{dcgan_discriminator.8} parent=5 // pred_check
      _
    $region10: #{dcgan_discriminator.8} parent=5 // pred_check_branch
      %135 = sbr.rel (%p132) target = $region12
    $region11: #{dcgan_discriminator.8} parent=5 // pred_region
      %s136 = ssub.s32 %s9, 1
      // Predicated region
      $region13: #{dcgan_discriminator.8} parent=11 // pred_check
        %p137 = pneg %p96
      $region14: #{dcgan_discriminator.8} parent=11 // pred_check_branch
        %139 = sbr.rel (%p137) target = $region16
      $region15: #{dcgan_discriminator.8} parent=11 // pred_region
        _
      $region16: #{dcgan_discriminator.8} parent=11 // pred_fallthru
        _
    $region12: #{dcgan_discriminator.8} parent=5 // pred_fallthru
      _
    %p140 = scmp.lt.s32.totalorder %s9, 4
    // Predicated region
    $region17: #{dcgan_discriminator.8} parent=5 // pred_check
      %p141 = pneg %p140
    $region18: #{dcgan_discriminator.8} parent=5 // pred_check_branch
      %143 = sbr.rel (%p141) target = $region20
    $region19: #{dcgan_discriminator.8} parent=5 // pred_region
      // Predicated region
      $region21: #{dcgan_discriminator.8} parent=19 // pred_check
        %p144 = pneg %p43
      $region22: #{dcgan_discriminator.8} parent=19 // pred_check_branch
        %146 = sbr.rel (%p144) target = $region24
      $region23: #{dcgan_discriminator.8} parent=19 // pred_region
        %s147 = smul.u32 8, %s17
        %p148 = scmp.lt.s32.totalorder %s16, 0
        %s149 = scalar_select %p148, %s16, 0
        %p150 = scmp.lt.s32.totalorder %s147, 31
        %s151 = scalar_select %p150, %s147, 31
        %s152 = smul.addr %s149, 32
        %s153 = sadd.s32 %s151, %s152
        %s154 = smul.addr %s153, 4
        %s155 = scalar_lea.vmem %s0, %s154
        %s156 = smul.u32 8, %s17
      $region24: #{dcgan_discriminator.8} parent=19 // pred_fallthru
        _
      // Predicated region
      $region25: #{dcgan_discriminator.8} parent=19 // pred_check
        %p157 = pneg %p69
      $region26: #{dcgan_discriminator.8} parent=19 // pred_check_branch
        %159 = sbr.rel (%p157) target = $region28
      $region27: #{dcgan_discriminator.8} parent=19 // pred_region
        %s160 = smul.u32 128, %s17
        %p161 = scmp.lt.s32.totalorder %s160, 511
        %s162 = scalar_select %p161, %s160, 511
        %s163 = smul.addr %s162, 4
        %s164 = smul.addr %s163, 4
        %s165 = scalar_lea.vmem %s1, %s164
        %s166 = smul.u32 128, %s17
      $region28: #{dcgan_discriminator.8} parent=19 // pred_fallthru
        _
    $region20: #{dcgan_discriminator.8} parent=5 // pred_fallthru
      _
    %p167 = scmp.le.s32.totalorder 1, %s9
    %p168 = scmp.lt.s32.totalorder %s9, 5
    %p169 = pnand %p167, %p168
    %p170 = pneg %p169
    // Predicated region
    $region29: #{dcgan_discriminator.8} parent=5 // pred_check
      _
    $region30: #{dcgan_discriminator.8} parent=5 // pred_check_branch
      %172 = sbr.rel (%p169) target = $region32
    $region31: #{dcgan_discriminator.8} parent=5 // pred_region
      %s173 = ssub.s32 %s9, 1
      %s174 = smul.u32 8, %s19
      %p175 = scmp.lt.s32.totalorder %s18, 0
      %s176 = scalar_select %p175, %s18, 0
      %p177 = scmp.lt.s32.totalorder %s174, 31
      %s178 = scalar_select %p177, %s174, 31
      %s179 = smul.addr %s176, 32
      %s180 = sadd.s32 %s178, %s179
      %s181 = smul.addr %s180, 4
      %s182 = scalar_lea.vmem %s0, %s181
      %p183 = pneg %p49
      %p184 = pneg %p46
      %s185 = smul.u32 128, %s19
      %p186 = scmp.lt.s32.totalorder %s185, 511
      %s187 = scalar_select %p186, %s185, 511
      %s188 = smul.addr %s187, 4
      %s189 = smul.addr %s188, 4
      %s190 = scalar_lea.vmem %s1, %s189
      %p191 = pneg %p75
      %p192 = pneg %p72
      %p193 = pneg %p96
      %p194 = pneg %p93
      %p195 = pneg %p122
      %p196 = pneg %p119
      %p197 = scmp.lt.s32.totalorder %s18, 0
      %s198 = scalar_select %p197, %s18, 0
      %s199 = smul.addr %s198, 4
      %s200 = smul.addr %s199, 4
      %s201 = scalar_lea.vmem %s3, %s200
      %s202 = smul.u32 8, %s19
      %p203 = scmp.lt.s32.totalorder %s18, 0
      %s204 = scalar_select %p203, %s18, 0
      %p205 = scmp.lt.s32.totalorder %s202, 31
      %s206 = scalar_select %p205, %s202, 31
      %s207 = smul.addr %s204, 32
      %s208 = sadd.s32 %s206, %s207
      %s209 = smul.addr %s208, 4
      %s210 = scalar_lea.vmem %s0, %s209
      %s211 = smul.u32 8, %s19
      %s212 = smul.u32 128, %s19
      %p213 = scmp.lt.s32.totalorder %s212, 511
      %s214 = scalar_select %p213, %s212, 511
      %s215 = smul.addr %s214, 4
      %s216 = smul.addr %s215, 4
      %s217 = scalar_lea.vmem %s1, %s216
      %s218 = smul.u32 128, %s19
      %p219 = scmp.lt.s32.totalorder %s18, 0
      %s220 = scalar_select %p219, %s18, 0
      %s221 = smul.addr %s220, 4
      %s222 = smul.addr %s221, 4
      %s223 = scalar_lea.vmem %s3, %s222
      %p224 = scmp.eq.s32.totalorder %s19, 0
      // Predicated region
      $region33: #{dcgan_discriminator.8} parent=31 // pred_check
        %p225 = pneg %p224
      $region34: #{dcgan_discriminator.8} parent=31 // pred_check_branch
        %227 = sbr.rel (%p225) target = $region36
      $region35: #{dcgan_discriminator.8} parent=31 // pred_region
        %228 = vst [vmem:[#allocation2] sm:$0xff] 0.0
        %229 = vst [vmem:[#allocation2 + $0x8] sm:$0xff] 0.0
        %230 = vst [vmem:[#allocation2 + $0x10] sm:$0xff] 0.0
        %231 = vst [vmem:[#allocation2 + $0x18] sm:$0xff] 0.0
      $region36: #{dcgan_discriminator.8} parent=31 // pred_fallthru
        _
      %v232 = vld [vmem:[#allocation2] sm:$0xff]
      %v233 = vld [vmem:[#allocation2 + $0x8] sm:$0xff]
      %v234 = vld [vmem:[#allocation2 + $0x10] sm:$0xff]
      %v235 = vld [vmem:[#allocation2 + $0x18] sm:$0xff]
      %v236 = vld [vmem:[%s210] sm:$0xff]
      %v237 = vld [vmem:[%s210 + $0x8] sm:$0xff]
      %v238 = vld [vmem:[%s210 + $0x10] sm:$0xff]
      %v239 = vld [vmem:[%s210 + $0x18] sm:$0xff]
      %v240 = vld [vmem:[%s217] sm:$0xff]
      %v241 = vld [vmem:[%s217 + $0x8] sm:$0xff]
      %v242 = vld [vmem:[%s217 + $0x10] sm:$0xff]
      %v243 = vld [vmem:[%s217 + $0x18] sm:$0xff]
      %v244 = vld [vmem:[%s217 + $0x20] sm:$0xff]
      %v245 = vld [vmem:[%s217 + $0x28] sm:$0xff]
      %v246 = vld [vmem:[%s217 + $0x30] sm:$0xff]
      %v247 = vld [vmem:[%s217 + $0x38] sm:$0xff]
      %v248 = vld [vmem:[%s217 + $0x40] sm:$0xff]
      %v249 = vld [vmem:[%s217 + $0x48] sm:$0xff]
      %v250 = vld [vmem:[%s217 + $0x50] sm:$0xff]
      %v251 = vld [vmem:[%s217 + $0x58] sm:$0xff]
      %v252 = vld [vmem:[%s217 + $0x60] sm:$0xff]
      %v253 = vld [vmem:[%s217 + $0x68] sm:$0xff]
      %v254 = vld [vmem:[%s217 + $0x70] sm:$0xff]
      %v255 = vld [vmem:[%s217 + $0x78] sm:$0xff]
      %v256 = vld [vmem:[%s217 + $0x80] sm:$0xff]
      %v257 = vld [vmem:[%s217 + $0x88] sm:$0xff]
      %v258 = vld [vmem:[%s217 + $0x90] sm:$0xff]
      %v259 = vld [vmem:[%s217 + $0x98] sm:$0xff]
      %v260 = vld [vmem:[%s217 + $0xa0] sm:$0xff]
      %v261 = vld [vmem:[%s217 + $0xa8] sm:$0xff]
      %v262 = vld [vmem:[%s217 + $0xb0] sm:$0xff]
      %v263 = vld [vmem:[%s217 + $0xb8] sm:$0xff]
      %v264 = vld [vmem:[%s217 + $0xc0] sm:$0xff]
      %v265 = vld [vmem:[%s217 + $0xc8] sm:$0xff]
      %v266 = vld [vmem:[%s217 + $0xd0] sm:$0xff]
      %v267 = vld [vmem:[%s217 + $0xd8] sm:$0xff]
      %v268 = vld [vmem:[%s217 + $0xe0] sm:$0xff]
      %v269 = vld [vmem:[%s217 + $0xe8] sm:$0xff]
      %v270 = vld [vmem:[%s217 + $0xf0] sm:$0xff]
      %v271 = vld [vmem:[%s217 + $0xf8] sm:$0xff]
      %v272 = vld [vmem:[%s217 + $0x100] sm:$0xff]
      %v273 = vld [vmem:[%s217 + $0x108] sm:$0xff]
      %v274 = vld [vmem:[%s217 + $0x110] sm:$0xff]
      %v275 = vld [vmem:[%s217 + $0x118] sm:$0xff]
      %v276 = vld [vmem:[%s217 + $0x120] sm:$0xff]
      %v277 = vld [vmem:[%s217 + $0x128] sm:$0xff]
      %v278 = vld [vmem:[%s217 + $0x130] sm:$0xff]
      %v279 = vld [vmem:[%s217 + $0x138] sm:$0xff]
      %v280 = vld [vmem:[%s217 + $0x140] sm:$0xff]
      %v281 = vld [vmem:[%s217 + $0x148] sm:$0xff]
      %v282 = vld [vmem:[%s217 + $0x150] sm:$0xff]
      %v283 = vld [vmem:[%s217 + $0x158] sm:$0xff]
      %v284 = vld [vmem:[%s217 + $0x160] sm:$0xff]
      %v285 = vld [vmem:[%s217 + $0x168] sm:$0xff]
      %v286 = vld [vmem:[%s217 + $0x170] sm:$0xff]
      %v287 = vld [vmem:[%s217 + $0x178] sm:$0xff]
      %v288 = vld [vmem:[%s217 + $0x180] sm:$0xff]
      %v289 = vld [vmem:[%s217 + $0x188] sm:$0xff]
      %v290 = vld [vmem:[%s217 + $0x190] sm:$0xff]
      %v291 = vld [vmem:[%s217 + $0x198] sm:$0xff]
      %v292 = vld [vmem:[%s217 + $0x1a0] sm:$0xff]
      %v293 = vld [vmem:[%s217 + $0x1a8] sm:$0xff]
      %v294 = vld [vmem:[%s217 + $0x1b0] sm:$0xff]
      %v295 = vld [vmem:[%s217 + $0x1b8] sm:$0xff]
      %v296 = vld [vmem:[%s217 + $0x1c0] sm:$0xff]
      %v297 = vld [vmem:[%s217 + $0x1c8] sm:$0xff]
      %v298 = vld [vmem:[%s217 + $0x1d0] sm:$0xff]
      %v299 = vld [vmem:[%s217 + $0x1d8] sm:$0xff]
      %v300 = vld [vmem:[%s217 + $0x1e0] sm:$0xff]
      %v301 = vld [vmem:[%s217 + $0x1e8] sm:$0xff]
      %v302 = vld [vmem:[%s217 + $0x1f0] sm:$0xff]
      %v303 = vld [vmem:[%s217 + $0x1f8] sm:$0xff]
      %v304 = vld [vmem:[%s217 + $0x200] sm:$0xff]
      %v305 = vld [vmem:[%s217 + $0x208] sm:$0xff]
      %v306 = vld [vmem:[%s217 + $0x210] sm:$0xff]
      %v307 = vld [vmem:[%s217 + $0x218] sm:$0xff]
      %v308 = vld [vmem:[%s217 + $0x220] sm:$0xff]
      %v309 = vld [vmem:[%s217 + $0x228] sm:$0xff]
      %v310 = vld [vmem:[%s217 + $0x230] sm:$0xff]
      %v311 = vld [vmem:[%s217 + $0x238] sm:$0xff]
      %v312 = vld [vmem:[%s217 + $0x240] sm:$0xff]
      %v313 = vld [vmem:[%s217 + $0x248] sm:$0xff]
      %v314 = vld [vmem:[%s217 + $0x250] sm:$0xff]
      %v315 = vld [vmem:[%s217 + $0x258] sm:$0xff]
      %v316 = vld [vmem:[%s217 + $0x260] sm:$0xff]
      %v317 = vld [vmem:[%s217 + $0x268] sm:$0xff]
      %v318 = vld [vmem:[%s217 + $0x270] sm:$0xff]
      %v319 = vld [vmem:[%s217 + $0x278] sm:$0xff]
      %v320 = vld [vmem:[%s217 + $0x280] sm:$0xff]
      %v321 = vld [vmem:[%s217 + $0x288] sm:$0xff]
      %v322 = vld [vmem:[%s217 + $0x290] sm:$0xff]
      %v323 = vld [vmem:[%s217 + $0x298] sm:$0xff]
      %v324 = vld [vmem:[%s217 + $0x2a0] sm:$0xff]
      %v325 = vld [vmem:[%s217 + $0x2a8] sm:$0xff]
      %v326 = vld [vmem:[%s217 + $0x2b0] sm:$0xff]
      %v327 = vld [vmem:[%s217 + $0x2b8] sm:$0xff]
      %v328 = vld [vmem:[%s217 + $0x2c0] sm:$0xff]
      %v329 = vld [vmem:[%s217 + $0x2c8] sm:$0xff]
      %v330 = vld [vmem:[%s217 + $0x2d0] sm:$0xff]
      %v331 = vld [vmem:[%s217 + $0x2d8] sm:$0xff]
      %v332 = vld [vmem:[%s217 + $0x2e0] sm:$0xff]
      %v333 = vld [vmem:[%s217 + $0x2e8] sm:$0xff]
      %v334 = vld [vmem:[%s217 + $0x2f0] sm:$0xff]
      %v335 = vld [vmem:[%s217 + $0x2f8] sm:$0xff]
      %v336 = vld [vmem:[%s217 + $0x300] sm:$0xff]
      %v337 = vld [vmem:[%s217 + $0x308] sm:$0xff]
      %v338 = vld [vmem:[%s217 + $0x310] sm:$0xff]
      %v339 = vld [vmem:[%s217 + $0x318] sm:$0xff]
      %v340 = vld [vmem:[%s217 + $0x320] sm:$0xff]
      %v341 = vld [vmem:[%s217 + $0x328] sm:$0xff]
      %v342 = vld [vmem:[%s217 + $0x330] sm:$0xff]
      %v343 = vld [vmem:[%s217 + $0x338] sm:$0xff]
      %v344 = vld [vmem:[%s217 + $0x340] sm:$0xff]
      %v345 = vld [vmem:[%s217 + $0x348] sm:$0xff]
      %v346 = vld [vmem:[%s217 + $0x350] sm:$0xff]
      %v347 = vld [vmem:[%s217 + $0x358] sm:$0xff]
      %v348 = vld [vmem:[%s217 + $0x360] sm:$0xff]
      %v349 = vld [vmem:[%s217 + $0x368] sm:$0xff]
      %v350 = vld [vmem:[%s217 + $0x370] sm:$0xff]
      %v351 = vld [vmem:[%s217 + $0x378] sm:$0xff]
      %v352 = vld [vmem:[%s217 + $0x380] sm:$0xff]
      %v353 = vld [vmem:[%s217 + $0x388] sm:$0xff]
      %v354 = vld [vmem:[%s217 + $0x390] sm:$0xff]
      %v355 = vld [vmem:[%s217 + $0x398] sm:$0xff]
      %v356 = vld [vmem:[%s217 + $0x3a0] sm:$0xff]
      %v357 = vld [vmem:[%s217 + $0x3a8] sm:$0xff]
      %v358 = vld [vmem:[%s217 + $0x3b0] sm:$0xff]
      %v359 = vld [vmem:[%s217 + $0x3b8] sm:$0xff]
      %v360 = vld [vmem:[%s217 + $0x3c0] sm:$0xff]
      %v361 = vld [vmem:[%s217 + $0x3c8] sm:$0xff]
      %v362 = vld [vmem:[%s217 + $0x3d0] sm:$0xff]
      %v363 = vld [vmem:[%s217 + $0x3d8] sm:$0xff]
      %v364 = vld [vmem:[%s217 + $0x3e0] sm:$0xff]
      %v365 = vld [vmem:[%s217 + $0x3e8] sm:$0xff]
      %v366 = vld [vmem:[%s217 + $0x3f0] sm:$0xff]
      %v367 = vld [vmem:[%s217 + $0x3f8] sm:$0xff]
      %v368 = vld [vmem:[%s217 + $0x400] sm:$0xff]
      %v369 = vld [vmem:[%s217 + $0x408] sm:$0xff]
      %v370 = vld [vmem:[%s217 + $0x410] sm:$0xff]
      %v371 = vld [vmem:[%s217 + $0x418] sm:$0xff]
      %v372 = vld [vmem:[%s217 + $0x420] sm:$0xff]
      %v373 = vld [vmem:[%s217 + $0x428] sm:$0xff]
      %v374 = vld [vmem:[%s217 + $0x430] sm:$0xff]
      %v375 = vld [vmem:[%s217 + $0x438] sm:$0xff]
      %v376 = vld [vmem:[%s217 + $0x440] sm:$0xff]
      %v377 = vld [vmem:[%s217 + $0x448] sm:$0xff]
      %v378 = vld [vmem:[%s217 + $0x450] sm:$0xff]
      %v379 = vld [vmem:[%s217 + $0x458] sm:$0xff]
      %v380 = vld [vmem:[%s217 + $0x460] sm:$0xff]
      %v381 = vld [vmem:[%s217 + $0x468] sm:$0xff]
      %v382 = vld [vmem:[%s217 + $0x470] sm:$0xff]
      %v383 = vld [vmem:[%s217 + $0x478] sm:$0xff]
      %v384 = vld [vmem:[%s217 + $0x480] sm:$0xff]
      %v385 = vld [vmem:[%s217 + $0x488] sm:$0xff]
      %v386 = vld [vmem:[%s217 + $0x490] sm:$0xff]
      %v387 = vld [vmem:[%s217 + $0x498] sm:$0xff]
      %v388 = vld [vmem:[%s217 + $0x4a0] sm:$0xff]
      %v389 = vld [vmem:[%s217 + $0x4a8] sm:$0xff]
      %v390 = vld [vmem:[%s217 + $0x4b0] sm:$0xff]
      %v391 = vld [vmem:[%s217 + $0x4b8] sm:$0xff]
      %v392 = vld [vmem:[%s217 + $0x4c0] sm:$0xff]
      %v393 = vld [vmem:[%s217 + $0x4c8] sm:$0xff]
      %v394 = vld [vmem:[%s217 + $0x4d0] sm:$0xff]
      %v395 = vld [vmem:[%s217 + $0x4d8] sm:$0xff]
      %v396 = vld [vmem:[%s217 + $0x4e0] sm:$0xff]
      %v397 = vld [vmem:[%s217 + $0x4e8] sm:$0xff]
      %v398 = vld [vmem:[%s217 + $0x4f0] sm:$0xff]
      %v399 = vld [vmem:[%s217 + $0x4f8] sm:$0xff]
      %v400 = vld [vmem:[%s217 + $0x500] sm:$0xff]
      %v401 = vld [vmem:[%s217 + $0x508] sm:$0xff]
      %v402 = vld [vmem:[%s217 + $0x510] sm:$0xff]
      %v403 = vld [vmem:[%s217 + $0x518] sm:$0xff]
      %v404 = vld [vmem:[%s217 + $0x520] sm:$0xff]
      %v405 = vld [vmem:[%s217 + $0x528] sm:$0xff]
      %v406 = vld [vmem:[%s217 + $0x530] sm:$0xff]
      %v407 = vld [vmem:[%s217 + $0x538] sm:$0xff]
      %v408 = vld [vmem:[%s217 + $0x540] sm:$0xff]
      %v409 = vld [vmem:[%s217 + $0x548] sm:$0xff]
      %v410 = vld [vmem:[%s217 + $0x550] sm:$0xff]
      %v411 = vld [vmem:[%s217 + $0x558] sm:$0xff]
      %v412 = vld [vmem:[%s217 + $0x560] sm:$0xff]
      %v413 = vld [vmem:[%s217 + $0x568] sm:$0xff]
      %v414 = vld [vmem:[%s217 + $0x570] sm:$0xff]
      %v415 = vld [vmem:[%s217 + $0x578] sm:$0xff]
      %v416 = vld [vmem:[%s217 + $0x580] sm:$0xff]
      %v417 = vld [vmem:[%s217 + $0x588] sm:$0xff]
      %v418 = vld [vmem:[%s217 + $0x590] sm:$0xff]
      %v419 = vld [vmem:[%s217 + $0x598] sm:$0xff]
      %v420 = vld [vmem:[%s217 + $0x5a0] sm:$0xff]
      %v421 = vld [vmem:[%s217 + $0x5a8] sm:$0xff]
      %v422 = vld [vmem:[%s217 + $0x5b0] sm:$0xff]
      %v423 = vld [vmem:[%s217 + $0x5b8] sm:$0xff]
      %v424 = vld [vmem:[%s217 + $0x5c0] sm:$0xff]
      %v425 = vld [vmem:[%s217 + $0x5c8] sm:$0xff]
      %v426 = vld [vmem:[%s217 + $0x5d0] sm:$0xff]
      %v427 = vld [vmem:[%s217 + $0x5d8] sm:$0xff]
      %v428 = vld [vmem:[%s217 + $0x5e0] sm:$0xff]
      %v429 = vld [vmem:[%s217 + $0x5e8] sm:$0xff]
      %v430 = vld [vmem:[%s217 + $0x5f0] sm:$0xff]
      %v431 = vld [vmem:[%s217 + $0x5f8] sm:$0xff]
      %v432 = vld [vmem:[%s217 + $0x600] sm:$0xff]
      %v433 = vld [vmem:[%s217 + $0x608] sm:$0xff]
      %v434 = vld [vmem:[%s217 + $0x610] sm:$0xff]
      %v435 = vld [vmem:[%s217 + $0x618] sm:$0xff]
      %v436 = vld [vmem:[%s217 + $0x620] sm:$0xff]
      %v437 = vld [vmem:[%s217 + $0x628] sm:$0xff]
      %v438 = vld [vmem:[%s217 + $0x630] sm:$0xff]
      %v439 = vld [vmem:[%s217 + $0x638] sm:$0xff]
      %v440 = vld [vmem:[%s217 + $0x640] sm:$0xff]
      %v441 = vld [vmem:[%s217 + $0x648] sm:$0xff]
      %v442 = vld [vmem:[%s217 + $0x650] sm:$0xff]
      %v443 = vld [vmem:[%s217 + $0x658] sm:$0xff]
      %v444 = vld [vmem:[%s217 + $0x660] sm:$0xff]
      %v445 = vld [vmem:[%s217 + $0x668] sm:$0xff]
      %v446 = vld [vmem:[%s217 + $0x670] sm:$0xff]
      %v447 = vld [vmem:[%s217 + $0x678] sm:$0xff]
      %v448 = vld [vmem:[%s217 + $0x680] sm:$0xff]
      %v449 = vld [vmem:[%s217 + $0x688] sm:$0xff]
      %v450 = vld [vmem:[%s217 + $0x690] sm:$0xff]
      %v451 = vld [vmem:[%s217 + $0x698] sm:$0xff]
      %v452 = vld [vmem:[%s217 + $0x6a0] sm:$0xff]
      %v453 = vld [vmem:[%s217 + $0x6a8] sm:$0xff]
      %v454 = vld [vmem:[%s217 + $0x6b0] sm:$0xff]
      %v455 = vld [vmem:[%s217 + $0x6b8] sm:$0xff]
      %v456 = vld [vmem:[%s217 + $0x6c0] sm:$0xff]
      %v457 = vld [vmem:[%s217 + $0x6c8] sm:$0xff]
      %v458 = vld [vmem:[%s217 + $0x6d0] sm:$0xff]
      %v459 = vld [vmem:[%s217 + $0x6d8] sm:$0xff]
      %v460 = vld [vmem:[%s217 + $0x6e0] sm:$0xff]
      %v461 = vld [vmem:[%s217 + $0x6e8] sm:$0xff]
      %v462 = vld [vmem:[%s217 + $0x6f0] sm:$0xff]
      %v463 = vld [vmem:[%s217 + $0x6f8] sm:$0xff]
      %v464 = vld [vmem:[%s217 + $0x700] sm:$0xff]
      %v465 = vld [vmem:[%s217 + $0x708] sm:$0xff]
      %v466 = vld [vmem:[%s217 + $0x710] sm:$0xff]
      %v467 = vld [vmem:[%s217 + $0x718] sm:$0xff]
      %v468 = vld [vmem:[%s217 + $0x720] sm:$0xff]
      %v469 = vld [vmem:[%s217 + $0x728] sm:$0xff]
      %v470 = vld [vmem:[%s217 + $0x730] sm:$0xff]
      %v471 = vld [vmem:[%s217 + $0x738] sm:$0xff]
      %v472 = vld [vmem:[%s217 + $0x740] sm:$0xff]
      %v473 = vld [vmem:[%s217 + $0x748] sm:$0xff]
      %v474 = vld [vmem:[%s217 + $0x750] sm:$0xff]
      %v475 = vld [vmem:[%s217 + $0x758] sm:$0xff]
      %v476 = vld [vmem:[%s217 + $0x760] sm:$0xff]
      %v477 = vld [vmem:[%s217 + $0x768] sm:$0xff]
      %v478 = vld [vmem:[%s217 + $0x770] sm:$0xff]
      %v479 = vld [vmem:[%s217 + $0x778] sm:$0xff]
      %v480 = vld [vmem:[%s217 + $0x780] sm:$0xff]
      %v481 = vld [vmem:[%s217 + $0x788] sm:$0xff]
      %v482 = vld [vmem:[%s217 + $0x790] sm:$0xff]
      %v483 = vld [vmem:[%s217 + $0x798] sm:$0xff]
      %v484 = vld [vmem:[%s217 + $0x7a0] sm:$0xff]
      %v485 = vld [vmem:[%s217 + $0x7a8] sm:$0xff]
      %v486 = vld [vmem:[%s217 + $0x7b0] sm:$0xff]
      %v487 = vld [vmem:[%s217 + $0x7b8] sm:$0xff]
      %v488 = vld [vmem:[%s217 + $0x7c0] sm:$0xff]
      %v489 = vld [vmem:[%s217 + $0x7c8] sm:$0xff]
      %v490 = vld [vmem:[%s217 + $0x7d0] sm:$0xff]
      %v491 = vld [vmem:[%s217 + $0x7d8] sm:$0xff]
      %v492 = vld [vmem:[%s217 + $0x7e0] sm:$0xff]
      %v493 = vld [vmem:[%s217 + $0x7e8] sm:$0xff]
      %v494 = vld [vmem:[%s217 + $0x7f0] sm:$0xff]
      %v495 = vld [vmem:[%s217 + $0x7f8] sm:$0xff]
      %v500 = vunpack.c.l.b16 %v236
      %v501 = vunpack.c.h.b16 %v236
      %v502 = vunpack.c.l.b16 %v237
      %v503 = vunpack.c.h.b16 %v237
      %v504 = vunpack.c.l.b16 %v238
      %v505 = vunpack.c.h.b16 %v238
      %v506 = vunpack.c.l.b16 %v239
      %v507 = vunpack.c.h.b16 %v239
      %v508 = vpack.c.b16 %v500, %v500
      %v509 = vpack.c.b16 %v501, %v501
      %v510 = vpack.c.b16 %v502, %v502
      %v511 = vpack.c.b16 %v503, %v503
      %v512 = vpack.c.b16 %v504, %v504
      %v513 = vpack.c.b16 %v505, %v505
      %v514 = vpack.c.b16 %v506, %v506
      %v515 = vpack.c.b16 %v507, %v507
      %v780 = vunpack.c.l.b16 %v240
      %v781 = vunpack.c.h.b16 %v240
      %v782 = vunpack.c.l.b16 %v241
      %v783 = vunpack.c.h.b16 %v241
      %v784 = vunpack.c.l.b16 %v242
      %v785 = vunpack.c.h.b16 %v242
      %v786 = vunpack.c.l.b16 %v243
      %v787 = vunpack.c.h.b16 %v243
      %v788 = vunpack.c.l.b16 %v244
      %v789 = vunpack.c.h.b16 %v244
      %v790 = vunpack.c.l.b16 %v245
      %v791 = vunpack.c.h.b16 %v245
      %v792 = vunpack.c.l.b16 %v246
      %v793 = vunpack.c.h.b16 %v246
      %v794 = vunpack.c.l.b16 %v247
      %v795 = vunpack.c.h.b16 %v247
      %v796 = vunpack.c.l.b16 %v248
      %v797 = vunpack.c.h.b16 %v248
      %v798 = vunpack.c.l.b16 %v249
      %v799 = vunpack.c.h.b16 %v249
      %v800 = vunpack.c.l.b16 %v250
      %v801 = vunpack.c.h.b16 %v250
      %v802 = vunpack.c.l.b16 %v251
      %v803 = vunpack.c.h.b16 %v251
      %v804 = vunpack.c.l.b16 %v252
      %v805 = vunpack.c.h.b16 %v252
      %v806 = vunpack.c.l.b16 %v253
      %v807 = vunpack.c.h.b16 %v253
      %v808 = vunpack.c.l.b16 %v254
      %v809 = vunpack.c.h.b16 %v254
      %v810 = vunpack.c.l.b16 %v255
      %v811 = vunpack.c.h.b16 %v255
      %v812 = vunpack.c.l.b16 %v256
      %v813 = vunpack.c.h.b16 %v256
      %v814 = vunpack.c.l.b16 %v257
      %v815 = vunpack.c.h.b16 %v257
      %v816 = vunpack.c.l.b16 %v258
      %v817 = vunpack.c.h.b16 %v258
      %v818 = vunpack.c.l.b16 %v259
      %v819 = vunpack.c.h.b16 %v259
      %v820 = vunpack.c.l.b16 %v260
      %v821 = vunpack.c.h.b16 %v260
      %v822 = vunpack.c.l.b16 %v261
      %v823 = vunpack.c.h.b16 %v261
      %v824 = vunpack.c.l.b16 %v262
      %v825 = vunpack.c.h.b16 %v262
      %v826 = vunpack.c.l.b16 %v263
      %v827 = vunpack.c.h.b16 %v263
      %v828 = vunpack.c.l.b16 %v264
      %v829 = vunpack.c.h.b16 %v264
      %v830 = vunpack.c.l.b16 %v265
      %v831 = vunpack.c.h.b16 %v265
      %v832 = vunpack.c.l.b16 %v266
      %v833 = vunpack.c.h.b16 %v266
      %v834 = vunpack.c.l.b16 %v267
      %v835 = vunpack.c.h.b16 %v267
      %v836 = vunpack.c.l.b16 %v268
      %v837 = vunpack.c.h.b16 %v268
      %v838 = vunpack.c.l.b16 %v269
      %v839 = vunpack.c.h.b16 %v269
      %v840 = vunpack.c.l.b16 %v270
      %v841 = vunpack.c.h.b16 %v270
      %v842 = vunpack.c.l.b16 %v271
      %v843 = vunpack.c.h.b16 %v271
      %v844 = vunpack.c.l.b16 %v272
      %v845 = vunpack.c.h.b16 %v272
      %v846 = vunpack.c.l.b16 %v273
      %v847 = vunpack.c.h.b16 %v273
      %v848 = vunpack.c.l.b16 %v274
      %v849 = vunpack.c.h.b16 %v274
      %v850 = vunpack.c.l.b16 %v275
      %v851 = vunpack.c.h.b16 %v275
      %v852 = vunpack.c.l.b16 %v276
      %v853 = vunpack.c.h.b16 %v276
      %v854 = vunpack.c.l.b16 %v277
      %v855 = vunpack.c.h.b16 %v277
      %v856 = vunpack.c.l.b16 %v278
      %v857 = vunpack.c.h.b16 %v278
      %v858 = vunpack.c.l.b16 %v279
      %v859 = vunpack.c.h.b16 %v279
      %v860 = vunpack.c.l.b16 %v280
      %v861 = vunpack.c.h.b16 %v280
      %v862 = vunpack.c.l.b16 %v281
      %v863 = vunpack.c.h.b16 %v281
      %v864 = vunpack.c.l.b16 %v282
      %v865 = vunpack.c.h.b16 %v282
      %v866 = vunpack.c.l.b16 %v283
      %v867 = vunpack.c.h.b16 %v283
      %v868 = vunpack.c.l.b16 %v284
      %v869 = vunpack.c.h.b16 %v284
      %v870 = vunpack.c.l.b16 %v285
      %v871 = vunpack.c.h.b16 %v285
      %v872 = vunpack.c.l.b16 %v286
      %v873 = vunpack.c.h.b16 %v286
      %v874 = vunpack.c.l.b16 %v287
      %v875 = vunpack.c.h.b16 %v287
      %v876 = vunpack.c.l.b16 %v288
      %v877 = vunpack.c.h.b16 %v288
      %v878 = vunpack.c.l.b16 %v289
      %v879 = vunpack.c.h.b16 %v289
      %v880 = vunpack.c.l.b16 %v290
      %v881 = vunpack.c.h.b16 %v290
      %v882 = vunpack.c.l.b16 %v291
      %v883 = vunpack.c.h.b16 %v291
      %v884 = vunpack.c.l.b16 %v292
      %v885 = vunpack.c.h.b16 %v292
      %v886 = vunpack.c.l.b16 %v293
      %v887 = vunpack.c.h.b16 %v293
      %v888 = vunpack.c.l.b16 %v294
      %v889 = vunpack.c.h.b16 %v294
      %v890 = vunpack.c.l.b16 %v295
      %v891 = vunpack.c.h.b16 %v295
      %v892 = vunpack.c.l.b16 %v296
      %v893 = vunpack.c.h.b16 %v296
      %v894 = vunpack.c.l.b16 %v297
      %v895 = vunpack.c.h.b16 %v297
      %v896 = vunpack.c.l.b16 %v298
      %v897 = vunpack.c.h.b16 %v298
      %v898 = vunpack.c.l.b16 %v299
      %v899 = vunpack.c.h.b16 %v299
      %v900 = vunpack.c.l.b16 %v300
      %v901 = vunpack.c.h.b16 %v300
      %v902 = vunpack.c.l.b16 %v301
      %v903 = vunpack.c.h.b16 %v301
      %v904 = vunpack.c.l.b16 %v302
      %v905 = vunpack.c.h.b16 %v302
      %v906 = vunpack.c.l.b16 %v303
      %v907 = vunpack.c.h.b16 %v303
      %v908 = vunpack.c.l.b16 %v304
      %v909 = vunpack.c.h.b16 %v304
      %v910 = vunpack.c.l.b16 %v305
      %v911 = vunpack.c.h.b16 %v305
      %v912 = vunpack.c.l.b16 %v306
      %v913 = vunpack.c.h.b16 %v306
      %v914 = vunpack.c.l.b16 %v307
      %v915 = vunpack.c.h.b16 %v307
      %v916 = vunpack.c.l.b16 %v308
      %v917 = vunpack.c.h.b16 %v308
      %v918 = vunpack.c.l.b16 %v309
      %v919 = vunpack.c.h.b16 %v309
      %v920 = vunpack.c.l.b16 %v310
      %v921 = vunpack.c.h.b16 %v310
      %v922 = vunpack.c.l.b16 %v311
      %v923 = vunpack.c.h.b16 %v311
      %v924 = vunpack.c.l.b16 %v312
      %v925 = vunpack.c.h.b16 %v312
      %v926 = vunpack.c.l.b16 %v313
      %v927 = vunpack.c.h.b16 %v313
      %v928 = vunpack.c.l.b16 %v314
      %v929 = vunpack.c.h.b16 %v314
      %v930 = vunpack.c.l.b16 %v315
      %v931 = vunpack.c.h.b16 %v315
      %v932 = vunpack.c.l.b16 %v316
      %v933 = vunpack.c.h.b16 %v316
      %v934 = vunpack.c.l.b16 %v317
      %v935 = vunpack.c.h.b16 %v317
      %v936 = vunpack.c.l.b16 %v318
      %v937 = vunpack.c.h.b16 %v318
      %v938 = vunpack.c.l.b16 %v319
      %v939 = vunpack.c.h.b16 %v319
      %v940 = vunpack.c.l.b16 %v320
      %v941 = vunpack.c.h.b16 %v320
      %v942 = vunpack.c.l.b16 %v321
      %v943 = vunpack.c.h.b16 %v321
      %v944 = vunpack.c.l.b16 %v322
      %v945 = vunpack.c.h.b16 %v322
      %v946 = vunpack.c.l.b16 %v323
      %v947 = vunpack.c.h.b16 %v323
      %v948 = vunpack.c.l.b16 %v324
      %v949 = vunpack.c.h.b16 %v324
      %v950 = vunpack.c.l.b16 %v325
      %v951 = vunpack.c.h.b16 %v325
      %v952 = vunpack.c.l.b16 %v326
      %v953 = vunpack.c.h.b16 %v326
      %v954 = vunpack.c.l.b16 %v327
      %v955 = vunpack.c.h.b16 %v327
      %v956 = vunpack.c.l.b16 %v328
      %v957 = vunpack.c.h.b16 %v328
      %v958 = vunpack.c.l.b16 %v329
      %v959 = vunpack.c.h.b16 %v329
      %v960 = vunpack.c.l.b16 %v330
      %v961 = vunpack.c.h.b16 %v330
      %v962 = vunpack.c.l.b16 %v331
      %v963 = vunpack.c.h.b16 %v331
      %v964 = vunpack.c.l.b16 %v332
      %v965 = vunpack.c.h.b16 %v332
      %v966 = vunpack.c.l.b16 %v333
      %v967 = vunpack.c.h.b16 %v333
      %v968 = vunpack.c.l.b16 %v334
      %v969 = vunpack.c.h.b16 %v334
      %v970 = vunpack.c.l.b16 %v335
      %v971 = vunpack.c.h.b16 %v335
      %v972 = vunpack.c.l.b16 %v336
      %v973 = vunpack.c.h.b16 %v336
      %v974 = vunpack.c.l.b16 %v337
      %v975 = vunpack.c.h.b16 %v337
      %v976 = vunpack.c.l.b16 %v338
      %v977 = vunpack.c.h.b16 %v338
      %v978 = vunpack.c.l.b16 %v339
      %v979 = vunpack.c.h.b16 %v339
      %v980 = vunpack.c.l.b16 %v340
      %v981 = vunpack.c.h.b16 %v340
      %v982 = vunpack.c.l.b16 %v341
      %v983 = vunpack.c.h.b16 %v341
      %v984 = vunpack.c.l.b16 %v342
      %v985 = vunpack.c.h.b16 %v342
      %v986 = vunpack.c.l.b16 %v343
      %v987 = vunpack.c.h.b16 %v343
      %v988 = vunpack.c.l.b16 %v344
      %v989 = vunpack.c.h.b16 %v344
      %v990 = vunpack.c.l.b16 %v345
      %v991 = vunpack.c.h.b16 %v345
      %v992 = vunpack.c.l.b16 %v346
      %v993 = vunpack.c.h.b16 %v346
      %v994 = vunpack.c.l.b16 %v347
      %v995 = vunpack.c.h.b16 %v347
      %v996 = vunpack.c.l.b16 %v348
      %v997 = vunpack.c.h.b16 %v348
      %v998 = vunpack.c.l.b16 %v349
      %v999 = vunpack.c.h.b16 %v349
      %v1000 = vunpack.c.l.b16 %v350
      %v1001 = vunpack.c.h.b16 %v350
      %v1002 = vunpack.c.l.b16 %v351
      %v1003 = vunpack.c.h.b16 %v351
      %v1004 = vunpack.c.l.b16 %v352
      %v1005 = vunpack.c.h.b16 %v352
      %v1006 = vunpack.c.l.b16 %v353
      %v1007 = vunpack.c.h.b16 %v353
      %v1008 = vunpack.c.l.b16 %v354
      %v1009 = vunpack.c.h.b16 %v354
      %v1010 = vunpack.c.l.b16 %v355
      %v1011 = vunpack.c.h.b16 %v355
      %v1012 = vunpack.c.l.b16 %v356
      %v1013 = vunpack.c.h.b16 %v356
      %v1014 = vunpack.c.l.b16 %v357
      %v1015 = vunpack.c.h.b16 %v357
      %v1016 = vunpack.c.l.b16 %v358
      %v1017 = vunpack.c.h.b16 %v358
      %v1018 = vunpack.c.l.b16 %v359
      %v1019 = vunpack.c.h.b16 %v359
      %v1020 = vunpack.c.l.b16 %v360
      %v1021 = vunpack.c.h.b16 %v360
      %v1022 = vunpack.c.l.b16 %v361
      %v1023 = vunpack.c.h.b16 %v361
      %v1024 = vunpack.c.l.b16 %v362
      %v1025 = vunpack.c.h.b16 %v362
      %v1026 = vunpack.c.l.b16 %v363
      %v1027 = vunpack.c.h.b16 %v363
      %v1028 = vunpack.c.l.b16 %v364
      %v1029 = vunpack.c.h.b16 %v364
      %v1030 = vunpack.c.l.b16 %v365
      %v1031 = vunpack.c.h.b16 %v365
      %v1032 = vunpack.c.l.b16 %v366
      %v1033 = vunpack.c.h.b16 %v366
      %v1034 = vunpack.c.l.b16 %v367
      %v1035 = vunpack.c.h.b16 %v367
      %v1036 = vunpack.c.l.b16 %v368
      %v1037 = vunpack.c.h.b16 %v368
      %v1038 = vunpack.c.l.b16 %v369
      %v1039 = vunpack.c.h.b16 %v369
      %v1040 = vunpack.c.l.b16 %v370
      %v1041 = vunpack.c.h.b16 %v370
      %v1042 = vunpack.c.l.b16 %v371
      %v1043 = vunpack.c.h.b16 %v371
      %v1044 = vunpack.c.l.b16 %v372
      %v1045 = vunpack.c.h.b16 %v372
      %v1046 = vunpack.c.l.b16 %v373
      %v1047 = vunpack.c.h.b16 %v373
      %v1048 = vunpack.c.l.b16 %v374
      %v1049 = vunpack.c.h.b16 %v374
      %v1050 = vunpack.c.l.b16 %v375
      %v1051 = vunpack.c.h.b16 %v375
      %v1052 = vunpack.c.l.b16 %v376
      %v1053 = vunpack.c.h.b16 %v376
      %v1054 = vunpack.c.l.b16 %v377
      %v1055 = vunpack.c.h.b16 %v377
      %v1056 = vunpack.c.l.b16 %v378
      %v1057 = vunpack.c.h.b16 %v378
      %v1058 = vunpack.c.l.b16 %v379
      %v1059 = vunpack.c.h.b16 %v379
      %v1060 = vunpack.c.l.b16 %v380
      %v1061 = vunpack.c.h.b16 %v380
      %v1062 = vunpack.c.l.b16 %v381
      %v1063 = vunpack.c.h.b16 %v381
      %v1064 = vunpack.c.l.b16 %v382
      %v1065 = vunpack.c.h.b16 %v382
      %v1066 = vunpack.c.l.b16 %v383
      %v1067 = vunpack.c.h.b16 %v383
      %v1068 = vunpack.c.l.b16 %v384
      %v1069 = vunpack.c.h.b16 %v384
      %v1070 = vunpack.c.l.b16 %v385
      %v1071 = vunpack.c.h.b16 %v385
      %v1072 = vunpack.c.l.b16 %v386
      %v1073 = vunpack.c.h.b16 %v386
      %v1074 = vunpack.c.l.b16 %v387
      %v1075 = vunpack.c.h.b16 %v387
      %v1076 = vunpack.c.l.b16 %v388
      %v1077 = vunpack.c.h.b16 %v388
      %v1078 = vunpack.c.l.b16 %v389
      %v1079 = vunpack.c.h.b16 %v389
      %v1080 = vunpack.c.l.b16 %v390
      %v1081 = vunpack.c.h.b16 %v390
      %v1082 = vunpack.c.l.b16 %v391
      %v1083 = vunpack.c.h.b16 %v391
      %v1084 = vunpack.c.l.b16 %v392
      %v1085 = vunpack.c.h.b16 %v392
      %v1086 = vunpack.c.l.b16 %v393
      %v1087 = vunpack.c.h.b16 %v393
      %v1088 = vunpack.c.l.b16 %v394
      %v1089 = vunpack.c.h.b16 %v394
      %v1090 = vunpack.c.l.b16 %v395
      %v1091 = vunpack.c.h.b16 %v395
      %v1092 = vunpack.c.l.b16 %v396
      %v1093 = vunpack.c.h.b16 %v396
      %v1094 = vunpack.c.l.b16 %v397
      %v1095 = vunpack.c.h.b16 %v397
      %v1096 = vunpack.c.l.b16 %v398
      %v1097 = vunpack.c.h.b16 %v398
      %v1098 = vunpack.c.l.b16 %v399
      %v1099 = vunpack.c.h.b16 %v399
      %v1100 = vunpack.c.l.b16 %v400
      %v1101 = vunpack.c.h.b16 %v400
      %v1102 = vunpack.c.l.b16 %v401
      %v1103 = vunpack.c.h.b16 %v401
      %v1104 = vunpack.c.l.b16 %v402
      %v1105 = vunpack.c.h.b16 %v402
      %v1106 = vunpack.c.l.b16 %v403
      %v1107 = vunpack.c.h.b16 %v403
      %v1108 = vunpack.c.l.b16 %v404
      %v1109 = vunpack.c.h.b16 %v404
      %v1110 = vunpack.c.l.b16 %v405
      %v1111 = vunpack.c.h.b16 %v405
      %v1112 = vunpack.c.l.b16 %v406
      %v1113 = vunpack.c.h.b16 %v406
      %v1114 = vunpack.c.l.b16 %v407
      %v1115 = vunpack.c.h.b16 %v407
      %v1116 = vunpack.c.l.b16 %v408
      %v1117 = vunpack.c.h.b16 %v408
      %v1118 = vunpack.c.l.b16 %v409
      %v1119 = vunpack.c.h.b16 %v409
      %v1120 = vunpack.c.l.b16 %v410
      %v1121 = vunpack.c.h.b16 %v410
      %v1122 = vunpack.c.l.b16 %v411
      %v1123 = vunpack.c.h.b16 %v411
      %v1124 = vunpack.c.l.b16 %v412
      %v1125 = vunpack.c.h.b16 %v412
      %v1126 = vunpack.c.l.b16 %v413
      %v1127 = vunpack.c.h.b16 %v413
      %v1128 = vunpack.c.l.b16 %v414
      %v1129 = vunpack.c.h.b16 %v414
      %v1130 = vunpack.c.l.b16 %v415
      %v1131 = vunpack.c.h.b16 %v415
      %v1132 = vunpack.c.l.b16 %v416
      %v1133 = vunpack.c.h.b16 %v416
      %v1134 = vunpack.c.l.b16 %v417
      %v1135 = vunpack.c.h.b16 %v417
      %v1136 = vunpack.c.l.b16 %v418
      %v1137 = vunpack.c.h.b16 %v418
      %v1138 = vunpack.c.l.b16 %v419
      %v1139 = vunpack.c.h.b16 %v419
      %v1140 = vunpack.c.l.b16 %v420
      %v1141 = vunpack.c.h.b16 %v420
      %v1142 = vunpack.c.l.b16 %v421
      %v1143 = vunpack.c.h.b16 %v421
      %v1144 = vunpack.c.l.b16 %v422
      %v1145 = vunpack.c.h.b16 %v422
      %v1146 = vunpack.c.l.b16 %v423
      %v1147 = vunpack.c.h.b16 %v423
      %v1148 = vunpack.c.l.b16 %v424
      %v1149 = vunpack.c.h.b16 %v424
      %v1150 = vunpack.c.l.b16 %v425
      %v1151 = vunpack.c.h.b16 %v425
      %v1152 = vunpack.c.l.b16 %v426
      %v1153 = vunpack.c.h.b16 %v426
      %v1154 = vunpack.c.l.b16 %v427
      %v1155 = vunpack.c.h.b16 %v427
      %v1156 = vunpack.c.l.b16 %v428
      %v1157 = vunpack.c.h.b16 %v428
      %v1158 = vunpack.c.l.b16 %v429
      %v1159 = vunpack.c.h.b16 %v429
      %v1160 = vunpack.c.l.b16 %v430
      %v1161 = vunpack.c.h.b16 %v430
      %v1162 = vunpack.c.l.b16 %v431
      %v1163 = vunpack.c.h.b16 %v431
      %v1164 = vunpack.c.l.b16 %v432
      %v1165 = vunpack.c.h.b16 %v432
      %v1166 = vunpack.c.l.b16 %v433
      %v1167 = vunpack.c.h.b16 %v433
      %v1168 = vunpack.c.l.b16 %v434
      %v1169 = vunpack.c.h.b16 %v434
      %v1170 = vunpack.c.l.b16 %v435
      %v1171 = vunpack.c.h.b16 %v435
      %v1172 = vunpack.c.l.b16 %v436
      %v1173 = vunpack.c.h.b16 %v436
      %v1174 = vunpack.c.l.b16 %v437
      %v1175 = vunpack.c.h.b16 %v437
      %v1176 = vunpack.c.l.b16 %v438
      %v1177 = vunpack.c.h.b16 %v438
      %v1178 = vunpack.c.l.b16 %v439
      %v1179 = vunpack.c.h.b16 %v439
      %v1180 = vunpack.c.l.b16 %v440
      %v1181 = vunpack.c.h.b16 %v440
      %v1182 = vunpack.c.l.b16 %v441
      %v1183 = vunpack.c.h.b16 %v441
      %v1184 = vunpack.c.l.b16 %v442
      %v1185 = vunpack.c.h.b16 %v442
      %v1186 = vunpack.c.l.b16 %v443
      %v1187 = vunpack.c.h.b16 %v443
      %v1188 = vunpack.c.l.b16 %v444
      %v1189 = vunpack.c.h.b16 %v444
      %v1190 = vunpack.c.l.b16 %v445
      %v1191 = vunpack.c.h.b16 %v445
      %v1192 = vunpack.c.l.b16 %v446
      %v1193 = vunpack.c.h.b16 %v446
      %v1194 = vunpack.c.l.b16 %v447
      %v1195 = vunpack.c.h.b16 %v447
      %v1196 = vunpack.c.l.b16 %v448
      %v1197 = vunpack.c.h.b16 %v448
      %v1198 = vunpack.c.l.b16 %v449
      %v1199 = vunpack.c.h.b16 %v449
      %v1200 = vunpack.c.l.b16 %v450
      %v1201 = vunpack.c.h.b16 %v450
      %v1202 = vunpack.c.l.b16 %v451
      %v1203 = vunpack.c.h.b16 %v451
      %v1204 = vunpack.c.l.b16 %v452
      %v1205 = vunpack.c.h.b16 %v452
      %v1206 = vunpack.c.l.b16 %v453
      %v1207 = vunpack.c.h.b16 %v453
      %v1208 = vunpack.c.l.b16 %v454
      %v1209 = vunpack.c.h.b16 %v454
      %v1210 = vunpack.c.l.b16 %v455
      %v1211 = vunpack.c.h.b16 %v455
      %v1212 = vunpack.c.l.b16 %v456
      %v1213 = vunpack.c.h.b16 %v456
      %v1214 = vunpack.c.l.b16 %v457
      %v1215 = vunpack.c.h.b16 %v457
      %v1216 = vunpack.c.l.b16 %v458
      %v1217 = vunpack.c.h.b16 %v458
      %v1218 = vunpack.c.l.b16 %v459
      %v1219 = vunpack.c.h.b16 %v459
      %v1220 = vunpack.c.l.b16 %v460
      %v1221 = vunpack.c.h.b16 %v460
      %v1222 = vunpack.c.l.b16 %v461
      %v1223 = vunpack.c.h.b16 %v461
      %v1224 = vunpack.c.l.b16 %v462
      %v1225 = vunpack.c.h.b16 %v462
      %v1226 = vunpack.c.l.b16 %v463
      %v1227 = vunpack.c.h.b16 %v463
      %v1228 = vunpack.c.l.b16 %v464
      %v1229 = vunpack.c.h.b16 %v464
      %v1230 = vunpack.c.l.b16 %v465
      %v1231 = vunpack.c.h.b16 %v465
      %v1232 = vunpack.c.l.b16 %v466
      %v1233 = vunpack.c.h.b16 %v466
      %v1234 = vunpack.c.l.b16 %v467
      %v1235 = vunpack.c.h.b16 %v467
      %v1236 = vunpack.c.l.b16 %v468
      %v1237 = vunpack.c.h.b16 %v468
      %v1238 = vunpack.c.l.b16 %v469
      %v1239 = vunpack.c.h.b16 %v469
      %v1240 = vunpack.c.l.b16 %v470
      %v1241 = vunpack.c.h.b16 %v470
      %v1242 = vunpack.c.l.b16 %v471
      %v1243 = vunpack.c.h.b16 %v471
      %v1244 = vunpack.c.l.b16 %v472
      %v1245 = vunpack.c.h.b16 %v472
      %v1246 = vunpack.c.l.b16 %v473
      %v1247 = vunpack.c.h.b16 %v473
      %v1248 = vunpack.c.l.b16 %v474
      %v1249 = vunpack.c.h.b16 %v474
      %v1250 = vunpack.c.l.b16 %v475
      %v1251 = vunpack.c.h.b16 %v475
      %v1252 = vunpack.c.l.b16 %v476
      %v1253 = vunpack.c.h.b16 %v476
      %v1254 = vunpack.c.l.b16 %v477
      %v1255 = vunpack.c.h.b16 %v477
      %v1256 = vunpack.c.l.b16 %v478
      %v1257 = vunpack.c.h.b16 %v478
      %v1258 = vunpack.c.l.b16 %v479
      %v1259 = vunpack.c.h.b16 %v479
      %v1260 = vunpack.c.l.b16 %v480
      %v1261 = vunpack.c.h.b16 %v480
      %v1262 = vunpack.c.l.b16 %v481
      %v1263 = vunpack.c.h.b16 %v481
      %v1264 = vunpack.c.l.b16 %v482
      %v1265 = vunpack.c.h.b16 %v482
      %v1266 = vunpack.c.l.b16 %v483
      %v1267 = vunpack.c.h.b16 %v483
      %v1268 = vunpack.c.l.b16 %v484
      %v1269 = vunpack.c.h.b16 %v484
      %v1270 = vunpack.c.l.b16 %v485
      %v1271 = vunpack.c.h.b16 %v485
      %v1272 = vunpack.c.l.b16 %v486
      %v1273 = vunpack.c.h.b16 %v486
      %v1274 = vunpack.c.l.b16 %v487
      %v1275 = vunpack.c.h.b16 %v487
      %v1276 = vunpack.c.l.b16 %v488
      %v1277 = vunpack.c.h.b16 %v488
      %v1278 = vunpack.c.l.b16 %v489
      %v1279 = vunpack.c.h.b16 %v489
      %v1280 = vunpack.c.l.b16 %v490
      %v1281 = vunpack.c.h.b16 %v490
      %v1282 = vunpack.c.l.b16 %v491
      %v1283 = vunpack.c.h.b16 %v491
      %v1284 = vunpack.c.l.b16 %v492
      %v1285 = vunpack.c.h.b16 %v492
      %v1286 = vunpack.c.l.b16 %v493
      %v1287 = vunpack.c.h.b16 %v493
      %v1288 = vunpack.c.l.b16 %v494
      %v1289 = vunpack.c.h.b16 %v494
      %v1290 = vunpack.c.l.b16 %v495
      %v1291 = vunpack.c.h.b16 %v495
      %v1292 = vpack.c.b16 %v784, %v780
      %v1293 = vpack.c.b16 %v785, %v781
      %v1294 = vpack.c.b16 %v786, %v782
      %v1295 = vpack.c.b16 %v787, %v783
      %v1296 = vpack.c.b16 %v792, %v788
      %v1297 = vpack.c.b16 %v793, %v789
      %v1298 = vpack.c.b16 %v794, %v790
      %v1299 = vpack.c.b16 %v795, %v791
      %v1300 = vpack.c.b16 %v800, %v796
      %v1301 = vpack.c.b16 %v801, %v797
      %v1302 = vpack.c.b16 %v802, %v798
      %v1303 = vpack.c.b16 %v803, %v799
      %v1304 = vpack.c.b16 %v808, %v804
      %v1305 = vpack.c.b16 %v809, %v805
      %v1306 = vpack.c.b16 %v810, %v806
      %v1307 = vpack.c.b16 %v811, %v807
      %v1308 = vpack.c.b16 %v816, %v812
      %v1309 = vpack.c.b16 %v817, %v813
      %v1310 = vpack.c.b16 %v818, %v814
      %v1311 = vpack.c.b16 %v819, %v815
      %v1312 = vpack.c.b16 %v824, %v820
      %v1313 = vpack.c.b16 %v825, %v821
      %v1314 = vpack.c.b16 %v826, %v822
      %v1315 = vpack.c.b16 %v827, %v823
      %v1316 = vpack.c.b16 %v832, %v828
      %v1317 = vpack.c.b16 %v833, %v829
      %v1318 = vpack.c.b16 %v834, %v830
      %v1319 = vpack.c.b16 %v835, %v831
      %v1320 = vpack.c.b16 %v840, %v836
      %v1321 = vpack.c.b16 %v841, %v837
      %v1322 = vpack.c.b16 %v842, %v838
      %v1323 = vpack.c.b16 %v843, %v839
      %v1324 = vpack.c.b16 %v848, %v844
      %v1325 = vpack.c.b16 %v849, %v845
      %v1326 = vpack.c.b16 %v850, %v846
      %v1327 = vpack.c.b16 %v851, %v847
      %v1328 = vpack.c.b16 %v856, %v852
      %v1329 = vpack.c.b16 %v857, %v853
      %v1330 = vpack.c.b16 %v858, %v854
      %v1331 = vpack.c.b16 %v859, %v855
      %v1332 = vpack.c.b16 %v864, %v860
      %v1333 = vpack.c.b16 %v865, %v861
      %v1334 = vpack.c.b16 %v866, %v862
      %v1335 = vpack.c.b16 %v867, %v863
      %v1336 = vpack.c.b16 %v872, %v868
      %v1337 = vpack.c.b16 %v873, %v869
      %v1338 = vpack.c.b16 %v874, %v870
      %v1339 = vpack.c.b16 %v875, %v871
      %v1340 = vpack.c.b16 %v880, %v876
      %v1341 = vpack.c.b16 %v881, %v877
      %v1342 = vpack.c.b16 %v882, %v878
      %v1343 = vpack.c.b16 %v883, %v879
      %v1344 = vpack.c.b16 %v888, %v884
      %v1345 = vpack.c.b16 %v889, %v885
      %v1346 = vpack.c.b16 %v890, %v886
      %v1347 = vpack.c.b16 %v891, %v887
      %v1348 = vpack.c.b16 %v896, %v892
      %v1349 = vpack.c.b16 %v897, %v893
      %v1350 = vpack.c.b16 %v898, %v894
      %v1351 = vpack.c.b16 %v899, %v895
      %v1352 = vpack.c.b16 %v904, %v900
      %v1353 = vpack.c.b16 %v905, %v901
      %v1354 = vpack.c.b16 %v906, %v902
      %v1355 = vpack.c.b16 %v907, %v903
      %v1356 = vpack.c.b16 %v912, %v908
      %v1357 = vpack.c.b16 %v913, %v909
      %v1358 = vpack.c.b16 %v914, %v910
      %v1359 = vpack.c.b16 %v915, %v911
      %v1360 = vpack.c.b16 %v920, %v916
      %v1361 = vpack.c.b16 %v921, %v917
      %v1362 = vpack.c.b16 %v922, %v918
      %v1363 = vpack.c.b16 %v923, %v919
      %v1364 = vpack.c.b16 %v928, %v924
      %v1365 = vpack.c.b16 %v929, %v925
      %v1366 = vpack.c.b16 %v930, %v926
      %v1367 = vpack.c.b16 %v931, %v927
      %v1368 = vpack.c.b16 %v936, %v932
      %v1369 = vpack.c.b16 %v937, %v933
      %v1370 = vpack.c.b16 %v938, %v934
      %v1371 = vpack.c.b16 %v939, %v935
      %v1372 = vpack.c.b16 %v944, %v940
      %v1373 = vpack.c.b16 %v945, %v941
      %v1374 = vpack.c.b16 %v946, %v942
      %v1375 = vpack.c.b16 %v947, %v943
      %v1376 = vpack.c.b16 %v952, %v948
      %v1377 = vpack.c.b16 %v953, %v949
      %v1378 = vpack.c.b16 %v954, %v950
      %v1379 = vpack.c.b16 %v955, %v951
      %v1380 = vpack.c.b16 %v960, %v956
      %v1381 = vpack.c.b16 %v961, %v957
      %v1382 = vpack.c.b16 %v962, %v958
      %v1383 = vpack.c.b16 %v963, %v959
      %v1384 = vpack.c.b16 %v968, %v964
      %v1385 = vpack.c.b16 %v969, %v965
      %v1386 = vpack.c.b16 %v970, %v966
      %v1387 = vpack.c.b16 %v971, %v967
      %v1388 = vpack.c.b16 %v976, %v972
      %v1389 = vpack.c.b16 %v977, %v973
      %v1390 = vpack.c.b16 %v978, %v974
      %v1391 = vpack.c.b16 %v979, %v975
      %v1392 = vpack.c.b16 %v984, %v980
      %v1393 = vpack.c.b16 %v985, %v981
      %v1394 = vpack.c.b16 %v986, %v982
      %v1395 = vpack.c.b16 %v987, %v983
      %v1396 = vpack.c.b16 %v992, %v988
      %v1397 = vpack.c.b16 %v993, %v989
      %v1398 = vpack.c.b16 %v994, %v990
      %v1399 = vpack.c.b16 %v995, %v991
      %v1400 = vpack.c.b16 %v1000, %v996
      %v1401 = vpack.c.b16 %v1001, %v997
      %v1402 = vpack.c.b16 %v1002, %v998
      %v1403 = vpack.c.b16 %v1003, %v999
      %v1404 = vpack.c.b16 %v1008, %v1004
      %v1405 = vpack.c.b16 %v1009, %v1005
      %v1406 = vpack.c.b16 %v1010, %v1006
      %v1407 = vpack.c.b16 %v1011, %v1007
      %v1408 = vpack.c.b16 %v1016, %v1012
      %v1409 = vpack.c.b16 %v1017, %v1013
      %v1410 = vpack.c.b16 %v1018, %v1014
      %v1411 = vpack.c.b16 %v1019, %v1015
      %v1412 = vpack.c.b16 %v1024, %v1020
      %v1413 = vpack.c.b16 %v1025, %v1021
      %v1414 = vpack.c.b16 %v1026, %v1022
      %v1415 = vpack.c.b16 %v1027, %v1023
      %v1416 = vpack.c.b16 %v1032, %v1028
      %v1417 = vpack.c.b16 %v1033, %v1029
      %v1418 = vpack.c.b16 %v1034, %v1030
      %v1419 = vpack.c.b16 %v1035, %v1031
      %v1420 = vpack.c.b16 %v1040, %v1036
      %v1421 = vpack.c.b16 %v1041, %v1037
      %v1422 = vpack.c.b16 %v1042, %v1038
      %v1423 = vpack.c.b16 %v1043, %v1039
      %v1424 = vpack.c.b16 %v1048, %v1044
      %v1425 = vpack.c.b16 %v1049, %v1045
      %v1426 = vpack.c.b16 %v1050, %v1046
      %v1427 = vpack.c.b16 %v1051, %v1047
      %v1428 = vpack.c.b16 %v1056, %v1052
      %v1429 = vpack.c.b16 %v1057, %v1053
      %v1430 = vpack.c.b16 %v1058, %v1054
      %v1431 = vpack.c.b16 %v1059, %v1055
      %v1432 = vpack.c.b16 %v1064, %v1060
      %v1433 = vpack.c.b16 %v1065, %v1061
      %v1434 = vpack.c.b16 %v1066, %v1062
      %v1435 = vpack.c.b16 %v1067, %v1063
      %v1436 = vpack.c.b16 %v1072, %v1068
      %v1437 = vpack.c.b16 %v1073, %v1069
      %v1438 = vpack.c.b16 %v1074, %v1070
      %v1439 = vpack.c.b16 %v1075, %v1071
      %v1440 = vpack.c.b16 %v1080, %v1076
      %v1441 = vpack.c.b16 %v1081, %v1077
      %v1442 = vpack.c.b16 %v1082, %v1078
      %v1443 = vpack.c.b16 %v1083, %v1079
      %v1444 = vpack.c.b16 %v1088, %v1084
      %v1445 = vpack.c.b16 %v1089, %v1085
      %v1446 = vpack.c.b16 %v1090, %v1086
      %v1447 = vpack.c.b16 %v1091, %v1087
      %v1448 = vpack.c.b16 %v1096, %v1092
      %v1449 = vpack.c.b16 %v1097, %v1093
      %v1450 = vpack.c.b16 %v1098, %v1094
      %v1451 = vpack.c.b16 %v1099, %v1095
      %v1452 = vpack.c.b16 %v1104, %v1100
      %v1453 = vpack.c.b16 %v1105, %v1101
      %v1454 = vpack.c.b16 %v1106, %v1102
      %v1455 = vpack.c.b16 %v1107, %v1103
      %v1456 = vpack.c.b16 %v1112, %v1108
      %v1457 = vpack.c.b16 %v1113, %v1109
      %v1458 = vpack.c.b16 %v1114, %v1110
      %v1459 = vpack.c.b16 %v1115, %v1111
      %v1460 = vpack.c.b16 %v1120, %v1116
      %v1461 = vpack.c.b16 %v1121, %v1117
      %v1462 = vpack.c.b16 %v1122, %v1118
      %v1463 = vpack.c.b16 %v1123, %v1119
      %v1464 = vpack.c.b16 %v1128, %v1124
      %v1465 = vpack.c.b16 %v1129, %v1125
      %v1466 = vpack.c.b16 %v1130, %v1126
      %v1467 = vpack.c.b16 %v1131, %v1127
      %v1468 = vpack.c.b16 %v1136, %v1132
      %v1469 = vpack.c.b16 %v1137, %v1133
      %v1470 = vpack.c.b16 %v1138, %v1134
      %v1471 = vpack.c.b16 %v1139, %v1135
      %v1472 = vpack.c.b16 %v1144, %v1140
      %v1473 = vpack.c.b16 %v1145, %v1141
      %v1474 = vpack.c.b16 %v1146, %v1142
      %v1475 = vpack.c.b16 %v1147, %v1143
      %v1476 = vpack.c.b16 %v1152, %v1148
      %v1477 = vpack.c.b16 %v1153, %v1149
      %v1478 = vpack.c.b16 %v1154, %v1150
      %v1479 = vpack.c.b16 %v1155, %v1151
      %v1480 = vpack.c.b16 %v1160, %v1156
      %v1481 = vpack.c.b16 %v1161, %v1157
      %v1482 = vpack.c.b16 %v1162, %v1158
      %v1483 = vpack.c.b16 %v1163, %v1159
      %v1484 = vpack.c.b16 %v1168, %v1164
      %v1485 = vpack.c.b16 %v1169, %v1165
      %v1486 = vpack.c.b16 %v1170, %v1166
      %v1487 = vpack.c.b16 %v1171, %v1167
      %v1488 = vpack.c.b16 %v1176, %v1172
      %v1489 = vpack.c.b16 %v1177, %v1173
      %v1490 = vpack.c.b16 %v1178, %v1174
      %v1491 = vpack.c.b16 %v1179, %v1175
      %v1492 = vpack.c.b16 %v1184, %v1180
      %v1493 = vpack.c.b16 %v1185, %v1181
      %v1494 = vpack.c.b16 %v1186, %v1182
      %v1495 = vpack.c.b16 %v1187, %v1183
      %v1496 = vpack.c.b16 %v1192, %v1188
      %v1497 = vpack.c.b16 %v1193, %v1189
      %v1498 = vpack.c.b16 %v1194, %v1190
      %v1499 = vpack.c.b16 %v1195, %v1191
      %v1500 = vpack.c.b16 %v1200, %v1196
      %v1501 = vpack.c.b16 %v1201, %v1197
      %v1502 = vpack.c.b16 %v1202, %v1198
      %v1503 = vpack.c.b16 %v1203, %v1199
      %v1504 = vpack.c.b16 %v1208, %v1204
      %v1505 = vpack.c.b16 %v1209, %v1205
      %v1506 = vpack.c.b16 %v1210, %v1206
      %v1507 = vpack.c.b16 %v1211, %v1207
      %v1508 = vpack.c.b16 %v1216, %v1212
      %v1509 = vpack.c.b16 %v1217, %v1213
      %v1510 = vpack.c.b16 %v1218, %v1214
      %v1511 = vpack.c.b16 %v1219, %v1215
      %v1512 = vpack.c.b16 %v1224, %v1220
      %v1513 = vpack.c.b16 %v1225, %v1221
      %v1514 = vpack.c.b16 %v1226, %v1222
      %v1515 = vpack.c.b16 %v1227, %v1223
      %v1516 = vpack.c.b16 %v1232, %v1228
      %v1517 = vpack.c.b16 %v1233, %v1229
      %v1518 = vpack.c.b16 %v1234, %v1230
      %v1519 = vpack.c.b16 %v1235, %v1231
      %v1520 = vpack.c.b16 %v1240, %v1236
      %v1521 = vpack.c.b16 %v1241, %v1237
      %v1522 = vpack.c.b16 %v1242, %v1238
      %v1523 = vpack.c.b16 %v1243, %v1239
      %v1524 = vpack.c.b16 %v1248, %v1244
      %v1525 = vpack.c.b16 %v1249, %v1245
      %v1526 = vpack.c.b16 %v1250, %v1246
      %v1527 = vpack.c.b16 %v1251, %v1247
      %v1528 = vpack.c.b16 %v1256, %v1252
      %v1529 = vpack.c.b16 %v1257, %v1253
      %v1530 = vpack.c.b16 %v1258, %v1254
      %v1531 = vpack.c.b16 %v1259, %v1255
      %v1532 = vpack.c.b16 %v1264, %v1260
      %v1533 = vpack.c.b16 %v1265, %v1261
      %v1534 = vpack.c.b16 %v1266, %v1262
      %v1535 = vpack.c.b16 %v1267, %v1263
      %v1536 = vpack.c.b16 %v1272, %v1268
      %v1537 = vpack.c.b16 %v1273, %v1269
      %v1538 = vpack.c.b16 %v1274, %v1270
      %v1539 = vpack.c.b16 %v1275, %v1271
      %v1540 = vpack.c.b16 %v1280, %v1276
      %v1541 = vpack.c.b16 %v1281, %v1277
      %v1542 = vpack.c.b16 %v1282, %v1278
      %v1543 = vpack.c.b16 %v1283, %v1279
      %v1544 = vpack.c.b16 %v1288, %v1284
      %v1545 = vpack.c.b16 %v1289, %v1285
      %v1546 = vpack.c.b16 %v1290, %v1286
      %v1547 = vpack.c.b16 %v1291, %v1287
      %1804 = vmatpush.bf16.msra.mxu0 %v1320
      %1805 = vmatpush.bf16.msra.mxu0 %v1316
      %1806 = vmatpush.bf16.msra.mxu0 %v1312
      %1807 = vmatpush.bf16.msra.mxu0 %v1308
      %1808 = vmatpush.bf16.msra.mxu0 %v1304
      %1809 = vmatpush.bf16.msra.mxu0 %v1300
      %1810 = vmatpush.bf16.msra.mxu0 %v1296
      %1811 = vmatpush.bf16.msra.mxu0 %v1292
      %1812 = vmatmul.bf16.gmra.mxu0 %v508
      %v1813 = vpop.f32.mrf.mxu0
      %v1814 = vadd.f32 0.0, %v1813
      %v1815 = vpop.f32.mrf.mxu0
      %1816 = vdwg.mxu0
      %1817 = vmatpush.bf16.msra.mxu0 %v1352
      %1818 = vmatpush.bf16.msra.mxu0 %v1348
      %1819 = vmatpush.bf16.msra.mxu0 %v1344
      %1820 = vmatpush.bf16.msra.mxu0 %v1340
      %1821 = vmatpush.bf16.msra.mxu0 %v1336
      %1822 = vmatpush.bf16.msra.mxu0 %v1332
      %1823 = vmatpush.bf16.msra.mxu0 %v1328
      %1824 = vmatpush.bf16.msra.mxu0 %v1324
      %1825 = vmatmul.bf16.gmra.mxu0 %v509
      %v1826 = vpop.f32.mrf.mxu0
      %v1827 = vadd.f32 %v1814, %v1826
      %v1828 = vpop.f32.mrf.mxu0
      %1829 = vdwg.mxu0
      %1830 = vmatpush.bf16.msra.mxu0 %v1384
      %1831 = vmatpush.bf16.msra.mxu0 %v1380
      %1832 = vmatpush.bf16.msra.mxu0 %v1376
      %1833 = vmatpush.bf16.msra.mxu0 %v1372
      %1834 = vmatpush.bf16.msra.mxu0 %v1368
      %1835 = vmatpush.bf16.msra.mxu0 %v1364
      %1836 = vmatpush.bf16.msra.mxu0 %v1360
      %1837 = vmatpush.bf16.msra.mxu0 %v1356
      %1838 = vmatmul.bf16.gmra.mxu0 %v510
      %v1839 = vpop.f32.mrf.mxu0
      %v1840 = vadd.f32 %v1827, %v1839
      %v1841 = vpop.f32.mrf.mxu0
      %1842 = vdwg.mxu0
      %1843 = vmatpush.bf16.msra.mxu0 %v1416
      %1844 = vmatpush.bf16.msra.mxu0 %v1412
      %1845 = vmatpush.bf16.msra.mxu0 %v1408
      %1846 = vmatpush.bf16.msra.mxu0 %v1404
      %1847 = vmatpush.bf16.msra.mxu0 %v1400
      %1848 = vmatpush.bf16.msra.mxu0 %v1396
      %1849 = vmatpush.bf16.msra.mxu0 %v1392
      %1850 = vmatpush.bf16.msra.mxu0 %v1388
      %1851 = vmatmul.bf16.gmra.mxu0 %v511
      %v1852 = vpop.f32.mrf.mxu0
      %v1853 = vadd.f32 %v1840, %v1852
      %v1854 = vpop.f32.mrf.mxu0
      %1855 = vdwg.mxu0
      %1856 = vmatpush.bf16.msra.mxu0 %v1448
      %1857 = vmatpush.bf16.msra.mxu0 %v1444
      %1858 = vmatpush.bf16.msra.mxu0 %v1440
      %1859 = vmatpush.bf16.msra.mxu0 %v1436
      %1860 = vmatpush.bf16.msra.mxu0 %v1432
      %1861 = vmatpush.bf16.msra.mxu0 %v1428
      %1862 = vmatpush.bf16.msra.mxu0 %v1424
      %1863 = vmatpush.bf16.msra.mxu0 %v1420
      %1864 = vmatmul.bf16.gmra.mxu0 %v512
      %v1865 = vpop.f32.mrf.mxu0
      %v1866 = vadd.f32 %v1853, %v1865
      %v1867 = vpop.f32.mrf.mxu0
      %1868 = vdwg.mxu0
      %1869 = vmatpush.bf16.msra.mxu0 %v1480
      %1870 = vmatpush.bf16.msra.mxu0 %v1476
      %1871 = vmatpush.bf16.msra.mxu0 %v1472
      %1872 = vmatpush.bf16.msra.mxu0 %v1468
      %1873 = vmatpush.bf16.msra.mxu0 %v1464
      %1874 = vmatpush.bf16.msra.mxu0 %v1460
      %1875 = vmatpush.bf16.msra.mxu0 %v1456
      %1876 = vmatpush.bf16.msra.mxu0 %v1452
      %1877 = vmatmul.bf16.gmra.mxu0 %v513
      %v1878 = vpop.f32.mrf.mxu0
      %v1879 = vadd.f32 %v1866, %v1878
      %v1880 = vpop.f32.mrf.mxu0
      %1881 = vdwg.mxu0
      %1882 = vmatpush.bf16.msra.mxu0 %v1512
      %1883 = vmatpush.bf16.msra.mxu0 %v1508
      %1884 = vmatpush.bf16.msra.mxu0 %v1504
      %1885 = vmatpush.bf16.msra.mxu0 %v1500
      %1886 = vmatpush.bf16.msra.mxu0 %v1496
      %1887 = vmatpush.bf16.msra.mxu0 %v1492
      %1888 = vmatpush.bf16.msra.mxu0 %v1488
      %1889 = vmatpush.bf16.msra.mxu0 %v1484
      %1890 = vmatmul.bf16.gmra.mxu0 %v514
      %v1891 = vpop.f32.mrf.mxu0
      %v1892 = vadd.f32 %v1879, %v1891
      %v1893 = vpop.f32.mrf.mxu0
      %1894 = vdwg.mxu0
      %1895 = vmatpush.bf16.msra.mxu0 %v1544
      %1896 = vmatpush.bf16.msra.mxu0 %v1540
      %1897 = vmatpush.bf16.msra.mxu0 %v1536
      %1898 = vmatpush.bf16.msra.mxu0 %v1532
      %1899 = vmatpush.bf16.msra.mxu0 %v1528
      %1900 = vmatpush.bf16.msra.mxu0 %v1524
      %1901 = vmatpush.bf16.msra.mxu0 %v1520
      %1902 = vmatpush.bf16.msra.mxu0 %v1516
      %1903 = vmatmul.bf16.gmra.mxu0 %v515
      %v1904 = vpop.f32.mrf.mxu0
      %v1905 = vadd.f32 %v1892, %v1904
      %v1906 = vpop.f32.mrf.mxu0
      %1907 = vdwg.mxu0
      %1908 = vmatpush.bf16.msra.mxu0 %v1321
      %1909 = vmatpush.bf16.msra.mxu0 %v1317
      %1910 = vmatpush.bf16.msra.mxu0 %v1313
      %1911 = vmatpush.bf16.msra.mxu0 %v1309
      %1912 = vmatpush.bf16.msra.mxu0 %v1305
      %1913 = vmatpush.bf16.msra.mxu0 %v1301
      %1914 = vmatpush.bf16.msra.mxu0 %v1297
      %1915 = vmatpush.bf16.msra.mxu0 %v1293
      %1916 = vmatmul.bf16.gmra.mxu0 %v508
      %v1917 = vpop.f32.mrf.mxu0
      %v1918 = vadd.f32 0.0, %v1917
      %v1919 = vpop.f32.mrf.mxu0
      %1920 = vdwg.mxu0
      %1921 = vmatpush.bf16.msra.mxu0 %v1353
      %1922 = vmatpush.bf16.msra.mxu0 %v1349
      %1923 = vmatpush.bf16.msra.mxu0 %v1345
      %1924 = vmatpush.bf16.msra.mxu0 %v1341
      %1925 = vmatpush.bf16.msra.mxu0 %v1337
      %1926 = vmatpush.bf16.msra.mxu0 %v1333
      %1927 = vmatpush.bf16.msra.mxu0 %v1329
      %1928 = vmatpush.bf16.msra.mxu0 %v1325
      %1929 = vmatmul.bf16.gmra.mxu0 %v509
      %v1930 = vpop.f32.mrf.mxu0
      %v1931 = vadd.f32 %v1918, %v1930
      %v1932 = vpop.f32.mrf.mxu0
      %1933 = vdwg.mxu0
      %1934 = vmatpush.bf16.msra.mxu0 %v1385
      %1935 = vmatpush.bf16.msra.mxu0 %v1381
      %1936 = vmatpush.bf16.msra.mxu0 %v1377
      %1937 = vmatpush.bf16.msra.mxu0 %v1373
      %1938 = vmatpush.bf16.msra.mxu0 %v1369
      %1939 = vmatpush.bf16.msra.mxu0 %v1365
      %1940 = vmatpush.bf16.msra.mxu0 %v1361
      %1941 = vmatpush.bf16.msra.mxu0 %v1357
      %1942 = vmatmul.bf16.gmra.mxu0 %v510
      %v1943 = vpop.f32.mrf.mxu0
      %v1944 = vadd.f32 %v1931, %v1943
      %v1945 = vpop.f32.mrf.mxu0
      %1946 = vdwg.mxu0
      %1947 = vmatpush.bf16.msra.mxu0 %v1417
      %1948 = vmatpush.bf16.msra.mxu0 %v1413
      %1949 = vmatpush.bf16.msra.mxu0 %v1409
      %1950 = vmatpush.bf16.msra.mxu0 %v1405
      %1951 = vmatpush.bf16.msra.mxu0 %v1401
      %1952 = vmatpush.bf16.msra.mxu0 %v1397
      %1953 = vmatpush.bf16.msra.mxu0 %v1393
      %1954 = vmatpush.bf16.msra.mxu0 %v1389
      %1955 = vmatmul.bf16.gmra.mxu0 %v511
      %v1956 = vpop.f32.mrf.mxu0
      %v1957 = vadd.f32 %v1944, %v1956
      %v1958 = vpop.f32.mrf.mxu0
      %1959 = vdwg.mxu0
      %1960 = vmatpush.bf16.msra.mxu0 %v1449
      %1961 = vmatpush.bf16.msra.mxu0 %v1445
      %1962 = vmatpush.bf16.msra.mxu0 %v1441
      %1963 = vmatpush.bf16.msra.mxu0 %v1437
      %1964 = vmatpush.bf16.msra.mxu0 %v1433
      %1965 = vmatpush.bf16.msra.mxu0 %v1429
      %1966 = vmatpush.bf16.msra.mxu0 %v1425
      %1967 = vmatpush.bf16.msra.mxu0 %v1421
      %1968 = vmatmul.bf16.gmra.mxu0 %v512
      %v1969 = vpop.f32.mrf.mxu0
      %v1970 = vadd.f32 %v1957, %v1969
      %v1971 = vpop.f32.mrf.mxu0
      %1972 = vdwg.mxu0
      %1973 = vmatpush.bf16.msra.mxu0 %v1481
      %1974 = vmatpush.bf16.msra.mxu0 %v1477
      %1975 = vmatpush.bf16.msra.mxu0 %v1473
      %1976 = vmatpush.bf16.msra.mxu0 %v1469
      %1977 = vmatpush.bf16.msra.mxu0 %v1465
      %1978 = vmatpush.bf16.msra.mxu0 %v1461
      %1979 = vmatpush.bf16.msra.mxu0 %v1457
      %1980 = vmatpush.bf16.msra.mxu0 %v1453
      %1981 = vmatmul.bf16.gmra.mxu0 %v513
      %v1982 = vpop.f32.mrf.mxu0
      %v1983 = vadd.f32 %v1970, %v1982
      %v1984 = vpop.f32.mrf.mxu0
      %1985 = vdwg.mxu0
      %1986 = vmatpush.bf16.msra.mxu0 %v1513
      %1987 = vmatpush.bf16.msra.mxu0 %v1509
      %1988 = vmatpush.bf16.msra.mxu0 %v1505
      %1989 = vmatpush.bf16.msra.mxu0 %v1501
      %1990 = vmatpush.bf16.msra.mxu0 %v1497
      %1991 = vmatpush.bf16.msra.mxu0 %v1493
      %1992 = vmatpush.bf16.msra.mxu0 %v1489
      %1993 = vmatpush.bf16.msra.mxu0 %v1485
      %1994 = vmatmul.bf16.gmra.mxu0 %v514
      %v1995 = vpop.f32.mrf.mxu0
      %v1996 = vadd.f32 %v1983, %v1995
      %v1997 = vpop.f32.mrf.mxu0
      %1998 = vdwg.mxu0
      %1999 = vmatpush.bf16.msra.mxu0 %v1545
      %2000 = vmatpush.bf16.msra.mxu0 %v1541
      %2001 = vmatpush.bf16.msra.mxu0 %v1537
      %2002 = vmatpush.bf16.msra.mxu0 %v1533
      %2003 = vmatpush.bf16.msra.mxu0 %v1529
      %2004 = vmatpush.bf16.msra.mxu0 %v1525
      %2005 = vmatpush.bf16.msra.mxu0 %v1521
      %2006 = vmatpush.bf16.msra.mxu0 %v1517
      %2007 = vmatmul.bf16.gmra.mxu0 %v515
      %v2008 = vpop.f32.mrf.mxu0
      %v2009 = vadd.f32 %v1996, %v2008
      %v2010 = vpop.f32.mrf.mxu0
      %2011 = vdwg.mxu0
      %2012 = vmatpush.bf16.msra.mxu0 %v1322
      %2013 = vmatpush.bf16.msra.mxu0 %v1318
      %2014 = vmatpush.bf16.msra.mxu0 %v1314
      %2015 = vmatpush.bf16.msra.mxu0 %v1310
      %2016 = vmatpush.bf16.msra.mxu0 %v1306
      %2017 = vmatpush.bf16.msra.mxu0 %v1302
      %2018 = vmatpush.bf16.msra.mxu0 %v1298
      %2019 = vmatpush.bf16.msra.mxu0 %v1294
      %2020 = vmatmul.bf16.gmra.mxu0 %v508
      %v2021 = vpop.f32.mrf.mxu0
      %v2022 = vadd.f32 0.0, %v2021
      %v2023 = vpop.f32.mrf.mxu0
      %2024 = vdwg.mxu0
      %2025 = vmatpush.bf16.msra.mxu0 %v1354
      %2026 = vmatpush.bf16.msra.mxu0 %v1350
      %2027 = vmatpush.bf16.msra.mxu0 %v1346
      %2028 = vmatpush.bf16.msra.mxu0 %v1342
      %2029 = vmatpush.bf16.msra.mxu0 %v1338
      %2030 = vmatpush.bf16.msra.mxu0 %v1334
      %2031 = vmatpush.bf16.msra.mxu0 %v1330
      %2032 = vmatpush.bf16.msra.mxu0 %v1326
      %2033 = vmatmul.bf16.gmra.mxu0 %v509
      %v2034 = vpop.f32.mrf.mxu0
      %v2035 = vadd.f32 %v2022, %v2034
      %v2036 = vpop.f32.mrf.mxu0
      %2037 = vdwg.mxu0
      %2038 = vmatpush.bf16.msra.mxu0 %v1386
      %2039 = vmatpush.bf16.msra.mxu0 %v1382
      %2040 = vmatpush.bf16.msra.mxu0 %v1378
      %2041 = vmatpush.bf16.msra.mxu0 %v1374
      %2042 = vmatpush.bf16.msra.mxu0 %v1370
      %2043 = vmatpush.bf16.msra.mxu0 %v1366
      %2044 = vmatpush.bf16.msra.mxu0 %v1362
      %2045 = vmatpush.bf16.msra.mxu0 %v1358
      %2046 = vmatmul.bf16.gmra.mxu0 %v510
      %v2047 = vpop.f32.mrf.mxu0
      %v2048 = vadd.f32 %v2035, %v2047
      %v2049 = vpop.f32.mrf.mxu0
      %2050 = vdwg.mxu0
      %2051 = vmatpush.bf16.msra.mxu0 %v1418
      %2052 = vmatpush.bf16.msra.mxu0 %v1414
      %2053 = vmatpush.bf16.msra.mxu0 %v1410
      %2054 = vmatpush.bf16.msra.mxu0 %v1406
      %2055 = vmatpush.bf16.msra.mxu0 %v1402
      %2056 = vmatpush.bf16.msra.mxu0 %v1398
      %2057 = vmatpush.bf16.msra.mxu0 %v1394
      %2058 = vmatpush.bf16.msra.mxu0 %v1390
      %2059 = vmatmul.bf16.gmra.mxu0 %v511
      %v2060 = vpop.f32.mrf.mxu0
      %v2061 = vadd.f32 %v2048, %v2060
      %v2062 = vpop.f32.mrf.mxu0
      %2063 = vdwg.mxu0
      %2064 = vmatpush.bf16.msra.mxu0 %v1450
      %2065 = vmatpush.bf16.msra.mxu0 %v1446
      %2066 = vmatpush.bf16.msra.mxu0 %v1442
      %2067 = vmatpush.bf16.msra.mxu0 %v1438
      %2068 = vmatpush.bf16.msra.mxu0 %v1434
      %2069 = vmatpush.bf16.msra.mxu0 %v1430
      %2070 = vmatpush.bf16.msra.mxu0 %v1426
      %2071 = vmatpush.bf16.msra.mxu0 %v1422
      %2072 = vmatmul.bf16.gmra.mxu0 %v512
      %v2073 = vpop.f32.mrf.mxu0
      %v2074 = vadd.f32 %v2061, %v2073
      %v2075 = vpop.f32.mrf.mxu0
      %2076 = vdwg.mxu0
      %2077 = vmatpush.bf16.msra.mxu0 %v1482
      %2078 = vmatpush.bf16.msra.mxu0 %v1478
      %2079 = vmatpush.bf16.msra.mxu0 %v1474
      %2080 = vmatpush.bf16.msra.mxu0 %v1470
      %2081 = vmatpush.bf16.msra.mxu0 %v1466
      %2082 = vmatpush.bf16.msra.mxu0 %v1462
      %2083 = vmatpush.bf16.msra.mxu0 %v1458
      %2084 = vmatpush.bf16.msra.mxu0 %v1454
      %2085 = vmatmul.bf16.gmra.mxu0 %v513
      %v2086 = vpop.f32.mrf.mxu0
      %v2087 = vadd.f32 %v2074, %v2086
      %v2088 = vpop.f32.mrf.mxu0
      %2089 = vdwg.mxu0
      %2090 = vmatpush.bf16.msra.mxu0 %v1514
      %2091 = vmatpush.bf16.msra.mxu0 %v1510
      %2092 = vmatpush.bf16.msra.mxu0 %v1506
      %2093 = vmatpush.bf16.msra.mxu0 %v1502
      %2094 = vmatpush.bf16.msra.mxu0 %v1498
      %2095 = vmatpush.bf16.msra.mxu0 %v1494
      %2096 = vmatpush.bf16.msra.mxu0 %v1490
      %2097 = vmatpush.bf16.msra.mxu0 %v1486
      %2098 = vmatmul.bf16.gmra.mxu0 %v514
      %v2099 = vpop.f32.mrf.mxu0
      %v2100 = vadd.f32 %v2087, %v2099
      %v2101 = vpop.f32.mrf.mxu0
      %2102 = vdwg.mxu0
      %2103 = vmatpush.bf16.msra.mxu0 %v1546
      %2104 = vmatpush.bf16.msra.mxu0 %v1542
      %2105 = vmatpush.bf16.msra.mxu0 %v1538
      %2106 = vmatpush.bf16.msra.mxu0 %v1534
      %2107 = vmatpush.bf16.msra.mxu0 %v1530
      %2108 = vmatpush.bf16.msra.mxu0 %v1526
      %2109 = vmatpush.bf16.msra.mxu0 %v1522
      %2110 = vmatpush.bf16.msra.mxu0 %v1518
      %2111 = vmatmul.bf16.gmra.mxu0 %v515
      %v2112 = vpop.f32.mrf.mxu0
      %v2113 = vadd.f32 %v2100, %v2112
      %v2114 = vpop.f32.mrf.mxu0
      %2115 = vdwg.mxu0
      %2116 = vmatpush.bf16.msra.mxu0 %v1323
      %2117 = vmatpush.bf16.msra.mxu0 %v1319
      %2118 = vmatpush.bf16.msra.mxu0 %v1315
      %2119 = vmatpush.bf16.msra.mxu0 %v1311
      %2120 = vmatpush.bf16.msra.mxu0 %v1307
      %2121 = vmatpush.bf16.msra.mxu0 %v1303
      %2122 = vmatpush.bf16.msra.mxu0 %v1299
      %2123 = vmatpush.bf16.msra.mxu0 %v1295
      %2124 = vmatmul.bf16.gmra.mxu0 %v508
      %v2125 = vpop.f32.mrf.mxu0
      %v2126 = vadd.f32 0.0, %v2125
      %v2127 = vpop.f32.mrf.mxu0
      %2128 = vdwg.mxu0
      %2129 = vmatpush.bf16.msra.mxu0 %v1355
      %2130 = vmatpush.bf16.msra.mxu0 %v1351
      %2131 = vmatpush.bf16.msra.mxu0 %v1347
      %2132 = vmatpush.bf16.msra.mxu0 %v1343
      %2133 = vmatpush.bf16.msra.mxu0 %v1339
      %2134 = vmatpush.bf16.msra.mxu0 %v1335
      %2135 = vmatpush.bf16.msra.mxu0 %v1331
      %2136 = vmatpush.bf16.msra.mxu0 %v1327
      %2137 = vmatmul.bf16.gmra.mxu0 %v509
      %v2138 = vpop.f32.mrf.mxu0
      %v2139 = vadd.f32 %v2126, %v2138
      %v2140 = vpop.f32.mrf.mxu0
      %2141 = vdwg.mxu0
      %2142 = vmatpush.bf16.msra.mxu0 %v1387
      %2143 = vmatpush.bf16.msra.mxu0 %v1383
      %2144 = vmatpush.bf16.msra.mxu0 %v1379
      %2145 = vmatpush.bf16.msra.mxu0 %v1375
      %2146 = vmatpush.bf16.msra.mxu0 %v1371
      %2147 = vmatpush.bf16.msra.mxu0 %v1367
      %2148 = vmatpush.bf16.msra.mxu0 %v1363
      %2149 = vmatpush.bf16.msra.mxu0 %v1359
      %2150 = vmatmul.bf16.gmra.mxu0 %v510
      %v2151 = vpop.f32.mrf.mxu0
      %v2152 = vadd.f32 %v2139, %v2151
      %v2153 = vpop.f32.mrf.mxu0
      %2154 = vdwg.mxu0
      %2155 = vmatpush.bf16.msra.mxu0 %v1419
      %2156 = vmatpush.bf16.msra.mxu0 %v1415
      %2157 = vmatpush.bf16.msra.mxu0 %v1411
      %2158 = vmatpush.bf16.msra.mxu0 %v1407
      %2159 = vmatpush.bf16.msra.mxu0 %v1403
      %2160 = vmatpush.bf16.msra.mxu0 %v1399
      %2161 = vmatpush.bf16.msra.mxu0 %v1395
      %2162 = vmatpush.bf16.msra.mxu0 %v1391
      %2163 = vmatmul.bf16.gmra.mxu0 %v511
      %v2164 = vpop.f32.mrf.mxu0
      %v2165 = vadd.f32 %v2152, %v2164
      %v2166 = vpop.f32.mrf.mxu0
      %2167 = vdwg.mxu0
      %2168 = vmatpush.bf16.msra.mxu0 %v1451
      %2169 = vmatpush.bf16.msra.mxu0 %v1447
      %2170 = vmatpush.bf16.msra.mxu0 %v1443
      %2171 = vmatpush.bf16.msra.mxu0 %v1439
      %2172 = vmatpush.bf16.msra.mxu0 %v1435
      %2173 = vmatpush.bf16.msra.mxu0 %v1431
      %2174 = vmatpush.bf16.msra.mxu0 %v1427
      %2175 = vmatpush.bf16.msra.mxu0 %v1423
      %2176 = vmatmul.bf16.gmra.mxu0 %v512
      %v2177 = vpop.f32.mrf.mxu0
      %v2178 = vadd.f32 %v2165, %v2177
      %v2179 = vpop.f32.mrf.mxu0
      %2180 = vdwg.mxu0
      %2181 = vmatpush.bf16.msra.mxu0 %v1483
      %2182 = vmatpush.bf16.msra.mxu0 %v1479
      %2183 = vmatpush.bf16.msra.mxu0 %v1475
      %2184 = vmatpush.bf16.msra.mxu0 %v1471
      %2185 = vmatpush.bf16.msra.mxu0 %v1467
      %2186 = vmatpush.bf16.msra.mxu0 %v1463
      %2187 = vmatpush.bf16.msra.mxu0 %v1459
      %2188 = vmatpush.bf16.msra.mxu0 %v1455
      %2189 = vmatmul.bf16.gmra.mxu0 %v513
      %v2190 = vpop.f32.mrf.mxu0
      %v2191 = vadd.f32 %v2178, %v2190
      %v2192 = vpop.f32.mrf.mxu0
      %2193 = vdwg.mxu0
      %2194 = vmatpush.bf16.msra.mxu0 %v1515
      %2195 = vmatpush.bf16.msra.mxu0 %v1511
      %2196 = vmatpush.bf16.msra.mxu0 %v1507
      %2197 = vmatpush.bf16.msra.mxu0 %v1503
      %2198 = vmatpush.bf16.msra.mxu0 %v1499
      %2199 = vmatpush.bf16.msra.mxu0 %v1495
      %2200 = vmatpush.bf16.msra.mxu0 %v1491
      %2201 = vmatpush.bf16.msra.mxu0 %v1487
      %2202 = vmatmul.bf16.gmra.mxu0 %v514
      %v2203 = vpop.f32.mrf.mxu0
      %v2204 = vadd.f32 %v2191, %v2203
      %v2205 = vpop.f32.mrf.mxu0
      %2206 = vdwg.mxu0
      %2207 = vmatpush.bf16.msra.mxu0 %v1547
      %2208 = vmatpush.bf16.msra.mxu0 %v1543
      %2209 = vmatpush.bf16.msra.mxu0 %v1539
      %2210 = vmatpush.bf16.msra.mxu0 %v1535
      %2211 = vmatpush.bf16.msra.mxu0 %v1531
      %2212 = vmatpush.bf16.msra.mxu0 %v1527
      %2213 = vmatpush.bf16.msra.mxu0 %v1523
      %2214 = vmatpush.bf16.msra.mxu0 %v1519
      %2215 = vmatmul.bf16.gmra.mxu0 %v515
      %v2216 = vpop.f32.mrf.mxu0
      %v2217 = vadd.f32 %v2204, %v2216
      %v2218 = vpop.f32.mrf.mxu0
      %2219 = vdwg.mxu0
      %v2220 = vadd.f32 %v232, %v1905
      %v2221 = vadd.f32 %v233, %v2009
      %v2222 = vadd.f32 %v234, %v2113
      %v2223 = vadd.f32 %v235, %v2217
      %2224 = vst [vmem:[#allocation2] sm:$0xff] %v2220
      %2225 = vst [vmem:[#allocation2 + $0x8] sm:$0xff] %v2221
      %2226 = vst [vmem:[#allocation2 + $0x10] sm:$0xff] %v2222
      %2227 = vst [vmem:[#allocation2 + $0x18] sm:$0xff] %v2223
      %p2228 = scmp.eq.s32.totalorder %s19, 3
      // Predicated region
      $region37: #{dcgan_discriminator.8} parent=31 // pred_check
        %p2229 = pneg %p2228
      $region38: #{dcgan_discriminator.8} parent=31 // pred_check_branch
        %2231 = sbr.rel (%p2229) target = $region40
      $region39: #{dcgan_discriminator.8} parent=31 // pred_region
        %v2232 = vld [vmem:[#allocation2] sm:$0xff]
        %v2233 = vld [vmem:[#allocation2 + $0x8] sm:$0xff]
        %v2234 = vld [vmem:[#allocation2 + $0x10] sm:$0xff]
        %v2235 = vld [vmem:[#allocation2 + $0x18] sm:$0xff]
        %v2236 = vrot.slane %v2232, 4
        %v2237 = vadd.f32 %v2232, %v2236
        %v2238 = vrot.slane %v2237, 2
        %v2239 = vadd.f32 %v2237, %v2238
        %v2240 = vrot.slane %v2239, 1
        %v2241 = vadd.f32 %v2239, %v2240
        %v2242 = vrot.slane %v2233, 4
        %v2243 = vadd.f32 %v2233, %v2242
        %v2244 = vrot.slane %v2243, 2
        %v2245 = vadd.f32 %v2243, %v2244
        %v2246 = vrot.slane %v2245, 1
        %v2247 = vadd.f32 %v2245, %v2246
        %v2248 = vrot.slane %v2234, 4
        %v2249 = vadd.f32 %v2234, %v2248
        %v2250 = vrot.slane %v2249, 2
        %v2251 = vadd.f32 %v2249, %v2250
        %v2252 = vrot.slane %v2251, 1
        %v2253 = vadd.f32 %v2251, %v2252
        %v2254 = vrot.slane %v2235, 4
        %v2255 = vadd.f32 %v2235, %v2254
        %v2256 = vrot.slane %v2255, 2
        %v2257 = vadd.f32 %v2255, %v2256
        %v2258 = vrot.slane %v2257, 1
        %v2259 = vadd.f32 %v2257, %v2258
        %v2260 = vmul.f32 %v2241, 0.125
        %v2261 = vmul.f32 %v2247, 0.125
        %v2262 = vmul.f32 %v2253, 0.125
        %v2263 = vmul.f32 %v2259, 0.125
        %v2264 = vmul.f32 %v2232, %v2232
        %v2265 = vmul.f32 %v2233, %v2233
        %v2266 = vmul.f32 %v2234, %v2234
        %v2267 = vmul.f32 %v2235, %v2235
        %v2268 = vrot.slane %v2264, 4
        %v2269 = vadd.f32 %v2264, %v2268
        %v2270 = vrot.slane %v2269, 2
        %v2271 = vadd.f32 %v2269, %v2270
        %v2272 = vrot.slane %v2271, 1
        %v2273 = vadd.f32 %v2271, %v2272
        %v2274 = vrot.slane %v2265, 4
        %v2275 = vadd.f32 %v2265, %v2274
        %v2276 = vrot.slane %v2275, 2
        %v2277 = vadd.f32 %v2275, %v2276
        %v2278 = vrot.slane %v2277, 1
        %v2279 = vadd.f32 %v2277, %v2278
        %v2280 = vrot.slane %v2266, 4
        %v2281 = vadd.f32 %v2266, %v2280
        %v2282 = vrot.slane %v2281, 2
        %v2283 = vadd.f32 %v2281, %v2282
        %v2284 = vrot.slane %v2283, 1
        %v2285 = vadd.f32 %v2283, %v2284
        %v2286 = vrot.slane %v2267, 4
        %v2287 = vadd.f32 %v2267, %v2286
        %v2288 = vrot.slane %v2287, 2
        %v2289 = vadd.f32 %v2287, %v2288
        %v2290 = vrot.slane %v2289, 1
        %v2291 = vadd.f32 %v2289, %v2290
        %v2292 = vmul.f32 %v2273, 0.125
        %v2293 = vmul.f32 %v2279, 0.125
        %v2294 = vmul.f32 %v2285, 0.125
        %v2295 = vmul.f32 %v2291, 0.125
        %v2296 = vmul.f32 %v2260, %v2260
        %v2297 = vmul.f32 %v2261, %v2261
        %v2298 = vmul.f32 %v2262, %v2262
        %v2299 = vmul.f32 %v2263, %v2263
        %v2300 = vsub.f32 %v2292, %v2296
        %v2301 = vsub.f32 %v2293, %v2297
        %v2302 = vsub.f32 %v2294, %v2298
        %v2303 = vsub.f32 %v2295, %v2299
        %v2304 = vsub.f32 %v2232, %v2260
        %v2305 = vsub.f32 %v2233, %v2261
        %v2306 = vsub.f32 %v2234, %v2262
        %v2307 = vsub.f32 %v2235, %v2263
        %v2308 = vadd.f32 %v2300, 1e-05
        %v2309 = vadd.f32 %v2301, 1e-05
        %v2310 = vadd.f32 %v2302, 1e-05
        %v2311 = vadd.f32 %v2303, 1e-05
        %v2312 = vrsqrt.pop %v2308
        %v2313 = vmul.f32 %v2312, %v2308
        %v2314 = vmul.f32 %v2313, %v2312
        %v2315 = vmul.f32 0.5, %v2314
        %v2316 = vsub.f32 1.5, %v2315
        %v2317 = vmul.f32 %v2312, %v2316
        %vm2318 = vweird.f32 %v2308
        %vm2319 = vweird.f32 %v2312
        %vm2320 = vmor %vm2318, %vm2319
        %v2321 = vsel %vm2320, %v2312, %v2317
        %v2322 = vrsqrt.pop %v2309
        %v2323 = vmul.f32 %v2322, %v2309
        %v2324 = vmul.f32 %v2323, %v2322
        %v2325 = vmul.f32 0.5, %v2324
        %v2326 = vsub.f32 1.5, %v2325
        %v2327 = vmul.f32 %v2322, %v2326
        %vm2328 = vweird.f32 %v2309
        %vm2329 = vweird.f32 %v2322
        %vm2330 = vmor %vm2328, %vm2329
        %v2331 = vsel %vm2330, %v2322, %v2327
        %v2332 = vrsqrt.pop %v2310
        %v2333 = vmul.f32 %v2332, %v2310
        %v2334 = vmul.f32 %v2333, %v2332
        %v2335 = vmul.f32 0.5, %v2334
        %v2336 = vsub.f32 1.5, %v2335
        %v2337 = vmul.f32 %v2332, %v2336
        %vm2338 = vweird.f32 %v2310
        %vm2339 = vweird.f32 %v2332
        %vm2340 = vmor %vm2338, %vm2339
        %v2341 = vsel %vm2340, %v2332, %v2337
        %v2342 = vrsqrt.pop %v2311
        %v2343 = vmul.f32 %v2342, %v2311
        %v2344 = vmul.f32 %v2343, %v2342
        %v2345 = vmul.f32 0.5, %v2344
        %v2346 = vsub.f32 1.5, %v2345
        %v2347 = vmul.f32 %v2342, %v2346
        %vm2348 = vweird.f32 %v2311
        %vm2349 = vweird.f32 %v2342
        %vm2350 = vmor %vm2348, %vm2349
        %v2351 = vsel %vm2350, %v2342, %v2347
        %v2352 = vmul.f32 %v2304, %v2321
        %v2353 = vmul.f32 %v2305, %v2331
        %v2354 = vmul.f32 %v2306, %v2341
        %v2355 = vmul.f32 %v2307, %v2351
        %vm2356 = vcmp.gt.f32.partialorder %v2352, 0.0
        %vm2357 = vcmp.gt.f32.partialorder %v2353, 0.0
        %vm2358 = vcmp.gt.f32.partialorder %v2354, 0.0
        %vm2359 = vcmp.gt.f32.partialorder %v2355, 0.0
        %v2360 = vmul.f32 %v2352, 0.2
        %v2361 = vmul.f32 %v2353, 0.2
        %v2362 = vmul.f32 %v2354, 0.2
        %v2363 = vmul.f32 %v2355, 0.2
        %v2364 = vsel %vm2356, %v2352, %v2360
        %v2365 = vsel %vm2357, %v2353, %v2361
        %v2366 = vsel %vm2358, %v2354, %v2362
        %v2367 = vsel %vm2359, %v2355, %v2363
        %v2368 = vpack.c.bf16 %v2365, %v2364
        %v2369 = vpack.c.bf16 %v2367, %v2366
        %2370 = vst [vmem:[%s223] sm:$0xff] %v2368
        %2371 = vst [vmem:[%s223 + $0x8] sm:$0xff] %v2369
      $region40: #{dcgan_discriminator.8} parent=31 // pred_fallthru
        _
      %p2372 = scmp.lt.s32.totalorder %s18, 0
      %s2373 = scalar_select %p2372, %s18, 0
      %s2374 = smul.addr %s2373, 4
      %s2375 = smul.addr %s2374, 4
      %s2376 = scalar_lea.vmem %s3, %s2375
      // Predicated region
      $region41: #{dcgan_discriminator.8} parent=31 // pred_check
        %p2377 = pneg %p119
      $region42: #{dcgan_discriminator.8} parent=31 // pred_check_branch
        %2379 = sbr.rel (%p2377) target = $region44
      $region43: #{dcgan_discriminator.8} parent=31 // pred_region
        _
      $region44: #{dcgan_discriminator.8} parent=31 // pred_fallthru
        _
      // Predicated region
      $region45: #{dcgan_discriminator.8} parent=31 // pred_check
        %p2380 = pneg %p119
      $region46: #{dcgan_discriminator.8} parent=31 // pred_check_branch
        %2382 = sbr.rel (%p2380) target = $region48
      $region47: #{dcgan_discriminator.8} parent=31 // pred_region
        %p2383 = scmp.lt.s32.totalorder %s18, 0
        %s2384 = scalar_select %p2383, %s18, 0
        %s2385 = smul.addr %s2384, 4
        %s2386 = smul.addr %s2385, 4
        %s2387 = scalar_lea.vmem %s3, %s2386
      $region48: #{dcgan_discriminator.8} parent=31 // pred_fallthru
        _
    $region32: #{dcgan_discriminator.8} parent=5 // pred_fallthru
      _
    %p2388 = scmp.le.s32.totalorder 2, %s9
    // Predicated region
    $region49: #{dcgan_discriminator.8} parent=5 // pred_check
      %p2389 = pneg %p2388
    $region50: #{dcgan_discriminator.8} parent=5 // pred_check_branch
      %2391 = sbr.rel (%p2389) target = $region52
    $region51: #{dcgan_discriminator.8} parent=5 // pred_region
      %s2392 = ssub.s32 %s9, 2
    $region52: #{dcgan_discriminator.8} parent=5 // pred_fallthru
      _
  $region6: #{dcgan_discriminator.8} parent=0 // loop_footer
    %s13 = sadd.s32 1, %s9
  $region7: #{dcgan_discriminator.8} parent=0 // loop_footer_branch
    %8 = sbr.rel target = $region3
  $region8: #{dcgan_discriminator.8} parent=0 // loop_exit
    _

</llo_original>
